<compile_context>
chip_gen: v7x
topology: tpu7x:2x2x1
jax: 0.10.0
libtpu: 0.0.40
codegen_flags: <defaults>
</compile_context>

<pallas_src>
import jax
import jax.numpy as jnp
from jax import lax
from jax.experimental import pallas as pl
from jax.experimental.pallas import tpu as pltpu


# --------------------------------------------------------------------------- #
# Fused kernel wrapper: QKV proj + per-head attention + composed projection
# + residual + LayerNorm, tiled over tokens (grid axis "parallel").
# --------------------------------------------------------------------------- #
def self_attention(x, params, *, heads: int, tm: int = 128):
    n, d = x.shape
    (w_q, w_k, w_v, b_q, b_k, b_v, w_om, b_om, gamma, beta) = params
    assert d % heads == 0
    hd = d // heads
    assert hd % 128 == 0, "head_dim must be a multiple of 128 (lane-aligned head slices)"
    tm = min(tm, n)
    assert n % tm == 0 and tm % 8 == 0
    n_tiles = n // tm  # keep >= 2 so the parallel token axis feeds both TCs on v7x

    def kernel(xb_ref, xt_ref, wq_ref, wk_ref, wv_ref,
               bq_ref, bk_ref, bv_ref, wom_ref, bom_ref,
               gamma_ref, beta_ref, o_ref):
        # ---- fused projections (bf16 MXU matmuls, f32 accumulation) ----
        xt_f32 = xt_ref[...]                                    # (tm, d) f32, residual path
        xt = xt_f32.astype(jnp.bfloat16)
        xb = xb_ref[...]                                        # (n, d) bf16, resident

        # softmax 1/sqrt(hd) is pre-folded into wq / bq (init_params)
        q = (jnp.dot(xt, wq_ref[...], preferred_element_type=jnp.float32)
             + bq_ref[...]).astype(jnp.bfloat16)                # (tm, d)
        k = (jnp.dot(xb, wk_ref[...], preferred_element_type=jnp.float32)
             + bk_ref[...]).astype(jnp.bfloat16)                # (n, d)
        v = (jnp.dot(xb, wv_ref[...], preferred_element_type=jnp.float32)
             + bv_ref[...]).astype(jnp.bfloat16)                # (n, d)

        # ---- per-head attention; heads accumulate through the pre-composed
        #      (out_proj @ attn_mlp) weight slice, so no concat is needed ----
        acc = jnp.zeros((tm, d), jnp.float32)
        for h in range(heads):                                   # static, lane-aligned slices
            lo = h * hd
            q_h = q[:, lo:lo + hd]                               # (tm, hd)
            k_h = k[:, lo:lo + hd]                               # (n, hd)
            v_h = v[:, lo:lo + hd]                               # (n, hd)
            # NT matmul (contract head_dim of both); Mosaic lowers this on the MXU.
            s = lax.dot_general(q_h, k_h, (((1,), (1,)), ((), ())),
                                preferred_element_type=jnp.float32)   # (tm, n)
            s = s - jnp.max(s, axis=-1, keepdims=True)
            p = jnp.exp(s)
            p = p * pl.reciprocal(jnp.sum(p, axis=-1, keepdims=True), approx=True)
            ctx = jnp.dot(p.astype(jnp.bfloat16), v_h,
                          preferred_element_type=jnp.float32)         # (tm, hd)
            acc = acc + jnp.dot(ctx.astype(jnp.bfloat16), wom_ref[lo:lo + hd, :],
                                preferred_element_type=jnp.float32)   # (tm, d)

        # ---- residual + LayerNorm (f32) ----
        res = xt_f32 + acc + bom_ref[...]
        mu = jnp.mean(res, axis=-1, keepdims=True)
        var = jnp.mean((res - mu) ** 2, axis=-1, keepdims=True)
        normed = (res - mu) * lax.rsqrt(var + 1e-5)
        o_ref[...] = (normed * gamma_ref[...] + beta_ref[...]).astype(o_ref.dtype)

    x_bf16 = x.astype(jnp.bfloat16)          # matmul copy; f32 x feeds only Q/residual

    resident = lambda i: (0, 0)
    out = pl.pallas_call(
        kernel,
        out_shape=jax.ShapeDtypeStruct((n, d), jnp.float32),
        grid_spec=pltpu.PrefetchScalarGridSpec(
            num_scalar_prefetch=0,
            grid=(n_tiles,),
            in_specs=[
                pl.BlockSpec((n, d), resident),            # x bf16 full (K/V projection)
                pl.BlockSpec((tm, d), lambda i: (i, 0)),   # x f32 tile (Q + residual)
                pl.BlockSpec((d, d), resident),            # w_q (softmax scale folded)
                pl.BlockSpec((d, d), resident),            # w_k
                pl.BlockSpec((d, d), resident),            # w_v
                pl.BlockSpec((1, d), resident),            # b_q (softmax scale folded)
                pl.BlockSpec((1, d), resident),            # b_k
                pl.BlockSpec((1, d), resident),            # b_v
                pl.BlockSpec((d, d), resident),            # w_om = wo @ wm
                pl.BlockSpec((1, d), resident),            # b_om = bo @ wm + bm
                pl.BlockSpec((1, d), resident),            # LayerNorm gamma
                pl.BlockSpec((1, d), resident),            # LayerNorm beta
            ],
            out_specs=pl.BlockSpec((tm, d), lambda i: (i, 0)),
        ),
        compiler_params=pltpu.CompilerParams(dimension_semantics=("parallel",)),
    )(x_bf16, x, w_q, w_k, w_v, b_q, b_k, b_v, w_om, b_om, gamma, beta)
    return out


# --------------------------------------------------------------------------- #
# Deterministic synthetic parameters (shapes match nn.MultiheadAttention /
# nn.Linear / nn.LayerNorm; weights stored pre-transposed for x @ W).
# The softmax scale is folded into (w_q, b_q); out_proj and attn_mlp are
# pre-composed:  w_om = wo @ wm,  b_om = bo @ wm + bm  (mathematically identical).
# --------------------------------------------------------------------------- #
def init_params(key, d: int, heads: int):
    hd = d // heads
    scale = 1.0 / (float(hd) ** 0.5)
    ks = jax.random.split(key, 10)
    s = 1.0 / jnp.sqrt(jnp.float32(d))
    wq = jax.random.normal(ks[0], (d, d), jnp.float32) * s
    wk = jax.random.normal(ks[1], (d, d), jnp.float32) * s
    wv = jax.random.normal(ks[2], (d, d), jnp.float32) * s
    bq = jax.random.normal(ks[3], (1, d), jnp.float32) * 0.01
    bk = jax.random.normal(ks[4], (1, d), jnp.float32) * 0.01
    bv = jax.random.normal(ks[5], (1, d), jnp.float32) * 0.01
    wo = jax.random.normal(ks[6], (d, d), jnp.float32) * s       # attn.out_proj
    bo = jax.random.normal(ks[7], (1, d), jnp.float32) * 0.01
    wm = jax.random.normal(ks[8], (d, d), jnp.float32) * s       # attn_mlp
    bm = jax.random.normal(ks[9], (1, d), jnp.float32) * 0.01
    gamma = jnp.ones((1, d), jnp.float32)                        # LayerNorm weight
    beta = jnp.zeros((1, d), jnp.float32)                        # LayerNorm bias

    w_q = (wq * scale).astype(jnp.bfloat16)                      # scale folded
    b_q = bq * scale                                             # scale folded (f32)
    w_k = wk.astype(jnp.bfloat16)
    w_v = wv.astype(jnp.bfloat16)
    w_om = jnp.dot(wo, wm).astype(jnp.bfloat16)                  # (d, d)
    b_om = jnp.dot(bo, wm) + bm                                  # (1, d) f32
    return (w_q, w_k, w_v, b_q, bk, bv, w_om, b_om, gamma, beta)


if __name__ == "__main__":
    d, heads, seq = 512, 4, 256      # head_dim = 128 (lane-aligned), 2 parallel token tiles
    key = jax.random.PRNGKey(0)
    kx, kp = jax.random.split(key)
    x = jax.random.normal(kx, (seq, d), jnp.float32)
    params = init_params(kp, d, heads)

    out = self_attention(x, params, heads=heads, tm=128)
    jax.block_until_ready(out)
    assert out.shape == (seq, d) and out.dtype == jnp.float32
    assert bool(jnp.all(jnp.isfinite(out)))
    print("KERNEL_OK")
</pallas_src>

<mosaic_0001>
module attributes {stable_mosaic.version = 11 : i64} {
  func.func @kernel(%arg0: i32, %arg1: memref<256x512xbf16, #tpu.memory_space<vmem>>, %arg2: memref<128x512xf32, #tpu.memory_space<vmem>>, %arg3: memref<512x512xbf16, #tpu.memory_space<vmem>>, %arg4: memref<512x512xbf16, #tpu.memory_space<vmem>>, %arg5: memref<512x512xbf16, #tpu.memory_space<vmem>>, %arg6: memref<1x512xf32, #tpu.memory_space<vmem>>, %arg7: memref<1x512xf32, #tpu.memory_space<vmem>>, %arg8: memref<1x512xf32, #tpu.memory_space<vmem>>, %arg9: memref<512x512xbf16, #tpu.memory_space<vmem>>, %arg10: memref<1x512xf32, #tpu.memory_space<vmem>>, %arg11: memref<1x512xf32, #tpu.memory_space<vmem>>, %arg12: memref<1x512xf32, #tpu.memory_space<vmem>>, %arg13: memref<128x512xf32, #tpu.memory_space<vmem>>) attributes {dimension_semantics = [#tpu.dimension_semantics<parallel>], iteration_bounds = array<i64: 2>, scalar_prefetch = 0 : i64, scratch_operands = 0 : i64, tpu.core_type = #tpu.core_type<tc>, window_params = [{pipeline_mode = #tpu.pipeline_mode<synchronous>, transform_indices = @transform_0, window_bounds = array<i64: 256, 512>}, {transform_indices = @transform_1, window_bounds = array<i64: 128, 512>}, {pipeline_mode = #tpu.pipeline_mode<synchronous>, transform_indices = @transform_2, window_bounds = array<i64: 512, 512>}, {pipeline_mode = #tpu.pipeline_mode<synchronous>, transform_indices = @transform_3, window_bounds = array<i64: 512, 512>}, {pipeline_mode = #tpu.pipeline_mode<synchronous>, transform_indices = @transform_4, window_bounds = array<i64: 512, 512>}, {pipeline_mode = #tpu.pipeline_mode<synchronous>, transform_indices = @transform_5, window_bounds = array<i64: 1, 512>}, {pipeline_mode = #tpu.pipeline_mode<synchronous>, transform_indices = @transform_6, window_bounds = array<i64: 1, 512>}, {pipeline_mode = #tpu.pipeline_mode<synchronous>, transform_indices = @transform_7, window_bounds = array<i64: 1, 512>}, {pipeline_mode = #tpu.pipeline_mode<synchronous>, transform_indices = @transform_8, window_bounds = array<i64: 512, 512>}, {pipeline_mode = #tpu.pipeline_mode<synchronous>, transform_indices = @transform_9, window_bounds = array<i64: 1, 512>}, {pipeline_mode = #tpu.pipeline_mode<synchronous>, transform_indices = @transform_10, window_bounds = array<i64: 1, 512>}, {pipeline_mode = #tpu.pipeline_mode<synchronous>, transform_indices = @transform_11, window_bounds = array<i64: 1, 512>}, {transform_indices = @transform_12, window_bounds = array<i64: 128, 512>}]} {
    %c0 = arith.constant 0 : index
    %c0_0 = arith.constant 0 : index
    %0 = vector.load %arg2[%c0, %c0_0] : memref<128x512xf32, #tpu.memory_space<vmem>>, vector<128x512xf32>
    %1 = arith.truncf %0 : vector<128x512xf32> to vector<128x512xbf16>
    %c0_1 = arith.constant 0 : index
    %c0_2 = arith.constant 0 : index
    %2 = vector.load %arg1[%c0_1, %c0_2] : memref<256x512xbf16, #tpu.memory_space<vmem>>, vector<256x512xbf16>
    %c0_3 = arith.constant 0 : index
    %c0_4 = arith.constant 0 : index
    %3 = vector.load %arg3[%c0_3, %c0_4] : memref<512x512xbf16, #tpu.memory_space<vmem>>, vector<512x512xbf16>
    %cst = arith.constant dense<0.000000e+00> : vector<128x512xf32>
    %4 = tpu.matmul %1, %3, %cst {dimension_numbers = #tpu.dot_dimension_numbers<[1], [0], [0], [1], [0, 0, 1, 1], [], []>} : vector<128x512xbf16>, vector<512x512xbf16>, vector<128x512xf32> -> vector<128x512xf32>
    %c0_5 = arith.constant 0 : index
    %c0_6 = arith.constant 0 : index
    %5 = vector.load %arg6[%c0_5, %c0_6] : memref<1x512xf32, #tpu.memory_space<vmem>>, vector<1x512xf32>
    %6 = vector.broadcast %5 : vector<1x512xf32> to vector<128x512xf32>
    %7 = arith.addf %4, %6 : vector<128x512xf32>
    %8 = arith.truncf %7 : vector<128x512xf32> to vector<128x512xbf16>
    %c0_7 = arith.constant 0 : index
    %c0_8 = arith.constant 0 : index
    %9 = vector.load %arg4[%c0_7, %c0_8] : memref<512x512xbf16, #tpu.memory_space<vmem>>, vector<512x512xbf16>
    %cst_9 = arith.constant dense<0.000000e+00> : vector<256x512xf32>
    %10 = tpu.matmul %2, %9, %cst_9 {dimension_numbers = #tpu.dot_dimension_numbers<[1], [0], [0], [1], [0, 0, 1, 1], [], []>} : vector<256x512xbf16>, vector<512x512xbf16>, vector<256x512xf32> -> vector<256x512xf32>
    %c0_10 = arith.constant 0 : index
    %c0_11 = arith.constant 0 : index
    %11 = vector.load %arg7[%c0_10, %c0_11] : memref<1x512xf32, #tpu.memory_space<vmem>>, vector<1x512xf32>
    %12 = vector.broadcast %11 : vector<1x512xf32> to vector<256x512xf32>
    %13 = arith.addf %10, %12 : vector<256x512xf32>
    %14 = arith.truncf %13 : vector<256x512xf32> to vector<256x512xbf16>
    %c0_12 = arith.constant 0 : index
    %c0_13 = arith.constant 0 : index
    %15 = vector.load %arg5[%c0_12, %c0_13] : memref<512x512xbf16, #tpu.memory_space<vmem>>, vector<512x512xbf16>
    %cst_14 = arith.constant dense<0.000000e+00> : vector<256x512xf32>
    %16 = tpu.matmul %2, %15, %cst_14 {dimension_numbers = #tpu.dot_dimension_numbers<[1], [0], [0], [1], [0, 0, 1, 1], [], []>} : vector<256x512xbf16>, vector<512x512xbf16>, vector<256x512xf32> -> vector<256x512xf32>
    %c0_15 = arith.constant 0 : index
    %c0_16 = arith.constant 0 : index
    %17 = vector.load %arg8[%c0_15, %c0_16] : memref<1x512xf32, #tpu.memory_space<vmem>>, vector<1x512xf32>
    %18 = vector.broadcast %17 : vector<1x512xf32> to vector<256x512xf32>
    %19 = arith.addf %16, %18 : vector<256x512xf32>
    %20 = arith.truncf %19 : vector<256x512xf32> to vector<256x512xbf16>
    %cst_17 = arith.constant 0.000000e+00 : f32
    %21 = vector.broadcast %cst_17 : f32 to vector<128x512xf32>
    %22 = vector.extract_strided_slice %8 {offsets = [0, 0], sizes = [128, 128], strides = [1, 1]} : vector<128x512xbf16> to vector<128x128xbf16>
    %23 = vector.extract_strided_slice %14 {offsets = [0, 0], sizes = [256, 128], strides = [1, 1]} : vector<256x512xbf16> to vector<256x128xbf16>
    %24 = vector.extract_strided_slice %20 {offsets = [0, 0], sizes = [256, 128], strides = [1, 1]} : vector<256x512xbf16> to vector<256x128xbf16>
    %cst_18 = arith.constant dense<0.000000e+00> : vector<128x256xf32>
    %25 = tpu.matmul %22, %23, %cst_18 {dimension_numbers = #tpu.dot_dimension_numbers<[1], [1], [0], [0], [0, 0, 1, 0], [], []>} : vector<128x128xbf16>, vector<256x128xbf16>, vector<128x256xf32> -> vector<128x256xf32>
    %cst_19 = arith.constant dense<0xFF800000> : vector<128xf32>
    %26 = vector.multi_reduction <maximumf>, %25, %cst_19 [1] : vector<128x256xf32> to vector<128xf32>
    %27 = vector.shape_cast %26 : vector<128xf32> to vector<128x1xf32>
    %28 = vector.broadcast %27 : vector<128x1xf32> to vector<128x256xf32>
    %29 = arith.subf %25, %28 : vector<128x256xf32>
    %30 = math.exp %29 : vector<128x256xf32>
    %cst_20 = arith.constant dense<0.000000e+00> : vector<128xf32>
    %31 = vector.multi_reduction <add>, %30, %cst_20 [1] : vector<128x256xf32> to vector<128xf32>
    %32 = vector.shape_cast %31 : vector<128xf32> to vector<128x1xf32>
    %33 = tpu.reciprocal %32 {approx = true} : vector<128x1xf32> -> vector<128x1xf32>
    %34 = vector.broadcast %33 : vector<128x1xf32> to vector<128x256xf32>
    %35 = arith.mulf %30, %34 : vector<128x256xf32>
    %36 = arith.truncf %35 : vector<128x256xf32> to vector<128x256xbf16>
    %cst_21 = arith.constant dense<0.000000e+00> : vector<128x128xf32>
    %37 = tpu.matmul %36, %24, %cst_21 {dimension_numbers = #tpu.dot_dimension_numbers<[1], [0], [0], [1], [0, 0, 1, 1], [], []>} : vector<128x256xbf16>, vector<256x128xbf16>, vector<128x128xf32> -> vector<128x128xf32>
    %38 = arith.truncf %37 : vector<128x128xf32> to vector<128x128xbf16>
    %c0_22 = arith.constant 0 : index
    %c0_23 = arith.constant 0 : index
    %39 = vector.load %arg9[%c0_22, %c0_23] : memref<512x512xbf16, #tpu.memory_space<vmem>>, vector<128x512xbf16>
    %cst_24 = arith.constant dense<0.000000e+00> : vector<128x512xf32>
    %40 = tpu.matmul %38, %39, %cst_24 {dimension_numbers = #tpu.dot_dimension_numbers<[1], [0], [0], [1], [0, 0, 1, 1], [], []>} : vector<128x128xbf16>, vector<128x512xbf16>, vector<128x512xf32> -> vector<128x512xf32>
    %41 = arith.addf %21, %40 : vector<128x512xf32>
    %42 = vector.extract_strided_slice %8 {offsets = [0, 128], sizes = [128, 128], strides = [1, 1]} : vector<128x512xbf16> to vector<128x128xbf16>
    %43 = vector.extract_strided_slice %14 {offsets = [0, 128], sizes = [256, 128], strides = [1, 1]} : vector<256x512xbf16> to vector<256x128xbf16>
    %44 = vector.extract_strided_slice %20 {offsets = [0, 128], sizes = [256, 128], strides = [1, 1]} : vector<256x512xbf16> to vector<256x128xbf16>
    %cst_25 = arith.constant dense<0.000000e+00> : vector<128x256xf32>
    %45 = tpu.matmul %42, %43, %cst_25 {dimension_numbers = #tpu.dot_dimension_numbers<[1], [1], [0], [0], [0, 0, 1, 0], [], []>} : vector<128x128xbf16>, vector<256x128xbf16>, vector<128x256xf32> -> vector<128x256xf32>
    %cst_26 = arith.constant dense<0xFF800000> : vector<128xf32>
    %46 = vector.multi_reduction <maximumf>, %45, %cst_26 [1] : vector<128x256xf32> to vector<128xf32>
    %47 = vector.shape_cast %46 : vector<128xf32> to vector<128x1xf32>
    %48 = vector.broadcast %47 : vector<128x1xf32> to vector<128x256xf32>
    %49 = arith.subf %45, %48 : vector<128x256xf32>
    %50 = math.exp %49 : vector<128x256xf32>
    %cst_27 = arith.constant dense<0.000000e+00> : vector<128xf32>
    %51 = vector.multi_reduction <add>, %50, %cst_27 [1] : vector<128x256xf32> to vector<128xf32>
    %52 = vector.shape_cast %51 : vector<128xf32> to vector<128x1xf32>
    %53 = tpu.reciprocal %52 {approx = true} : vector<128x1xf32> -> vector<128x1xf32>
    %54 = vector.broadcast %53 : vector<128x1xf32> to vector<128x256xf32>
    %55 = arith.mulf %50, %54 : vector<128x256xf32>
    %56 = arith.truncf %55 : vector<128x256xf32> to vector<128x256xbf16>
    %cst_28 = arith.constant dense<0.000000e+00> : vector<128x128xf32>
    %57 = tpu.matmul %56, %44, %cst_28 {dimension_numbers = #tpu.dot_dimension_numbers<[1], [0], [0], [1], [0, 0, 1, 1], [], []>} : vector<128x256xbf16>, vector<256x128xbf16>, vector<128x128xf32> -> vector<128x128xf32>
    %58 = arith.truncf %57 : vector<128x128xf32> to vector<128x128xbf16>
    %c128 = arith.constant 128 : index
    %c0_29 = arith.constant 0 : index
    %59 = vector.load %arg9[%c128, %c0_29] : memref<512x512xbf16, #tpu.memory_space<vmem>>, vector<128x512xbf16>
    %cst_30 = arith.constant dense<0.000000e+00> : vector<128x512xf32>
    %60 = tpu.matmul %58, %59, %cst_30 {dimension_numbers = #tpu.dot_dimension_numbers<[1], [0], [0], [1], [0, 0, 1, 1], [], []>} : vector<128x128xbf16>, vector<128x512xbf16>, vector<128x512xf32> -> vector<128x512xf32>
    %61 = arith.addf %41, %60 : vector<128x512xf32>
    %62 = vector.extract_strided_slice %8 {offsets = [0, 256], sizes = [128, 128], strides = [1, 1]} : vector<128x512xbf16> to vector<128x128xbf16>
    %63 = vector.extract_strided_slice %14 {offsets = [0, 256], sizes = [256, 128], strides = [1, 1]} : vector<256x512xbf16> to vector<256x128xbf16>
    %64 = vector.extract_strided_slice %20 {offsets = [0, 256], sizes = [256, 128], strides = [1, 1]} : vector<256x512xbf16> to vector<256x128xbf16>
    %cst_31 = arith.constant dense<0.000000e+00> : vector<128x256xf32>
    %65 = tpu.matmul %62, %63, %cst_31 {dimension_numbers = #tpu.dot_dimension_numbers<[1], [1], [0], [0], [0, 0, 1, 0], [], []>} : vector<128x128xbf16>, vector<256x128xbf16>, vector<128x256xf32> -> vector<128x256xf32>
    %cst_32 = arith.constant dense<0xFF800000> : vector<128xf32>
    %66 = vector.multi_reduction <maximumf>, %65, %cst_32 [1] : vector<128x256xf32> to vector<128xf32>
    %67 = vector.shape_cast %66 : vector<128xf32> to vector<128x1xf32>
    %68 = vector.broadcast %67 : vector<128x1xf32> to vector<128x256xf32>
    %69 = arith.subf %65, %68 : vector<128x256xf32>
    %70 = math.exp %69 : vector<128x256xf32>
    %cst_33 = arith.constant dense<0.000000e+00> : vector<128xf32>
    %71 = vector.multi_reduction <add>, %70, %cst_33 [1] : vector<128x256xf32> to vector<128xf32>
    %72 = vector.shape_cast %71 : vector<128xf32> to vector<128x1xf32>
    %73 = tpu.reciprocal %72 {approx = true} : vector<128x1xf32> -> vector<128x1xf32>
    %74 = vector.broadcast %73 : vector<128x1xf32> to vector<128x256xf32>
    %75 = arith.mulf %70, %74 : vector<128x256xf32>
    %76 = arith.truncf %75 : vector<128x256xf32> to vector<128x256xbf16>
    %cst_34 = arith.constant dense<0.000000e+00> : vector<128x128xf32>
    %77 = tpu.matmul %76, %64, %cst_34 {dimension_numbers = #tpu.dot_dimension_numbers<[1], [0], [0], [1], [0, 0, 1, 1], [], []>} : vector<128x256xbf16>, vector<256x128xbf16>, vector<128x128xf32> -> vector<128x128xf32>
    %78 = arith.truncf %77 : vector<128x128xf32> to vector<128x128xbf16>
    %c256 = arith.constant 256 : index
    %c0_35 = arith.constant 0 : index
    %79 = vector.load %arg9[%c256, %c0_35] : memref<512x512xbf16, #tpu.memory_space<vmem>>, vector<128x512xbf16>
    %cst_36 = arith.constant dense<0.000000e+00> : vector<128x512xf32>
    %80 = tpu.matmul %78, %79, %cst_36 {dimension_numbers = #tpu.dot_dimension_numbers<[1], [0], [0], [1], [0, 0, 1, 1], [], []>} : vector<128x128xbf16>, vector<128x512xbf16>, vector<128x512xf32> -> vector<128x512xf32>
    %81 = arith.addf %61, %80 : vector<128x512xf32>
    %82 = vector.extract_strided_slice %8 {offsets = [0, 384], sizes = [128, 128], strides = [1, 1]} : vector<128x512xbf16> to vector<128x128xbf16>
    %83 = vector.extract_strided_slice %14 {offsets = [0, 384], sizes = [256, 128], strides = [1, 1]} : vector<256x512xbf16> to vector<256x128xbf16>
    %84 = vector.extract_strided_slice %20 {offsets = [0, 384], sizes = [256, 128], strides = [1, 1]} : vector<256x512xbf16> to vector<256x128xbf16>
    %cst_37 = arith.constant dense<0.000000e+00> : vector<128x256xf32>
    %85 = tpu.matmul %82, %83, %cst_37 {dimension_numbers = #tpu.dot_dimension_numbers<[1], [1], [0], [0], [0, 0, 1, 0], [], []>} : vector<128x128xbf16>, vector<256x128xbf16>, vector<128x256xf32> -> vector<128x256xf32>
    %cst_38 = arith.constant dense<0xFF800000> : vector<128xf32>
    %86 = vector.multi_reduction <maximumf>, %85, %cst_38 [1] : vector<128x256xf32> to vector<128xf32>
    %87 = vector.shape_cast %86 : vector<128xf32> to vector<128x1xf32>
    %88 = vector.broadcast %87 : vector<128x1xf32> to vector<128x256xf32>
    %89 = arith.subf %85, %88 : vector<128x256xf32>
    %90 = math.exp %89 : vector<128x256xf32>
    %cst_39 = arith.constant dense<0.000000e+00> : vector<128xf32>
    %91 = vector.multi_reduction <add>, %90, %cst_39 [1] : vector<128x256xf32> to vector<128xf32>
    %92 = vector.shape_cast %91 : vector<128xf32> to vector<128x1xf32>
    %93 = tpu.reciprocal %92 {approx = true} : vector<128x1xf32> -> vector<128x1xf32>
    %94 = vector.broadcast %93 : vector<128x1xf32> to vector<128x256xf32>
    %95 = arith.mulf %90, %94 : vector<128x256xf32>
    %96 = arith.truncf %95 : vector<128x256xf32> to vector<128x256xbf16>
    %cst_40 = arith.constant dense<0.000000e+00> : vector<128x128xf32>
    %97 = tpu.matmul %96, %84, %cst_40 {dimension_numbers = #tpu.dot_dimension_numbers<[1], [0], [0], [1], [0, 0, 1, 1], [], []>} : vector<128x256xbf16>, vector<256x128xbf16>, vector<128x128xf32> -> vector<128x128xf32>
    %98 = arith.truncf %97 : vector<128x128xf32> to vector<128x128xbf16>
    %c384 = arith.constant 384 : index
    %c0_41 = arith.constant 0 : index
    %99 = vector.load %arg9[%c384, %c0_41] : memref<512x512xbf16, #tpu.memory_space<vmem>>, vector<128x512xbf16>
    %cst_42 = arith.constant dense<0.000000e+00> : vector<128x512xf32>
    %100 = tpu.matmul %98, %99, %cst_42 {dimension_numbers = #tpu.dot_dimension_numbers<[1], [0], [0], [1], [0, 0, 1, 1], [], []>} : vector<128x128xbf16>, vector<128x512xbf16>, vector<128x512xf32> -> vector<128x512xf32>
    %101 = arith.addf %81, %100 : vector<128x512xf32>
    %102 = arith.addf %0, %101 : vector<128x512xf32>
    %c0_43 = arith.constant 0 : index
    %c0_44 = arith.constant 0 : index
    %103 = vector.load %arg10[%c0_43, %c0_44] : memref<1x512xf32, #tpu.memory_space<vmem>>, vector<1x512xf32>
    %104 = vector.broadcast %103 : vector<1x512xf32> to vector<128x512xf32>
    %105 = arith.addf %102, %104 : vector<128x512xf32>
    %cst_45 = arith.constant dense<0.000000e+00> : vector<128xf32>
    %106 = vector.multi_reduction <add>, %105, %cst_45 [1] : vector<128x512xf32> to vector<128xf32>
    %107 = vector.shape_cast %106 : vector<128xf32> to vector<128x1xf32>
    %cst_46 = arith.constant 5.120000e+02 : f32
    %108 = vector.broadcast %cst_46 : f32 to vector<128x1xf32>
    %109 = arith.divf %107, %108 : vector<128x1xf32>
    %110 = vector.broadcast %109 : vector<128x1xf32> to vector<128x512xf32>
    %111 = arith.subf %105, %110 : vector<128x512xf32>
    %112 = arith.mulf %111, %111 : vector<128x512xf32>
    %cst_47 = arith.constant dense<0.000000e+00> : vector<128xf32>
    %113 = vector.multi_reduction <add>, %112, %cst_47 [1] : vector<128x512xf32> to vector<128xf32>
    %114 = vector.shape_cast %113 : vector<128xf32> to vector<128x1xf32>
    %cst_48 = arith.constant 5.120000e+02 : f32
    %115 = vector.broadcast %cst_48 : f32 to vector<128x1xf32>
    %116 = arith.divf %114, %115 : vector<128x1xf32>
    %117 = vector.broadcast %109 : vector<128x1xf32> to vector<128x512xf32>
    %118 = arith.subf %105, %117 : vector<128x512xf32>
    %cst_49 = arith.constant 9.99999974E-6 : f32
    %119 = vector.broadcast %cst_49 : f32 to vector<128x1xf32>
    %120 = arith.addf %116, %119 : vector<128x1xf32>
    %121 = math.rsqrt %120 : vector<128x1xf32>
    %122 = vector.broadcast %121 : vector<128x1xf32> to vector<128x512xf32>
    %123 = arith.mulf %118, %122 : vector<128x512xf32>
    %c0_50 = arith.constant 0 : index
    %c0_51 = arith.constant 0 : index
    %124 = vector.load %arg11[%c0_50, %c0_51] : memref<1x512xf32, #tpu.memory_space<vmem>>, vector<1x512xf32>
    %125 = vector.broadcast %124 : vector<1x512xf32> to vector<128x512xf32>
    %126 = arith.mulf %123, %125 : vector<128x512xf32>
    %c0_52 = arith.constant 0 : index
    %c0_53 = arith.constant 0 : index
    %127 = vector.load %arg12[%c0_52, %c0_53] : memref<1x512xf32, #tpu.memory_space<vmem>>, vector<1x512xf32>
    %128 = vector.broadcast %127 : vector<1x512xf32> to vector<128x512xf32>
    %129 = arith.addf %126, %128 : vector<128x512xf32>
    %c0_54 = arith.constant 0 : index
    %c0_55 = arith.constant 0 : index
    %130 = vector.load %arg13[%c0_54, %c0_55] : memref<128x512xf32, #tpu.memory_space<vmem>>, vector<128x512xf32>
    tpu.vector_store %arg13[%c0_54, %c0_55], %129 {strides = array<i32>} : memref<128x512xf32, #tpu.memory_space<vmem>>, vector<128x512xf32>,
    return
  }
  func.func @transform_0(%arg0: i32) -> (i32, i32) {
    %c0_i32 = arith.constant 0 : i32
    %c0_i32_0 = arith.constant 0 : i32
    %c0_i32_1 = arith.constant 0 : i32
    return %c0_i32, %c0_i32_0 : i32, i32
  }
  func.func @transform_1(%arg0: i32) -> (i32, i32) {
    %c0_i32 = arith.constant 0 : i32
    %c0_i32_0 = arith.constant 0 : i32
    return %arg0, %c0_i32 : i32, i32
  }
  func.func @transform_2(%arg0: i32) -> (i32, i32) {
    %c0_i32 = arith.constant 0 : i32
    %c0_i32_0 = arith.constant 0 : i32
    %c0_i32_1 = arith.constant 0 : i32
    return %c0_i32, %c0_i32_0 : i32, i32
  }
  func.func @transform_3(%arg0: i32) -> (i32, i32) {
    %c0_i32 = arith.constant 0 : i32
    %c0_i32_0 = arith.constant 0 : i32
    %c0_i32_1 = arith.constant 0 : i32
    return %c0_i32, %c0_i32_0 : i32, i32
  }
  func.func @transform_4(%arg0: i32) -> (i32, i32) {
    %c0_i32 = arith.constant 0 : i32
    %c0_i32_0 = arith.constant 0 : i32
    %c0_i32_1 = arith.constant 0 : i32
    return %c0_i32, %c0_i32_0 : i32, i32
  }
  func.func @transform_5(%arg0: i32) -> (i32, i32) {
    %c0_i32 = arith.constant 0 : i32
    %c0_i32_0 = arith.constant 0 : i32
    %c0_i32_1 = arith.constant 0 : i32
    return %c0_i32, %c0_i32_0 : i32, i32
  }
  func.func @transform_6(%arg0: i32) -> (i32, i32) {
    %c0_i32 = arith.constant 0 : i32
    %c0_i32_0 = arith.constant 0 : i32
    %c0_i32_1 = arith.constant 0 : i32
    return %c0_i32, %c0_i32_0 : i32, i32
  }
  func.func @transform_7(%arg0: i32) -> (i32, i32) {
    %c0_i32 = arith.constant 0 : i32
    %c0_i32_0 = arith.constant 0 : i32
    %c0_i32_1 = arith.constant 0 : i32
    return %c0_i32, %c0_i32_0 : i32, i32
  }
  func.func @transform_8(%arg0: i32) -> (i32, i32) {
    %c0_i32 = arith.constant 0 : i32
    %c0_i32_0 = arith.constant 0 : i32
    %c0_i32_1 = arith.constant 0 : i32
    return %c0_i32, %c0_i32_0 : i32, i32
  }
  func.func @transform_9(%arg0: i32) -> (i32, i32) {
    %c0_i32 = arith.constant 0 : i32
    %c0_i32_0 = arith.constant 0 : i32
    %c0_i32_1 = arith.constant 0 : i32
    return %c0_i32, %c0_i32_0 : i32, i32
  }
  func.func @transform_10(%arg0: i32) -> (i32, i32) {
    %c0_i32 = arith.constant 0 : i32
    %c0_i32_0 = arith.constant 0 : i32
    %c0_i32_1 = arith.constant 0 : i32
    return %c0_i32, %c0_i32_0 : i32, i32
  }
  func.func @transform_11(%arg0: i32) -> (i32, i32) {
    %c0_i32 = arith.constant 0 : i32
    %c0_i32_0 = arith.constant 0 : i32
    %c0_i32_1 = arith.constant 0 : i32
    return %c0_i32, %c0_i32_0 : i32, i32
  }
  func.func @transform_12(%arg0: i32) -> (i32, i32) {
    %c0_i32 = arith.constant 0 : i32
    %c0_i32_0 = arith.constant 0 : i32
    return %arg0, %c0_i32 : i32, i32
  }
}

</mosaic_0001>

<llo_original>
// kernel: tpu_custom_call.1
$region0: #{tpu_custom_call.1}
  #allocation0 [shape = 'u32[]', space=smem, size = 0x4, offset = 0x4, fixed_abs, tag = 'smem constant byte address 0x4 - core index']
  #allocation1 [shape = 'u32[144,128]{1,0:T(1,128)}', space=vmem, size = 0x12000, scoped, tag = 'internal scratch']
  %s0 = inlined_call_operand.hbm [shape: bf16[256,512], index: 0, kind: input, shape index: {}]
  %s1 = inlined_call_operand.hbm [shape: f32[256,512], index: 1, kind: input, shape index: {}]
  %s2 = inlined_call_operand.hbm [shape: bf16[512,512], index: 2, kind: input, shape index: {}]
  %s3 = inlined_call_operand.hbm [shape: bf16[512,512], index: 3, kind: input, shape index: {}]
  %s4 = inlined_call_operand.hbm [shape: bf16[512,512], index: 4, kind: input, shape index: {}]
  %s5 = inlined_call_operand.vmem [shape: f32[1,512], index: 5, kind: input, shape index: {}]
  %s6 = inlined_call_operand.vmem [shape: f32[1,512], index: 6, kind: input, shape index: {}]
  %s7 = inlined_call_operand.vmem [shape: f32[1,512], index: 7, kind: input, shape index: {}]
  %s8 = inlined_call_operand.hbm [shape: bf16[512,512], index: 8, kind: input, shape index: {}]
  %s9 = inlined_call_operand.vmem [shape: f32[1,512], index: 9, kind: input, shape index: {}]
  %s10 = inlined_call_operand.vmem [shape: f32[1,512], index: 10, kind: input, shape index: {}]
  %s11 = inlined_call_operand.vmem [shape: f32[1,512], index: 11, kind: input, shape index: {}]
  %s12 = inlined_call_operand.hbm [shape: f32[256,512], index: 12, kind: output, shape index: {}]
  %s13 = sld [smem:[#allocation0]]
  $region105: #{tpu_custom_call.1} parent=0
    _
  %s15 = ssub.s32 1, %s13
  %s16 = scalar_select 0, %s15, %s13
  $region1: #{tpu_custom_call.1} parent=0
    #allocation2 [shape = 'u8[262144]{0}', space=vmem, size = 0x40000, scoped, tag = 'input window, operand 0, single buffered']
    #allocation3 [shape = 's32[2]{0}', space=sflag, size = 0x8, scoped, tag = 'scoped memory for tpu_custom_call.1']
    #allocation4 [shape = 's32[2]{0}', space=sflag, size = 0x8, scoped, tag = 'scoped memory for tpu_custom_call.1']
    #allocation5 [shape = 'u8[524288]{0}', space=vmem, size = 0x80000, scoped, tag = 'input window, operand 1']
    #allocation6 [shape = 's32[2]{0}', space=sflag, size = 0x8, scoped, tag = 'scoped memory for tpu_custom_call.1']
    #allocation7 [shape = 'u8[524288]{0}', space=vmem, size = 0x80000, scoped, tag = 'input window, operand 2, single buffered']
    #allocation8 [shape = 'u8[524288]{0}', space=vmem, size = 0x80000, scoped, tag = 'input window, operand 3, single buffered']
    #allocation9 [shape = 's32[1]{0}', space=sflag, size = 0x4, scoped, tag = 'scoped memory for tpu_custom_call.1']
    #allocation10 [shape = 'u8[524288]{0}', space=vmem, size = 0x80000, scoped, tag = 'input window, operand 4, single buffered']
    #allocation11 [shape = 'u8[524288]{0}', space=vmem, size = 0x80000, scoped, tag = 'input window, operand 8, single buffered']
    #allocation12 [shape = 's32[1]{0}', space=sflag, size = 0x4, scoped, tag = 'scoped memory for tpu_custom_call.1']
    #allocation13 [shape = 'u8[524288]{0}', space=vmem, size = 0x80000, scoped, tag = 'output window, operand 0']
    %17 = vsyncpa [#allocation3], 0
    %18 = vsyncpa [#allocation6], 0
    %s19 = scalar_lea.sflag [#allocation6], 1
    %20 = vsyncpa %s19, 0
    %21 = vsyncpa [#allocation9], 0
    %22 = vsyncpa [#allocation12], 0
    %23 = vsyncpa [#allocation4], 0
    %s24 = scalar_lea.sflag [#allocation4], 1
    %25 = vsyncpa %s24, 0
    loop: start=0, step=1, limit=4
    $region2: #{tpu_custom_call.1} parent=1 // loop_pre_header
      _
    $region3: #{tpu_custom_call.1} parent=1 // loop_header
      %s27 = sphi 0, %s31
      %p28 = scmp.ge.s32.totalorder %s27, 4
      %s35 = sphi 0, %s35
      %s37 = sphi 0, %s35
      %s38 = sphi 0, %s37
      %s52 = sphi 0, %s38
      %s58 = sphi 0, %s60
      %s61 = sphi 0, %s58
      %s62 = sphi 0, %s61
      %s78 = sphi 0, %s62
      %s82 = sphi 0, %s82
      %s84 = sphi 0, %s82
      %s85 = sphi 0, %s84
      %s99 = sphi 0, %s85
      %s103 = sphi 0, %s103
      %s105 = sphi 0, %s103
      %s106 = sphi 0, %s105
      %s120 = sphi 0, %s106
      %s124 = sphi 0, %s124
      %s126 = sphi 0, %s124
      %s127 = sphi 0, %s126
      %s141 = sphi 0, %s127
      %s145 = sphi 0, %s145
      %s147 = sphi 0, %s145
      %s148 = sphi 0, %s147
      %s162 = sphi 0, %s148
      %s166 = sphi 0, %s166
      %s168 = sphi 0, %s166
      %s169 = sphi 0, %s168
      %s183 = sphi 0, %s169
      %s187 = sphi 0, %s187
      %s189 = sphi 0, %s187
      %s190 = sphi 0, %s189
      %s204 = sphi 0, %s190
      %s208 = sphi 0, %s208
      %s210 = sphi 0, %s208
      %s211 = sphi 0, %s210
      %s225 = sphi 0, %s211
      %s229 = sphi 0, %s229
      %s231 = sphi 0, %s229
      %s232 = sphi 0, %s231
      %s246 = sphi 0, %s232
      %s250 = sphi 0, %s250
      %s252 = sphi 0, %s250
      %s253 = sphi 0, %s252
      %s267 = sphi 0, %s253
      %s271 = sphi 0, %s271
      %s273 = sphi 0, %s271
      %s274 = sphi 0, %s273
      %s288 = sphi 0, %s274
      %s294 = sphi 0, %s296
      %s297 = sphi 0, %s294
      %s298 = sphi 0, %s297
      %s314 = sphi 0, %s298
    $region4: #{tpu_custom_call.1} parent=1 // loop_header_branch
      %30 = sbr.rel (%p28) target = $region8
    $region5: #{tpu_custom_call.1} parent=1 // loop_body
      %s32 = ssub.s32 %s27, 1
      %s33 = ssub.s32 %s27, 2
      %s34 = sadd.s32 %s27, 1
      %s36 = sadd.s32 %s35, 1
      %p39 = scmp.eq.s32.totalorder %s27, 1
      %p40 = scmp.ne.s32.totalorder %s35, %s37
      %p41 = scmp.eq.s32.totalorder %s27, 0
      %p42 = por %p40, %p41
      %p43 = scmp.ne.s32.totalorder %s35, %s37
      %p44 = scmp.eq.s32.totalorder %s32, 1
      %p45 = por %p43, %p44
      %p46 = scmp.ne.s32.totalorder %s37, %s38
      %p47 = scmp.eq.s32.totalorder %s32, 0
      %p48 = por %p46, %p47
      %p49 = scmp.ne.s32.totalorder %s37, %s38
      %p50 = scmp.eq.s32.totalorder %s33, 1
      %p51 = por %p49, %p50
      %p53 = scmp.ne.s32.totalorder %s38, %s52
      %p54 = scmp.eq.s32.totalorder %s33, 0
      %p55 = por %p53, %p54
      %s56 = ssub.s32 %s27, %s34
      %p57 = scmp.eq.s32.totalorder %s56, 0
      %s59 = sadd.s32 %s58, 1
      %s60 = scalar_select %p57, %s58, %s59
      %p63 = pneg %p57
      %p64 = scmp.eq.s32.totalorder %s27, 1
      %p65 = por %p63, %p64
      %p66 = scmp.ne.s32.totalorder %s58, %s61
      %p67 = scmp.eq.s32.totalorder %s27, 0
      %p68 = por %p66, %p67
      %p69 = scmp.ne.s32.totalorder %s58, %s61
      %p70 = scmp.eq.s32.totalorder %s32, 1
      %p71 = por %p69, %p70
      %p72 = scmp.ne.s32.totalorder %s61, %s62
      %p73 = scmp.eq.s32.totalorder %s32, 0
      %p74 = por %p72, %p73
      %p75 = scmp.ne.s32.totalorder %s61, %s62
      %p76 = scmp.eq.s32.totalorder %s33, 1
      %p77 = por %p75, %p76
      %p79 = scmp.ne.s32.totalorder %s62, %s78
      %p80 = scmp.eq.s32.totalorder %s33, 0
      %p81 = por %p79, %p80
      %s83 = sadd.s32 %s82, 1
      %p86 = scmp.eq.s32.totalorder %s27, 1
      %p87 = scmp.ne.s32.totalorder %s82, %s84
      %p88 = scmp.eq.s32.totalorder %s27, 0
      %p89 = por %p87, %p88
      %p90 = scmp.ne.s32.totalorder %s82, %s84
      %p91 = scmp.eq.s32.totalorder %s32, 1
      %p92 = por %p90, %p91
      %p93 = scmp.ne.s32.totalorder %s84, %s85
      %p94 = scmp.eq.s32.totalorder %s32, 0
      %p95 = por %p93, %p94
      %p96 = scmp.ne.s32.totalorder %s84, %s85
      %p97 = scmp.eq.s32.totalorder %s33, 1
      %p98 = por %p96, %p97
      %p100 = scmp.ne.s32.totalorder %s85, %s99
      %p101 = scmp.eq.s32.totalorder %s33, 0
      %p102 = por %p100, %p101
      %s104 = sadd.s32 %s103, 1
      %p107 = scmp.eq.s32.totalorder %s27, 1
      %p108 = scmp.ne.s32.totalorder %s103, %s105
      %p109 = scmp.eq.s32.totalorder %s27, 0
      %p110 = por %p108, %p109
      %p111 = scmp.ne.s32.totalorder %s103, %s105
      %p112 = scmp.eq.s32.totalorder %s32, 1
      %p113 = por %p111, %p112
      %p114 = scmp.ne.s32.totalorder %s105, %s106
      %p115 = scmp.eq.s32.totalorder %s32, 0
      %p116 = por %p114, %p115
      %p117 = scmp.ne.s32.totalorder %s105, %s106
      %p118 = scmp.eq.s32.totalorder %s33, 1
      %p119 = por %p117, %p118
      %p121 = scmp.ne.s32.totalorder %s106, %s120
      %p122 = scmp.eq.s32.totalorder %s33, 0
      %p123 = por %p121, %p122
      %s125 = sadd.s32 %s124, 1
      %p128 = scmp.eq.s32.totalorder %s27, 1
      %p129 = scmp.ne.s32.totalorder %s124, %s126
      %p130 = scmp.eq.s32.totalorder %s27, 0
      %p131 = por %p129, %p130
      %p132 = scmp.ne.s32.totalorder %s124, %s126
      %p133 = scmp.eq.s32.totalorder %s32, 1
      %p134 = por %p132, %p133
      %p135 = scmp.ne.s32.totalorder %s126, %s127
      %p136 = scmp.eq.s32.totalorder %s32, 0
      %p137 = por %p135, %p136
      %p138 = scmp.ne.s32.totalorder %s126, %s127
      %p139 = scmp.eq.s32.totalorder %s33, 1
      %p140 = por %p138, %p139
      %p142 = scmp.ne.s32.totalorder %s127, %s141
      %p143 = scmp.eq.s32.totalorder %s33, 0
      %p144 = por %p142, %p143
      %s146 = sadd.s32 %s145, 1
      %p149 = scmp.eq.s32.totalorder %s27, 1
      %p150 = scmp.ne.s32.totalorder %s145, %s147
      %p151 = scmp.eq.s32.totalorder %s27, 0
      %p152 = por %p150, %p151
      %p153 = scmp.ne.s32.totalorder %s145, %s147
      %p154 = scmp.eq.s32.totalorder %s32, 1
      %p155 = por %p153, %p154
      %p156 = scmp.ne.s32.totalorder %s147, %s148
      %p157 = scmp.eq.s32.totalorder %s32, 0
      %p158 = por %p156, %p157
      %p159 = scmp.ne.s32.totalorder %s147, %s148
      %p160 = scmp.eq.s32.totalorder %s33, 1
      %p161 = por %p159, %p160
      %p163 = scmp.ne.s32.totalorder %s148, %s162
      %p164 = scmp.eq.s32.totalorder %s33, 0
      %p165 = por %p163, %p164
      %s167 = sadd.s32 %s166, 1
      %p170 = scmp.eq.s32.totalorder %s27, 1
      %p171 = scmp.ne.s32.totalorder %s166, %s168
      %p172 = scmp.eq.s32.totalorder %s27, 0
      %p173 = por %p171, %p172
      %p174 = scmp.ne.s32.totalorder %s166, %s168
      %p175 = scmp.eq.s32.totalorder %s32, 1
      %p176 = por %p174, %p175
      %p177 = scmp.ne.s32.totalorder %s168, %s169
      %p178 = scmp.eq.s32.totalorder %s32, 0
      %p179 = por %p177, %p178
      %p180 = scmp.ne.s32.totalorder %s168, %s169
      %p181 = scmp.eq.s32.totalorder %s33, 1
      %p182 = por %p180, %p181
      %p184 = scmp.ne.s32.totalorder %s169, %s183
      %p185 = scmp.eq.s32.totalorder %s33, 0
      %p186 = por %p184, %p185
      %s188 = sadd.s32 %s187, 1
      %p191 = scmp.eq.s32.totalorder %s27, 1
      %p192 = scmp.ne.s32.totalorder %s187, %s189
      %p193 = scmp.eq.s32.totalorder %s27, 0
      %p194 = por %p192, %p193
      %p195 = scmp.ne.s32.totalorder %s187, %s189
      %p196 = scmp.eq.s32.totalorder %s32, 1
      %p197 = por %p195, %p196
      %p198 = scmp.ne.s32.totalorder %s189, %s190
      %p199 = scmp.eq.s32.totalorder %s32, 0
      %p200 = por %p198, %p199
      %p201 = scmp.ne.s32.totalorder %s189, %s190
      %p202 = scmp.eq.s32.totalorder %s33, 1
      %p203 = por %p201, %p202
      %p205 = scmp.ne.s32.totalorder %s190, %s204
      %p206 = scmp.eq.s32.totalorder %s33, 0
      %p207 = por %p205, %p206
      %s209 = sadd.s32 %s208, 1
      %p212 = scmp.eq.s32.totalorder %s27, 1
      %p213 = scmp.ne.s32.totalorder %s208, %s210
      %p214 = scmp.eq.s32.totalorder %s27, 0
      %p215 = por %p213, %p214
      %p216 = scmp.ne.s32.totalorder %s208, %s210
      %p217 = scmp.eq.s32.totalorder %s32, 1
      %p218 = por %p216, %p217
      %p219 = scmp.ne.s32.totalorder %s210, %s211
      %p220 = scmp.eq.s32.totalorder %s32, 0
      %p221 = por %p219, %p220
      %p222 = scmp.ne.s32.totalorder %s210, %s211
      %p223 = scmp.eq.s32.totalorder %s33, 1
      %p224 = por %p222, %p223
      %p226 = scmp.ne.s32.totalorder %s211, %s225
      %p227 = scmp.eq.s32.totalorder %s33, 0
      %p228 = por %p226, %p227
      %s230 = sadd.s32 %s229, 1
      %p233 = scmp.eq.s32.totalorder %s27, 1
      %p234 = scmp.ne.s32.totalorder %s229, %s231
      %p235 = scmp.eq.s32.totalorder %s27, 0
      %p236 = por %p234, %p235
      %p237 = scmp.ne.s32.totalorder %s229, %s231
      %p238 = scmp.eq.s32.totalorder %s32, 1
      %p239 = por %p237, %p238
      %p240 = scmp.ne.s32.totalorder %s231, %s232
      %p241 = scmp.eq.s32.totalorder %s32, 0
      %p242 = por %p240, %p241
      %p243 = scmp.ne.s32.totalorder %s231, %s232
      %p244 = scmp.eq.s32.totalorder %s33, 1
      %p245 = por %p243, %p244
      %p247 = scmp.ne.s32.totalorder %s232, %s246
      %p248 = scmp.eq.s32.totalorder %s33, 0
      %p249 = por %p247, %p248
      %s251 = sadd.s32 %s250, 1
      %p254 = scmp.eq.s32.totalorder %s27, 1
      %p255 = scmp.ne.s32.totalorder %s250, %s252
      %p256 = scmp.eq.s32.totalorder %s27, 0
      %p257 = por %p255, %p256
      %p258 = scmp.ne.s32.totalorder %s250, %s252
      %p259 = scmp.eq.s32.totalorder %s32, 1
      %p260 = por %p258, %p259
      %p261 = scmp.ne.s32.totalorder %s252, %s253
      %p262 = scmp.eq.s32.totalorder %s32, 0
      %p263 = por %p261, %p262
      %p264 = scmp.ne.s32.totalorder %s252, %s253
      %p265 = scmp.eq.s32.totalorder %s33, 1
      %p266 = por %p264, %p265
      %p268 = scmp.ne.s32.totalorder %s253, %s267
      %p269 = scmp.eq.s32.totalorder %s33, 0
      %p270 = por %p268, %p269
      %s272 = sadd.s32 %s271, 1
      %p275 = scmp.eq.s32.totalorder %s27, 1
      %p276 = scmp.ne.s32.totalorder %s271, %s273
      %p277 = scmp.eq.s32.totalorder %s27, 0
      %p278 = por %p276, %p277
      %p279 = scmp.ne.s32.totalorder %s271, %s273
      %p280 = scmp.eq.s32.totalorder %s32, 1
      %p281 = por %p279, %p280
      %p282 = scmp.ne.s32.totalorder %s273, %s274
      %p283 = scmp.eq.s32.totalorder %s32, 0
      %p284 = por %p282, %p283
      %p285 = scmp.ne.s32.totalorder %s273, %s274
      %p286 = scmp.eq.s32.totalorder %s33, 1
      %p287 = por %p285, %p286
      %p289 = scmp.ne.s32.totalorder %s274, %s288
      %p290 = scmp.eq.s32.totalorder %s33, 0
      %p291 = por %p289, %p290
      %s292 = ssub.s32 %s27, %s34
      %p293 = scmp.eq.s32.totalorder %s292, 0
      %s295 = sadd.s32 %s294, 1
      %s296 = scalar_select %p293, %s294, %s295
      %p299 = pneg %p293
      %p300 = scmp.eq.s32.totalorder %s27, 1
      %p301 = por %p299, %p300
      %p302 = scmp.ne.s32.totalorder %s294, %s297
      %p303 = scmp.eq.s32.totalorder %s27, 0
      %p304 = por %p302, %p303
      %p305 = scmp.ne.s32.totalorder %s294, %s297
      %p306 = scmp.eq.s32.totalorder %s32, 1
      %p307 = por %p305, %p306
      %p308 = scmp.ne.s32.totalorder %s297, %s298
      %p309 = scmp.eq.s32.totalorder %s32, 0
      %p310 = por %p308, %p309
      %p311 = scmp.ne.s32.totalorder %s297, %s298
      %p312 = scmp.eq.s32.totalorder %s33, 1
      %p313 = por %p311, %p312
      %p315 = scmp.ne.s32.totalorder %s298, %s314
      %p316 = scmp.eq.s32.totalorder %s33, 0
      %p317 = por %p315, %p316
      %p318 = scmp.le.s32.totalorder 1, %s27
      %p319 = scmp.lt.s32.totalorder %s27, 3
      %p320 = pnand %p318, %p319
      %p321 = pneg %p320
      // Predicated region
      $region9: #{tpu_custom_call.1} parent=5 // pred_check
        _
      $region10: #{tpu_custom_call.1} parent=5 // pred_check_branch
        %323 = sbr.rel (%p320) target = $region12
      $region11: #{tpu_custom_call.1} parent=5 // pred_region
        %s324 = ssub.s32 %s27, 1
        // Predicated region
        $region13: #{tpu_custom_call.1} parent=11 // pred_check
          %p325 = pneg %p48
        $region14: #{tpu_custom_call.1} parent=11 // pred_check_branch
          %327 = sbr.rel (%p325) target = $region16
        $region15: #{tpu_custom_call.1} parent=11 // pred_region
          %s329 = ssub.s32 8192, 8192
          %330 = vsyncadd [#allocation3], %s329
          %s331 = sshll.u32 [#allocation2], 4
          %s332 = int_to_ptr.vmem [resolvable:$true] %s331
          %337 = dma.hbm_to_vmem [thread:$0]  %s0, 8192, %s332, [#allocation3], 256, 256, 16
        $region16: #{tpu_custom_call.1} parent=11 // pred_fallthru
          _
        // Predicated region
        $region17: #{tpu_custom_call.1} parent=11 // pred_check
          %p338 = pneg %p95
        $region18: #{tpu_custom_call.1} parent=11 // pred_check_branch
          %340 = sbr.rel (%p338) target = $region20
        $region19: #{tpu_custom_call.1} parent=11 // pred_region
          %s342 = ssub.s32 16384, 16384
          %343 = vsyncadd [#allocation6], %s342
          %s344 = sshll.u32 [#allocation7], 4
          %s345 = int_to_ptr.vmem [resolvable:$true] %s344
          %350 = dma.hbm_to_vmem [thread:$0]  %s2, 16384, %s345, [#allocation6], 256, 256, 16
        $region20: #{tpu_custom_call.1} parent=11 // pred_fallthru
          _
        // Predicated region
        $region21: #{tpu_custom_call.1} parent=11 // pred_check
          %p351 = pneg %p116
        $region22: #{tpu_custom_call.1} parent=11 // pred_check_branch
          %353 = sbr.rel (%p351) target = $region24
        $region23: #{tpu_custom_call.1} parent=11 // pred_region
          %s355 = ssub.s32 16384, 16384
          %356 = vsyncadd [#allocation9], %s355
          %s357 = sshll.u32 [#allocation8], 4
          %s358 = int_to_ptr.vmem [resolvable:$true] %s357
          %363 = dma.hbm_to_vmem [thread:$0]  %s3, 16384, %s358, [#allocation9], 256, 256, 16
        $region24: #{tpu_custom_call.1} parent=11 // pred_fallthru
          _
        // Predicated region
        $region25: #{tpu_custom_call.1} parent=11 // pred_check
          %p364 = pneg %p137
        $region26: #{tpu_custom_call.1} parent=11 // pred_check_branch
          %366 = sbr.rel (%p364) target = $region28
        $region27: #{tpu_custom_call.1} parent=11 // pred_region
          %s368 = ssub.s32 16384, 16384
          %369 = vsyncadd [#allocation9], %s368
          %s370 = sshll.u32 [#allocation10], 4
          %s371 = int_to_ptr.vmem [resolvable:$true] %s370
          %376 = dma.hbm_to_vmem [thread:$0]  %s4, 16384, %s371, [#allocation9], 256, 256, 16
        $region28: #{tpu_custom_call.1} parent=11 // pred_fallthru
          _
        // Predicated region
        $region29: #{tpu_custom_call.1} parent=11 // pred_check
          %p377 = pneg %p158
        $region30: #{tpu_custom_call.1} parent=11 // pred_check_branch
          %379 = sbr.rel (%p377) target = $region32
        $region31: #{tpu_custom_call.1} parent=11 // pred_region
          _
        $region32: #{tpu_custom_call.1} parent=11 // pred_fallthru
          _
        // Predicated region
        $region33: #{tpu_custom_call.1} parent=11 // pred_check
          %p380 = pneg %p179
        $region34: #{tpu_custom_call.1} parent=11 // pred_check_branch
          %382 = sbr.rel (%p380) target = $region36
        $region35: #{tpu_custom_call.1} parent=11 // pred_region
          _
        $region36: #{tpu_custom_call.1} parent=11 // pred_fallthru
          _
        // Predicated region
        $region37: #{tpu_custom_call.1} parent=11 // pred_check
          %p383 = pneg %p200
        $region38: #{tpu_custom_call.1} parent=11 // pred_check_branch
          %385 = sbr.rel (%p383) target = $region40
        $region39: #{tpu_custom_call.1} parent=11 // pred_region
          _
        $region40: #{tpu_custom_call.1} parent=11 // pred_fallthru
          _
        // Predicated region
        $region41: #{tpu_custom_call.1} parent=11 // pred_check
          %p386 = pneg %p221
        $region42: #{tpu_custom_call.1} parent=11 // pred_check_branch
          %388 = sbr.rel (%p386) target = $region44
        $region43: #{tpu_custom_call.1} parent=11 // pred_region
          %s390 = ssub.s32 16384, 16384
          %391 = vsyncadd [#allocation12], %s390
          %s392 = sshll.u32 [#allocation11], 4
          %s393 = int_to_ptr.vmem [resolvable:$true] %s392
          %398 = dma.hbm_to_vmem [thread:$0]  %s8, 16384, %s393, [#allocation12], 256, 256, 16
        $region44: #{tpu_custom_call.1} parent=11 // pred_fallthru
          _
        // Predicated region
        $region45: #{tpu_custom_call.1} parent=11 // pred_check
          %p399 = pneg %p242
        $region46: #{tpu_custom_call.1} parent=11 // pred_check_branch
          %401 = sbr.rel (%p399) target = $region48
        $region47: #{tpu_custom_call.1} parent=11 // pred_region
          _
        $region48: #{tpu_custom_call.1} parent=11 // pred_fallthru
          _
        // Predicated region
        $region49: #{tpu_custom_call.1} parent=11 // pred_check
          %p402 = pneg %p263
        $region50: #{tpu_custom_call.1} parent=11 // pred_check_branch
          %404 = sbr.rel (%p402) target = $region52
        $region51: #{tpu_custom_call.1} parent=11 // pred_region
          _
        $region52: #{tpu_custom_call.1} parent=11 // pred_fallthru
          _
        // Predicated region
        $region53: #{tpu_custom_call.1} parent=11 // pred_check
          %p405 = pneg %p284
        $region54: #{tpu_custom_call.1} parent=11 // pred_check_branch
          %407 = sbr.rel (%p405) target = $region56
        $region55: #{tpu_custom_call.1} parent=11 // pred_region
          _
        $region56: #{tpu_custom_call.1} parent=11 // pred_fallthru
          _
      $region12: #{tpu_custom_call.1} parent=5 // pred_fallthru
        _
      %p408 = scmp.lt.s32.totalorder %s27, 2
      // Predicated region
      $region57: #{tpu_custom_call.1} parent=5 // pred_check
        %p409 = pneg %p408
      $region58: #{tpu_custom_call.1} parent=5 // pred_check_branch
        %411 = sbr.rel (%p409) target = $region60
      $region59: #{tpu_custom_call.1} parent=5 // pred_region
        // Predicated region
        $region61: #{tpu_custom_call.1} parent=59 // pred_check
          %p412 = pneg %p68
        $region62: #{tpu_custom_call.1} parent=59 // pred_check_branch
          %414 = sbr.rel (%p412) target = $region64
        $region63: #{tpu_custom_call.1} parent=59 // pred_region
          %s415 = sand.u32 %s27, 1
          %s416 = scalar_lea.sflag [#allocation6], %s415
          %s417 = sand.u32 %s58, 1
          %s418 = smul.addr %s417, 512
          %s419 = scalar_lea.vmem [#allocation5], %s418
          %s420 = smul.u32 16, %s27
          %s422 = ssub.s32 8192, 8192
          %423 = vsyncadd %s416, %s422
          %s424 = smul.addr %s420, 4
          %s425 = smul.addr %s424, 128
          %s426 = scalar_lea.hbm %s1, %s425
          %s427 = sshll.u32 %s419, 4
          %s428 = int_to_ptr.vmem [resolvable:$true] %s427
          %433 = dma.hbm_to_vmem [thread:$0]  %s426, 8192, %s428, %s416, 512, 512, 32
        $region64: #{tpu_custom_call.1} parent=59 // pred_fallthru
          _
      $region60: #{tpu_custom_call.1} parent=5 // pred_fallthru
        _
      %p434 = scmp.le.s32.totalorder 1, %s27
      %p435 = scmp.lt.s32.totalorder %s27, 3
      %p436 = pnand %p434, %p435
      %p437 = pneg %p436
      // Predicated region
      $region65: #{tpu_custom_call.1} parent=5 // pred_check
        _
      $region66: #{tpu_custom_call.1} parent=5 // pred_check_branch
        %439 = sbr.rel (%p436) target = $region68
      $region67: #{tpu_custom_call.1} parent=5 // pred_region
        %s440 = ssub.s32 %s27, 1
        // Predicated region
        $region69: #{tpu_custom_call.1} parent=67 // pred_check
          %p441 = pneg %p48
        $region70: #{tpu_custom_call.1} parent=67 // pred_check_branch
          %443 = sbr.rel (%p441) target = $region72
        $region71: #{tpu_custom_call.1} parent=67 // pred_region
          %444 = dma.done [#allocation3], 8192
        $region72: #{tpu_custom_call.1} parent=67 // pred_fallthru
          _
        %s445 = sand.u32 %s32, 1
        %s446 = scalar_lea.sflag [#allocation6], %s445
        %s447 = sand.u32 %s61, 1
        %s448 = smul.addr %s447, 512
        %s449 = scalar_lea.vmem [#allocation5], %s448
        // Predicated region
        $region73: #{tpu_custom_call.1} parent=67 // pred_check
          %p450 = pneg %p74
        $region74: #{tpu_custom_call.1} parent=67 // pred_check_branch
          %452 = sbr.rel (%p450) target = $region76
        $region75: #{tpu_custom_call.1} parent=67 // pred_region
          %453 = dma.done %s446, 8192
        $region76: #{tpu_custom_call.1} parent=67 // pred_fallthru
          _
        // Predicated region
        $region77: #{tpu_custom_call.1} parent=67 // pred_check
          %p454 = pneg %p95
        $region78: #{tpu_custom_call.1} parent=67 // pred_check_branch
          %456 = sbr.rel (%p454) target = $region80
        $region79: #{tpu_custom_call.1} parent=67 // pred_region
          %457 = dma.done [#allocation6], 16384
        $region80: #{tpu_custom_call.1} parent=67 // pred_fallthru
          _
        // Predicated region
        $region81: #{tpu_custom_call.1} parent=67 // pred_check
          %p458 = pneg %p116
        $region82: #{tpu_custom_call.1} parent=67 // pred_check_branch
          %460 = sbr.rel (%p458) target = $region84
        $region83: #{tpu_custom_call.1} parent=67 // pred_region
          %461 = dma.done [#allocation9], 16384
        $region84: #{tpu_custom_call.1} parent=67 // pred_fallthru
          _
        // Predicated region
        $region85: #{tpu_custom_call.1} parent=67 // pred_check
          %p462 = pneg %p137
        $region86: #{tpu_custom_call.1} parent=67 // pred_check_branch
          %464 = sbr.rel (%p462) target = $region88
        $region87: #{tpu_custom_call.1} parent=67 // pred_region
          %465 = dma.done [#allocation9], 16384
        $region88: #{tpu_custom_call.1} parent=67 // pred_fallthru
          _
        // Predicated region
        $region89: #{tpu_custom_call.1} parent=67 // pred_check
          %p466 = pneg %p221
        $region90: #{tpu_custom_call.1} parent=67 // pred_check_branch
          %468 = sbr.rel (%p466) target = $region92
        $region91: #{tpu_custom_call.1} parent=67 // pred_region
          %469 = dma.done [#allocation12], 16384
        $region92: #{tpu_custom_call.1} parent=67 // pred_fallthru
          _
        %p470 = pneg %p48
        %p471 = pneg %p45
        %s472 = sand.u32 %s32, 1
        %s473 = scalar_lea.sflag [#allocation6], %s472
        %s474 = sand.u32 %s61, 1
        %s475 = smul.addr %s474, 512
        %s476 = scalar_lea.vmem [#allocation5], %s475
        %p477 = pneg %p74
        %p478 = pneg %p71
        %p479 = pneg %p95
        %p480 = pneg %p92
        %p481 = pneg %p116
        %p482 = pneg %p113
        %p483 = pneg %p137
        %p484 = pneg %p134
        %p485 = pneg %p158
        %p486 = pneg %p155
        %p487 = pneg %p179
        %p488 = pneg %p176
        %p489 = pneg %p200
        %p490 = pneg %p197
        %p491 = pneg %p221
        %p492 = pneg %p218
        %p493 = pneg %p242
        %p494 = pneg %p239
        %p495 = pneg %p263
        %p496 = pneg %p260
        %p497 = pneg %p284
        %p498 = pneg %p281
        %p499 = pneg %p310
        %p500 = pneg %p307
        %s501 = sand.u32 %s297, 1
        %s502 = scalar_lea.sflag [#allocation4], %s501
        %s503 = sand.u32 %s297, 1
        %s504 = smul.addr %s503, 512
        %s505 = scalar_lea.vmem [#allocation13], %s504
        %s506 = smul.u32 16, %s32
        %s507 = smul.u32 16, %s32
        %v509 = vld [vmem:[%s449] sm:$0xff]
        %v510 = vld [vmem:[%s449 + $0x8] sm:$0xff]
        %v511 = vld [vmem:[%s449 + $0x10] sm:$0xff]
        %v512 = vld [vmem:[%s449 + $0x18] sm:$0xff]
        %v513 = vld [vmem:[%s449 + $0x20] sm:$0xff]
        %v514 = vld [vmem:[%s449 + $0x28] sm:$0xff]
        %v515 = vld [vmem:[%s449 + $0x30] sm:$0xff]
        %v516 = vld [vmem:[%s449 + $0x38] sm:$0xff]
        %v517 = vld [vmem:[%s449 + $0x40] sm:$0xff]
        %v518 = vld [vmem:[%s449 + $0x48] sm:$0xff]
        %v519 = vld [vmem:[%s449 + $0x50] sm:$0xff]
        %v520 = vld [vmem:[%s449 + $0x58] sm:$0xff]
        %v521 = vld [vmem:[%s449 + $0x60] sm:$0xff]
        %v522 = vld [vmem:[%s449 + $0x68] sm:$0xff]
        %v523 = vld [vmem:[%s449 + $0x70] sm:$0xff]
        %v524 = vld [vmem:[%s449 + $0x78] sm:$0xff]
        %v525 = vld [vmem:[%s449 + $0x80] sm:$0xff]
        %v526 = vld [vmem:[%s449 + $0x88] sm:$0xff]
        %v527 = vld [vmem:[%s449 + $0x90] sm:$0xff]
        %v528 = vld [vmem:[%s449 + $0x98] sm:$0xff]
        %v529 = vld [vmem:[%s449 + $0xa0] sm:$0xff]
        %v530 = vld [vmem:[%s449 + $0xa8] sm:$0xff]
        %v531 = vld [vmem:[%s449 + $0xb0] sm:$0xff]
        %v532 = vld [vmem:[%s449 + $0xb8] sm:$0xff]
        %v533 = vld [vmem:[%s449 + $0xc0] sm:$0xff]
        %v534 = vld [vmem:[%s449 + $0xc8] sm:$0xff]
        %v535 = vld [vmem:[%s449 + $0xd0] sm:$0xff]
        %v536 = vld [vmem:[%s449 + $0xd8] sm:$0xff]
        %v537 = vld [vmem:[%s449 + $0xe0] sm:$0xff]
        %v538 = vld [vmem:[%s449 + $0xe8] sm:$0xff]
        %v539 = vld [vmem:[%s449 + $0xf0] sm:$0xff]
        %v540 = vld [vmem:[%s449 + $0xf8] sm:$0xff]
        %v541 = vld [vmem:[%s449 + $0x100] sm:$0xff]
        %v542 = vld [vmem:[%s449 + $0x108] sm:$0xff]
        %v543 = vld [vmem:[%s449 + $0x110] sm:$0xff]
        %v544 = vld [vmem:[%s449 + $0x118] sm:$0xff]
        %v545 = vld [vmem:[%s449 + $0x120] sm:$0xff]
        %v546 = vld [vmem:[%s449 + $0x128] sm:$0xff]
        %v547 = vld [vmem:[%s449 + $0x130] sm:$0xff]
        %v548 = vld [vmem:[%s449 + $0x138] sm:$0xff]
        %v549 = vld [vmem:[%s449 + $0x140] sm:$0xff]
        %v550 = vld [vmem:[%s449 + $0x148] sm:$0xff]
        %v551 = vld [vmem:[%s449 + $0x150] sm:$0xff]
        %v552 = vld [vmem:[%s449 + $0x158] sm:$0xff]
        %v553 = vld [vmem:[%s449 + $0x160] sm:$0xff]
        %v554 = vld [vmem:[%s449 + $0x168] sm:$0xff]
        %v555 = vld [vmem:[%s449 + $0x170] sm:$0xff]
        %v556 = vld [vmem:[%s449 + $0x178] sm:$0xff]
        %v557 = vld [vmem:[%s449 + $0x180] sm:$0xff]
        %v558 = vld [vmem:[%s449 + $0x188] sm:$0xff]
        %v559 = vld [vmem:[%s449 + $0x190] sm:$0xff]
        %v560 = vld [vmem:[%s449 + $0x198] sm:$0xff]
        %v561 = vld [vmem:[%s449 + $0x1a0] sm:$0xff]
        %v562 = vld [vmem:[%s449 + $0x1a8] sm:$0xff]
        %v563 = vld [vmem:[%s449 + $0x1b0] sm:$0xff]
        %v564 = vld [vmem:[%s449 + $0x1b8] sm:$0xff]
        %v565 = vld [vmem:[%s449 + $0x1c0] sm:$0xff]
        %v566 = vld [vmem:[%s449 + $0x1c8] sm:$0xff]
        %v567 = vld [vmem:[%s449 + $0x1d0] sm:$0xff]
        %v568 = vld [vmem:[%s449 + $0x1d8] sm:$0xff]
        %v569 = vld [vmem:[%s449 + $0x1e0] sm:$0xff]
        %v570 = vld [vmem:[%s449 + $0x1e8] sm:$0xff]
        %v571 = vld [vmem:[%s449 + $0x1f0] sm:$0xff]
        %v572 = vld [vmem:[%s449 + $0x1f8] sm:$0xff]
        %v573 = vpack.c.bf16 %v513, %v509
        %v574 = vpack.c.bf16 %v514, %v510
        %v575 = vpack.c.bf16 %v515, %v511
        %v576 = vpack.c.bf16 %v516, %v512
        %v577 = vpack.c.bf16 %v521, %v517
        %v578 = vpack.c.bf16 %v522, %v518
        %v579 = vpack.c.bf16 %v523, %v519
        %v580 = vpack.c.bf16 %v524, %v520
        %v581 = vpack.c.bf16 %v529, %v525
        %v582 = vpack.c.bf16 %v530, %v526
        %v583 = vpack.c.bf16 %v531, %v527
        %v584 = vpack.c.bf16 %v532, %v528
        %v585 = vpack.c.bf16 %v537, %v533
        %v586 = vpack.c.bf16 %v538, %v534
        %v587 = vpack.c.bf16 %v539, %v535
        %v588 = vpack.c.bf16 %v540, %v536
        %v589 = vpack.c.bf16 %v545, %v541
        %v590 = vpack.c.bf16 %v546, %v542
        %v591 = vpack.c.bf16 %v547, %v543
        %v592 = vpack.c.bf16 %v548, %v544
        %v593 = vpack.c.bf16 %v553, %v549
        %v594 = vpack.c.bf16 %v554, %v550
        %v595 = vpack.c.bf16 %v555, %v551
        %v596 = vpack.c.bf16 %v556, %v552
        %v597 = vpack.c.bf16 %v561, %v557
        %v598 = vpack.c.bf16 %v562, %v558
        %v599 = vpack.c.bf16 %v563, %v559
        %v600 = vpack.c.bf16 %v564, %v560
        %v601 = vpack.c.bf16 %v569, %v565
        %v602 = vpack.c.bf16 %v570, %v566
        %v603 = vpack.c.bf16 %v571, %v567
        %v604 = vpack.c.bf16 %v572, %v568
        %v605 = vld [vmem:[#allocation2] sm:$0xff]
        %v606 = vld [vmem:[#allocation2 + $0x8] sm:$0xff]
        %v607 = vld [vmem:[#allocation2 + $0x10] sm:$0xff]
        %v608 = vld [vmem:[#allocation2 + $0x18] sm:$0xff]
        %v609 = vld [vmem:[#allocation2 + $0x20] sm:$0xff]
        %v610 = vld [vmem:[#allocation2 + $0x28] sm:$0xff]
        %v611 = vld [vmem:[#allocation2 + $0x30] sm:$0xff]
        %v612 = vld [vmem:[#allocation2 + $0x38] sm:$0xff]
        %v613 = vld [vmem:[#allocation2 + $0x40] sm:$0xff]
        %v614 = vld [vmem:[#allocation2 + $0x48] sm:$0xff]
        %v615 = vld [vmem:[#allocation2 + $0x50] sm:$0xff]
        %v616 = vld [vmem:[#allocation2 + $0x58] sm:$0xff]
        %v617 = vld [vmem:[#allocation2 + $0x60] sm:$0xff]
        %v618 = vld [vmem:[#allocation2 + $0x68] sm:$0xff]
        %v619 = vld [vmem:[#allocation2 + $0x70] sm:$0xff]
        %v620 = vld [vmem:[#allocation2 + $0x78] sm:$0xff]
        %v621 = vld [vmem:[#allocation2 + $0x80] sm:$0xff]
        %v622 = vld [vmem:[#allocation2 + $0x88] sm:$0xff]
        %v623 = vld [vmem:[#allocation2 + $0x90] sm:$0xff]
        %v624 = vld [vmem:[#allocation2 + $0x98] sm:$0xff]
        %v625 = vld [vmem:[#allocation2 + $0xa0] sm:$0xff]
        %v626 = vld [vmem:[#allocation2 + $0xa8] sm:$0xff]
        %v627 = vld [vmem:[#allocation2 + $0xb0] sm:$0xff]
        %v628 = vld [vmem:[#allocation2 + $0xb8] sm:$0xff]
        %v629 = vld [vmem:[#allocation2 + $0xc0] sm:$0xff]
        %v630 = vld [vmem:[#allocation2 + $0xc8] sm:$0xff]
        %v631 = vld [vmem:[#allocation2 + $0xd0] sm:$0xff]
        %v632 = vld [vmem:[#allocation2 + $0xd8] sm:$0xff]
        %v633 = vld [vmem:[#allocation2 + $0xe0] sm:$0xff]
        %v634 = vld [vmem:[#allocation2 + $0xe8] sm:$0xff]
        %v635 = vld [vmem:[#allocation2 + $0xf0] sm:$0xff]
        %v636 = vld [vmem:[#allocation2 + $0xf8] sm:$0xff]
        %v637 = vld [vmem:[#allocation2 + $0x100] sm:$0xff]
        %v638 = vld [vmem:[#allocation2 + $0x108] sm:$0xff]
        %v639 = vld [vmem:[#allocation2 + $0x110] sm:$0xff]
        %v640 = vld [vmem:[#allocation2 + $0x118] sm:$0xff]
        %v641 = vld [vmem:[#allocation2 + $0x120] sm:$0xff]
        %v642 = vld [vmem:[#allocation2 + $0x128] sm:$0xff]
        %v643 = vld [vmem:[#allocation2 + $0x130] sm:$0xff]
        %v644 = vld [vmem:[#allocation2 + $0x138] sm:$0xff]
        %v645 = vld [vmem:[#allocation2 + $0x140] sm:$0xff]
        %v646 = vld [vmem:[#allocation2 + $0x148] sm:$0xff]
        %v647 = vld [vmem:[#allocation2 + $0x150] sm:$0xff]
        %v648 = vld [vmem:[#allocation2 + $0x158] sm:$0xff]
        %v649 = vld [vmem:[#allocation2 + $0x160] sm:$0xff]
        %v650 = vld [vmem:[#allocation2 + $0x168] sm:$0xff]
        %v651 = vld [vmem:[#allocation2 + $0x170] sm:$0xff]
        %v652 = vld [vmem:[#allocation2 + $0x178] sm:$0xff]
        %v653 = vld [vmem:[#allocation2 + $0x180] sm:$0xff]
        %v654 = vld [vmem:[#allocation2 + $0x188] sm:$0xff]
        %v655 = vld [vmem:[#allocation2 + $0x190] sm:$0xff]
        %v656 = vld [vmem:[#allocation2 + $0x198] sm:$0xff]
        %v657 = vld [vmem:[#allocation2 + $0x1a0] sm:$0xff]
        %v658 = vld [vmem:[#allocation2 + $0x1a8] sm:$0xff]
        %v659 = vld [vmem:[#allocation2 + $0x1b0] sm:$0xff]
        %v660 = vld [vmem:[#allocation2 + $0x1b8] sm:$0xff]
        %v661 = vld [vmem:[#allocation2 + $0x1c0] sm:$0xff]
        %v662 = vld [vmem:[#allocation2 + $0x1c8] sm:$0xff]
        %v663 = vld [vmem:[#allocation2 + $0x1d0] sm:$0xff]
        %v664 = vld [vmem:[#allocation2 + $0x1d8] sm:$0xff]
        %v665 = vld [vmem:[#allocation2 + $0x1e0] sm:$0xff]
        %v666 = vld [vmem:[#allocation2 + $0x1e8] sm:$0xff]
        %v667 = vld [vmem:[#allocation2 + $0x1f0] sm:$0xff]
        %v668 = vld [vmem:[#allocation2 + $0x1f8] sm:$0xff]
        %v669 = vld [vmem:[#allocation7] sm:$0xff]
        %v670 = vld [vmem:[#allocation7 + $0x8] sm:$0xff]
        %v671 = vld [vmem:[#allocation7 + $0x10] sm:$0xff]
        %v672 = vld [vmem:[#allocation7 + $0x18] sm:$0xff]
        %v673 = vld [vmem:[#allocation7 + $0x20] sm:$0xff]
        %v674 = vld [vmem:[#allocation7 + $0x28] sm:$0xff]
        %v675 = vld [vmem:[#allocation7 + $0x30] sm:$0xff]
        %v676 = vld [vmem:[#allocation7 + $0x38] sm:$0xff]
        %v677 = vld [vmem:[#allocation7 + $0x40] sm:$0xff]
        %v678 = vld [vmem:[#allocation7 + $0x48] sm:$0xff]
        %v679 = vld [vmem:[#allocation7 + $0x50] sm:$0xff]
        %v680 = vld [vmem:[#allocation7 + $0x58] sm:$0xff]
        %v681 = vld [vmem:[#allocation7 + $0x60] sm:$0xff]
        %v682 = vld [vmem:[#allocation7 + $0x68] sm:$0xff]
        %v683 = vld [vmem:[#allocation7 + $0x70] sm:$0xff]
        %v684 = vld [vmem:[#allocation7 + $0x78] sm:$0xff]
        %v685 = vld [vmem:[#allocation7 + $0x80] sm:$0xff]
        %v686 = vld [vmem:[#allocation7 + $0x88] sm:$0xff]
        %v687 = vld [vmem:[#allocation7 + $0x90] sm:$0xff]
        %v688 = vld [vmem:[#allocation7 + $0x98] sm:$0xff]
        %v689 = vld [vmem:[#allocation7 + $0xa0] sm:$0xff]
        %v690 = vld [vmem:[#allocation7 + $0xa8] sm:$0xff]
        %v691 = vld [vmem:[#allocation7 + $0xb0] sm:$0xff]
        %v692 = vld [vmem:[#allocation7 + $0xb8] sm:$0xff]
        %v693 = vld [vmem:[#allocation7 + $0xc0] sm:$0xff]
        %v694 = vld [vmem:[#allocation7 + $0xc8] sm:$0xff]
        %v695 = vld [vmem:[#allocation7 + $0xd0] sm:$0xff]
        %v696 = vld [vmem:[#allocation7 + $0xd8] sm:$0xff]
        %v697 = vld [vmem:[#allocation7 + $0xe0] sm:$0xff]
        %v698 = vld [vmem:[#allocation7 + $0xe8] sm:$0xff]
        %v699 = vld [vmem:[#allocation7 + $0xf0] sm:$0xff]
        %v700 = vld [vmem:[#allocation7 + $0xf8] sm:$0xff]
        %v701 = vld [vmem:[#allocation7 + $0x100] sm:$0xff]
        %v702 = vld [vmem:[#allocation7 + $0x108] sm:$0xff]
        %v703 = vld [vmem:[#allocation7 + $0x110] sm:$0xff]
        %v704 = vld [vmem:[#allocation7 + $0x118] sm:$0xff]
        %v705 = vld [vmem:[#allocation7 + $0x120] sm:$0xff]
        %v706 = vld [vmem:[#allocation7 + $0x128] sm:$0xff]
        %v707 = vld [vmem:[#allocation7 + $0x130] sm:$0xff]
        %v708 = vld [vmem:[#allocation7 + $0x138] sm:$0xff]
        %v709 = vld [vmem:[#allocation7 + $0x140] sm:$0xff]
        %v710 = vld [vmem:[#allocation7 + $0x148] sm:$0xff]
        %v711 = vld [vmem:[#allocation7 + $0x150] sm:$0xff]
        %v712 = vld [vmem:[#allocation7 + $0x158] sm:$0xff]
        %v713 = vld [vmem:[#allocation7 + $0x160] sm:$0xff]
        %v714 = vld [vmem:[#allocation7 + $0x168] sm:$0xff]
        %v715 = vld [vmem:[#allocation7 + $0x170] sm:$0xff]
        %v716 = vld [vmem:[#allocation7 + $0x178] sm:$0xff]
        %v717 = vld [vmem:[#allocation7 + $0x180] sm:$0xff]
        %v718 = vld [vmem:[#allocation7 + $0x188] sm:$0xff]
        %v719 = vld [vmem:[#allocation7 + $0x190] sm:$0xff]
        %v720 = vld [vmem:[#allocation7 + $0x198] sm:$0xff]
        %v721 = vld [vmem:[#allocation7 + $0x1a0] sm:$0xff]
        %v722 = vld [vmem:[#allocation7 + $0x1a8] sm:$0xff]
        %v723 = vld [vmem:[#allocation7 + $0x1b0] sm:$0xff]
        %v724 = vld [vmem:[#allocation7 + $0x1b8] sm:$0xff]
        %v725 = vld [vmem:[#allocation7 + $0x1c0] sm:$0xff]
        %v726 = vld [vmem:[#allocation7 + $0x1c8] sm:$0xff]
        %v727 = vld [vmem:[#allocation7 + $0x1d0] sm:$0xff]
        %v728 = vld [vmem:[#allocation7 + $0x1d8] sm:$0xff]
        %v729 = vld [vmem:[#allocation7 + $0x1e0] sm:$0xff]
        %v730 = vld [vmem:[#allocation7 + $0x1e8] sm:$0xff]
        %v731 = vld [vmem:[#allocation7 + $0x1f0] sm:$0xff]
        %v732 = vld [vmem:[#allocation7 + $0x1f8] sm:$0xff]
        %v733 = vld [vmem:[#allocation7 + $0x200] sm:$0xff]
        %v734 = vld [vmem:[#allocation7 + $0x208] sm:$0xff]
        %v735 = vld [vmem:[#allocation7 + $0x210] sm:$0xff]
        %v736 = vld [vmem:[#allocation7 + $0x218] sm:$0xff]
        %v737 = vld [vmem:[#allocation7 + $0x220] sm:$0xff]
        %v738 = vld [vmem:[#allocation7 + $0x228] sm:$0xff]
        %v739 = vld [vmem:[#allocation7 + $0x230] sm:$0xff]
        %v740 = vld [vmem:[#allocation7 + $0x238] sm:$0xff]
        %v741 = vld [vmem:[#allocation7 + $0x240] sm:$0xff]
        %v742 = vld [vmem:[#allocation7 + $0x248] sm:$0xff]
        %v743 = vld [vmem:[#allocation7 + $0x250] sm:$0xff]
        %v744 = vld [vmem:[#allocation7 + $0x258] sm:$0xff]
        %v745 = vld [vmem:[#allocation7 + $0x260] sm:$0xff]
        %v746 = vld [vmem:[#allocation7 + $0x268] sm:$0xff]
        %v747 = vld [vmem:[#allocation7 + $0x270] sm:$0xff]
        %v748 = vld [vmem:[#allocation7 + $0x278] sm:$0xff]
        %v749 = vld [vmem:[#allocation7 + $0x280] sm:$0xff]
        %v750 = vld [vmem:[#allocation7 + $0x288] sm:$0xff]
        %v751 = vld [vmem:[#allocation7 + $0x290] sm:$0xff]
        %v752 = vld [vmem:[#allocation7 + $0x298] sm:$0xff]
        %v753 = vld [vmem:[#allocation7 + $0x2a0] sm:$0xff]
        %v754 = vld [vmem:[#allocation7 + $0x2a8] sm:$0xff]
        %v755 = vld [vmem:[#allocation7 + $0x2b0] sm:$0xff]
        %v756 = vld [vmem:[#allocation7 + $0x2b8] sm:$0xff]
        %v757 = vld [vmem:[#allocation7 + $0x2c0] sm:$0xff]
        %v758 = vld [vmem:[#allocation7 + $0x2c8] sm:$0xff]
        %v759 = vld [vmem:[#allocation7 + $0x2d0] sm:$0xff]
        %v760 = vld [vmem:[#allocation7 + $0x2d8] sm:$0xff]
        %v761 = vld [vmem:[#allocation7 + $0x2e0] sm:$0xff]
        %v762 = vld [vmem:[#allocation7 + $0x2e8] sm:$0xff]
        %v763 = vld [vmem:[#allocation7 + $0x2f0] sm:$0xff]
        %v764 = vld [vmem:[#allocation7 + $0x2f8] sm:$0xff]
        %v765 = vld [vmem:[#allocation7 + $0x300] sm:$0xff]
        %v766 = vld [vmem:[#allocation7 + $0x308] sm:$0xff]
        %v767 = vld [vmem:[#allocation7 + $0x310] sm:$0xff]
        %v768 = vld [vmem:[#allocation7 + $0x318] sm:$0xff]
        %v769 = vld [vmem:[#allocation7 + $0x320] sm:$0xff]
        %v770 = vld [vmem:[#allocation7 + $0x328] sm:$0xff]
        %v771 = vld [vmem:[#allocation7 + $0x330] sm:$0xff]
        %v772 = vld [vmem:[#allocation7 + $0x338] sm:$0xff]
        %v773 = vld [vmem:[#allocation7 + $0x340] sm:$0xff]
        %v774 = vld [vmem:[#allocation7 + $0x348] sm:$0xff]
        %v775 = vld [vmem:[#allocation7 + $0x350] sm:$0xff]
        %v776 = vld [vmem:[#allocation7 + $0x358] sm:$0xff]
        %v777 = vld [vmem:[#allocation7 + $0x360] sm:$0xff]
        %v778 = vld [vmem:[#allocation7 + $0x368] sm:$0xff]
        %v779 = vld [vmem:[#allocation7 + $0x370] sm:$0xff]
        %v780 = vld [vmem:[#allocation7 + $0x378] sm:$0xff]
        %v781 = vld [vmem:[#allocation7 + $0x380] sm:$0xff]
        %v782 = vld [vmem:[#allocation7 + $0x388] sm:$0xff]
        %v783 = vld [vmem:[#allocation7 + $0x390] sm:$0xff]
        %v784 = vld [vmem:[#allocation7 + $0x398] sm:$0xff]
        %v785 = vld [vmem:[#allocation7 + $0x3a0] sm:$0xff]
        %v786 = vld [vmem:[#allocation7 + $0x3a8] sm:$0xff]
        %v787 = vld [vmem:[#allocation7 + $0x3b0] sm:$0xff]
        %v788 = vld [vmem:[#allocation7 + $0x3b8] sm:$0xff]
        %v789 = vld [vmem:[#allocation7 + $0x3c0] sm:$0xff]
        %v790 = vld [vmem:[#allocation7 + $0x3c8] sm:$0xff]
        %v791 = vld [vmem:[#allocation7 + $0x3d0] sm:$0xff]
        %v792 = vld [vmem:[#allocation7 + $0x3d8] sm:$0xff]
        %v793 = vld [vmem:[#allocation7 + $0x3e0] sm:$0xff]
        %v794 = vld [vmem:[#allocation7 + $0x3e8] sm:$0xff]
        %v795 = vld [vmem:[#allocation7 + $0x3f0] sm:$0xff]
        %v796 = vld [vmem:[#allocation7 + $0x3f8] sm:$0xff]
        %v797 = vld [vmem:[%s5] sm:$0xf]
        %v799 = vlaneseq
        %v800 = vshrl.u32 %v799, 7
        %v801 = vsub.s32 0, %v800
        %v802 = vrot.slane %v797, %v801
        %v803 = vlaneseq
        %v804 = vshrl.u32 %v803, 7
        %v805 = vsub.s32 1, %v804
        %v806 = vrot.slane %v797, %v805
        %v807 = vlaneseq
        %v808 = vshrl.u32 %v807, 7
        %v809 = vsub.s32 2, %v808
        %v810 = vrot.slane %v797, %v809
        %v811 = vlaneseq
        %v812 = vshrl.u32 %v811, 7
        %v813 = vsub.s32 3, %v812
        %v814 = vrot.slane %v797, %v813
        %v947 = vunpack.c.l.b16 %v669
        %v948 = vunpack.c.h.b16 %v669
        %v949 = vunpack.c.l.b16 %v670
        %v950 = vunpack.c.h.b16 %v670
        %v951 = vunpack.c.l.b16 %v671
        %v952 = vunpack.c.h.b16 %v671
        %v953 = vunpack.c.l.b16 %v672
        %v954 = vunpack.c.h.b16 %v672
        %v955 = vunpack.c.l.b16 %v673
        %v956 = vunpack.c.h.b16 %v673
        %v957 = vunpack.c.l.b16 %v674
        %v958 = vunpack.c.h.b16 %v674
        %v959 = vunpack.c.l.b16 %v675
        %v960 = vunpack.c.h.b16 %v675
        %v961 = vunpack.c.l.b16 %v676
        %v962 = vunpack.c.h.b16 %v676
        %v963 = vunpack.c.l.b16 %v677
        %v964 = vunpack.c.h.b16 %v677
        %v965 = vunpack.c.l.b16 %v678
        %v966 = vunpack.c.h.b16 %v678
        %v967 = vunpack.c.l.b16 %v679
        %v968 = vunpack.c.h.b16 %v679
        %v969 = vunpack.c.l.b16 %v680
        %v970 = vunpack.c.h.b16 %v680
        %v971 = vunpack.c.l.b16 %v681
        %v972 = vunpack.c.h.b16 %v681
        %v973 = vunpack.c.l.b16 %v682
        %v974 = vunpack.c.h.b16 %v682
        %v975 = vunpack.c.l.b16 %v683
        %v976 = vunpack.c.h.b16 %v683
        %v977 = vunpack.c.l.b16 %v684
        %v978 = vunpack.c.h.b16 %v684
        %v979 = vunpack.c.l.b16 %v685
        %v980 = vunpack.c.h.b16 %v685
        %v981 = vunpack.c.l.b16 %v686
        %v982 = vunpack.c.h.b16 %v686
        %v983 = vunpack.c.l.b16 %v687
        %v984 = vunpack.c.h.b16 %v687
        %v985 = vunpack.c.l.b16 %v688
        %v986 = vunpack.c.h.b16 %v688
        %v987 = vunpack.c.l.b16 %v689
        %v988 = vunpack.c.h.b16 %v689
        %v989 = vunpack.c.l.b16 %v690
        %v990 = vunpack.c.h.b16 %v690
        %v991 = vunpack.c.l.b16 %v691
        %v992 = vunpack.c.h.b16 %v691
        %v993 = vunpack.c.l.b16 %v692
        %v994 = vunpack.c.h.b16 %v692
        %v995 = vunpack.c.l.b16 %v693
        %v996 = vunpack.c.h.b16 %v693
        %v997 = vunpack.c.l.b16 %v694
        %v998 = vunpack.c.h.b16 %v694
        %v999 = vunpack.c.l.b16 %v695
        %v1000 = vunpack.c.h.b16 %v695
        %v1001 = vunpack.c.l.b16 %v696
        %v1002 = vunpack.c.h.b16 %v696
        %v1003 = vunpack.c.l.b16 %v697
        %v1004 = vunpack.c.h.b16 %v697
        %v1005 = vunpack.c.l.b16 %v698
        %v1006 = vunpack.c.h.b16 %v698
        %v1007 = vunpack.c.l.b16 %v699
        %v1008 = vunpack.c.h.b16 %v699
        %v1009 = vunpack.c.l.b16 %v700
        %v1010 = vunpack.c.h.b16 %v700
        %v1011 = vunpack.c.l.b16 %v701
        %v1012 = vunpack.c.h.b16 %v701
        %v1013 = vunpack.c.l.b16 %v702
        %v1014 = vunpack.c.h.b16 %v702
        %v1015 = vunpack.c.l.b16 %v703
        %v1016 = vunpack.c.h.b16 %v703
        %v1017 = vunpack.c.l.b16 %v704
        %v1018 = vunpack.c.h.b16 %v704
        %v1019 = vunpack.c.l.b16 %v705
        %v1020 = vunpack.c.h.b16 %v705
        %v1021 = vunpack.c.l.b16 %v706
        %v1022 = vunpack.c.h.b16 %v706
        %v1023 = vunpack.c.l.b16 %v707
        %v1024 = vunpack.c.h.b16 %v707
        %v1025 = vunpack.c.l.b16 %v708
        %v1026 = vunpack.c.h.b16 %v708
        %v1027 = vunpack.c.l.b16 %v709
        %v1028 = vunpack.c.h.b16 %v709
        %v1029 = vunpack.c.l.b16 %v710
        %v1030 = vunpack.c.h.b16 %v710
        %v1031 = vunpack.c.l.b16 %v711
        %v1032 = vunpack.c.h.b16 %v711
        %v1033 = vunpack.c.l.b16 %v712
        %v1034 = vunpack.c.h.b16 %v712
        %v1035 = vunpack.c.l.b16 %v713
        %v1036 = vunpack.c.h.b16 %v713
        %v1037 = vunpack.c.l.b16 %v714
        %v1038 = vunpack.c.h.b16 %v714
        %v1039 = vunpack.c.l.b16 %v715
        %v1040 = vunpack.c.h.b16 %v715
        %v1041 = vunpack.c.l.b16 %v716
        %v1042 = vunpack.c.h.b16 %v716
        %v1043 = vunpack.c.l.b16 %v717
        %v1044 = vunpack.c.h.b16 %v717
        %v1045 = vunpack.c.l.b16 %v718
        %v1046 = vunpack.c.h.b16 %v718
        %v1047 = vunpack.c.l.b16 %v719
        %v1048 = vunpack.c.h.b16 %v719
        %v1049 = vunpack.c.l.b16 %v720
        %v1050 = vunpack.c.h.b16 %v720
        %v1051 = vunpack.c.l.b16 %v721
        %v1052 = vunpack.c.h.b16 %v721
        %v1053 = vunpack.c.l.b16 %v722
        %v1054 = vunpack.c.h.b16 %v722
        %v1055 = vunpack.c.l.b16 %v723
        %v1056 = vunpack.c.h.b16 %v723
        %v1057 = vunpack.c.l.b16 %v724
        %v1058 = vunpack.c.h.b16 %v724
        %v1059 = vunpack.c.l.b16 %v725
        %v1060 = vunpack.c.h.b16 %v725
        %v1061 = vunpack.c.l.b16 %v726
        %v1062 = vunpack.c.h.b16 %v726
        %v1063 = vunpack.c.l.b16 %v727
        %v1064 = vunpack.c.h.b16 %v727
        %v1065 = vunpack.c.l.b16 %v728
        %v1066 = vunpack.c.h.b16 %v728
        %v1067 = vunpack.c.l.b16 %v729
        %v1068 = vunpack.c.h.b16 %v729
        %v1069 = vunpack.c.l.b16 %v730
        %v1070 = vunpack.c.h.b16 %v730
        %v1071 = vunpack.c.l.b16 %v731
        %v1072 = vunpack.c.h.b16 %v731
        %v1073 = vunpack.c.l.b16 %v732
        %v1074 = vunpack.c.h.b16 %v732
        %v1075 = vunpack.c.l.b16 %v733
        %v1076 = vunpack.c.h.b16 %v733
        %v1077 = vunpack.c.l.b16 %v734
        %v1078 = vunpack.c.h.b16 %v734
        %v1079 = vunpack.c.l.b16 %v735
        %v1080 = vunpack.c.h.b16 %v735
        %v1081 = vunpack.c.l.b16 %v736
        %v1082 = vunpack.c.h.b16 %v736
        %v1083 = vunpack.c.l.b16 %v737
        %v1084 = vunpack.c.h.b16 %v737
        %v1085 = vunpack.c.l.b16 %v738
        %v1086 = vunpack.c.h.b16 %v738
        %v1087 = vunpack.c.l.b16 %v739
        %v1088 = vunpack.c.h.b16 %v739
        %v1089 = vunpack.c.l.b16 %v740
        %v1090 = vunpack.c.h.b16 %v740
        %v1091 = vunpack.c.l.b16 %v741
        %v1092 = vunpack.c.h.b16 %v741
        %v1093 = vunpack.c.l.b16 %v742
        %v1094 = vunpack.c.h.b16 %v742
        %v1095 = vunpack.c.l.b16 %v743
        %v1096 = vunpack.c.h.b16 %v743
        %v1097 = vunpack.c.l.b16 %v744
        %v1098 = vunpack.c.h.b16 %v744
        %v1099 = vunpack.c.l.b16 %v745
        %v1100 = vunpack.c.h.b16 %v745
        %v1101 = vunpack.c.l.b16 %v746
        %v1102 = vunpack.c.h.b16 %v746
        %v1103 = vunpack.c.l.b16 %v747
        %v1104 = vunpack.c.h.b16 %v747
        %v1105 = vunpack.c.l.b16 %v748
        %v1106 = vunpack.c.h.b16 %v748
        %v1107 = vunpack.c.l.b16 %v749
        %v1108 = vunpack.c.h.b16 %v749
        %v1109 = vunpack.c.l.b16 %v750
        %v1110 = vunpack.c.h.b16 %v750
        %v1111 = vunpack.c.l.b16 %v751
        %v1112 = vunpack.c.h.b16 %v751
        %v1113 = vunpack.c.l.b16 %v752
        %v1114 = vunpack.c.h.b16 %v752
        %v1115 = vunpack.c.l.b16 %v753
        %v1116 = vunpack.c.h.b16 %v753
        %v1117 = vunpack.c.l.b16 %v754
        %v1118 = vunpack.c.h.b16 %v754
        %v1119 = vunpack.c.l.b16 %v755
        %v1120 = vunpack.c.h.b16 %v755
        %v1121 = vunpack.c.l.b16 %v756
        %v1122 = vunpack.c.h.b16 %v756
        %v1123 = vunpack.c.l.b16 %v757
        %v1124 = vunpack.c.h.b16 %v757
        %v1125 = vunpack.c.l.b16 %v758
        %v1126 = vunpack.c.h.b16 %v758
        %v1127 = vunpack.c.l.b16 %v759
        %v1128 = vunpack.c.h.b16 %v759
        %v1129 = vunpack.c.l.b16 %v760
        %v1130 = vunpack.c.h.b16 %v760
        %v1131 = vunpack.c.l.b16 %v761
        %v1132 = vunpack.c.h.b16 %v761
        %v1133 = vunpack.c.l.b16 %v762
        %v1134 = vunpack.c.h.b16 %v762
        %v1135 = vunpack.c.l.b16 %v763
        %v1136 = vunpack.c.h.b16 %v763
        %v1137 = vunpack.c.l.b16 %v764
        %v1138 = vunpack.c.h.b16 %v764
        %v1139 = vunpack.c.l.b16 %v765
        %v1140 = vunpack.c.h.b16 %v765
        %v1141 = vunpack.c.l.b16 %v766
        %v1142 = vunpack.c.h.b16 %v766
        %v1143 = vunpack.c.l.b16 %v767
        %v1144 = vunpack.c.h.b16 %v767
        %v1145 = vunpack.c.l.b16 %v768
        %v1146 = vunpack.c.h.b16 %v768
        %v1147 = vunpack.c.l.b16 %v769
        %v1148 = vunpack.c.h.b16 %v769
        %v1149 = vunpack.c.l.b16 %v770
        %v1150 = vunpack.c.h.b16 %v770
        %v1151 = vunpack.c.l.b16 %v771
        %v1152 = vunpack.c.h.b16 %v771
        %v1153 = vunpack.c.l.b16 %v772
        %v1154 = vunpack.c.h.b16 %v772
        %v1155 = vunpack.c.l.b16 %v773
        %v1156 = vunpack.c.h.b16 %v773
        %v1157 = vunpack.c.l.b16 %v774
        %v1158 = vunpack.c.h.b16 %v774
        %v1159 = vunpack.c.l.b16 %v775
        %v1160 = vunpack.c.h.b16 %v775
        %v1161 = vunpack.c.l.b16 %v776
        %v1162 = vunpack.c.h.b16 %v776
        %v1163 = vunpack.c.l.b16 %v777
        %v1164 = vunpack.c.h.b16 %v777
        %v1165 = vunpack.c.l.b16 %v778
        %v1166 = vunpack.c.h.b16 %v778
        %v1167 = vunpack.c.l.b16 %v779
        %v1168 = vunpack.c.h.b16 %v779
        %v1169 = vunpack.c.l.b16 %v780
        %v1170 = vunpack.c.h.b16 %v780
        %v1171 = vunpack.c.l.b16 %v781
        %v1172 = vunpack.c.h.b16 %v781
        %v1173 = vunpack.c.l.b16 %v782
        %v1174 = vunpack.c.h.b16 %v782
        %v1175 = vunpack.c.l.b16 %v783
        %v1176 = vunpack.c.h.b16 %v783
        %v1177 = vunpack.c.l.b16 %v784
        %v1178 = vunpack.c.h.b16 %v784
        %v1179 = vunpack.c.l.b16 %v785
        %v1180 = vunpack.c.h.b16 %v785
        %v1181 = vunpack.c.l.b16 %v786
        %v1182 = vunpack.c.h.b16 %v786
        %v1183 = vunpack.c.l.b16 %v787
        %v1184 = vunpack.c.h.b16 %v787
        %v1185 = vunpack.c.l.b16 %v788
        %v1186 = vunpack.c.h.b16 %v788
        %v1187 = vunpack.c.l.b16 %v789
        %v1188 = vunpack.c.h.b16 %v789
        %v1189 = vunpack.c.l.b16 %v790
        %v1190 = vunpack.c.h.b16 %v790
        %v1191 = vunpack.c.l.b16 %v791
        %v1192 = vunpack.c.h.b16 %v791
        %v1193 = vunpack.c.l.b16 %v792
        %v1194 = vunpack.c.h.b16 %v792
        %v1195 = vunpack.c.l.b16 %v793
        %v1196 = vunpack.c.h.b16 %v793
        %v1197 = vunpack.c.l.b16 %v794
        %v1198 = vunpack.c.h.b16 %v794
        %v1199 = vunpack.c.l.b16 %v795
        %v1200 = vunpack.c.h.b16 %v795
        %v1201 = vunpack.c.l.b16 %v796
        %v1202 = vunpack.c.h.b16 %v796
        %v1203 = vpack.c.b16 %v951, %v947
        %v1204 = vpack.c.b16 %v952, %v948
        %v1205 = vpack.c.b16 %v953, %v949
        %v1206 = vpack.c.b16 %v954, %v950
        %v1207 = vpack.c.b16 %v959, %v955
        %v1208 = vpack.c.b16 %v960, %v956
        %v1209 = vpack.c.b16 %v961, %v957
        %v1210 = vpack.c.b16 %v962, %v958
        %v1211 = vpack.c.b16 %v967, %v963
        %v1212 = vpack.c.b16 %v968, %v964
        %v1213 = vpack.c.b16 %v969, %v965
        %v1214 = vpack.c.b16 %v970, %v966
        %v1215 = vpack.c.b16 %v975, %v971
        %v1216 = vpack.c.b16 %v976, %v972
        %v1217 = vpack.c.b16 %v977, %v973
        %v1218 = vpack.c.b16 %v978, %v974
        %v1219 = vpack.c.b16 %v983, %v979
        %v1220 = vpack.c.b16 %v984, %v980
        %v1221 = vpack.c.b16 %v985, %v981
        %v1222 = vpack.c.b16 %v986, %v982
        %v1223 = vpack.c.b16 %v991, %v987
        %v1224 = vpack.c.b16 %v992, %v988
        %v1225 = vpack.c.b16 %v993, %v989
        %v1226 = vpack.c.b16 %v994, %v990
        %v1227 = vpack.c.b16 %v999, %v995
        %v1228 = vpack.c.b16 %v1000, %v996
        %v1229 = vpack.c.b16 %v1001, %v997
        %v1230 = vpack.c.b16 %v1002, %v998
        %v1231 = vpack.c.b16 %v1007, %v1003
        %v1232 = vpack.c.b16 %v1008, %v1004
        %v1233 = vpack.c.b16 %v1009, %v1005
        %v1234 = vpack.c.b16 %v1010, %v1006
        %v1235 = vpack.c.b16 %v1015, %v1011
        %v1236 = vpack.c.b16 %v1016, %v1012
        %v1237 = vpack.c.b16 %v1017, %v1013
        %v1238 = vpack.c.b16 %v1018, %v1014
        %v1239 = vpack.c.b16 %v1023, %v1019
        %v1240 = vpack.c.b16 %v1024, %v1020
        %v1241 = vpack.c.b16 %v1025, %v1021
        %v1242 = vpack.c.b16 %v1026, %v1022
        %v1243 = vpack.c.b16 %v1031, %v1027
        %v1244 = vpack.c.b16 %v1032, %v1028
        %v1245 = vpack.c.b16 %v1033, %v1029
        %v1246 = vpack.c.b16 %v1034, %v1030
        %v1247 = vpack.c.b16 %v1039, %v1035
        %v1248 = vpack.c.b16 %v1040, %v1036
        %v1249 = vpack.c.b16 %v1041, %v1037
        %v1250 = vpack.c.b16 %v1042, %v1038
        %v1251 = vpack.c.b16 %v1047, %v1043
        %v1252 = vpack.c.b16 %v1048, %v1044
        %v1253 = vpack.c.b16 %v1049, %v1045
        %v1254 = vpack.c.b16 %v1050, %v1046
        %v1255 = vpack.c.b16 %v1055, %v1051
        %v1256 = vpack.c.b16 %v1056, %v1052
        %v1257 = vpack.c.b16 %v1057, %v1053
        %v1258 = vpack.c.b16 %v1058, %v1054
        %v1259 = vpack.c.b16 %v1063, %v1059
        %v1260 = vpack.c.b16 %v1064, %v1060
        %v1261 = vpack.c.b16 %v1065, %v1061
        %v1262 = vpack.c.b16 %v1066, %v1062
        %v1263 = vpack.c.b16 %v1071, %v1067
        %v1264 = vpack.c.b16 %v1072, %v1068
        %v1265 = vpack.c.b16 %v1073, %v1069
        %v1266 = vpack.c.b16 %v1074, %v1070
        %v1267 = vpack.c.b16 %v1079, %v1075
        %v1268 = vpack.c.b16 %v1080, %v1076
        %v1269 = vpack.c.b16 %v1081, %v1077
        %v1270 = vpack.c.b16 %v1082, %v1078
        %v1271 = vpack.c.b16 %v1087, %v1083
        %v1272 = vpack.c.b16 %v1088, %v1084
        %v1273 = vpack.c.b16 %v1089, %v1085
        %v1274 = vpack.c.b16 %v1090, %v1086
        %v1275 = vpack.c.b16 %v1095, %v1091
        %v1276 = vpack.c.b16 %v1096, %v1092
        %v1277 = vpack.c.b16 %v1097, %v1093
        %v1278 = vpack.c.b16 %v1098, %v1094
        %v1279 = vpack.c.b16 %v1103, %v1099
        %v1280 = vpack.c.b16 %v1104, %v1100
        %v1281 = vpack.c.b16 %v1105, %v1101
        %v1282 = vpack.c.b16 %v1106, %v1102
        %v1283 = vpack.c.b16 %v1111, %v1107
        %v1284 = vpack.c.b16 %v1112, %v1108
        %v1285 = vpack.c.b16 %v1113, %v1109
        %v1286 = vpack.c.b16 %v1114, %v1110
        %v1287 = vpack.c.b16 %v1119, %v1115
        %v1288 = vpack.c.b16 %v1120, %v1116
        %v1289 = vpack.c.b16 %v1121, %v1117
        %v1290 = vpack.c.b16 %v1122, %v1118
        %v1291 = vpack.c.b16 %v1127, %v1123
        %v1292 = vpack.c.b16 %v1128, %v1124
        %v1293 = vpack.c.b16 %v1129, %v1125
        %v1294 = vpack.c.b16 %v1130, %v1126
        %v1295 = vpack.c.b16 %v1135, %v1131
        %v1296 = vpack.c.b16 %v1136, %v1132
        %v1297 = vpack.c.b16 %v1137, %v1133
        %v1298 = vpack.c.b16 %v1138, %v1134
        %v1299 = vpack.c.b16 %v1143, %v1139
        %v1300 = vpack.c.b16 %v1144, %v1140
        %v1301 = vpack.c.b16 %v1145, %v1141
        %v1302 = vpack.c.b16 %v1146, %v1142
        %v1303 = vpack.c.b16 %v1151, %v1147
        %v1304 = vpack.c.b16 %v1152, %v1148
        %v1305 = vpack.c.b16 %v1153, %v1149
        %v1306 = vpack.c.b16 %v1154, %v1150
        %v1307 = vpack.c.b16 %v1159, %v1155
        %v1308 = vpack.c.b16 %v1160, %v1156
        %v1309 = vpack.c.b16 %v1161, %v1157
        %v1310 = vpack.c.b16 %v1162, %v1158
        %v1311 = vpack.c.b16 %v1167, %v1163
        %v1312 = vpack.c.b16 %v1168, %v1164
        %v1313 = vpack.c.b16 %v1169, %v1165
        %v1314 = vpack.c.b16 %v1170, %v1166
        %v1315 = vpack.c.b16 %v1175, %v1171
        %v1316 = vpack.c.b16 %v1176, %v1172
        %v1317 = vpack.c.b16 %v1177, %v1173
        %v1318 = vpack.c.b16 %v1178, %v1174
        %v1319 = vpack.c.b16 %v1183, %v1179
        %v1320 = vpack.c.b16 %v1184, %v1180
        %v1321 = vpack.c.b16 %v1185, %v1181
        %v1322 = vpack.c.b16 %v1186, %v1182
        %v1323 = vpack.c.b16 %v1191, %v1187
        %v1324 = vpack.c.b16 %v1192, %v1188
        %v1325 = vpack.c.b16 %v1193, %v1189
        %v1326 = vpack.c.b16 %v1194, %v1190
        %v1327 = vpack.c.b16 %v1199, %v1195
        %v1328 = vpack.c.b16 %v1200, %v1196
        %v1329 = vpack.c.b16 %v1201, %v1197
        %v1330 = vpack.c.b16 %v1202, %v1198
        %1459 = vmatprep.subr.bf16.mxu0 %v1204
        %1460 = vmatpush1.bf16.msra.mxu0 %v1203
        %1461 = vmatprep.subr.bf16.mxu0 %v1208
        %1462 = vmatpush1.bf16.msra.mxu0 %v1207
        %1463 = vmatprep.subr.bf16.mxu0 %v1212
        %1464 = vmatpush1.bf16.msra.mxu0 %v1211
        %1465 = vmatprep.subr.bf16.mxu0 %v1216
        %1466 = vmatpush1.bf16.msra.mxu0 %v1215
        %1467 = vmatprep.subr.bf16.mxu0 %v1220
        %1468 = vmatpush1.bf16.msra.mxu0 %v1219
        %1469 = vmatprep.subr.bf16.mxu0 %v1224
        %1470 = vmatpush1.bf16.msra.mxu0 %v1223
        %1471 = vmatprep.subr.bf16.mxu0 %v1228
        %1472 = vmatpush1.bf16.msra.mxu0 %v1227
        %1473 = vmatprep.subr.bf16.mxu0 %v1232
        %1474 = vmatpush1.bf16.msra.mxu0 %v1231
        %1475 = vmatprep.subr.bf16.mxu0 %v1236
        %1476 = vmatpush1.bf16.msra.mxu0 %v1235
        %1477 = vmatprep.subr.bf16.mxu0 %v1240
        %1478 = vmatpush1.bf16.msra.mxu0 %v1239
        %1479 = vmatprep.subr.bf16.mxu0 %v1244
        %1480 = vmatpush1.bf16.msra.mxu0 %v1243
        %1481 = vmatprep.subr.bf16.mxu0 %v1248
        %1482 = vmatpush1.bf16.msra.mxu0 %v1247
        %1483 = vmatprep.subr.bf16.mxu0 %v1252
        %1484 = vmatpush1.bf16.msra.mxu0 %v1251
        %1485 = vmatprep.subr.bf16.mxu0 %v1256
        %1486 = vmatpush1.bf16.msra.mxu0 %v1255
        %1487 = vmatprep.subr.bf16.mxu0 %v1260
        %1488 = vmatpush1.bf16.msra.mxu0 %v1259
        %1489 = vmatprep.subr.bf16.mxu0 %v1264
        %1490 = vmatpush1.bf16.msra.mxu0 %v1263
        %1491 = vmatprep.mubr.bf16.mxu0 %v574
        %1492 = vmatmul.mubr.bf16.gmra.mrb[0].mxu0 %v573
        %v1493 = vpop.f32.mrb[0].mxu0
        %v1494 = vadd.f32 %v802, %v1493
        %v1495 = vpop.f32.mrb[0].mxu0
        %v1496 = vadd.f32 %v806, %v1495
        %v1497 = vpop.f32.mrb[0].mxu0
        %v1498 = vadd.f32 %v802, %v1497
        %v1499 = vpop.f32.mrb[0].mxu0
        %v1500 = vadd.f32 %v806, %v1499
        %1501 = vmatprep.mubr.bf16.mxu0 %v578
        %1502 = vmatmul.mubr.bf16.gmra.mrb[0].mxu0 %v577
        %v1503 = vpop.f32.mrb[0].mxu0
        %v1504 = vadd.f32 %v802, %v1503
        %v1505 = vpop.f32.mrb[0].mxu0
        %v1506 = vadd.f32 %v806, %v1505
        %v1507 = vpop.f32.mrb[0].mxu0
        %v1508 = vadd.f32 %v802, %v1507
        %v1509 = vpop.f32.mrb[0].mxu0
        %v1510 = vadd.f32 %v806, %v1509
        %1511 = vmatprep.mubr.bf16.mxu0 %v582
        %1512 = vmatmul.mubr.bf16.gmra.mrb[0].mxu0 %v581
        %v1513 = vpop.f32.mrb[0].mxu0
        %v1514 = vadd.f32 %v802, %v1513
        %v1515 = vpop.f32.mrb[0].mxu0
        %v1516 = vadd.f32 %v806, %v1515
        %v1517 = vpop.f32.mrb[0].mxu0
        %v1518 = vadd.f32 %v802, %v1517
        %v1519 = vpop.f32.mrb[0].mxu0
        %v1520 = vadd.f32 %v806, %v1519
        %1521 = vmatprep.mubr.bf16.mxu0 %v586
        %1522 = vmatmul.mubr.bf16.gmra.mrb[0].mxu0 %v585
        %v1523 = vpop.f32.mrb[0].mxu0
        %v1524 = vadd.f32 %v802, %v1523
        %v1525 = vpop.f32.mrb[0].mxu0
        %v1526 = vadd.f32 %v806, %v1525
        %v1527 = vpop.f32.mrb[0].mxu0
        %v1528 = vadd.f32 %v802, %v1527
        %v1529 = vpop.f32.mrb[0].mxu0
        %v1530 = vadd.f32 %v806, %v1529
        %1531 = vmatprep.mubr.bf16.mxu0 %v590
        %1532 = vmatmul.mubr.bf16.gmra.mrb[0].mxu0 %v589
        %v1533 = vpop.f32.mrb[0].mxu0
        %v1534 = vadd.f32 %v802, %v1533
        %v1535 = vpop.f32.mrb[0].mxu0
        %v1536 = vadd.f32 %v806, %v1535
        %v1537 = vpop.f32.mrb[0].mxu0
        %v1538 = vadd.f32 %v802, %v1537
        %v1539 = vpop.f32.mrb[0].mxu0
        %v1540 = vadd.f32 %v806, %v1539
        %1541 = vmatprep.mubr.bf16.mxu0 %v594
        %1542 = vmatmul.mubr.bf16.gmra.mrb[0].mxu0 %v593
        %v1543 = vpop.f32.mrb[0].mxu0
        %v1544 = vadd.f32 %v802, %v1543
        %v1545 = vpop.f32.mrb[0].mxu0
        %v1546 = vadd.f32 %v806, %v1545
        %v1547 = vpop.f32.mrb[0].mxu0
        %v1548 = vadd.f32 %v802, %v1547
        %v1549 = vpop.f32.mrb[0].mxu0
        %v1550 = vadd.f32 %v806, %v1549
        %1551 = vmatprep.mubr.bf16.mxu0 %v598
        %1552 = vmatmul.mubr.bf16.gmra.mrb[0].mxu0 %v597
        %v1553 = vpop.f32.mrb[0].mxu0
        %v1554 = vadd.f32 %v802, %v1553
        %v1555 = vpop.f32.mrb[0].mxu0
        %v1556 = vadd.f32 %v806, %v1555
        %v1557 = vpop.f32.mrb[0].mxu0
        %v1558 = vadd.f32 %v802, %v1557
        %v1559 = vpop.f32.mrb[0].mxu0
        %v1560 = vadd.f32 %v806, %v1559
        %1561 = vmatprep.mubr.bf16.mxu0 %v602
        %1562 = vmatmul.mubr.bf16.gmra.mrb[0].mxu0 %v601
        %v1563 = vpop.f32.mrb[0].mxu0
        %v1564 = vadd.f32 %v802, %v1563
        %v1565 = vpop.f32.mrb[0].mxu0
        %v1566 = vadd.f32 %v806, %v1565
        %v1567 = vpop.f32.mrb[0].mxu0
        %v1568 = vadd.f32 %v802, %v1567
        %v1569 = vpop.f32.mrb[0].mxu0
        %v1570 = vadd.f32 %v806, %v1569
        %1571 = vdwg.mxu0
        %1572 = vmatprep.subr.bf16.mxu0 %v1268
        %1573 = vmatpush1.bf16.msra.mxu0 %v1267
        %1574 = vmatprep.subr.bf16.mxu0 %v1272
        %1575 = vmatpush1.bf16.msra.mxu0 %v1271
        %1576 = vmatprep.subr.bf16.mxu0 %v1276
        %1577 = vmatpush1.bf16.msra.mxu0 %v1275
        %1578 = vmatprep.subr.bf16.mxu0 %v1280
        %1579 = vmatpush1.bf16.msra.mxu0 %v1279
        %1580 = vmatprep.subr.bf16.mxu0 %v1284
        %1581 = vmatpush1.bf16.msra.mxu0 %v1283
        %1582 = vmatprep.subr.bf16.mxu0 %v1288
        %1583 = vmatpush1.bf16.msra.mxu0 %v1287
        %1584 = vmatprep.subr.bf16.mxu0 %v1292
        %1585 = vmatpush1.bf16.msra.mxu0 %v1291
        %1586 = vmatprep.subr.bf16.mxu0 %v1296
        %1587 = vmatpush1.bf16.msra.mxu0 %v1295
        %1588 = vmatprep.subr.bf16.mxu0 %v1300
        %1589 = vmatpush1.bf16.msra.mxu0 %v1299
        %1590 = vmatprep.subr.bf16.mxu0 %v1304
        %1591 = vmatpush1.bf16.msra.mxu0 %v1303
        %1592 = vmatprep.subr.bf16.mxu0 %v1308
        %1593 = vmatpush1.bf16.msra.mxu0 %v1307
        %1594 = vmatprep.subr.bf16.mxu0 %v1312
        %1595 = vmatpush1.bf16.msra.mxu0 %v1311
        %1596 = vmatprep.subr.bf16.mxu0 %v1316
        %1597 = vmatpush1.bf16.msra.mxu0 %v1315
        %1598 = vmatprep.subr.bf16.mxu0 %v1320
        %1599 = vmatpush1.bf16.msra.mxu0 %v1319
        %1600 = vmatprep.subr.bf16.mxu0 %v1324
        %1601 = vmatpush1.bf16.msra.mxu0 %v1323
        %1602 = vmatprep.subr.bf16.mxu0 %v1328
        %1603 = vmatpush1.bf16.msra.mxu0 %v1327
        %1604 = vmatprep.mubr.bf16.mxu0 %v576
        %1605 = vmatmul.mubr.bf16.gmra.mrb[0].mxu0 %v575
        %v1606 = vpop.f32.mrb[0].mxu0
        %v1607 = vadd.f32 %v1494, %v1606
        %v1608 = vpop.f32.mrb[0].mxu0
        %v1609 = vadd.f32 %v1496, %v1608
        %v1610 = vpop.f32.mrb[0].mxu0
        %v1611 = vadd.f32 %v1498, %v1610
        %v1612 = vpop.f32.mrb[0].mxu0
        %v1613 = vadd.f32 %v1500, %v1612
        %1614 = vmatprep.mubr.bf16.mxu0 %v580
        %1615 = vmatmul.mubr.bf16.gmra.mrb[0].mxu0 %v579
        %v1616 = vpop.f32.mrb[0].mxu0
        %v1617 = vadd.f32 %v1504, %v1616
        %v1618 = vpop.f32.mrb[0].mxu0
        %v1619 = vadd.f32 %v1506, %v1618
        %v1620 = vpop.f32.mrb[0].mxu0
        %v1621 = vadd.f32 %v1508, %v1620
        %v1622 = vpop.f32.mrb[0].mxu0
        %v1623 = vadd.f32 %v1510, %v1622
        %1624 = vmatprep.mubr.bf16.mxu0 %v584
        %1625 = vmatmul.mubr.bf16.gmra.mrb[0].mxu0 %v583
        %v1626 = vpop.f32.mrb[0].mxu0
        %v1627 = vadd.f32 %v1514, %v1626
        %v1628 = vpop.f32.mrb[0].mxu0
        %v1629 = vadd.f32 %v1516, %v1628
        %v1630 = vpop.f32.mrb[0].mxu0
        %v1631 = vadd.f32 %v1518, %v1630
        %v1632 = vpop.f32.mrb[0].mxu0
        %v1633 = vadd.f32 %v1520, %v1632
        %1634 = vmatprep.mubr.bf16.mxu0 %v588
        %1635 = vmatmul.mubr.bf16.gmra.mrb[0].mxu0 %v587
        %v1636 = vpop.f32.mrb[0].mxu0
        %v1637 = vadd.f32 %v1524, %v1636
        %v1638 = vpop.f32.mrb[0].mxu0
        %v1639 = vadd.f32 %v1526, %v1638
        %v1640 = vpop.f32.mrb[0].mxu0
        %v1641 = vadd.f32 %v1528, %v1640
        %v1642 = vpop.f32.mrb[0].mxu0
        %v1643 = vadd.f32 %v1530, %v1642
        %1644 = vmatprep.mubr.bf16.mxu0 %v592
        %1645 = vmatmul.mubr.bf16.gmra.mrb[0].mxu0 %v591
        %v1646 = vpop.f32.mrb[0].mxu0
        %v1647 = vadd.f32 %v1534, %v1646
        %v1648 = vpop.f32.mrb[0].mxu0
        %v1649 = vadd.f32 %v1536, %v1648
        %v1650 = vpop.f32.mrb[0].mxu0
        %v1651 = vadd.f32 %v1538, %v1650
        %v1652 = vpop.f32.mrb[0].mxu0
        %v1653 = vadd.f32 %v1540, %v1652
        %1654 = vmatprep.mubr.bf16.mxu0 %v596
        %1655 = vmatmul.mubr.bf16.gmra.mrb[0].mxu0 %v595
        %v1656 = vpop.f32.mrb[0].mxu0
        %v1657 = vadd.f32 %v1544, %v1656
        %v1658 = vpop.f32.mrb[0].mxu0
        %v1659 = vadd.f32 %v1546, %v1658
        %v1660 = vpop.f32.mrb[0].mxu0
        %v1661 = vadd.f32 %v1548, %v1660
        %v1662 = vpop.f32.mrb[0].mxu0
        %v1663 = vadd.f32 %v1550, %v1662
        %1664 = vmatprep.mubr.bf16.mxu0 %v600
        %1665 = vmatmul.mubr.bf16.gmra.mrb[0].mxu0 %v599
        %v1666 = vpop.f32.mrb[0].mxu0
        %v1667 = vadd.f32 %v1554, %v1666
        %v1668 = vpop.f32.mrb[0].mxu0
        %v1669 = vadd.f32 %v1556, %v1668
        %v1670 = vpop.f32.mrb[0].mxu0
        %v1671 = vadd.f32 %v1558, %v1670
        %v1672 = vpop.f32.mrb[0].mxu0
        %v1673 = vadd.f32 %v1560, %v1672
        %1674 = vmatprep.mubr.bf16.mxu0 %v604
        %1675 = vmatmul.mubr.bf16.gmra.mrb[0].mxu0 %v603
        %v1676 = vpop.f32.mrb[0].mxu0
        %v1677 = vadd.f32 %v1564, %v1676
        %v1678 = vpop.f32.mrb[0].mxu0
        %v1679 = vadd.f32 %v1566, %v1678
        %v1680 = vpop.f32.mrb[0].mxu0
        %v1681 = vadd.f32 %v1568, %v1680
        %v1682 = vpop.f32.mrb[0].mxu0
        %v1683 = vadd.f32 %v1570, %v1682
        %1684 = vdwg.mxu0
        %1685 = vmatprep.subr.bf16.mxu0 %v1206
        %1686 = vmatpush1.bf16.msra.mxu0 %v1205
        %1687 = vmatprep.subr.bf16.mxu0 %v1210
        %1688 = vmatpush1.bf16.msra.mxu0 %v1209
        %1689 = vmatprep.subr.bf16.mxu0 %v1214
        %1690 = vmatpush1.bf16.msra.mxu0 %v1213
        %1691 = vmatprep.subr.bf16.mxu0 %v1218
        %1692 = vmatpush1.bf16.msra.mxu0 %v1217
        %1693 = vmatprep.subr.bf16.mxu0 %v1222
        %1694 = vmatpush1.bf16.msra.mxu0 %v1221
        %1695 = vmatprep.subr.bf16.mxu0 %v1226
        %1696 = vmatpush1.bf16.msra.mxu0 %v1225
        %1697 = vmatprep.subr.bf16.mxu0 %v1230
        %1698 = vmatpush1.bf16.msra.mxu0 %v1229
        %1699 = vmatprep.subr.bf16.mxu0 %v1234
        %1700 = vmatpush1.bf16.msra.mxu0 %v1233
        %1701 = vmatprep.subr.bf16.mxu0 %v1238
        %1702 = vmatpush1.bf16.msra.mxu0 %v1237
        %1703 = vmatprep.subr.bf16.mxu0 %v1242
        %1704 = vmatpush1.bf16.msra.mxu0 %v1241
        %1705 = vmatprep.subr.bf16.mxu0 %v1246
        %1706 = vmatpush1.bf16.msra.mxu0 %v1245
        %1707 = vmatprep.subr.bf16.mxu0 %v1250
        %1708 = vmatpush1.bf16.msra.mxu0 %v1249
        %1709 = vmatprep.subr.bf16.mxu0 %v1254
        %1710 = vmatpush1.bf16.msra.mxu0 %v1253
        %1711 = vmatprep.subr.bf16.mxu0 %v1258
        %1712 = vmatpush1.bf16.msra.mxu0 %v1257
        %1713 = vmatprep.subr.bf16.mxu0 %v1262
        %1714 = vmatpush1.bf16.msra.mxu0 %v1261
        %1715 = vmatprep.subr.bf16.mxu0 %v1266
        %1716 = vmatpush1.bf16.msra.mxu0 %v1265
        %1717 = vmatprep.mubr.bf16.mxu0 %v574
        %1718 = vmatmul.mubr.bf16.gmra.mrb[0].mxu0 %v573
        %v1719 = vpop.f32.mrb[0].mxu0
        %v1720 = vadd.f32 %v810, %v1719
        %v1721 = vpop.f32.mrb[0].mxu0
        %v1722 = vadd.f32 %v814, %v1721
        %v1723 = vpop.f32.mrb[0].mxu0
        %v1724 = vadd.f32 %v810, %v1723
        %v1725 = vpop.f32.mrb[0].mxu0
        %v1726 = vadd.f32 %v814, %v1725
        %1727 = vmatprep.mubr.bf16.mxu0 %v578
        %1728 = vmatmul.mubr.bf16.gmra.mrb[0].mxu0 %v577
        %v1729 = vpop.f32.mrb[0].mxu0
        %v1730 = vadd.f32 %v810, %v1729
        %v1731 = vpop.f32.mrb[0].mxu0
        %v1732 = vadd.f32 %v814, %v1731
        %v1733 = vpop.f32.mrb[0].mxu0
        %v1734 = vadd.f32 %v810, %v1733
        %v1735 = vpop.f32.mrb[0].mxu0
        %v1736 = vadd.f32 %v814, %v1735
        %1737 = vmatprep.mubr.bf16.mxu0 %v582
        %1738 = vmatmul.mubr.bf16.gmra.mrb[0].mxu0 %v581
        %v1739 = vpop.f32.mrb[0].mxu0
        %v1740 = vadd.f32 %v810, %v1739
        %v1741 = vpop.f32.mrb[0].mxu0
        %v1742 = vadd.f32 %v814, %v1741
        %v1743 = vpop.f32.mrb[0].mxu0
        %v1744 = vadd.f32 %v810, %v1743
        %v1745 = vpop.f32.mrb[0].mxu0
        %v1746 = vadd.f32 %v814, %v1745
        %1747 = vmatprep.mubr.bf16.mxu0 %v586
        %1748 = vmatmul.mubr.bf16.gmra.mrb[0].mxu0 %v585
        %v1749 = vpop.f32.mrb[0].mxu0
        %v1750 = vadd.f32 %v810, %v1749
        %v1751 = vpop.f32.mrb[0].mxu0
        %v1752 = vadd.f32 %v814, %v1751
        %v1753 = vpop.f32.mrb[0].mxu0
        %v1754 = vadd.f32 %v810, %v1753
        %v1755 = vpop.f32.mrb[0].mxu0
        %v1756 = vadd.f32 %v814, %v1755
        %1757 = vmatprep.mubr.bf16.mxu0 %v590
        %1758 = vmatmul.mubr.bf16.gmra.mrb[0].mxu0 %v589
        %v1759 = vpop.f32.mrb[0].mxu0
        %v1760 = vadd.f32 %v810, %v1759
        %v1761 = vpop.f32.mrb[0].mxu0
        %v1762 = vadd.f32 %v814, %v1761
        %v1763 = vpop.f32.mrb[0].mxu0
        %v1764 = vadd.f32 %v810, %v1763
        %v1765 = vpop.f32.mrb[0].mxu0
        %v1766 = vadd.f32 %v814, %v1765
        %1767 = vmatprep.mubr.bf16.mxu0 %v594
        %1768 = vmatmul.mubr.bf16.gmra.mrb[0].mxu0 %v593
        %v1769 = vpop.f32.mrb[0].mxu0
        %v1770 = vadd.f32 %v810, %v1769
        %v1771 = vpop.f32.mrb[0].mxu0
        %v1772 = vadd.f32 %v814, %v1771
        %v1773 = vpop.f32.mrb[0].mxu0
        %v1774 = vadd.f32 %v810, %v1773
        %v1775 = vpop.f32.mrb[0].mxu0
        %v1776 = vadd.f32 %v814, %v1775
        %1777 = vmatprep.mubr.bf16.mxu0 %v598
        %1778 = vmatmul.mubr.bf16.gmra.mrb[0].mxu0 %v597
        %v1779 = vpop.f32.mrb[0].mxu0
        %v1780 = vadd.f32 %v810, %v1779
        %v1781 = vpop.f32.mrb[0].mxu0
        %v1782 = vadd.f32 %v814, %v1781
        %v1783 = vpop.f32.mrb[0].mxu0
        %v1784 = vadd.f32 %v810, %v1783
        %v1785 = vpop.f32.mrb[0].mxu0
        %v1786 = vadd.f32 %v814, %v1785
        %1787 = vmatprep.mubr.bf16.mxu0 %v602
        %1788 = vmatmul.mubr.bf16.gmra.mrb[0].mxu0 %v601
        %v1789 = vpop.f32.mrb[0].mxu0
        %v1790 = vadd.f32 %v810, %v1789
        %v1791 = vpop.f32.mrb[0].mxu0
        %v1792 = vadd.f32 %v814, %v1791
        %v1793 = vpop.f32.mrb[0].mxu0
        %v1794 = vadd.f32 %v810, %v1793
        %v1795 = vpop.f32.mrb[0].mxu0
        %v1796 = vadd.f32 %v814, %v1795
        %1797 = vdwg.mxu0
        %1798 = vmatprep.subr.bf16.mxu0 %v1270
        %1799 = vmatpush1.bf16.msra.mxu0 %v1269
        %1800 = vmatprep.subr.bf16.mxu0 %v1274
        %1801 = vmatpush1.bf16.msra.mxu0 %v1273
        %1802 = vmatprep.subr.bf16.mxu0 %v1278
        %1803 = vmatpush1.bf16.msra.mxu0 %v1277
        %1804 = vmatprep.subr.bf16.mxu0 %v1282
        %1805 = vmatpush1.bf16.msra.mxu0 %v1281
        %1806 = vmatprep.subr.bf16.mxu0 %v1286
        %1807 = vmatpush1.bf16.msra.mxu0 %v1285
        %1808 = vmatprep.subr.bf16.mxu0 %v1290
        %1809 = vmatpush1.bf16.msra.mxu0 %v1289
        %1810 = vmatprep.subr.bf16.mxu0 %v1294
        %1811 = vmatpush1.bf16.msra.mxu0 %v1293
        %1812 = vmatprep.subr.bf16.mxu0 %v1298
        %1813 = vmatpush1.bf16.msra.mxu0 %v1297
        %1814 = vmatprep.subr.bf16.mxu0 %v1302
        %1815 = vmatpush1.bf16.msra.mxu0 %v1301
        %1816 = vmatprep.subr.bf16.mxu0 %v1306
        %1817 = vmatpush1.bf16.msra.mxu0 %v1305
        %1818 = vmatprep.subr.bf16.mxu0 %v1310
        %1819 = vmatpush1.bf16.msra.mxu0 %v1309
        %1820 = vmatprep.subr.bf16.mxu0 %v1314
        %1821 = vmatpush1.bf16.msra.mxu0 %v1313
        %1822 = vmatprep.subr.bf16.mxu0 %v1318
        %1823 = vmatpush1.bf16.msra.mxu0 %v1317
        %1824 = vmatprep.subr.bf16.mxu0 %v1322
        %1825 = vmatpush1.bf16.msra.mxu0 %v1321
        %1826 = vmatprep.subr.bf16.mxu0 %v1326
        %1827 = vmatpush1.bf16.msra.mxu0 %v1325
        %1828 = vmatprep.subr.bf16.mxu0 %v1330
        %1829 = vmatpush1.bf16.msra.mxu0 %v1329
        %1830 = vmatprep.mubr.bf16.mxu0 %v576
        %1831 = vmatmul.mubr.bf16.gmra.mrb[0].mxu0 %v575
        %v1832 = vpop.f32.mrb[0].mxu0
        %v1833 = vadd.f32 %v1720, %v1832
        %v1834 = vpop.f32.mrb[0].mxu0
        %v1835 = vadd.f32 %v1722, %v1834
        %v1836 = vpop.f32.mrb[0].mxu0
        %v1837 = vadd.f32 %v1724, %v1836
        %v1838 = vpop.f32.mrb[0].mxu0
        %v1839 = vadd.f32 %v1726, %v1838
        %1840 = vmatprep.mubr.bf16.mxu0 %v580
        %1841 = vmatmul.mubr.bf16.gmra.mrb[0].mxu0 %v579
        %v1842 = vpop.f32.mrb[0].mxu0
        %v1843 = vadd.f32 %v1730, %v1842
        %v1844 = vpop.f32.mrb[0].mxu0
        %v1845 = vadd.f32 %v1732, %v1844
        %v1846 = vpop.f32.mrb[0].mxu0
        %v1847 = vadd.f32 %v1734, %v1846
        %v1848 = vpop.f32.mrb[0].mxu0
        %v1849 = vadd.f32 %v1736, %v1848
        %1850 = vmatprep.mubr.bf16.mxu0 %v584
        %1851 = vmatmul.mubr.bf16.gmra.mrb[0].mxu0 %v583
        %v1852 = vpop.f32.mrb[0].mxu0
        %v1853 = vadd.f32 %v1740, %v1852
        %v1854 = vpop.f32.mrb[0].mxu0
        %v1855 = vadd.f32 %v1742, %v1854
        %v1856 = vpop.f32.mrb[0].mxu0
        %v1857 = vadd.f32 %v1744, %v1856
        %v1858 = vpop.f32.mrb[0].mxu0
        %v1859 = vadd.f32 %v1746, %v1858
        %1860 = vmatprep.mubr.bf16.mxu0 %v588
        %1861 = vmatmul.mubr.bf16.gmra.mrb[0].mxu0 %v587
        %v1862 = vpop.f32.mrb[0].mxu0
        %v1863 = vadd.f32 %v1750, %v1862
        %v1864 = vpop.f32.mrb[0].mxu0
        %v1865 = vadd.f32 %v1752, %v1864
        %v1866 = vpop.f32.mrb[0].mxu0
        %v1867 = vadd.f32 %v1754, %v1866
        %v1868 = vpop.f32.mrb[0].mxu0
        %v1869 = vadd.f32 %v1756, %v1868
        %1870 = vmatprep.mubr.bf16.mxu0 %v592
        %1871 = vmatmul.mubr.bf16.gmra.mrb[0].mxu0 %v591
        %v1872 = vpop.f32.mrb[0].mxu0
        %v1873 = vadd.f32 %v1760, %v1872
        %v1874 = vpop.f32.mrb[0].mxu0
        %v1875 = vadd.f32 %v1762, %v1874
        %v1876 = vpop.f32.mrb[0].mxu0
        %v1877 = vadd.f32 %v1764, %v1876
        %v1878 = vpop.f32.mrb[0].mxu0
        %v1879 = vadd.f32 %v1766, %v1878
        %1880 = vmatprep.mubr.bf16.mxu0 %v596
        %1881 = vmatmul.mubr.bf16.gmra.mrb[0].mxu0 %v595
        %v1882 = vpop.f32.mrb[0].mxu0
        %v1883 = vadd.f32 %v1770, %v1882
        %v1884 = vpop.f32.mrb[0].mxu0
        %v1885 = vadd.f32 %v1772, %v1884
        %v1886 = vpop.f32.mrb[0].mxu0
        %v1887 = vadd.f32 %v1774, %v1886
        %v1888 = vpop.f32.mrb[0].mxu0
        %v1889 = vadd.f32 %v1776, %v1888
        %1890 = vmatprep.mubr.bf16.mxu0 %v600
        %1891 = vmatmul.mubr.bf16.gmra.mrb[0].mxu0 %v599
        %v1892 = vpop.f32.mrb[0].mxu0
        %v1893 = vadd.f32 %v1780, %v1892
        %v1894 = vpop.f32.mrb[0].mxu0
        %v1895 = vadd.f32 %v1782, %v1894
        %v1896 = vpop.f32.mrb[0].mxu0
        %v1897 = vadd.f32 %v1784, %v1896
        %v1898 = vpop.f32.mrb[0].mxu0
        %v1899 = vadd.f32 %v1786, %v1898
        %1900 = vmatprep.mubr.bf16.mxu0 %v604
        %1901 = vmatmul.mubr.bf16.gmra.mrb[0].mxu0 %v603
        %v1902 = vpop.f32.mrb[0].mxu0
        %v1903 = vadd.f32 %v1790, %v1902
        %v1904 = vpop.f32.mrb[0].mxu0
        %v1905 = vadd.f32 %v1792, %v1904
        %v1906 = vpop.f32.mrb[0].mxu0
        %v1907 = vadd.f32 %v1794, %v1906
        %v1908 = vpop.f32.mrb[0].mxu0
        %v1909 = vadd.f32 %v1796, %v1908
        %1910 = vdwg.mxu0
        %v1911 = vpack.c.bf16 %v1611, %v1607
        %v1912 = vpack.c.bf16 %v1613, %v1609
        %v1913 = vpack.c.bf16 %v1837, %v1833
        %v1914 = vpack.c.bf16 %v1839, %v1835
        %v1915 = vpack.c.bf16 %v1621, %v1617
        %v1916 = vpack.c.bf16 %v1623, %v1619
        %v1917 = vpack.c.bf16 %v1847, %v1843
        %v1918 = vpack.c.bf16 %v1849, %v1845
        %v1919 = vpack.c.bf16 %v1631, %v1627
        %v1920 = vpack.c.bf16 %v1633, %v1629
        %v1921 = vpack.c.bf16 %v1857, %v1853
        %v1922 = vpack.c.bf16 %v1859, %v1855
        %v1923 = vpack.c.bf16 %v1641, %v1637
        %v1924 = vpack.c.bf16 %v1643, %v1639
        %v1925 = vpack.c.bf16 %v1867, %v1863
        %v1926 = vpack.c.bf16 %v1869, %v1865
        %v1927 = vpack.c.bf16 %v1651, %v1647
        %v1928 = vpack.c.bf16 %v1653, %v1649
        %v1929 = vpack.c.bf16 %v1877, %v1873
        %v1930 = vpack.c.bf16 %v1879, %v1875
        %v1931 = vpack.c.bf16 %v1661, %v1657
        %v1932 = vpack.c.bf16 %v1663, %v1659
        %v1933 = vpack.c.bf16 %v1887, %v1883
        %v1934 = vpack.c.bf16 %v1889, %v1885
        %v1935 = vpack.c.bf16 %v1671, %v1667
        %v1936 = vpack.c.bf16 %v1673, %v1669
        %v1937 = vpack.c.bf16 %v1897, %v1893
        %v1938 = vpack.c.bf16 %v1899, %v1895
        %v1939 = vpack.c.bf16 %v1681, %v1677
        %v1940 = vpack.c.bf16 %v1683, %v1679
        %v1941 = vpack.c.bf16 %v1907, %v1903
        %v1942 = vpack.c.bf16 %v1909, %v1905
        %v1943 = vld [vmem:[#allocation8] sm:$0xff]
        %v1944 = vld [vmem:[#allocation8 + $0x8] sm:$0xff]
        %v1945 = vld [vmem:[#allocation8 + $0x10] sm:$0xff]
        %v1946 = vld [vmem:[#allocation8 + $0x18] sm:$0xff]
        %v1947 = vld [vmem:[#allocation8 + $0x20] sm:$0xff]
        %v1948 = vld [vmem:[#allocation8 + $0x28] sm:$0xff]
        %v1949 = vld [vmem:[#allocation8 + $0x30] sm:$0xff]
        %v1950 = vld [vmem:[#allocation8 + $0x38] sm:$0xff]
        %v1951 = vld [vmem:[#allocation8 + $0x40] sm:$0xff]
        %v1952 = vld [vmem:[#allocation8 + $0x48] sm:$0xff]
        %v1953 = vld [vmem:[#allocation8 + $0x50] sm:$0xff]
        %v1954 = vld [vmem:[#allocation8 + $0x58] sm:$0xff]
        %v1955 = vld [vmem:[#allocation8 + $0x60] sm:$0xff]
        %v1956 = vld [vmem:[#allocation8 + $0x68] sm:$0xff]
        %v1957 = vld [vmem:[#allocation8 + $0x70] sm:$0xff]
        %v1958 = vld [vmem:[#allocation8 + $0x78] sm:$0xff]
        %v1959 = vld [vmem:[#allocation8 + $0x80] sm:$0xff]
        %v1960 = vld [vmem:[#allocation8 + $0x88] sm:$0xff]
        %v1961 = vld [vmem:[#allocation8 + $0x90] sm:$0xff]
        %v1962 = vld [vmem:[#allocation8 + $0x98] sm:$0xff]
        %v1963 = vld [vmem:[#allocation8 + $0xa0] sm:$0xff]
        %v1964 = vld [vmem:[#allocation8 + $0xa8] sm:$0xff]
        %v1965 = vld [vmem:[#allocation8 + $0xb0] sm:$0xff]
        %v1966 = vld [vmem:[#allocation8 + $0xb8] sm:$0xff]
        %v1967 = vld [vmem:[#allocation8 + $0xc0] sm:$0xff]
        %v1968 = vld [vmem:[#allocation8 + $0xc8] sm:$0xff]
        %v1969 = vld [vmem:[#allocation8 + $0xd0] sm:$0xff]
        %v1970 = vld [vmem:[#allocation8 + $0xd8] sm:$0xff]
        %v1971 = vld [vmem:[#allocation8 + $0xe0] sm:$0xff]
        %v1972 = vld [vmem:[#allocation8 + $0xe8] sm:$0xff]
        %v1973 = vld [vmem:[#allocation8 + $0xf0] sm:$0xff]
        %v1974 = vld [vmem:[#allocation8 + $0xf8] sm:$0xff]
        %v1975 = vld [vmem:[#allocation8 + $0x100] sm:$0xff]
        %v1976 = vld [vmem:[#allocation8 + $0x108] sm:$0xff]
        %v1977 = vld [vmem:[#allocation8 + $0x110] sm:$0xff]
        %v1978 = vld [vmem:[#allocation8 + $0x118] sm:$0xff]
        %v1979 = vld [vmem:[#allocation8 + $0x120] sm:$0xff]
        %v1980 = vld [vmem:[#allocation8 + $0x128] sm:$0xff]
        %v1981 = vld [vmem:[#allocation8 + $0x130] sm:$0xff]
        %v1982 = vld [vmem:[#allocation8 + $0x138] sm:$0xff]
        %v1983 = vld [vmem:[#allocation8 + $0x140] sm:$0xff]
        %v1984 = vld [vmem:[#allocation8 + $0x148] sm:$0xff]
        %v1985 = vld [vmem:[#allocation8 + $0x150] sm:$0xff]
        %v1986 = vld [vmem:[#allocation8 + $0x158] sm:$0xff]
        %v1987 = vld [vmem:[#allocation8 + $0x160] sm:$0xff]
        %v1988 = vld [vmem:[#allocation8 + $0x168] sm:$0xff]
        %v1989 = vld [vmem:[#allocation8 + $0x170] sm:$0xff]
        %v1990 = vld [vmem:[#allocation8 + $0x178] sm:$0xff]
        %v1991 = vld [vmem:[#allocation8 + $0x180] sm:$0xff]
        %v1992 = vld [vmem:[#allocation8 + $0x188] sm:$0xff]
        %v1993 = vld [vmem:[#allocation8 + $0x190] sm:$0xff]
        %v1994 = vld [vmem:[#allocation8 + $0x198] sm:$0xff]
        %v1995 = vld [vmem:[#allocation8 + $0x1a0] sm:$0xff]
        %v1996 = vld [vmem:[#allocation8 + $0x1a8] sm:$0xff]
        %v1997 = vld [vmem:[#allocation8 + $0x1b0] sm:$0xff]
        %v1998 = vld [vmem:[#allocation8 + $0x1b8] sm:$0xff]
        %v1999 = vld [vmem:[#allocation8 + $0x1c0] sm:$0xff]
        %v2000 = vld [vmem:[#allocation8 + $0x1c8] sm:$0xff]
        %v2001 = vld [vmem:[#allocation8 + $0x1d0] sm:$0xff]
        %v2002 = vld [vmem:[#allocation8 + $0x1d8] sm:$0xff]
        %v2003 = vld [vmem:[#allocation8 + $0x1e0] sm:$0xff]
        %v2004 = vld [vmem:[#allocation8 + $0x1e8] sm:$0xff]
        %v2005 = vld [vmem:[#allocation8 + $0x1f0] sm:$0xff]
        %v2006 = vld [vmem:[#allocation8 + $0x1f8] sm:$0xff]
        %v2007 = vld [vmem:[#allocation8 + $0x200] sm:$0xff]
        %v2008 = vld [vmem:[#allocation8 + $0x208] sm:$0xff]
        %v2009 = vld [vmem:[#allocation8 + $0x210] sm:$0xff]
        %v2010 = vld [vmem:[#allocation8 + $0x218] sm:$0xff]
        %v2011 = vld [vmem:[#allocation8 + $0x220] sm:$0xff]
        %v2012 = vld [vmem:[#allocation8 + $0x228] sm:$0xff]
        %v2013 = vld [vmem:[#allocation8 + $0x230] sm:$0xff]
        %v2014 = vld [vmem:[#allocation8 + $0x238] sm:$0xff]
        %v2015 = vld [vmem:[#allocation8 + $0x240] sm:$0xff]
        %v2016 = vld [vmem:[#allocation8 + $0x248] sm:$0xff]
        %v2017 = vld [vmem:[#allocation8 + $0x250] sm:$0xff]
        %v2018 = vld [vmem:[#allocation8 + $0x258] sm:$0xff]
        %v2019 = vld [vmem:[#allocation8 + $0x260] sm:$0xff]
        %v2020 = vld [vmem:[#allocation8 + $0x268] sm:$0xff]
        %v2021 = vld [vmem:[#allocation8 + $0x270] sm:$0xff]
        %v2022 = vld [vmem:[#allocation8 + $0x278] sm:$0xff]
        %v2023 = vld [vmem:[#allocation8 + $0x280] sm:$0xff]
        %v2024 = vld [vmem:[#allocation8 + $0x288] sm:$0xff]
        %v2025 = vld [vmem:[#allocation8 + $0x290] sm:$0xff]
        %v2026 = vld [vmem:[#allocation8 + $0x298] sm:$0xff]
        %v2027 = vld [vmem:[#allocation8 + $0x2a0] sm:$0xff]
        %v2028 = vld [vmem:[#allocation8 + $0x2a8] sm:$0xff]
        %v2029 = vld [vmem:[#allocation8 + $0x2b0] sm:$0xff]
        %v2030 = vld [vmem:[#allocation8 + $0x2b8] sm:$0xff]
        %v2031 = vld [vmem:[#allocation8 + $0x2c0] sm:$0xff]
        %v2032 = vld [vmem:[#allocation8 + $0x2c8] sm:$0xff]
        %v2033 = vld [vmem:[#allocation8 + $0x2d0] sm:$0xff]
        %v2034 = vld [vmem:[#allocation8 + $0x2d8] sm:$0xff]
        %v2035 = vld [vmem:[#allocation8 + $0x2e0] sm:$0xff]
        %v2036 = vld [vmem:[#allocation8 + $0x2e8] sm:$0xff]
        %v2037 = vld [vmem:[#allocation8 + $0x2f0] sm:$0xff]
        %v2038 = vld [vmem:[#allocation8 + $0x2f8] sm:$0xff]
        %v2039 = vld [vmem:[#allocation8 + $0x300] sm:$0xff]
        %v2040 = vld [vmem:[#allocation8 + $0x308] sm:$0xff]
        %v2041 = vld [vmem:[#allocation8 + $0x310] sm:$0xff]
        %v2042 = vld [vmem:[#allocation8 + $0x318] sm:$0xff]
        %v2043 = vld [vmem:[#allocation8 + $0x320] sm:$0xff]
        %v2044 = vld [vmem:[#allocation8 + $0x328] sm:$0xff]
        %v2045 = vld [vmem:[#allocation8 + $0x330] sm:$0xff]
        %v2046 = vld [vmem:[#allocation8 + $0x338] sm:$0xff]
        %v2047 = vld [vmem:[#allocation8 + $0x340] sm:$0xff]
        %v2048 = vld [vmem:[#allocation8 + $0x348] sm:$0xff]
        %v2049 = vld [vmem:[#allocation8 + $0x350] sm:$0xff]
        %v2050 = vld [vmem:[#allocation8 + $0x358] sm:$0xff]
        %v2051 = vld [vmem:[#allocation8 + $0x360] sm:$0xff]
        %v2052 = vld [vmem:[#allocation8 + $0x368] sm:$0xff]
        %v2053 = vld [vmem:[#allocation8 + $0x370] sm:$0xff]
        %v2054 = vld [vmem:[#allocation8 + $0x378] sm:$0xff]
        %v2055 = vld [vmem:[#allocation8 + $0x380] sm:$0xff]
        %v2056 = vld [vmem:[#allocation8 + $0x388] sm:$0xff]
        %v2057 = vld [vmem:[#allocation8 + $0x390] sm:$0xff]
        %v2058 = vld [vmem:[#allocation8 + $0x398] sm:$0xff]
        %v2059 = vld [vmem:[#allocation8 + $0x3a0] sm:$0xff]
        %v2060 = vld [vmem:[#allocation8 + $0x3a8] sm:$0xff]
        %v2061 = vld [vmem:[#allocation8 + $0x3b0] sm:$0xff]
        %v2062 = vld [vmem:[#allocation8 + $0x3b8] sm:$0xff]
        %v2063 = vld [vmem:[#allocation8 + $0x3c0] sm:$0xff]
        %v2064 = vld [vmem:[#allocation8 + $0x3c8] sm:$0xff]
        %v2065 = vld [vmem:[#allocation8 + $0x3d0] sm:$0xff]
        %v2066 = vld [vmem:[#allocation8 + $0x3d8] sm:$0xff]
        %v2067 = vld [vmem:[#allocation8 + $0x3e0] sm:$0xff]
        %v2068 = vld [vmem:[#allocation8 + $0x3e8] sm:$0xff]
        %v2069 = vld [vmem:[#allocation8 + $0x3f0] sm:$0xff]
        %v2070 = vld [vmem:[#allocation8 + $0x3f8] sm:$0xff]
        %v2071 = vld [vmem:[%s6] sm:$0xf]
        %v2073 = vlaneseq
        %v2074 = vshrl.u32 %v2073, 7
        %v2075 = vsub.s32 0, %v2074
        %v2076 = vrot.slane %v2071, %v2075
        %v2077 = vlaneseq
        %v2078 = vshrl.u32 %v2077, 7
        %v2079 = vsub.s32 1, %v2078
        %v2080 = vrot.slane %v2071, %v2079
        %v2081 = vlaneseq
        %v2082 = vshrl.u32 %v2081, 7
        %v2083 = vsub.s32 2, %v2082
        %v2084 = vrot.slane %v2071, %v2083
        %v2085 = vlaneseq
        %v2086 = vshrl.u32 %v2085, 7
        %v2087 = vsub.s32 3, %v2086
        %v2088 = vrot.slane %v2071, %v2087
        %v2157 = vunpack.c.l.b16 %v605
        %v2158 = vunpack.c.h.b16 %v605
        %v2159 = vunpack.c.l.b16 %v606
        %v2160 = vunpack.c.h.b16 %v606
        %v2161 = vunpack.c.l.b16 %v607
        %v2162 = vunpack.c.h.b16 %v607
        %v2163 = vunpack.c.l.b16 %v608
        %v2164 = vunpack.c.h.b16 %v608
        %v2165 = vunpack.c.l.b16 %v609
        %v2166 = vunpack.c.h.b16 %v609
        %v2167 = vunpack.c.l.b16 %v610
        %v2168 = vunpack.c.h.b16 %v610
        %v2169 = vunpack.c.l.b16 %v611
        %v2170 = vunpack.c.h.b16 %v611
        %v2171 = vunpack.c.l.b16 %v612
        %v2172 = vunpack.c.h.b16 %v612
        %v2173 = vunpack.c.l.b16 %v613
        %v2174 = vunpack.c.h.b16 %v613
        %v2175 = vunpack.c.l.b16 %v614
        %v2176 = vunpack.c.h.b16 %v614
        %v2177 = vunpack.c.l.b16 %v615
        %v2178 = vunpack.c.h.b16 %v615
        %v2179 = vunpack.c.l.b16 %v616
        %v2180 = vunpack.c.h.b16 %v616
        %v2181 = vunpack.c.l.b16 %v617
        %v2182 = vunpack.c.h.b16 %v617
        %v2183 = vunpack.c.l.b16 %v618
        %v2184 = vunpack.c.h.b16 %v618
        %v2185 = vunpack.c.l.b16 %v619
        %v2186 = vunpack.c.h.b16 %v619
        %v2187 = vunpack.c.l.b16 %v620
        %v2188 = vunpack.c.h.b16 %v620
        %v2189 = vunpack.c.l.b16 %v621
        %v2190 = vunpack.c.h.b16 %v621
        %v2191 = vunpack.c.l.b16 %v622
        %v2192 = vunpack.c.h.b16 %v622
        %v2193 = vunpack.c.l.b16 %v623
        %v2194 = vunpack.c.h.b16 %v623
        %v2195 = vunpack.c.l.b16 %v624
        %v2196 = vunpack.c.h.b16 %v624
        %v2197 = vunpack.c.l.b16 %v625
        %v2198 = vunpack.c.h.b16 %v625
        %v2199 = vunpack.c.l.b16 %v626
        %v2200 = vunpack.c.h.b16 %v626
        %v2201 = vunpack.c.l.b16 %v627
        %v2202 = vunpack.c.h.b16 %v627
        %v2203 = vunpack.c.l.b16 %v628
        %v2204 = vunpack.c.h.b16 %v628
        %v2205 = vunpack.c.l.b16 %v629
        %v2206 = vunpack.c.h.b16 %v629
        %v2207 = vunpack.c.l.b16 %v630
        %v2208 = vunpack.c.h.b16 %v630
        %v2209 = vunpack.c.l.b16 %v631
        %v2210 = vunpack.c.h.b16 %v631
        %v2211 = vunpack.c.l.b16 %v632
        %v2212 = vunpack.c.h.b16 %v632
        %v2213 = vunpack.c.l.b16 %v633
        %v2214 = vunpack.c.h.b16 %v633
        %v2215 = vunpack.c.l.b16 %v634
        %v2216 = vunpack.c.h.b16 %v634
        %v2217 = vunpack.c.l.b16 %v635
        %v2218 = vunpack.c.h.b16 %v635
        %v2219 = vunpack.c.l.b16 %v636
        %v2220 = vunpack.c.h.b16 %v636
        %v2221 = vunpack.c.l.b16 %v637
        %v2222 = vunpack.c.h.b16 %v637
        %v2223 = vunpack.c.l.b16 %v638
        %v2224 = vunpack.c.h.b16 %v638
        %v2225 = vunpack.c.l.b16 %v639
        %v2226 = vunpack.c.h.b16 %v639
        %v2227 = vunpack.c.l.b16 %v640
        %v2228 = vunpack.c.h.b16 %v640
        %v2229 = vunpack.c.l.b16 %v641
        %v2230 = vunpack.c.h.b16 %v641
        %v2231 = vunpack.c.l.b16 %v642
        %v2232 = vunpack.c.h.b16 %v642
        %v2233 = vunpack.c.l.b16 %v643
        %v2234 = vunpack.c.h.b16 %v643
        %v2235 = vunpack.c.l.b16 %v644
        %v2236 = vunpack.c.h.b16 %v644
        %v2237 = vunpack.c.l.b16 %v645
        %v2238 = vunpack.c.h.b16 %v645
        %v2239 = vunpack.c.l.b16 %v646
        %v2240 = vunpack.c.h.b16 %v646
        %v2241 = vunpack.c.l.b16 %v647
        %v2242 = vunpack.c.h.b16 %v647
        %v2243 = vunpack.c.l.b16 %v648
        %v2244 = vunpack.c.h.b16 %v648
        %v2245 = vunpack.c.l.b16 %v649
        %v2246 = vunpack.c.h.b16 %v649
        %v2247 = vunpack.c.l.b16 %v650
        %v2248 = vunpack.c.h.b16 %v650
        %v2249 = vunpack.c.l.b16 %v651
        %v2250 = vunpack.c.h.b16 %v651
        %v2251 = vunpack.c.l.b16 %v652
        %v2252 = vunpack.c.h.b16 %v652
        %v2253 = vunpack.c.l.b16 %v653
        %v2254 = vunpack.c.h.b16 %v653
        %v2255 = vunpack.c.l.b16 %v654
        %v2256 = vunpack.c.h.b16 %v654
        %v2257 = vunpack.c.l.b16 %v655
        %v2258 = vunpack.c.h.b16 %v655
        %v2259 = vunpack.c.l.b16 %v656
        %v2260 = vunpack.c.h.b16 %v656
        %v2261 = vunpack.c.l.b16 %v657
        %v2262 = vunpack.c.h.b16 %v657
        %v2263 = vunpack.c.l.b16 %v658
        %v2264 = vunpack.c.h.b16 %v658
        %v2265 = vunpack.c.l.b16 %v659
        %v2266 = vunpack.c.h.b16 %v659
        %v2267 = vunpack.c.l.b16 %v660
        %v2268 = vunpack.c.h.b16 %v660
        %v2269 = vunpack.c.l.b16 %v661
        %v2270 = vunpack.c.h.b16 %v661
        %v2271 = vunpack.c.l.b16 %v662
        %v2272 = vunpack.c.h.b16 %v662
        %v2273 = vunpack.c.l.b16 %v663
        %v2274 = vunpack.c.h.b16 %v663
        %v2275 = vunpack.c.l.b16 %v664
        %v2276 = vunpack.c.h.b16 %v664
        %v2277 = vunpack.c.l.b16 %v665
        %v2278 = vunpack.c.h.b16 %v665
        %v2279 = vunpack.c.l.b16 %v666
        %v2280 = vunpack.c.h.b16 %v666
        %v2281 = vunpack.c.l.b16 %v667
        %v2282 = vunpack.c.h.b16 %v667
        %v2283 = vunpack.c.l.b16 %v668
        %v2284 = vunpack.c.h.b16 %v668
        %v2285 = vpack.c.b16 %v2161, %v2157
        %v2286 = vpack.c.b16 %v2162, %v2158
        %v2287 = vpack.c.b16 %v2163, %v2159
        %v2288 = vpack.c.b16 %v2164, %v2160
        %v2289 = vpack.c.b16 %v2169, %v2165
        %v2290 = vpack.c.b16 %v2170, %v2166
        %v2291 = vpack.c.b16 %v2171, %v2167
        %v2292 = vpack.c.b16 %v2172, %v2168
        %v2293 = vpack.c.b16 %v2177, %v2173
        %v2294 = vpack.c.b16 %v2178, %v2174
        %v2295 = vpack.c.b16 %v2179, %v2175
        %v2296 = vpack.c.b16 %v2180, %v2176
        %v2297 = vpack.c.b16 %v2185, %v2181
        %v2298 = vpack.c.b16 %v2186, %v2182
        %v2299 = vpack.c.b16 %v2187, %v2183
        %v2300 = vpack.c.b16 %v2188, %v2184
        %v2301 = vpack.c.b16 %v2193, %v2189
        %v2302 = vpack.c.b16 %v2194, %v2190
        %v2303 = vpack.c.b16 %v2195, %v2191
        %v2304 = vpack.c.b16 %v2196, %v2192
        %v2305 = vpack.c.b16 %v2201, %v2197
        %v2306 = vpack.c.b16 %v2202, %v2198
        %v2307 = vpack.c.b16 %v2203, %v2199
        %v2308 = vpack.c.b16 %v2204, %v2200
        %v2309 = vpack.c.b16 %v2209, %v2205
        %v2310 = vpack.c.b16 %v2210, %v2206
        %v2311 = vpack.c.b16 %v2211, %v2207
        %v2312 = vpack.c.b16 %v2212, %v2208
        %v2313 = vpack.c.b16 %v2217, %v2213
        %v2314 = vpack.c.b16 %v2218, %v2214
        %v2315 = vpack.c.b16 %v2219, %v2215
        %v2316 = vpack.c.b16 %v2220, %v2216
        %v2317 = vpack.c.b16 %v2225, %v2221
        %v2318 = vpack.c.b16 %v2226, %v2222
        %v2319 = vpack.c.b16 %v2227, %v2223
        %v2320 = vpack.c.b16 %v2228, %v2224
        %v2321 = vpack.c.b16 %v2233, %v2229
        %v2322 = vpack.c.b16 %v2234, %v2230
        %v2323 = vpack.c.b16 %v2235, %v2231
        %v2324 = vpack.c.b16 %v2236, %v2232
        %v2325 = vpack.c.b16 %v2241, %v2237
        %v2326 = vpack.c.b16 %v2242, %v2238
        %v2327 = vpack.c.b16 %v2243, %v2239
        %v2328 = vpack.c.b16 %v2244, %v2240
        %v2329 = vpack.c.b16 %v2249, %v2245
        %v2330 = vpack.c.b16 %v2250, %v2246
        %v2331 = vpack.c.b16 %v2251, %v2247
        %v2332 = vpack.c.b16 %v2252, %v2248
        %v2333 = vpack.c.b16 %v2257, %v2253
        %v2334 = vpack.c.b16 %v2258, %v2254
        %v2335 = vpack.c.b16 %v2259, %v2255
        %v2336 = vpack.c.b16 %v2260, %v2256
        %v2337 = vpack.c.b16 %v2265, %v2261
        %v2338 = vpack.c.b16 %v2266, %v2262
        %v2339 = vpack.c.b16 %v2267, %v2263
        %v2340 = vpack.c.b16 %v2268, %v2264
        %v2341 = vpack.c.b16 %v2273, %v2269
        %v2342 = vpack.c.b16 %v2274, %v2270
        %v2343 = vpack.c.b16 %v2275, %v2271
        %v2344 = vpack.c.b16 %v2276, %v2272
        %v2345 = vpack.c.b16 %v2281, %v2277
        %v2346 = vpack.c.b16 %v2282, %v2278
        %v2347 = vpack.c.b16 %v2283, %v2279
        %v2348 = vpack.c.b16 %v2284, %v2280
        %v2541 = vunpack.c.l.b16 %v1943
        %v2542 = vunpack.c.h.b16 %v1943
        %v2543 = vunpack.c.l.b16 %v1944
        %v2544 = vunpack.c.h.b16 %v1944
        %v2545 = vunpack.c.l.b16 %v1945
        %v2546 = vunpack.c.h.b16 %v1945
        %v2547 = vunpack.c.l.b16 %v1946
        %v2548 = vunpack.c.h.b16 %v1946
        %v2549 = vunpack.c.l.b16 %v1947
        %v2550 = vunpack.c.h.b16 %v1947
        %v2551 = vunpack.c.l.b16 %v1948
        %v2552 = vunpack.c.h.b16 %v1948
        %v2553 = vunpack.c.l.b16 %v1949
        %v2554 = vunpack.c.h.b16 %v1949
        %v2555 = vunpack.c.l.b16 %v1950
        %v2556 = vunpack.c.h.b16 %v1950
        %v2557 = vunpack.c.l.b16 %v1951
        %v2558 = vunpack.c.h.b16 %v1951
        %v2559 = vunpack.c.l.b16 %v1952
        %v2560 = vunpack.c.h.b16 %v1952
        %v2561 = vunpack.c.l.b16 %v1953
        %v2562 = vunpack.c.h.b16 %v1953
        %v2563 = vunpack.c.l.b16 %v1954
        %v2564 = vunpack.c.h.b16 %v1954
        %v2565 = vunpack.c.l.b16 %v1955
        %v2566 = vunpack.c.h.b16 %v1955
        %v2567 = vunpack.c.l.b16 %v1956
        %v2568 = vunpack.c.h.b16 %v1956
        %v2569 = vunpack.c.l.b16 %v1957
        %v2570 = vunpack.c.h.b16 %v1957
        %v2571 = vunpack.c.l.b16 %v1958
        %v2572 = vunpack.c.h.b16 %v1958
        %v2573 = vunpack.c.l.b16 %v1959
        %v2574 = vunpack.c.h.b16 %v1959
        %v2575 = vunpack.c.l.b16 %v1960
        %v2576 = vunpack.c.h.b16 %v1960
        %v2577 = vunpack.c.l.b16 %v1961
        %v2578 = vunpack.c.h.b16 %v1961
        %v2579 = vunpack.c.l.b16 %v1962
        %v2580 = vunpack.c.h.b16 %v1962
        %v2581 = vunpack.c.l.b16 %v1963
        %v2582 = vunpack.c.h.b16 %v1963
        %v2583 = vunpack.c.l.b16 %v1964
        %v2584 = vunpack.c.h.b16 %v1964
        %v2585 = vunpack.c.l.b16 %v1965
        %v2586 = vunpack.c.h.b16 %v1965
        %v2587 = vunpack.c.l.b16 %v1966
        %v2588 = vunpack.c.h.b16 %v1966
        %v2589 = vunpack.c.l.b16 %v1967
        %v2590 = vunpack.c.h.b16 %v1967
        %v2591 = vunpack.c.l.b16 %v1968
        %v2592 = vunpack.c.h.b16 %v1968
        %v2593 = vunpack.c.l.b16 %v1969
        %v2594 = vunpack.c.h.b16 %v1969
        %v2595 = vunpack.c.l.b16 %v1970
        %v2596 = vunpack.c.h.b16 %v1970
        %v2597 = vunpack.c.l.b16 %v1971
        %v2598 = vunpack.c.h.b16 %v1971
        %v2599 = vunpack.c.l.b16 %v1972
        %v2600 = vunpack.c.h.b16 %v1972
        %v2601 = vunpack.c.l.b16 %v1973
        %v2602 = vunpack.c.h.b16 %v1973
        %v2603 = vunpack.c.l.b16 %v1974
        %v2604 = vunpack.c.h.b16 %v1974
        %v2605 = vunpack.c.l.b16 %v1975
        %v2606 = vunpack.c.h.b16 %v1975
        %v2607 = vunpack.c.l.b16 %v1976
        %v2608 = vunpack.c.h.b16 %v1976
        %v2609 = vunpack.c.l.b16 %v1977
        %v2610 = vunpack.c.h.b16 %v1977
        %v2611 = vunpack.c.l.b16 %v1978
        %v2612 = vunpack.c.h.b16 %v1978
        %v2613 = vunpack.c.l.b16 %v1979
        %v2614 = vunpack.c.h.b16 %v1979
        %v2615 = vunpack.c.l.b16 %v1980
        %v2616 = vunpack.c.h.b16 %v1980
        %v2617 = vunpack.c.l.b16 %v1981
        %v2618 = vunpack.c.h.b16 %v1981
        %v2619 = vunpack.c.l.b16 %v1982
        %v2620 = vunpack.c.h.b16 %v1982
        %v2621 = vunpack.c.l.b16 %v1983
        %v2622 = vunpack.c.h.b16 %v1983
        %v2623 = vunpack.c.l.b16 %v1984
        %v2624 = vunpack.c.h.b16 %v1984
        %v2625 = vunpack.c.l.b16 %v1985
        %v2626 = vunpack.c.h.b16 %v1985
        %v2627 = vunpack.c.l.b16 %v1986
        %v2628 = vunpack.c.h.b16 %v1986
        %v2629 = vunpack.c.l.b16 %v1987
        %v2630 = vunpack.c.h.b16 %v1987
        %v2631 = vunpack.c.l.b16 %v1988
        %v2632 = vunpack.c.h.b16 %v1988
        %v2633 = vunpack.c.l.b16 %v1989
        %v2634 = vunpack.c.h.b16 %v1989
        %v2635 = vunpack.c.l.b16 %v1990
        %v2636 = vunpack.c.h.b16 %v1990
        %v2637 = vunpack.c.l.b16 %v1991
        %v2638 = vunpack.c.h.b16 %v1991
        %v2639 = vunpack.c.l.b16 %v1992
        %v2640 = vunpack.c.h.b16 %v1992
        %v2641 = vunpack.c.l.b16 %v1993
        %v2642 = vunpack.c.h.b16 %v1993
        %v2643 = vunpack.c.l.b16 %v1994
        %v2644 = vunpack.c.h.b16 %v1994
        %v2645 = vunpack.c.l.b16 %v1995
        %v2646 = vunpack.c.h.b16 %v1995
        %v2647 = vunpack.c.l.b16 %v1996
        %v2648 = vunpack.c.h.b16 %v1996
        %v2649 = vunpack.c.l.b16 %v1997
        %v2650 = vunpack.c.h.b16 %v1997
        %v2651 = vunpack.c.l.b16 %v1998
        %v2652 = vunpack.c.h.b16 %v1998
        %v2653 = vunpack.c.l.b16 %v1999
        %v2654 = vunpack.c.h.b16 %v1999
        %v2655 = vunpack.c.l.b16 %v2000
        %v2656 = vunpack.c.h.b16 %v2000
        %v2657 = vunpack.c.l.b16 %v2001
        %v2658 = vunpack.c.h.b16 %v2001
        %v2659 = vunpack.c.l.b16 %v2002
        %v2660 = vunpack.c.h.b16 %v2002
        %v2661 = vunpack.c.l.b16 %v2003
        %v2662 = vunpack.c.h.b16 %v2003
        %v2663 = vunpack.c.l.b16 %v2004
        %v2664 = vunpack.c.h.b16 %v2004
        %v2665 = vunpack.c.l.b16 %v2005
        %v2666 = vunpack.c.h.b16 %v2005
        %v2667 = vunpack.c.l.b16 %v2006
        %v2668 = vunpack.c.h.b16 %v2006
        %v2669 = vunpack.c.l.b16 %v2007
        %v2670 = vunpack.c.h.b16 %v2007
        %v2671 = vunpack.c.l.b16 %v2008
        %v2672 = vunpack.c.h.b16 %v2008
        %v2673 = vunpack.c.l.b16 %v2009
        %v2674 = vunpack.c.h.b16 %v2009
        %v2675 = vunpack.c.l.b16 %v2010
        %v2676 = vunpack.c.h.b16 %v2010
        %v2677 = vunpack.c.l.b16 %v2011
        %v2678 = vunpack.c.h.b16 %v2011
        %v2679 = vunpack.c.l.b16 %v2012
        %v2680 = vunpack.c.h.b16 %v2012
        %v2681 = vunpack.c.l.b16 %v2013
        %v2682 = vunpack.c.h.b16 %v2013
        %v2683 = vunpack.c.l.b16 %v2014
        %v2684 = vunpack.c.h.b16 %v2014
        %v2685 = vunpack.c.l.b16 %v2015
        %v2686 = vunpack.c.h.b16 %v2015
        %v2687 = vunpack.c.l.b16 %v2016
        %v2688 = vunpack.c.h.b16 %v2016
        %v2689 = vunpack.c.l.b16 %v2017
        %v2690 = vunpack.c.h.b16 %v2017
        %v2691 = vunpack.c.l.b16 %v2018
        %v2692 = vunpack.c.h.b16 %v2018
        %v2693 = vunpack.c.l.b16 %v2019
        %v2694 = vunpack.c.h.b16 %v2019
        %v2695 = vunpack.c.l.b16 %v2020
        %v2696 = vunpack.c.h.b16 %v2020
        %v2697 = vunpack.c.l.b16 %v2021
        %v2698 = vunpack.c.h.b16 %v2021
        %v2699 = vunpack.c.l.b16 %v2022
        %v2700 = vunpack.c.h.b16 %v2022
        %v2701 = vunpack.c.l.b16 %v2023
        %v2702 = vunpack.c.h.b16 %v2023
        %v2703 = vunpack.c.l.b16 %v2024
        %v2704 = vunpack.c.h.b16 %v2024
        %v2705 = vunpack.c.l.b16 %v2025
        %v2706 = vunpack.c.h.b16 %v2025
        %v2707 = vunpack.c.l.b16 %v2026
        %v2708 = vunpack.c.h.b16 %v2026
        %v2709 = vunpack.c.l.b16 %v2027
        %v2710 = vunpack.c.h.b16 %v2027
        %v2711 = vunpack.c.l.b16 %v2028
        %v2712 = vunpack.c.h.b16 %v2028
        %v2713 = vunpack.c.l.b16 %v2029
        %v2714 = vunpack.c.h.b16 %v2029
        %v2715 = vunpack.c.l.b16 %v2030
        %v2716 = vunpack.c.h.b16 %v2030
        %v2717 = vunpack.c.l.b16 %v2031
        %v2718 = vunpack.c.h.b16 %v2031
        %v2719 = vunpack.c.l.b16 %v2032
        %v2720 = vunpack.c.h.b16 %v2032
        %v2721 = vunpack.c.l.b16 %v2033
        %v2722 = vunpack.c.h.b16 %v2033
        %v2723 = vunpack.c.l.b16 %v2034
        %v2724 = vunpack.c.h.b16 %v2034
        %v2725 = vunpack.c.l.b16 %v2035
        %v2726 = vunpack.c.h.b16 %v2035
        %v2727 = vunpack.c.l.b16 %v2036
        %v2728 = vunpack.c.h.b16 %v2036
        %v2729 = vunpack.c.l.b16 %v2037
        %v2730 = vunpack.c.h.b16 %v2037
        %v2731 = vunpack.c.l.b16 %v2038
        %v2732 = vunpack.c.h.b16 %v2038
        %v2733 = vunpack.c.l.b16 %v2039
        %v2734 = vunpack.c.h.b16 %v2039
        %v2735 = vunpack.c.l.b16 %v2040
        %v2736 = vunpack.c.h.b16 %v2040
        %v2737 = vunpack.c.l.b16 %v2041
        %v2738 = vunpack.c.h.b16 %v2041
        %v2739 = vunpack.c.l.b16 %v2042
        %v2740 = vunpack.c.h.b16 %v2042
        %v2741 = vunpack.c.l.b16 %v2043
        %v2742 = vunpack.c.h.b16 %v2043
        %v2743 = vunpack.c.l.b16 %v2044
        %v2744 = vunpack.c.h.b16 %v2044
        %v2745 = vunpack.c.l.b16 %v2045
        %v2746 = vunpack.c.h.b16 %v2045
        %v2747 = vunpack.c.l.b16 %v2046
        %v2748 = vunpack.c.h.b16 %v2046
        %v2749 = vunpack.c.l.b16 %v2047
        %v2750 = vunpack.c.h.b16 %v2047
        %v2751 = vunpack.c.l.b16 %v2048
        %v2752 = vunpack.c.h.b16 %v2048
        %v2753 = vunpack.c.l.b16 %v2049
        %v2754 = vunpack.c.h.b16 %v2049
        %v2755 = vunpack.c.l.b16 %v2050
        %v2756 = vunpack.c.h.b16 %v2050
        %v2757 = vunpack.c.l.b16 %v2051
        %v2758 = vunpack.c.h.b16 %v2051
        %v2759 = vunpack.c.l.b16 %v2052
        %v2760 = vunpack.c.h.b16 %v2052
        %v2761 = vunpack.c.l.b16 %v2053
        %v2762 = vunpack.c.h.b16 %v2053
        %v2763 = vunpack.c.l.b16 %v2054
        %v2764 = vunpack.c.h.b16 %v2054
        %v2765 = vunpack.c.l.b16 %v2055
        %v2766 = vunpack.c.h.b16 %v2055
        %v2767 = vunpack.c.l.b16 %v2056
        %v2768 = vunpack.c.h.b16 %v2056
        %v2769 = vunpack.c.l.b16 %v2057
        %v2770 = vunpack.c.h.b16 %v2057
        %v2771 = vunpack.c.l.b16 %v2058
        %v2772 = vunpack.c.h.b16 %v2058
        %v2773 = vunpack.c.l.b16 %v2059
        %v2774 = vunpack.c.h.b16 %v2059
        %v2775 = vunpack.c.l.b16 %v2060
        %v2776 = vunpack.c.h.b16 %v2060
        %v2777 = vunpack.c.l.b16 %v2061
        %v2778 = vunpack.c.h.b16 %v2061
        %v2779 = vunpack.c.l.b16 %v2062
        %v2780 = vunpack.c.h.b16 %v2062
        %v2781 = vunpack.c.l.b16 %v2063
        %v2782 = vunpack.c.h.b16 %v2063
        %v2783 = vunpack.c.l.b16 %v2064
        %v2784 = vunpack.c.h.b16 %v2064
        %v2785 = vunpack.c.l.b16 %v2065
        %v2786 = vunpack.c.h.b16 %v2065
        %v2787 = vunpack.c.l.b16 %v2066
        %v2788 = vunpack.c.h.b16 %v2066
        %v2789 = vunpack.c.l.b16 %v2067
        %v2790 = vunpack.c.h.b16 %v2067
        %v2791 = vunpack.c.l.b16 %v2068
        %v2792 = vunpack.c.h.b16 %v2068
        %v2793 = vunpack.c.l.b16 %v2069
        %v2794 = vunpack.c.h.b16 %v2069
        %v2795 = vunpack.c.l.b16 %v2070
        %v2796 = vunpack.c.h.b16 %v2070
        %v2797 = vpack.c.b16 %v2545, %v2541
        %v2798 = vpack.c.b16 %v2546, %v2542
        %v2799 = vpack.c.b16 %v2547, %v2543
        %v2800 = vpack.c.b16 %v2548, %v2544
        %v2801 = vpack.c.b16 %v2553, %v2549
        %v2802 = vpack.c.b16 %v2554, %v2550
        %v2803 = vpack.c.b16 %v2555, %v2551
        %v2804 = vpack.c.b16 %v2556, %v2552
        %v2805 = vpack.c.b16 %v2561, %v2557
        %v2806 = vpack.c.b16 %v2562, %v2558
        %v2807 = vpack.c.b16 %v2563, %v2559
        %v2808 = vpack.c.b16 %v2564, %v2560
        %v2809 = vpack.c.b16 %v2569, %v2565
        %v2810 = vpack.c.b16 %v2570, %v2566
        %v2811 = vpack.c.b16 %v2571, %v2567
        %v2812 = vpack.c.b16 %v2572, %v2568
        %v2813 = vpack.c.b16 %v2577, %v2573
        %v2814 = vpack.c.b16 %v2578, %v2574
        %v2815 = vpack.c.b16 %v2579, %v2575
        %v2816 = vpack.c.b16 %v2580, %v2576
        %v2817 = vpack.c.b16 %v2585, %v2581
        %v2818 = vpack.c.b16 %v2586, %v2582
        %v2819 = vpack.c.b16 %v2587, %v2583
        %v2820 = vpack.c.b16 %v2588, %v2584
        %v2821 = vpack.c.b16 %v2593, %v2589
        %v2822 = vpack.c.b16 %v2594, %v2590
        %v2823 = vpack.c.b16 %v2595, %v2591
        %v2824 = vpack.c.b16 %v2596, %v2592
        %v2825 = vpack.c.b16 %v2601, %v2597
        %v2826 = vpack.c.b16 %v2602, %v2598
        %v2827 = vpack.c.b16 %v2603, %v2599
        %v2828 = vpack.c.b16 %v2604, %v2600
        %v2829 = vpack.c.b16 %v2609, %v2605
        %v2830 = vpack.c.b16 %v2610, %v2606
        %v2831 = vpack.c.b16 %v2611, %v2607
        %v2832 = vpack.c.b16 %v2612, %v2608
        %v2833 = vpack.c.b16 %v2617, %v2613
        %v2834 = vpack.c.b16 %v2618, %v2614
        %v2835 = vpack.c.b16 %v2619, %v2615
        %v2836 = vpack.c.b16 %v2620, %v2616
        %v2837 = vpack.c.b16 %v2625, %v2621
        %v2838 = vpack.c.b16 %v2626, %v2622
        %v2839 = vpack.c.b16 %v2627, %v2623
        %v2840 = vpack.c.b16 %v2628, %v2624
        %v2841 = vpack.c.b16 %v2633, %v2629
        %v2842 = vpack.c.b16 %v2634, %v2630
        %v2843 = vpack.c.b16 %v2635, %v2631
        %v2844 = vpack.c.b16 %v2636, %v2632
        %v2845 = vpack.c.b16 %v2641, %v2637
        %v2846 = vpack.c.b16 %v2642, %v2638
        %v2847 = vpack.c.b16 %v2643, %v2639
        %v2848 = vpack.c.b16 %v2644, %v2640
        %v2849 = vpack.c.b16 %v2649, %v2645
        %v2850 = vpack.c.b16 %v2650, %v2646
        %v2851 = vpack.c.b16 %v2651, %v2647
        %v2852 = vpack.c.b16 %v2652, %v2648
        %v2853 = vpack.c.b16 %v2657, %v2653
        %v2854 = vpack.c.b16 %v2658, %v2654
        %v2855 = vpack.c.b16 %v2659, %v2655
        %v2856 = vpack.c.b16 %v2660, %v2656
        %v2857 = vpack.c.b16 %v2665, %v2661
        %v2858 = vpack.c.b16 %v2666, %v2662
        %v2859 = vpack.c.b16 %v2667, %v2663
        %v2860 = vpack.c.b16 %v2668, %v2664
        %v2861 = vpack.c.b16 %v2673, %v2669
        %v2862 = vpack.c.b16 %v2674, %v2670
        %v2863 = vpack.c.b16 %v2675, %v2671
        %v2864 = vpack.c.b16 %v2676, %v2672
        %v2865 = vpack.c.b16 %v2681, %v2677
        %v2866 = vpack.c.b16 %v2682, %v2678
        %v2867 = vpack.c.b16 %v2683, %v2679
        %v2868 = vpack.c.b16 %v2684, %v2680
        %v2869 = vpack.c.b16 %v2689, %v2685
        %v2870 = vpack.c.b16 %v2690, %v2686
        %v2871 = vpack.c.b16 %v2691, %v2687
        %v2872 = vpack.c.b16 %v2692, %v2688
        %v2873 = vpack.c.b16 %v2697, %v2693
        %v2874 = vpack.c.b16 %v2698, %v2694
        %v2875 = vpack.c.b16 %v2699, %v2695
        %v2876 = vpack.c.b16 %v2700, %v2696
        %v2877 = vpack.c.b16 %v2705, %v2701
        %v2878 = vpack.c.b16 %v2706, %v2702
        %v2879 = vpack.c.b16 %v2707, %v2703
        %v2880 = vpack.c.b16 %v2708, %v2704
        %v2881 = vpack.c.b16 %v2713, %v2709
        %v2882 = vpack.c.b16 %v2714, %v2710
        %v2883 = vpack.c.b16 %v2715, %v2711
        %v2884 = vpack.c.b16 %v2716, %v2712
        %v2885 = vpack.c.b16 %v2721, %v2717
        %v2886 = vpack.c.b16 %v2722, %v2718
        %v2887 = vpack.c.b16 %v2723, %v2719
        %v2888 = vpack.c.b16 %v2724, %v2720
        %v2889 = vpack.c.b16 %v2729, %v2725
        %v2890 = vpack.c.b16 %v2730, %v2726
        %v2891 = vpack.c.b16 %v2731, %v2727
        %v2892 = vpack.c.b16 %v2732, %v2728
        %v2893 = vpack.c.b16 %v2737, %v2733
        %v2894 = vpack.c.b16 %v2738, %v2734
        %v2895 = vpack.c.b16 %v2739, %v2735
        %v2896 = vpack.c.b16 %v2740, %v2736
        %v2897 = vpack.c.b16 %v2745, %v2741
        %v2898 = vpack.c.b16 %v2746, %v2742
        %v2899 = vpack.c.b16 %v2747, %v2743
        %v2900 = vpack.c.b16 %v2748, %v2744
        %v2901 = vpack.c.b16 %v2753, %v2749
        %v2902 = vpack.c.b16 %v2754, %v2750
        %v2903 = vpack.c.b16 %v2755, %v2751
        %v2904 = vpack.c.b16 %v2756, %v2752
        %v2905 = vpack.c.b16 %v2761, %v2757
        %v2906 = vpack.c.b16 %v2762, %v2758
        %v2907 = vpack.c.b16 %v2763, %v2759
        %v2908 = vpack.c.b16 %v2764, %v2760
        %v2909 = vpack.c.b16 %v2769, %v2765
        %v2910 = vpack.c.b16 %v2770, %v2766
        %v2911 = vpack.c.b16 %v2771, %v2767
        %v2912 = vpack.c.b16 %v2772, %v2768
        %v2913 = vpack.c.b16 %v2777, %v2773
        %v2914 = vpack.c.b16 %v2778, %v2774
        %v2915 = vpack.c.b16 %v2779, %v2775
        %v2916 = vpack.c.b16 %v2780, %v2776
        %v2917 = vpack.c.b16 %v2785, %v2781
        %v2918 = vpack.c.b16 %v2786, %v2782
        %v2919 = vpack.c.b16 %v2787, %v2783
        %v2920 = vpack.c.b16 %v2788, %v2784
        %v2921 = vpack.c.b16 %v2793, %v2789
        %v2922 = vpack.c.b16 %v2794, %v2790
        %v2923 = vpack.c.b16 %v2795, %v2791
        %v2924 = vpack.c.b16 %v2796, %v2792
        %3053 = vmatprep.subr.bf16.mxu0 %v2798
        %3054 = vmatpush1.bf16.msra.mxu0 %v2797
        %3055 = vmatprep.subr.bf16.mxu0 %v2802
        %3056 = vmatpush1.bf16.msra.mxu0 %v2801
        %3057 = vmatprep.subr.bf16.mxu0 %v2806
        %3058 = vmatpush1.bf16.msra.mxu0 %v2805
        %3059 = vmatprep.subr.bf16.mxu0 %v2810
        %3060 = vmatpush1.bf16.msra.mxu0 %v2809
        %3061 = vmatprep.subr.bf16.mxu0 %v2814
        %3062 = vmatpush1.bf16.msra.mxu0 %v2813
        %3063 = vmatprep.subr.bf16.mxu0 %v2818
        %3064 = vmatpush1.bf16.msra.mxu0 %v2817
        %3065 = vmatprep.subr.bf16.mxu0 %v2822
        %3066 = vmatpush1.bf16.msra.mxu0 %v2821
        %3067 = vmatprep.subr.bf16.mxu0 %v2826
        %3068 = vmatpush1.bf16.msra.mxu0 %v2825
        %3069 = vmatprep.subr.bf16.mxu0 %v2830
        %3070 = vmatpush1.bf16.msra.mxu0 %v2829
        %3071 = vmatprep.subr.bf16.mxu0 %v2834
        %3072 = vmatpush1.bf16.msra.mxu0 %v2833
        %3073 = vmatprep.subr.bf16.mxu0 %v2838
        %3074 = vmatpush1.bf16.msra.mxu0 %v2837
        %3075 = vmatprep.subr.bf16.mxu0 %v2842
        %3076 = vmatpush1.bf16.msra.mxu0 %v2841
        %3077 = vmatprep.subr.bf16.mxu0 %v2846
        %3078 = vmatpush1.bf16.msra.mxu0 %v2845
        %3079 = vmatprep.subr.bf16.mxu0 %v2850
        %3080 = vmatpush1.bf16.msra.mxu0 %v2849
        %3081 = vmatprep.subr.bf16.mxu0 %v2854
        %3082 = vmatpush1.bf16.msra.mxu0 %v2853
        %3083 = vmatprep.subr.bf16.mxu0 %v2858
        %3084 = vmatpush1.bf16.msra.mxu0 %v2857
        %3085 = vmatprep.mubr.bf16.mxu0 %v2286
        %3086 = vmatmul.mubr.bf16.gmra.mrb[0].mxu0 %v2285
        %v3087 = vpop.f32.mrb[0].mxu0
        %v3088 = vadd.f32 %v2076, %v3087
        %v3089 = vpop.f32.mrb[0].mxu0
        %v3090 = vadd.f32 %v2080, %v3089
        %v3091 = vpop.f32.mrb[0].mxu0
        %v3092 = vadd.f32 %v2076, %v3091
        %v3093 = vpop.f32.mrb[0].mxu0
        %v3094 = vadd.f32 %v2080, %v3093
        %3095 = vmatprep.mubr.bf16.mxu0 %v2290
        %3096 = vmatmul.mubr.bf16.gmra.mrb[0].mxu0 %v2289
        %v3097 = vpop.f32.mrb[0].mxu0
        %v3098 = vadd.f32 %v2076, %v3097
        %v3099 = vpop.f32.mrb[0].mxu0
        %v3100 = vadd.f32 %v2080, %v3099
        %v3101 = vpop.f32.mrb[0].mxu0
        %v3102 = vadd.f32 %v2076, %v3101
        %v3103 = vpop.f32.mrb[0].mxu0
        %v3104 = vadd.f32 %v2080, %v3103
        %3105 = vmatprep.mubr.bf16.mxu0 %v2294
        %3106 = vmatmul.mubr.bf16.gmra.mrb[0].mxu0 %v2293
        %v3107 = vpop.f32.mrb[0].mxu0
        %v3108 = vadd.f32 %v2076, %v3107
        %v3109 = vpop.f32.mrb[0].mxu0
        %v3110 = vadd.f32 %v2080, %v3109
        %v3111 = vpop.f32.mrb[0].mxu0
        %v3112 = vadd.f32 %v2076, %v3111
        %v3113 = vpop.f32.mrb[0].mxu0
        %v3114 = vadd.f32 %v2080, %v3113
        %3115 = vmatprep.mubr.bf16.mxu0 %v2298
        %3116 = vmatmul.mubr.bf16.gmra.mrb[0].mxu0 %v2297
        %v3117 = vpop.f32.mrb[0].mxu0
        %v3118 = vadd.f32 %v2076, %v3117
        %v3119 = vpop.f32.mrb[0].mxu0
        %v3120 = vadd.f32 %v2080, %v3119
        %v3121 = vpop.f32.mrb[0].mxu0
        %v3122 = vadd.f32 %v2076, %v3121
        %v3123 = vpop.f32.mrb[0].mxu0
        %v3124 = vadd.f32 %v2080, %v3123
        %3125 = vmatprep.mubr.bf16.mxu0 %v2302
        %3126 = vmatmul.mubr.bf16.gmra.mrb[0].mxu0 %v2301
        %v3127 = vpop.f32.mrb[0].mxu0
        %v3128 = vadd.f32 %v2076, %v3127
        %v3129 = vpop.f32.mrb[0].mxu0
        %v3130 = vadd.f32 %v2080, %v3129
        %v3131 = vpop.f32.mrb[0].mxu0
        %v3132 = vadd.f32 %v2076, %v3131
        %v3133 = vpop.f32.mrb[0].mxu0
        %v3134 = vadd.f32 %v2080, %v3133
        %3135 = vmatprep.mubr.bf16.mxu0 %v2306
        %3136 = vmatmul.mubr.bf16.gmra.mrb[0].mxu0 %v2305
        %v3137 = vpop.f32.mrb[0].mxu0
        %v3138 = vadd.f32 %v2076, %v3137
        %v3139 = vpop.f32.mrb[0].mxu0
        %v3140 = vadd.f32 %v2080, %v3139
        %v3141 = vpop.f32.mrb[0].mxu0
        %v3142 = vadd.f32 %v2076, %v3141
        %v3143 = vpop.f32.mrb[0].mxu0
        %v3144 = vadd.f32 %v2080, %v3143
        %3145 = vmatprep.mubr.bf16.mxu0 %v2310
        %3146 = vmatmul.mubr.bf16.gmra.mrb[0].mxu0 %v2309
        %v3147 = vpop.f32.mrb[0].mxu0
        %v3148 = vadd.f32 %v2076, %v3147
        %v3149 = vpop.f32.mrb[0].mxu0
        %v3150 = vadd.f32 %v2080, %v3149
        %v3151 = vpop.f32.mrb[0].mxu0
        %v3152 = vadd.f32 %v2076, %v3151
        %v3153 = vpop.f32.mrb[0].mxu0
        %v3154 = vadd.f32 %v2080, %v3153
        %3155 = vmatprep.mubr.bf16.mxu0 %v2314
        %3156 = vmatmul.mubr.bf16.gmra.mrb[0].mxu0 %v2313
        %v3157 = vpop.f32.mrb[0].mxu0
        %v3158 = vadd.f32 %v2076, %v3157
        %v3159 = vpop.f32.mrb[0].mxu0
        %v3160 = vadd.f32 %v2080, %v3159
        %v3161 = vpop.f32.mrb[0].mxu0
        %v3162 = vadd.f32 %v2076, %v3161
        %v3163 = vpop.f32.mrb[0].mxu0
        %v3164 = vadd.f32 %v2080, %v3163
        %3165 = vmatprep.mubr.bf16.mxu0 %v2318
        %3166 = vmatmul.mubr.bf16.gmra.mrb[0].mxu0 %v2317
        %v3167 = vpop.f32.mrb[0].mxu0
        %v3168 = vadd.f32 %v2076, %v3167
        %v3169 = vpop.f32.mrb[0].mxu0
        %v3170 = vadd.f32 %v2080, %v3169
        %v3171 = vpop.f32.mrb[0].mxu0
        %v3172 = vadd.f32 %v2076, %v3171
        %v3173 = vpop.f32.mrb[0].mxu0
        %v3174 = vadd.f32 %v2080, %v3173
        %3175 = vmatprep.mubr.bf16.mxu0 %v2322
        %3176 = vmatmul.mubr.bf16.gmra.mrb[0].mxu0 %v2321
        %v3177 = vpop.f32.mrb[0].mxu0
        %v3178 = vadd.f32 %v2076, %v3177
        %v3179 = vpop.f32.mrb[0].mxu0
        %v3180 = vadd.f32 %v2080, %v3179
        %v3181 = vpop.f32.mrb[0].mxu0
        %v3182 = vadd.f32 %v2076, %v3181
        %v3183 = vpop.f32.mrb[0].mxu0
        %v3184 = vadd.f32 %v2080, %v3183
        %3185 = vmatprep.mubr.bf16.mxu0 %v2326
        %3186 = vmatmul.mubr.bf16.gmra.mrb[0].mxu0 %v2325
        %v3187 = vpop.f32.mrb[0].mxu0
        %v3188 = vadd.f32 %v2076, %v3187
        %v3189 = vpop.f32.mrb[0].mxu0
        %v3190 = vadd.f32 %v2080, %v3189
        %v3191 = vpop.f32.mrb[0].mxu0
        %v3192 = vadd.f32 %v2076, %v3191
        %v3193 = vpop.f32.mrb[0].mxu0
        %v3194 = vadd.f32 %v2080, %v3193
        %3195 = vmatprep.mubr.bf16.mxu0 %v2330
        %3196 = vmatmul.mubr.bf16.gmra.mrb[0].mxu0 %v2329
        %v3197 = vpop.f32.mrb[0].mxu0
        %v3198 = vadd.f32 %v2076, %v3197
        %v3199 = vpop.f32.mrb[0].mxu0
        %v3200 = vadd.f32 %v2080, %v3199
        %v3201 = vpop.f32.mrb[0].mxu0
        %v3202 = vadd.f32 %v2076, %v3201
        %v3203 = vpop.f32.mrb[0].mxu0
        %v3204 = vadd.f32 %v2080, %v3203
        %3205 = vmatprep.mubr.bf16.mxu0 %v2334
        %3206 = vmatmul.mubr.bf16.gmra.mrb[0].mxu0 %v2333
        %v3207 = vpop.f32.mrb[0].mxu0
        %v3208 = vadd.f32 %v2076, %v3207
        %v3209 = vpop.f32.mrb[0].mxu0
        %v3210 = vadd.f32 %v2080, %v3209
        %v3211 = vpop.f32.mrb[0].mxu0
        %v3212 = vadd.f32 %v2076, %v3211
        %v3213 = vpop.f32.mrb[0].mxu0
        %v3214 = vadd.f32 %v2080, %v3213
        %3215 = vmatprep.mubr.bf16.mxu0 %v2338
        %3216 = vmatmul.mubr.bf16.gmra.mrb[0].mxu0 %v2337
        %v3217 = vpop.f32.mrb[0].mxu0
        %v3218 = vadd.f32 %v2076, %v3217
        %v3219 = vpop.f32.mrb[0].mxu0
        %v3220 = vadd.f32 %v2080, %v3219
        %v3221 = vpop.f32.mrb[0].mxu0
        %v3222 = vadd.f32 %v2076, %v3221
        %v3223 = vpop.f32.mrb[0].mxu0
        %v3224 = vadd.f32 %v2080, %v3223
        %3225 = vmatprep.mubr.bf16.mxu0 %v2342
        %3226 = vmatmul.mubr.bf16.gmra.mrb[0].mxu0 %v2341
        %v3227 = vpop.f32.mrb[0].mxu0
        %v3228 = vadd.f32 %v2076, %v3227
        %v3229 = vpop.f32.mrb[0].mxu0
        %v3230 = vadd.f32 %v2080, %v3229
        %v3231 = vpop.f32.mrb[0].mxu0
        %v3232 = vadd.f32 %v2076, %v3231
        %v3233 = vpop.f32.mrb[0].mxu0
        %v3234 = vadd.f32 %v2080, %v3233
        %3235 = vmatprep.mubr.bf16.mxu0 %v2346
        %3236 = vmatmul.mubr.bf16.gmra.mrb[0].mxu0 %v2345
        %v3237 = vpop.f32.mrb[0].mxu0
        %v3238 = vadd.f32 %v2076, %v3237
        %v3239 = vpop.f32.mrb[0].mxu0
        %v3240 = vadd.f32 %v2080, %v3239
        %v3241 = vpop.f32.mrb[0].mxu0
        %v3242 = vadd.f32 %v2076, %v3241
        %v3243 = vpop.f32.mrb[0].mxu0
        %v3244 = vadd.f32 %v2080, %v3243
        %3245 = vdwg.mxu0
        %3246 = vmatprep.subr.bf16.mxu0 %v2862
        %3247 = vmatpush1.bf16.msra.mxu0 %v2861
        %3248 = vmatprep.subr.bf16.mxu0 %v2866
        %3249 = vmatpush1.bf16.msra.mxu0 %v2865
        %3250 = vmatprep.subr.bf16.mxu0 %v2870
        %3251 = vmatpush1.bf16.msra.mxu0 %v2869
        %3252 = vmatprep.subr.bf16.mxu0 %v2874
        %3253 = vmatpush1.bf16.msra.mxu0 %v2873
        %3254 = vmatprep.subr.bf16.mxu0 %v2878
        %3255 = vmatpush1.bf16.msra.mxu0 %v2877
        %3256 = vmatprep.subr.bf16.mxu0 %v2882
        %3257 = vmatpush1.bf16.msra.mxu0 %v2881
        %3258 = vmatprep.subr.bf16.mxu0 %v2886
        %3259 = vmatpush1.bf16.msra.mxu0 %v2885
        %3260 = vmatprep.subr.bf16.mxu0 %v2890
        %3261 = vmatpush1.bf16.msra.mxu0 %v2889
        %3262 = vmatprep.subr.bf16.mxu0 %v2894
        %3263 = vmatpush1.bf16.msra.mxu0 %v2893
        %3264 = vmatprep.subr.bf16.mxu0 %v2898
        %3265 = vmatpush1.bf16.msra.mxu0 %v2897
        %3266 = vmatprep.subr.bf16.mxu0 %v2902
        %3267 = vmatpush1.bf16.msra.mxu0 %v2901
        %3268 = vmatprep.subr.bf16.mxu0 %v2906
        %3269 = vmatpush1.bf16.msra.mxu0 %v2905
        %3270 = vmatprep.subr.bf16.mxu0 %v2910
        %3271 = vmatpush1.bf16.msra.mxu0 %v2909
        %3272 = vmatprep.subr.bf16.mxu0 %v2914
        %3273 = vmatpush1.bf16.msra.mxu0 %v2913
        %3274 = vmatprep.subr.bf16.mxu0 %v2918
        %3275 = vmatpush1.bf16.msra.mxu0 %v2917
        %3276 = vmatprep.subr.bf16.mxu0 %v2922
        %3277 = vmatpush1.bf16.msra.mxu0 %v2921
        %3278 = vmatprep.mubr.bf16.mxu0 %v2288
        %3279 = vmatmul.mubr.bf16.gmra.mrb[0].mxu0 %v2287
        %v3280 = vpop.f32.mrb[0].mxu0
        %v3281 = vadd.f32 %v3088, %v3280
        %v3282 = vpop.f32.mrb[0].mxu0
        %v3283 = vadd.f32 %v3090, %v3282
        %v3284 = vpop.f32.mrb[0].mxu0
        %v3285 = vadd.f32 %v3092, %v3284
        %v3286 = vpop.f32.mrb[0].mxu0
        %v3287 = vadd.f32 %v3094, %v3286
        %3288 = vmatprep.mubr.bf16.mxu0 %v2292
        %3289 = vmatmul.mubr.bf16.gmra.mrb[0].mxu0 %v2291
        %v3290 = vpop.f32.mrb[0].mxu0
        %v3291 = vadd.f32 %v3098, %v3290
        %v3292 = vpop.f32.mrb[0].mxu0
        %v3293 = vadd.f32 %v3100, %v3292
        %v3294 = vpop.f32.mrb[0].mxu0
        %v3295 = vadd.f32 %v3102, %v3294
        %v3296 = vpop.f32.mrb[0].mxu0
        %v3297 = vadd.f32 %v3104, %v3296
        %3298 = vmatprep.mubr.bf16.mxu0 %v2296
        %3299 = vmatmul.mubr.bf16.gmra.mrb[0].mxu0 %v2295
        %v3300 = vpop.f32.mrb[0].mxu0
        %v3301 = vadd.f32 %v3108, %v3300
        %v3302 = vpop.f32.mrb[0].mxu0
        %v3303 = vadd.f32 %v3110, %v3302
        %v3304 = vpop.f32.mrb[0].mxu0
        %v3305 = vadd.f32 %v3112, %v3304
        %v3306 = vpop.f32.mrb[0].mxu0
        %v3307 = vadd.f32 %v3114, %v3306
        %3308 = vmatprep.mubr.bf16.mxu0 %v2300
        %3309 = vmatmul.mubr.bf16.gmra.mrb[0].mxu0 %v2299
        %v3310 = vpop.f32.mrb[0].mxu0
        %v3311 = vadd.f32 %v3118, %v3310
        %v3312 = vpop.f32.mrb[0].mxu0
        %v3313 = vadd.f32 %v3120, %v3312
        %v3314 = vpop.f32.mrb[0].mxu0
        %v3315 = vadd.f32 %v3122, %v3314
        %v3316 = vpop.f32.mrb[0].mxu0
        %v3317 = vadd.f32 %v3124, %v3316
        %3318 = vmatprep.mubr.bf16.mxu0 %v2304
        %3319 = vmatmul.mubr.bf16.gmra.mrb[0].mxu0 %v2303
        %v3320 = vpop.f32.mrb[0].mxu0
        %v3321 = vadd.f32 %v3128, %v3320
        %v3322 = vpop.f32.mrb[0].mxu0
        %v3323 = vadd.f32 %v3130, %v3322
        %v3324 = vpop.f32.mrb[0].mxu0
        %v3325 = vadd.f32 %v3132, %v3324
        %v3326 = vpop.f32.mrb[0].mxu0
        %v3327 = vadd.f32 %v3134, %v3326
        %3328 = vmatprep.mubr.bf16.mxu0 %v2308
        %3329 = vmatmul.mubr.bf16.gmra.mrb[0].mxu0 %v2307
        %v3330 = vpop.f32.mrb[0].mxu0
        %v3331 = vadd.f32 %v3138, %v3330
        %v3332 = vpop.f32.mrb[0].mxu0
        %v3333 = vadd.f32 %v3140, %v3332
        %v3334 = vpop.f32.mrb[0].mxu0
        %v3335 = vadd.f32 %v3142, %v3334
        %v3336 = vpop.f32.mrb[0].mxu0
        %v3337 = vadd.f32 %v3144, %v3336
        %3338 = vmatprep.mubr.bf16.mxu0 %v2312
        %3339 = vmatmul.mubr.bf16.gmra.mrb[0].mxu0 %v2311
        %v3340 = vpop.f32.mrb[0].mxu0
        %v3341 = vadd.f32 %v3148, %v3340
        %v3342 = vpop.f32.mrb[0].mxu0
        %v3343 = vadd.f32 %v3150, %v3342
        %v3344 = vpop.f32.mrb[0].mxu0
        %v3345 = vadd.f32 %v3152, %v3344
        %v3346 = vpop.f32.mrb[0].mxu0
        %v3347 = vadd.f32 %v3154, %v3346
        %3348 = vmatprep.mubr.bf16.mxu0 %v2316
        %3349 = vmatmul.mubr.bf16.gmra.mrb[0].mxu0 %v2315
        %v3350 = vpop.f32.mrb[0].mxu0
        %v3351 = vadd.f32 %v3158, %v3350
        %v3352 = vpop.f32.mrb[0].mxu0
        %v3353 = vadd.f32 %v3160, %v3352
        %v3354 = vpop.f32.mrb[0].mxu0
        %v3355 = vadd.f32 %v3162, %v3354
        %v3356 = vpop.f32.mrb[0].mxu0
        %v3357 = vadd.f32 %v3164, %v3356
        %3358 = vmatprep.mubr.bf16.mxu0 %v2320
        %3359 = vmatmul.mubr.bf16.gmra.mrb[0].mxu0 %v2319
        %v3360 = vpop.f32.mrb[0].mxu0
        %v3361 = vadd.f32 %v3168, %v3360
        %v3362 = vpop.f32.mrb[0].mxu0
        %v3363 = vadd.f32 %v3170, %v3362
        %v3364 = vpop.f32.mrb[0].mxu0
        %v3365 = vadd.f32 %v3172, %v3364
        %v3366 = vpop.f32.mrb[0].mxu0
        %v3367 = vadd.f32 %v3174, %v3366
        %3368 = vmatprep.mubr.bf16.mxu0 %v2324
        %3369 = vmatmul.mubr.bf16.gmra.mrb[0].mxu0 %v2323
        %v3370 = vpop.f32.mrb[0].mxu0
        %v3371 = vadd.f32 %v3178, %v3370
        %v3372 = vpop.f32.mrb[0].mxu0
        %v3373 = vadd.f32 %v3180, %v3372
        %v3374 = vpop.f32.mrb[0].mxu0
        %v3375 = vadd.f32 %v3182, %v3374
        %v3376 = vpop.f32.mrb[0].mxu0
        %v3377 = vadd.f32 %v3184, %v3376
        %3378 = vmatprep.mubr.bf16.mxu0 %v2328
        %3379 = vmatmul.mubr.bf16.gmra.mrb[0].mxu0 %v2327
        %v3380 = vpop.f32.mrb[0].mxu0
        %v3381 = vadd.f32 %v3188, %v3380
        %v3382 = vpop.f32.mrb[0].mxu0
        %v3383 = vadd.f32 %v3190, %v3382
        %v3384 = vpop.f32.mrb[0].mxu0
        %v3385 = vadd.f32 %v3192, %v3384
        %v3386 = vpop.f32.mrb[0].mxu0
        %v3387 = vadd.f32 %v3194, %v3386
        %3388 = vmatprep.mubr.bf16.mxu0 %v2332
        %3389 = vmatmul.mubr.bf16.gmra.mrb[0].mxu0 %v2331
        %v3390 = vpop.f32.mrb[0].mxu0
        %v3391 = vadd.f32 %v3198, %v3390
        %v3392 = vpop.f32.mrb[0].mxu0
        %v3393 = vadd.f32 %v3200, %v3392
        %v3394 = vpop.f32.mrb[0].mxu0
        %v3395 = vadd.f32 %v3202, %v3394
        %v3396 = vpop.f32.mrb[0].mxu0
        %v3397 = vadd.f32 %v3204, %v3396
        %3398 = vmatprep.mubr.bf16.mxu0 %v2336
        %3399 = vmatmul.mubr.bf16.gmra.mrb[0].mxu0 %v2335
        %v3400 = vpop.f32.mrb[0].mxu0
        %v3401 = vadd.f32 %v3208, %v3400
        %v3402 = vpop.f32.mrb[0].mxu0
        %v3403 = vadd.f32 %v3210, %v3402
        %v3404 = vpop.f32.mrb[0].mxu0
        %v3405 = vadd.f32 %v3212, %v3404
        %v3406 = vpop.f32.mrb[0].mxu0
        %v3407 = vadd.f32 %v3214, %v3406
        %3408 = vmatprep.mubr.bf16.mxu0 %v2340
        %3409 = vmatmul.mubr.bf16.gmra.mrb[0].mxu0 %v2339
        %v3410 = vpop.f32.mrb[0].mxu0
        %v3411 = vadd.f32 %v3218, %v3410
        %v3412 = vpop.f32.mrb[0].mxu0
        %v3413 = vadd.f32 %v3220, %v3412
        %v3414 = vpop.f32.mrb[0].mxu0
        %v3415 = vadd.f32 %v3222, %v3414
        %v3416 = vpop.f32.mrb[0].mxu0
        %v3417 = vadd.f32 %v3224, %v3416
        %3418 = vmatprep.mubr.bf16.mxu0 %v2344
        %3419 = vmatmul.mubr.bf16.gmra.mrb[0].mxu0 %v2343
        %v3420 = vpop.f32.mrb[0].mxu0
        %v3421 = vadd.f32 %v3228, %v3420
        %v3422 = vpop.f32.mrb[0].mxu0
        %v3423 = vadd.f32 %v3230, %v3422
        %v3424 = vpop.f32.mrb[0].mxu0
        %v3425 = vadd.f32 %v3232, %v3424
        %v3426 = vpop.f32.mrb[0].mxu0
        %v3427 = vadd.f32 %v3234, %v3426
        %3428 = vmatprep.mubr.bf16.mxu0 %v2348
        %3429 = vmatmul.mubr.bf16.gmra.mrb[0].mxu0 %v2347
        %v3430 = vpop.f32.mrb[0].mxu0
        %v3431 = vadd.f32 %v3238, %v3430
        %v3432 = vpop.f32.mrb[0].mxu0
        %v3433 = vadd.f32 %v3240, %v3432
        %v3434 = vpop.f32.mrb[0].mxu0
        %v3435 = vadd.f32 %v3242, %v3434
        %v3436 = vpop.f32.mrb[0].mxu0
        %v3437 = vadd.f32 %v3244, %v3436
        %3438 = vdwg.mxu0
        %3439 = vmatprep.subr.bf16.mxu0 %v2800
        %3440 = vmatpush1.bf16.msra.mxu0 %v2799
        %3441 = vmatprep.subr.bf16.mxu0 %v2804
        %3442 = vmatpush1.bf16.msra.mxu0 %v2803
        %3443 = vmatprep.subr.bf16.mxu0 %v2808
        %3444 = vmatpush1.bf16.msra.mxu0 %v2807
        %3445 = vmatprep.subr.bf16.mxu0 %v2812
        %3446 = vmatpush1.bf16.msra.mxu0 %v2811
        %3447 = vmatprep.subr.bf16.mxu0 %v2816
        %3448 = vmatpush1.bf16.msra.mxu0 %v2815
        %3449 = vmatprep.subr.bf16.mxu0 %v2820
        %3450 = vmatpush1.bf16.msra.mxu0 %v2819
        %3451 = vmatprep.subr.bf16.mxu0 %v2824
        %3452 = vmatpush1.bf16.msra.mxu0 %v2823
        %3453 = vmatprep.subr.bf16.mxu0 %v2828
        %3454 = vmatpush1.bf16.msra.mxu0 %v2827
        %3455 = vmatprep.subr.bf16.mxu0 %v2832
        %3456 = vmatpush1.bf16.msra.mxu0 %v2831
        %3457 = vmatprep.subr.bf16.mxu0 %v2836
        %3458 = vmatpush1.bf16.msra.mxu0 %v2835
        %3459 = vmatprep.subr.bf16.mxu0 %v2840
        %3460 = vmatpush1.bf16.msra.mxu0 %v2839
        %3461 = vmatprep.subr.bf16.mxu0 %v2844
        %3462 = vmatpush1.bf16.msra.mxu0 %v2843
        %3463 = vmatprep.subr.bf16.mxu0 %v2848
        %3464 = vmatpush1.bf16.msra.mxu0 %v2847
        %3465 = vmatprep.subr.bf16.mxu0 %v2852
        %3466 = vmatpush1.bf16.msra.mxu0 %v2851
        %3467 = vmatprep.subr.bf16.mxu0 %v2856
        %3468 = vmatpush1.bf16.msra.mxu0 %v2855
        %3469 = vmatprep.subr.bf16.mxu0 %v2860
        %3470 = vmatpush1.bf16.msra.mxu0 %v2859
        %3471 = vmatprep.mubr.bf16.mxu0 %v2286
        %3472 = vmatmul.mubr.bf16.gmra.mrb[0].mxu0 %v2285
        %v3473 = vpop.f32.mrb[0].mxu0
        %v3474 = vadd.f32 %v2084, %v3473
        %v3475 = vpop.f32.mrb[0].mxu0
        %v3476 = vadd.f32 %v2088, %v3475
        %v3477 = vpop.f32.mrb[0].mxu0
        %v3478 = vadd.f32 %v2084, %v3477
        %v3479 = vpop.f32.mrb[0].mxu0
        %v3480 = vadd.f32 %v2088, %v3479
        %3481 = vmatprep.mubr.bf16.mxu0 %v2290
        %3482 = vmatmul.mubr.bf16.gmra.mrb[0].mxu0 %v2289
        %v3483 = vpop.f32.mrb[0].mxu0
        %v3484 = vadd.f32 %v2084, %v3483
        %v3485 = vpop.f32.mrb[0].mxu0
        %v3486 = vadd.f32 %v2088, %v3485
        %v3487 = vpop.f32.mrb[0].mxu0
        %v3488 = vadd.f32 %v2084, %v3487
        %v3489 = vpop.f32.mrb[0].mxu0
        %v3490 = vadd.f32 %v2088, %v3489
        %3491 = vmatprep.mubr.bf16.mxu0 %v2294
        %3492 = vmatmul.mubr.bf16.gmra.mrb[0].mxu0 %v2293
        %v3493 = vpop.f32.mrb[0].mxu0
        %v3494 = vadd.f32 %v2084, %v3493
        %v3495 = vpop.f32.mrb[0].mxu0
        %v3496 = vadd.f32 %v2088, %v3495
        %v3497 = vpop.f32.mrb[0].mxu0
        %v3498 = vadd.f32 %v2084, %v3497
        %v3499 = vpop.f32.mrb[0].mxu0
        %v3500 = vadd.f32 %v2088, %v3499
        %3501 = vmatprep.mubr.bf16.mxu0 %v2298
        %3502 = vmatmul.mubr.bf16.gmra.mrb[0].mxu0 %v2297
        %v3503 = vpop.f32.mrb[0].mxu0
        %v3504 = vadd.f32 %v2084, %v3503
        %v3505 = vpop.f32.mrb[0].mxu0
        %v3506 = vadd.f32 %v2088, %v3505
        %v3507 = vpop.f32.mrb[0].mxu0
        %v3508 = vadd.f32 %v2084, %v3507
        %v3509 = vpop.f32.mrb[0].mxu0
        %v3510 = vadd.f32 %v2088, %v3509
        %3511 = vmatprep.mubr.bf16.mxu0 %v2302
        %3512 = vmatmul.mubr.bf16.gmra.mrb[0].mxu0 %v2301
        %v3513 = vpop.f32.mrb[0].mxu0
        %v3514 = vadd.f32 %v2084, %v3513
        %v3515 = vpop.f32.mrb[0].mxu0
        %v3516 = vadd.f32 %v2088, %v3515
        %v3517 = vpop.f32.mrb[0].mxu0
        %v3518 = vadd.f32 %v2084, %v3517
        %v3519 = vpop.f32.mrb[0].mxu0
        %v3520 = vadd.f32 %v2088, %v3519
        %3521 = vmatprep.mubr.bf16.mxu0 %v2306
        %3522 = vmatmul.mubr.bf16.gmra.mrb[0].mxu0 %v2305
        %v3523 = vpop.f32.mrb[0].mxu0
        %v3524 = vadd.f32 %v2084, %v3523
        %v3525 = vpop.f32.mrb[0].mxu0
        %v3526 = vadd.f32 %v2088, %v3525
        %v3527 = vpop.f32.mrb[0].mxu0
        %v3528 = vadd.f32 %v2084, %v3527
        %v3529 = vpop.f32.mrb[0].mxu0
        %v3530 = vadd.f32 %v2088, %v3529
        %3531 = vmatprep.mubr.bf16.mxu0 %v2310
        %3532 = vmatmul.mubr.bf16.gmra.mrb[0].mxu0 %v2309
        %v3533 = vpop.f32.mrb[0].mxu0
        %v3534 = vadd.f32 %v2084, %v3533
        %v3535 = vpop.f32.mrb[0].mxu0
        %v3536 = vadd.f32 %v2088, %v3535
        %v3537 = vpop.f32.mrb[0].mxu0
        %v3538 = vadd.f32 %v2084, %v3537
        %v3539 = vpop.f32.mrb[0].mxu0
        %v3540 = vadd.f32 %v2088, %v3539
        %3541 = vmatprep.mubr.bf16.mxu0 %v2314
        %3542 = vmatmul.mubr.bf16.gmra.mrb[0].mxu0 %v2313
        %v3543 = vpop.f32.mrb[0].mxu0
        %v3544 = vadd.f32 %v2084, %v3543
        %v3545 = vpop.f32.mrb[0].mxu0
        %v3546 = vadd.f32 %v2088, %v3545
        %v3547 = vpop.f32.mrb[0].mxu0
        %v3548 = vadd.f32 %v2084, %v3547
        %v3549 = vpop.f32.mrb[0].mxu0
        %v3550 = vadd.f32 %v2088, %v3549
        %3551 = vmatprep.mubr.bf16.mxu0 %v2318
        %3552 = vmatmul.mubr.bf16.gmra.mrb[0].mxu0 %v2317
        %v3553 = vpop.f32.mrb[0].mxu0
        %v3554 = vadd.f32 %v2084, %v3553
        %v3555 = vpop.f32.mrb[0].mxu0
        %v3556 = vadd.f32 %v2088, %v3555
        %v3557 = vpop.f32.mrb[0].mxu0
        %v3558 = vadd.f32 %v2084, %v3557
        %v3559 = vpop.f32.mrb[0].mxu0
        %v3560 = vadd.f32 %v2088, %v3559
        %3561 = vmatprep.mubr.bf16.mxu0 %v2322
        %3562 = vmatmul.mubr.bf16.gmra.mrb[0].mxu0 %v2321
        %v3563 = vpop.f32.mrb[0].mxu0
        %v3564 = vadd.f32 %v2084, %v3563
        %v3565 = vpop.f32.mrb[0].mxu0
        %v3566 = vadd.f32 %v2088, %v3565
        %v3567 = vpop.f32.mrb[0].mxu0
        %v3568 = vadd.f32 %v2084, %v3567
        %v3569 = vpop.f32.mrb[0].mxu0
        %v3570 = vadd.f32 %v2088, %v3569
        %3571 = vmatprep.mubr.bf16.mxu0 %v2326
        %3572 = vmatmul.mubr.bf16.gmra.mrb[0].mxu0 %v2325
        %v3573 = vpop.f32.mrb[0].mxu0
        %v3574 = vadd.f32 %v2084, %v3573
        %v3575 = vpop.f32.mrb[0].mxu0
        %v3576 = vadd.f32 %v2088, %v3575
        %v3577 = vpop.f32.mrb[0].mxu0
        %v3578 = vadd.f32 %v2084, %v3577
        %v3579 = vpop.f32.mrb[0].mxu0
        %v3580 = vadd.f32 %v2088, %v3579
        %3581 = vmatprep.mubr.bf16.mxu0 %v2330
        %3582 = vmatmul.mubr.bf16.gmra.mrb[0].mxu0 %v2329
        %v3583 = vpop.f32.mrb[0].mxu0
        %v3584 = vadd.f32 %v2084, %v3583
        %v3585 = vpop.f32.mrb[0].mxu0
        %v3586 = vadd.f32 %v2088, %v3585
        %v3587 = vpop.f32.mrb[0].mxu0
        %v3588 = vadd.f32 %v2084, %v3587
        %v3589 = vpop.f32.mrb[0].mxu0
        %v3590 = vadd.f32 %v2088, %v3589
        %3591 = vmatprep.mubr.bf16.mxu0 %v2334
        %3592 = vmatmul.mubr.bf16.gmra.mrb[0].mxu0 %v2333
        %v3593 = vpop.f32.mrb[0].mxu0
        %v3594 = vadd.f32 %v2084, %v3593
        %v3595 = vpop.f32.mrb[0].mxu0
        %v3596 = vadd.f32 %v2088, %v3595
        %v3597 = vpop.f32.mrb[0].mxu0
        %v3598 = vadd.f32 %v2084, %v3597
        %v3599 = vpop.f32.mrb[0].mxu0
        %v3600 = vadd.f32 %v2088, %v3599
        %3601 = vmatprep.mubr.bf16.mxu0 %v2338
        %3602 = vmatmul.mubr.bf16.gmra.mrb[0].mxu0 %v2337
        %v3603 = vpop.f32.mrb[0].mxu0
        %v3604 = vadd.f32 %v2084, %v3603
        %v3605 = vpop.f32.mrb[0].mxu0
        %v3606 = vadd.f32 %v2088, %v3605
        %v3607 = vpop.f32.mrb[0].mxu0
        %v3608 = vadd.f32 %v2084, %v3607
        %v3609 = vpop.f32.mrb[0].mxu0
        %v3610 = vadd.f32 %v2088, %v3609
        %3611 = vmatprep.mubr.bf16.mxu0 %v2342
        %3612 = vmatmul.mubr.bf16.gmra.mrb[0].mxu0 %v2341
        %v3613 = vpop.f32.mrb[0].mxu0
        %v3614 = vadd.f32 %v2084, %v3613
        %v3615 = vpop.f32.mrb[0].mxu0
        %v3616 = vadd.f32 %v2088, %v3615
        %v3617 = vpop.f32.mrb[0].mxu0
        %v3618 = vadd.f32 %v2084, %v3617
        %v3619 = vpop.f32.mrb[0].mxu0
        %v3620 = vadd.f32 %v2088, %v3619
        %3621 = vmatprep.mubr.bf16.mxu0 %v2346
        %3622 = vmatmul.mubr.bf16.gmra.mrb[0].mxu0 %v2345
        %v3623 = vpop.f32.mrb[0].mxu0
        %v3624 = vadd.f32 %v2084, %v3623
        %v3625 = vpop.f32.mrb[0].mxu0
        %v3626 = vadd.f32 %v2088, %v3625
        %v3627 = vpop.f32.mrb[0].mxu0
        %v3628 = vadd.f32 %v2084, %v3627
        %v3629 = vpop.f32.mrb[0].mxu0
        %v3630 = vadd.f32 %v2088, %v3629
        %3631 = vdwg.mxu0
        %3632 = vmatprep.subr.bf16.mxu0 %v2864
        %3633 = vmatpush1.bf16.msra.mxu0 %v2863
        %3634 = vmatprep.subr.bf16.mxu0 %v2868
        %3635 = vmatpush1.bf16.msra.mxu0 %v2867
        %3636 = vmatprep.subr.bf16.mxu0 %v2872
        %3637 = vmatpush1.bf16.msra.mxu0 %v2871
        %3638 = vmatprep.subr.bf16.mxu0 %v2876
        %3639 = vmatpush1.bf16.msra.mxu0 %v2875
        %3640 = vmatprep.subr.bf16.mxu0 %v2880
        %3641 = vmatpush1.bf16.msra.mxu0 %v2879
        %3642 = vmatprep.subr.bf16.mxu0 %v2884
        %3643 = vmatpush1.bf16.msra.mxu0 %v2883
        %3644 = vmatprep.subr.bf16.mxu0 %v2888
        %3645 = vmatpush1.bf16.msra.mxu0 %v2887
        %3646 = vmatprep.subr.bf16.mxu0 %v2892
        %3647 = vmatpush1.bf16.msra.mxu0 %v2891
        %3648 = vmatprep.subr.bf16.mxu0 %v2896
        %3649 = vmatpush1.bf16.msra.mxu0 %v2895
        %3650 = vmatprep.subr.bf16.mxu0 %v2900
        %3651 = vmatpush1.bf16.msra.mxu0 %v2899
        %3652 = vmatprep.subr.bf16.mxu0 %v2904
        %3653 = vmatpush1.bf16.msra.mxu0 %v2903
        %3654 = vmatprep.subr.bf16.mxu0 %v2908
        %3655 = vmatpush1.bf16.msra.mxu0 %v2907
        %3656 = vmatprep.subr.bf16.mxu0 %v2912
        %3657 = vmatpush1.bf16.msra.mxu0 %v2911
        %3658 = vmatprep.subr.bf16.mxu0 %v2916
        %3659 = vmatpush1.bf16.msra.mxu0 %v2915
        %3660 = vmatprep.subr.bf16.mxu0 %v2920
        %3661 = vmatpush1.bf16.msra.mxu0 %v2919
        %3662 = vmatprep.subr.bf16.mxu0 %v2924
        %3663 = vmatpush1.bf16.msra.mxu0 %v2923
        %3664 = vmatprep.mubr.bf16.mxu0 %v2288
        %3665 = vmatmul.mubr.bf16.gmra.mrb[0].mxu0 %v2287
        %v3666 = vpop.f32.mrb[0].mxu0
        %v3667 = vadd.f32 %v3474, %v3666
        %v3668 = vpop.f32.mrb[0].mxu0
        %v3669 = vadd.f32 %v3476, %v3668
        %v3670 = vpop.f32.mrb[0].mxu0
        %v3671 = vadd.f32 %v3478, %v3670
        %v3672 = vpop.f32.mrb[0].mxu0
        %v3673 = vadd.f32 %v3480, %v3672
        %3674 = vmatprep.mubr.bf16.mxu0 %v2292
        %3675 = vmatmul.mubr.bf16.gmra.mrb[0].mxu0 %v2291
        %v3676 = vpop.f32.mrb[0].mxu0
        %v3677 = vadd.f32 %v3484, %v3676
        %v3678 = vpop.f32.mrb[0].mxu0
        %v3679 = vadd.f32 %v3486, %v3678
        %v3680 = vpop.f32.mrb[0].mxu0
        %v3681 = vadd.f32 %v3488, %v3680
        %v3682 = vpop.f32.mrb[0].mxu0
        %v3683 = vadd.f32 %v3490, %v3682
        %3684 = vmatprep.mubr.bf16.mxu0 %v2296
        %3685 = vmatmul.mubr.bf16.gmra.mrb[0].mxu0 %v2295
        %v3686 = vpop.f32.mrb[0].mxu0
        %v3687 = vadd.f32 %v3494, %v3686
        %v3688 = vpop.f32.mrb[0].mxu0
        %v3689 = vadd.f32 %v3496, %v3688
        %v3690 = vpop.f32.mrb[0].mxu0
        %v3691 = vadd.f32 %v3498, %v3690
        %v3692 = vpop.f32.mrb[0].mxu0
        %v3693 = vadd.f32 %v3500, %v3692
        %3694 = vmatprep.mubr.bf16.mxu0 %v2300
        %3695 = vmatmul.mubr.bf16.gmra.mrb[0].mxu0 %v2299
        %v3696 = vpop.f32.mrb[0].mxu0
        %v3697 = vadd.f32 %v3504, %v3696
        %v3698 = vpop.f32.mrb[0].mxu0
        %v3699 = vadd.f32 %v3506, %v3698
        %v3700 = vpop.f32.mrb[0].mxu0
        %v3701 = vadd.f32 %v3508, %v3700
        %v3702 = vpop.f32.mrb[0].mxu0
        %v3703 = vadd.f32 %v3510, %v3702
        %3704 = vmatprep.mubr.bf16.mxu0 %v2304
        %3705 = vmatmul.mubr.bf16.gmra.mrb[0].mxu0 %v2303
        %v3706 = vpop.f32.mrb[0].mxu0
        %v3707 = vadd.f32 %v3514, %v3706
        %v3708 = vpop.f32.mrb[0].mxu0
        %v3709 = vadd.f32 %v3516, %v3708
        %v3710 = vpop.f32.mrb[0].mxu0
        %v3711 = vadd.f32 %v3518, %v3710
        %v3712 = vpop.f32.mrb[0].mxu0
        %v3713 = vadd.f32 %v3520, %v3712
        %3714 = vmatprep.mubr.bf16.mxu0 %v2308
        %3715 = vmatmul.mubr.bf16.gmra.mrb[0].mxu0 %v2307
        %v3716 = vpop.f32.mrb[0].mxu0
        %v3717 = vadd.f32 %v3524, %v3716
        %v3718 = vpop.f32.mrb[0].mxu0
        %v3719 = vadd.f32 %v3526, %v3718
        %v3720 = vpop.f32.mrb[0].mxu0
        %v3721 = vadd.f32 %v3528, %v3720
        %v3722 = vpop.f32.mrb[0].mxu0
        %v3723 = vadd.f32 %v3530, %v3722
        %3724 = vmatprep.mubr.bf16.mxu0 %v2312
        %3725 = vmatmul.mubr.bf16.gmra.mrb[0].mxu0 %v2311
        %v3726 = vpop.f32.mrb[0].mxu0
        %v3727 = vadd.f32 %v3534, %v3726
        %v3728 = vpop.f32.mrb[0].mxu0
        %v3729 = vadd.f32 %v3536, %v3728
        %v3730 = vpop.f32.mrb[0].mxu0
        %v3731 = vadd.f32 %v3538, %v3730
        %v3732 = vpop.f32.mrb[0].mxu0
        %v3733 = vadd.f32 %v3540, %v3732
        %3734 = vmatprep.mubr.bf16.mxu0 %v2316
        %3735 = vmatmul.mubr.bf16.gmra.mrb[0].mxu0 %v2315
        %v3736 = vpop.f32.mrb[0].mxu0
        %v3737 = vadd.f32 %v3544, %v3736
        %v3738 = vpop.f32.mrb[0].mxu0
        %v3739 = vadd.f32 %v3546, %v3738
        %v3740 = vpop.f32.mrb[0].mxu0
        %v3741 = vadd.f32 %v3548, %v3740
        %v3742 = vpop.f32.mrb[0].mxu0
        %v3743 = vadd.f32 %v3550, %v3742
        %3744 = vmatprep.mubr.bf16.mxu0 %v2320
        %3745 = vmatmul.mubr.bf16.gmra.mrb[0].mxu0 %v2319
        %v3746 = vpop.f32.mrb[0].mxu0
        %v3747 = vadd.f32 %v3554, %v3746
        %v3748 = vpop.f32.mrb[0].mxu0
        %v3749 = vadd.f32 %v3556, %v3748
        %v3750 = vpop.f32.mrb[0].mxu0
        %v3751 = vadd.f32 %v3558, %v3750
        %v3752 = vpop.f32.mrb[0].mxu0
        %v3753 = vadd.f32 %v3560, %v3752
        %3754 = vmatprep.mubr.bf16.mxu0 %v2324
        %3755 = vmatmul.mubr.bf16.gmra.mrb[0].mxu0 %v2323
        %v3756 = vpop.f32.mrb[0].mxu0
        %v3757 = vadd.f32 %v3564, %v3756
        %v3758 = vpop.f32.mrb[0].mxu0
        %v3759 = vadd.f32 %v3566, %v3758
        %v3760 = vpop.f32.mrb[0].mxu0
        %v3761 = vadd.f32 %v3568, %v3760
        %v3762 = vpop.f32.mrb[0].mxu0
        %v3763 = vadd.f32 %v3570, %v3762
        %3764 = vmatprep.mubr.bf16.mxu0 %v2328
        %3765 = vmatmul.mubr.bf16.gmra.mrb[0].mxu0 %v2327
        %v3766 = vpop.f32.mrb[0].mxu0
        %v3767 = vadd.f32 %v3574, %v3766
        %v3768 = vpop.f32.mrb[0].mxu0
        %v3769 = vadd.f32 %v3576, %v3768
        %v3770 = vpop.f32.mrb[0].mxu0
        %v3771 = vadd.f32 %v3578, %v3770
        %v3772 = vpop.f32.mrb[0].mxu0
        %v3773 = vadd.f32 %v3580, %v3772
        %3774 = vmatprep.mubr.bf16.mxu0 %v2332
        %3775 = vmatmul.mubr.bf16.gmra.mrb[0].mxu0 %v2331
        %v3776 = vpop.f32.mrb[0].mxu0
        %v3777 = vadd.f32 %v3584, %v3776
        %v3778 = vpop.f32.mrb[0].mxu0
        %v3779 = vadd.f32 %v3586, %v3778
        %v3780 = vpop.f32.mrb[0].mxu0
        %v3781 = vadd.f32 %v3588, %v3780
        %v3782 = vpop.f32.mrb[0].mxu0
        %v3783 = vadd.f32 %v3590, %v3782
        %3784 = vmatprep.mubr.bf16.mxu0 %v2336
        %3785 = vmatmul.mubr.bf16.gmra.mrb[0].mxu0 %v2335
        %v3786 = vpop.f32.mrb[0].mxu0
        %v3787 = vadd.f32 %v3594, %v3786
        %v3788 = vpop.f32.mrb[0].mxu0
        %v3789 = vadd.f32 %v3596, %v3788
        %v3790 = vpop.f32.mrb[0].mxu0
        %v3791 = vadd.f32 %v3598, %v3790
        %v3792 = vpop.f32.mrb[0].mxu0
        %v3793 = vadd.f32 %v3600, %v3792
        %3794 = vmatprep.mubr.bf16.mxu0 %v2340
        %3795 = vmatmul.mubr.bf16.gmra.mrb[0].mxu0 %v2339
        %v3796 = vpop.f32.mrb[0].mxu0
        %v3797 = vadd.f32 %v3604, %v3796
        %v3798 = vpop.f32.mrb[0].mxu0
        %v3799 = vadd.f32 %v3606, %v3798
        %v3800 = vpop.f32.mrb[0].mxu0
        %v3801 = vadd.f32 %v3608, %v3800
        %v3802 = vpop.f32.mrb[0].mxu0
        %v3803 = vadd.f32 %v3610, %v3802
        %3804 = vmatprep.mubr.bf16.mxu0 %v2344
        %3805 = vmatmul.mubr.bf16.gmra.mrb[0].mxu0 %v2343
        %v3806 = vpop.f32.mrb[0].mxu0
        %v3807 = vadd.f32 %v3614, %v3806
        %v3808 = vpop.f32.mrb[0].mxu0
        %v3809 = vadd.f32 %v3616, %v3808
        %v3810 = vpop.f32.mrb[0].mxu0
        %v3811 = vadd.f32 %v3618, %v3810
        %v3812 = vpop.f32.mrb[0].mxu0
        %v3813 = vadd.f32 %v3620, %v3812
        %3814 = vmatprep.mubr.bf16.mxu0 %v2348
        %3815 = vmatmul.mubr.bf16.gmra.mrb[0].mxu0 %v2347
        %v3816 = vpop.f32.mrb[0].mxu0
        %v3817 = vadd.f32 %v3624, %v3816
        %v3818 = vpop.f32.mrb[0].mxu0
        %v3819 = vadd.f32 %v3626, %v3818
        %v3820 = vpop.f32.mrb[0].mxu0
        %v3821 = vadd.f32 %v3628, %v3820
        %v3822 = vpop.f32.mrb[0].mxu0
        %v3823 = vadd.f32 %v3630, %v3822
        %3824 = vdwg.mxu0
        %v3825 = vpack.c.bf16 %v3285, %v3281
        %v3826 = vpack.c.bf16 %v3287, %v3283
        %v3827 = vpack.c.bf16 %v3671, %v3667
        %v3828 = vpack.c.bf16 %v3673, %v3669
        %v3829 = vpack.c.bf16 %v3295, %v3291
        %v3830 = vpack.c.bf16 %v3297, %v3293
        %v3831 = vpack.c.bf16 %v3681, %v3677
        %v3832 = vpack.c.bf16 %v3683, %v3679
        %v3833 = vpack.c.bf16 %v3305, %v3301
        %v3834 = vpack.c.bf16 %v3307, %v3303
        %v3835 = vpack.c.bf16 %v3691, %v3687
        %v3836 = vpack.c.bf16 %v3693, %v3689
        %v3837 = vpack.c.bf16 %v3315, %v3311
        %v3838 = vpack.c.bf16 %v3317, %v3313
        %v3839 = vpack.c.bf16 %v3701, %v3697
        %v3840 = vpack.c.bf16 %v3703, %v3699
        %v3841 = vpack.c.bf16 %v3325, %v3321
        %v3842 = vpack.c.bf16 %v3327, %v3323
        %v3843 = vpack.c.bf16 %v3711, %v3707
        %v3844 = vpack.c.bf16 %v3713, %v3709
        %v3845 = vpack.c.bf16 %v3335, %v3331
        %v3846 = vpack.c.bf16 %v3337, %v3333
        %v3847 = vpack.c.bf16 %v3721, %v3717
        %v3848 = vpack.c.bf16 %v3723, %v3719
        %v3849 = vpack.c.bf16 %v3345, %v3341
        %v3850 = vpack.c.bf16 %v3347, %v3343
        %v3851 = vpack.c.bf16 %v3731, %v3727
        %v3852 = vpack.c.bf16 %v3733, %v3729
        %v3853 = vpack.c.bf16 %v3355, %v3351
        %v3854 = vpack.c.bf16 %v3357, %v3353
        %v3855 = vpack.c.bf16 %v3741, %v3737
        %v3856 = vpack.c.bf16 %v3743, %v3739
        %v3857 = vpack.c.bf16 %v3365, %v3361
        %v3858 = vpack.c.bf16 %v3367, %v3363
        %v3859 = vpack.c.bf16 %v3751, %v3747
        %v3860 = vpack.c.bf16 %v3753, %v3749
        %v3861 = vpack.c.bf16 %v3375, %v3371
        %v3862 = vpack.c.bf16 %v3377, %v3373
        %v3863 = vpack.c.bf16 %v3761, %v3757
        %v3864 = vpack.c.bf16 %v3763, %v3759
        %v3865 = vpack.c.bf16 %v3385, %v3381
        %v3866 = vpack.c.bf16 %v3387, %v3383
        %v3867 = vpack.c.bf16 %v3771, %v3767
        %v3868 = vpack.c.bf16 %v3773, %v3769
        %v3869 = vpack.c.bf16 %v3395, %v3391
        %v3870 = vpack.c.bf16 %v3397, %v3393
        %v3871 = vpack.c.bf16 %v3781, %v3777
        %v3872 = vpack.c.bf16 %v3783, %v3779
        %v3873 = vpack.c.bf16 %v3405, %v3401
        %v3874 = vpack.c.bf16 %v3407, %v3403
        %v3875 = vpack.c.bf16 %v3791, %v3787
        %v3876 = vpack.c.bf16 %v3793, %v3789
        %v3877 = vpack.c.bf16 %v3415, %v3411
        %v3878 = vpack.c.bf16 %v3417, %v3413
        %v3879 = vpack.c.bf16 %v3801, %v3797
        %v3880 = vpack.c.bf16 %v3803, %v3799
        %v3881 = vpack.c.bf16 %v3425, %v3421
        %v3882 = vpack.c.bf16 %v3427, %v3423
        %v3883 = vpack.c.bf16 %v3811, %v3807
        %v3884 = vpack.c.bf16 %v3813, %v3809
        %v3885 = vpack.c.bf16 %v3435, %v3431
        %v3886 = vpack.c.bf16 %v3437, %v3433
        %v3887 = vpack.c.bf16 %v3821, %v3817
        %v3888 = vpack.c.bf16 %v3823, %v3819
        %v3889 = vld [vmem:[#allocation10] sm:$0xff]
        %v3890 = vld [vmem:[#allocation10 + $0x8] sm:$0xff]
        %v3891 = vld [vmem:[#allocation10 + $0x10] sm:$0xff]
        %v3892 = vld [vmem:[#allocation10 + $0x18] sm:$0xff]
        %v3893 = vld [vmem:[#allocation10 + $0x20] sm:$0xff]
        %v3894 = vld [vmem:[#allocation10 + $0x28] sm:$0xff]
        %v3895 = vld [vmem:[#allocation10 + $0x30] sm:$0xff]
        %v3896 = vld [vmem:[#allocation10 + $0x38] sm:$0xff]
        %v3897 = vld [vmem:[#allocation10 + $0x40] sm:$0xff]
        %v3898 = vld [vmem:[#allocation10 + $0x48] sm:$0xff]
        %v3899 = vld [vmem:[#allocation10 + $0x50] sm:$0xff]
        %v3900 = vld [vmem:[#allocation10 + $0x58] sm:$0xff]
        %v3901 = vld [vmem:[#allocation10 + $0x60] sm:$0xff]
        %v3902 = vld [vmem:[#allocation10 + $0x68] sm:$0xff]
        %v3903 = vld [vmem:[#allocation10 + $0x70] sm:$0xff]
        %v3904 = vld [vmem:[#allocation10 + $0x78] sm:$0xff]
        %v3905 = vld [vmem:[#allocation10 + $0x80] sm:$0xff]
        %v3906 = vld [vmem:[#allocation10 + $0x88] sm:$0xff]
        %v3907 = vld [vmem:[#allocation10 + $0x90] sm:$0xff]
        %v3908 = vld [vmem:[#allocation10 + $0x98] sm:$0xff]
        %v3909 = vld [vmem:[#allocation10 + $0xa0] sm:$0xff]
        %v3910 = vld [vmem:[#allocation10 + $0xa8] sm:$0xff]
        %v3911 = vld [vmem:[#allocation10 + $0xb0] sm:$0xff]
        %v3912 = vld [vmem:[#allocation10 + $0xb8] sm:$0xff]
        %v3913 = vld [vmem:[#allocation10 + $0xc0] sm:$0xff]
        %v3914 = vld [vmem:[#allocation10 + $0xc8] sm:$0xff]
        %v3915 = vld [vmem:[#allocation10 + $0xd0] sm:$0xff]
        %v3916 = vld [vmem:[#allocation10 + $0xd8] sm:$0xff]
        %v3917 = vld [vmem:[#allocation10 + $0xe0] sm:$0xff]
        %v3918 = vld [vmem:[#allocation10 + $0xe8] sm:$0xff]
        %v3919 = vld [vmem:[#allocation10 + $0xf0] sm:$0xff]
        %v3920 = vld [vmem:[#allocation10 + $0xf8] sm:$0xff]
        %v3921 = vld [vmem:[#allocation10 + $0x100] sm:$0xff]
        %v3922 = vld [vmem:[#allocation10 + $0x108] sm:$0xff]
        %v3923 = vld [vmem:[#allocation10 + $0x110] sm:$0xff]
        %v3924 = vld [vmem:[#allocation10 + $0x118] sm:$0xff]
        %v3925 = vld [vmem:[#allocation10 + $0x120] sm:$0xff]
        %v3926 = vld [vmem:[#allocation10 + $0x128] sm:$0xff]
        %v3927 = vld [vmem:[#allocation10 + $0x130] sm:$0xff]
        %v3928 = vld [vmem:[#allocation10 + $0x138] sm:$0xff]
        %v3929 = vld [vmem:[#allocation10 + $0x140] sm:$0xff]
        %v3930 = vld [vmem:[#allocation10 + $0x148] sm:$0xff]
        %v3931 = vld [vmem:[#allocation10 + $0x150] sm:$0xff]
        %v3932 = vld [vmem:[#allocation10 + $0x158] sm:$0xff]
        %v3933 = vld [vmem:[#allocation10 + $0x160] sm:$0xff]
        %v3934 = vld [vmem:[#allocation10 + $0x168] sm:$0xff]
        %v3935 = vld [vmem:[#allocation10 + $0x170] sm:$0xff]
        %v3936 = vld [vmem:[#allocation10 + $0x178] sm:$0xff]
        %v3937 = vld [vmem:[#allocation10 + $0x180] sm:$0xff]
        %v3938 = vld [vmem:[#allocation10 + $0x188] sm:$0xff]
        %v3939 = vld [vmem:[#allocation10 + $0x190] sm:$0xff]
        %v3940 = vld [vmem:[#allocation10 + $0x198] sm:$0xff]
        %v3941 = vld [vmem:[#allocation10 + $0x1a0] sm:$0xff]
        %v3942 = vld [vmem:[#allocation10 + $0x1a8] sm:$0xff]
        %v3943 = vld [vmem:[#allocation10 + $0x1b0] sm:$0xff]
        %v3944 = vld [vmem:[#allocation10 + $0x1b8] sm:$0xff]
        %v3945 = vld [vmem:[#allocation10 + $0x1c0] sm:$0xff]
        %v3946 = vld [vmem:[#allocation10 + $0x1c8] sm:$0xff]
        %v3947 = vld [vmem:[#allocation10 + $0x1d0] sm:$0xff]
        %v3948 = vld [vmem:[#allocation10 + $0x1d8] sm:$0xff]
        %v3949 = vld [vmem:[#allocation10 + $0x1e0] sm:$0xff]
        %v3950 = vld [vmem:[#allocation10 + $0x1e8] sm:$0xff]
        %v3951 = vld [vmem:[#allocation10 + $0x1f0] sm:$0xff]
        %v3952 = vld [vmem:[#allocation10 + $0x1f8] sm:$0xff]
        %v3953 = vld [vmem:[#allocation10 + $0x200] sm:$0xff]
        %v3954 = vld [vmem:[#allocation10 + $0x208] sm:$0xff]
        %v3955 = vld [vmem:[#allocation10 + $0x210] sm:$0xff]
        %v3956 = vld [vmem:[#allocation10 + $0x218] sm:$0xff]
        %v3957 = vld [vmem:[#allocation10 + $0x220] sm:$0xff]
        %v3958 = vld [vmem:[#allocation10 + $0x228] sm:$0xff]
        %v3959 = vld [vmem:[#allocation10 + $0x230] sm:$0xff]
        %v3960 = vld [vmem:[#allocation10 + $0x238] sm:$0xff]
        %v3961 = vld [vmem:[#allocation10 + $0x240] sm:$0xff]
        %v3962 = vld [vmem:[#allocation10 + $0x248] sm:$0xff]
        %v3963 = vld [vmem:[#allocation10 + $0x250] sm:$0xff]
        %v3964 = vld [vmem:[#allocation10 + $0x258] sm:$0xff]
        %v3965 = vld [vmem:[#allocation10 + $0x260] sm:$0xff]
        %v3966 = vld [vmem:[#allocation10 + $0x268] sm:$0xff]
        %v3967 = vld [vmem:[#allocation10 + $0x270] sm:$0xff]
        %v3968 = vld [vmem:[#allocation10 + $0x278] sm:$0xff]
        %v3969 = vld [vmem:[#allocation10 + $0x280] sm:$0xff]
        %v3970 = vld [vmem:[#allocation10 + $0x288] sm:$0xff]
        %v3971 = vld [vmem:[#allocation10 + $0x290] sm:$0xff]
        %v3972 = vld [vmem:[#allocation10 + $0x298] sm:$0xff]
        %v3973 = vld [vmem:[#allocation10 + $0x2a0] sm:$0xff]
        %v3974 = vld [vmem:[#allocation10 + $0x2a8] sm:$0xff]
        %v3975 = vld [vmem:[#allocation10 + $0x2b0] sm:$0xff]
        %v3976 = vld [vmem:[#allocation10 + $0x2b8] sm:$0xff]
        %v3977 = vld [vmem:[#allocation10 + $0x2c0] sm:$0xff]
        %v3978 = vld [vmem:[#allocation10 + $0x2c8] sm:$0xff]
        %v3979 = vld [vmem:[#allocation10 + $0x2d0] sm:$0xff]
        %v3980 = vld [vmem:[#allocation10 + $0x2d8] sm:$0xff]
        %v3981 = vld [vmem:[#allocation10 + $0x2e0] sm:$0xff]
        %v3982 = vld [vmem:[#allocation10 + $0x2e8] sm:$0xff]
        %v3983 = vld [vmem:[#allocation10 + $0x2f0] sm:$0xff]
        %v3984 = vld [vmem:[#allocation10 + $0x2f8] sm:$0xff]
        %v3985 = vld [vmem:[#allocation10 + $0x300] sm:$0xff]
        %v3986 = vld [vmem:[#allocation10 + $0x308] sm:$0xff]
        %v3987 = vld [vmem:[#allocation10 + $0x310] sm:$0xff]
        %v3988 = vld [vmem:[#allocation10 + $0x318] sm:$0xff]
        %v3989 = vld [vmem:[#allocation10 + $0x320] sm:$0xff]
        %v3990 = vld [vmem:[#allocation10 + $0x328] sm:$0xff]
        %v3991 = vld [vmem:[#allocation10 + $0x330] sm:$0xff]
        %v3992 = vld [vmem:[#allocation10 + $0x338] sm:$0xff]
        %v3993 = vld [vmem:[#allocation10 + $0x340] sm:$0xff]
        %v3994 = vld [vmem:[#allocation10 + $0x348] sm:$0xff]
        %v3995 = vld [vmem:[#allocation10 + $0x350] sm:$0xff]
        %v3996 = vld [vmem:[#allocation10 + $0x358] sm:$0xff]
        %v3997 = vld [vmem:[#allocation10 + $0x360] sm:$0xff]
        %v3998 = vld [vmem:[#allocation10 + $0x368] sm:$0xff]
        %v3999 = vld [vmem:[#allocation10 + $0x370] sm:$0xff]
        %v4000 = vld [vmem:[#allocation10 + $0x378] sm:$0xff]
        %v4001 = vld [vmem:[#allocation10 + $0x380] sm:$0xff]
        %v4002 = vld [vmem:[#allocation10 + $0x388] sm:$0xff]
        %v4003 = vld [vmem:[#allocation10 + $0x390] sm:$0xff]
        %v4004 = vld [vmem:[#allocation10 + $0x398] sm:$0xff]
        %v4005 = vld [vmem:[#allocation10 + $0x3a0] sm:$0xff]
        %v4006 = vld [vmem:[#allocation10 + $0x3a8] sm:$0xff]
        %v4007 = vld [vmem:[#allocation10 + $0x3b0] sm:$0xff]
        %v4008 = vld [vmem:[#allocation10 + $0x3b8] sm:$0xff]
        %v4009 = vld [vmem:[#allocation10 + $0x3c0] sm:$0xff]
        %v4010 = vld [vmem:[#allocation10 + $0x3c8] sm:$0xff]
        %v4011 = vld [vmem:[#allocation10 + $0x3d0] sm:$0xff]
        %v4012 = vld [vmem:[#allocation10 + $0x3d8] sm:$0xff]
        %v4013 = vld [vmem:[#allocation10 + $0x3e0] sm:$0xff]
        %v4014 = vld [vmem:[#allocation10 + $0x3e8] sm:$0xff]
        %v4015 = vld [vmem:[#allocation10 + $0x3f0] sm:$0xff]
        %v4016 = vld [vmem:[#allocation10 + $0x3f8] sm:$0xff]
        %v4017 = vld [vmem:[%s7] sm:$0xf]
        %v4019 = vlaneseq
        %v4020 = vshrl.u32 %v4019, 7
        %v4021 = vsub.s32 0, %v4020
        %v4022 = vrot.slane %v4017, %v4021
        %v4023 = vlaneseq
        %v4024 = vshrl.u32 %v4023, 7
        %v4025 = vsub.s32 1, %v4024
        %v4026 = vrot.slane %v4017, %v4025
        %v4027 = vlaneseq
        %v4028 = vshrl.u32 %v4027, 7
        %v4029 = vsub.s32 2, %v4028
        %v4030 = vrot.slane %v4017, %v4029
        %v4031 = vlaneseq
        %v4032 = vshrl.u32 %v4031, 7
        %v4033 = vsub.s32 3, %v4032
        %v4034 = vrot.slane %v4017, %v4033
        %v4167 = vunpack.c.l.b16 %v3889
        %v4168 = vunpack.c.h.b16 %v3889
        %v4169 = vunpack.c.l.b16 %v3890
        %v4170 = vunpack.c.h.b16 %v3890
        %v4171 = vunpack.c.l.b16 %v3891
        %v4172 = vunpack.c.h.b16 %v3891
        %v4173 = vunpack.c.l.b16 %v3892
        %v4174 = vunpack.c.h.b16 %v3892
        %v4175 = vunpack.c.l.b16 %v3893
        %v4176 = vunpack.c.h.b16 %v3893
        %v4177 = vunpack.c.l.b16 %v3894
        %v4178 = vunpack.c.h.b16 %v3894
        %v4179 = vunpack.c.l.b16 %v3895
        %v4180 = vunpack.c.h.b16 %v3895
        %v4181 = vunpack.c.l.b16 %v3896
        %v4182 = vunpack.c.h.b16 %v3896
        %v4183 = vunpack.c.l.b16 %v3897
        %v4184 = vunpack.c.h.b16 %v3897
        %v4185 = vunpack.c.l.b16 %v3898
        %v4186 = vunpack.c.h.b16 %v3898
        %v4187 = vunpack.c.l.b16 %v3899
        %v4188 = vunpack.c.h.b16 %v3899
        %v4189 = vunpack.c.l.b16 %v3900
        %v4190 = vunpack.c.h.b16 %v3900
        %v4191 = vunpack.c.l.b16 %v3901
        %v4192 = vunpack.c.h.b16 %v3901
        %v4193 = vunpack.c.l.b16 %v3902
        %v4194 = vunpack.c.h.b16 %v3902
        %v4195 = vunpack.c.l.b16 %v3903
        %v4196 = vunpack.c.h.b16 %v3903
        %v4197 = vunpack.c.l.b16 %v3904
        %v4198 = vunpack.c.h.b16 %v3904
        %v4199 = vunpack.c.l.b16 %v3905
        %v4200 = vunpack.c.h.b16 %v3905
        %v4201 = vunpack.c.l.b16 %v3906
        %v4202 = vunpack.c.h.b16 %v3906
        %v4203 = vunpack.c.l.b16 %v3907
        %v4204 = vunpack.c.h.b16 %v3907
        %v4205 = vunpack.c.l.b16 %v3908
        %v4206 = vunpack.c.h.b16 %v3908
        %v4207 = vunpack.c.l.b16 %v3909
        %v4208 = vunpack.c.h.b16 %v3909
        %v4209 = vunpack.c.l.b16 %v3910
        %v4210 = vunpack.c.h.b16 %v3910
        %v4211 = vunpack.c.l.b16 %v3911
        %v4212 = vunpack.c.h.b16 %v3911
        %v4213 = vunpack.c.l.b16 %v3912
        %v4214 = vunpack.c.h.b16 %v3912
        %v4215 = vunpack.c.l.b16 %v3913
        %v4216 = vunpack.c.h.b16 %v3913
        %v4217 = vunpack.c.l.b16 %v3914
        %v4218 = vunpack.c.h.b16 %v3914
        %v4219 = vunpack.c.l.b16 %v3915
        %v4220 = vunpack.c.h.b16 %v3915
        %v4221 = vunpack.c.l.b16 %v3916
        %v4222 = vunpack.c.h.b16 %v3916
        %v4223 = vunpack.c.l.b16 %v3917
        %v4224 = vunpack.c.h.b16 %v3917
        %v4225 = vunpack.c.l.b16 %v3918
        %v4226 = vunpack.c.h.b16 %v3918
        %v4227 = vunpack.c.l.b16 %v3919
        %v4228 = vunpack.c.h.b16 %v3919
        %v4229 = vunpack.c.l.b16 %v3920
        %v4230 = vunpack.c.h.b16 %v3920
        %v4231 = vunpack.c.l.b16 %v3921
        %v4232 = vunpack.c.h.b16 %v3921
        %v4233 = vunpack.c.l.b16 %v3922
        %v4234 = vunpack.c.h.b16 %v3922
        %v4235 = vunpack.c.l.b16 %v3923
        %v4236 = vunpack.c.h.b16 %v3923
        %v4237 = vunpack.c.l.b16 %v3924
        %v4238 = vunpack.c.h.b16 %v3924
        %v4239 = vunpack.c.l.b16 %v3925
        %v4240 = vunpack.c.h.b16 %v3925
        %v4241 = vunpack.c.l.b16 %v3926
        %v4242 = vunpack.c.h.b16 %v3926
        %v4243 = vunpack.c.l.b16 %v3927
        %v4244 = vunpack.c.h.b16 %v3927
        %v4245 = vunpack.c.l.b16 %v3928
        %v4246 = vunpack.c.h.b16 %v3928
        %v4247 = vunpack.c.l.b16 %v3929
        %v4248 = vunpack.c.h.b16 %v3929
        %v4249 = vunpack.c.l.b16 %v3930
        %v4250 = vunpack.c.h.b16 %v3930
        %v4251 = vunpack.c.l.b16 %v3931
        %v4252 = vunpack.c.h.b16 %v3931
        %v4253 = vunpack.c.l.b16 %v3932
        %v4254 = vunpack.c.h.b16 %v3932
        %v4255 = vunpack.c.l.b16 %v3933
        %v4256 = vunpack.c.h.b16 %v3933
        %v4257 = vunpack.c.l.b16 %v3934
        %v4258 = vunpack.c.h.b16 %v3934
        %v4259 = vunpack.c.l.b16 %v3935
        %v4260 = vunpack.c.h.b16 %v3935
        %v4261 = vunpack.c.l.b16 %v3936
        %v4262 = vunpack.c.h.b16 %v3936
        %v4263 = vunpack.c.l.b16 %v3937
        %v4264 = vunpack.c.h.b16 %v3937
        %v4265 = vunpack.c.l.b16 %v3938
        %v4266 = vunpack.c.h.b16 %v3938
        %v4267 = vunpack.c.l.b16 %v3939
        %v4268 = vunpack.c.h.b16 %v3939
        %v4269 = vunpack.c.l.b16 %v3940
        %v4270 = vunpack.c.h.b16 %v3940
        %v4271 = vunpack.c.l.b16 %v3941
        %v4272 = vunpack.c.h.b16 %v3941
        %v4273 = vunpack.c.l.b16 %v3942
        %v4274 = vunpack.c.h.b16 %v3942
        %v4275 = vunpack.c.l.b16 %v3943
        %v4276 = vunpack.c.h.b16 %v3943
        %v4277 = vunpack.c.l.b16 %v3944
        %v4278 = vunpack.c.h.b16 %v3944
        %v4279 = vunpack.c.l.b16 %v3945
        %v4280 = vunpack.c.h.b16 %v3945
        %v4281 = vunpack.c.l.b16 %v3946
        %v4282 = vunpack.c.h.b16 %v3946
        %v4283 = vunpack.c.l.b16 %v3947
        %v4284 = vunpack.c.h.b16 %v3947
        %v4285 = vunpack.c.l.b16 %v3948
        %v4286 = vunpack.c.h.b16 %v3948
        %v4287 = vunpack.c.l.b16 %v3949
        %v4288 = vunpack.c.h.b16 %v3949
        %v4289 = vunpack.c.l.b16 %v3950
        %v4290 = vunpack.c.h.b16 %v3950
        %v4291 = vunpack.c.l.b16 %v3951
        %v4292 = vunpack.c.h.b16 %v3951
        %v4293 = vunpack.c.l.b16 %v3952
        %v4294 = vunpack.c.h.b16 %v3952
        %v4295 = vunpack.c.l.b16 %v3953
        %v4296 = vunpack.c.h.b16 %v3953
        %v4297 = vunpack.c.l.b16 %v3954
        %v4298 = vunpack.c.h.b16 %v3954
        %v4299 = vunpack.c.l.b16 %v3955
        %v4300 = vunpack.c.h.b16 %v3955
        %v4301 = vunpack.c.l.b16 %v3956
        %v4302 = vunpack.c.h.b16 %v3956
        %v4303 = vunpack.c.l.b16 %v3957
        %v4304 = vunpack.c.h.b16 %v3957
        %v4305 = vunpack.c.l.b16 %v3958
        %v4306 = vunpack.c.h.b16 %v3958
        %v4307 = vunpack.c.l.b16 %v3959
        %v4308 = vunpack.c.h.b16 %v3959
        %v4309 = vunpack.c.l.b16 %v3960
        %v4310 = vunpack.c.h.b16 %v3960
        %v4311 = vunpack.c.l.b16 %v3961
        %v4312 = vunpack.c.h.b16 %v3961
        %v4313 = vunpack.c.l.b16 %v3962
        %v4314 = vunpack.c.h.b16 %v3962
        %v4315 = vunpack.c.l.b16 %v3963
        %v4316 = vunpack.c.h.b16 %v3963
        %v4317 = vunpack.c.l.b16 %v3964
        %v4318 = vunpack.c.h.b16 %v3964
        %v4319 = vunpack.c.l.b16 %v3965
        %v4320 = vunpack.c.h.b16 %v3965
        %v4321 = vunpack.c.l.b16 %v3966
        %v4322 = vunpack.c.h.b16 %v3966
        %v4323 = vunpack.c.l.b16 %v3967
        %v4324 = vunpack.c.h.b16 %v3967
        %v4325 = vunpack.c.l.b16 %v3968
        %v4326 = vunpack.c.h.b16 %v3968
        %v4327 = vunpack.c.l.b16 %v3969
        %v4328 = vunpack.c.h.b16 %v3969
        %v4329 = vunpack.c.l.b16 %v3970
        %v4330 = vunpack.c.h.b16 %v3970
        %v4331 = vunpack.c.l.b16 %v3971
        %v4332 = vunpack.c.h.b16 %v3971
        %v4333 = vunpack.c.l.b16 %v3972
        %v4334 = vunpack.c.h.b16 %v3972
        %v4335 = vunpack.c.l.b16 %v3973
        %v4336 = vunpack.c.h.b16 %v3973
        %v4337 = vunpack.c.l.b16 %v3974
        %v4338 = vunpack.c.h.b16 %v3974
        %v4339 = vunpack.c.l.b16 %v3975
        %v4340 = vunpack.c.h.b16 %v3975
        %v4341 = vunpack.c.l.b16 %v3976
        %v4342 = vunpack.c.h.b16 %v3976
        %v4343 = vunpack.c.l.b16 %v3977
        %v4344 = vunpack.c.h.b16 %v3977
        %v4345 = vunpack.c.l.b16 %v3978
        %v4346 = vunpack.c.h.b16 %v3978
        %v4347 = vunpack.c.l.b16 %v3979
        %v4348 = vunpack.c.h.b16 %v3979
        %v4349 = vunpack.c.l.b16 %v3980
        %v4350 = vunpack.c.h.b16 %v3980
        %v4351 = vunpack.c.l.b16 %v3981
        %v4352 = vunpack.c.h.b16 %v3981
        %v4353 = vunpack.c.l.b16 %v3982
        %v4354 = vunpack.c.h.b16 %v3982
        %v4355 = vunpack.c.l.b16 %v3983
        %v4356 = vunpack.c.h.b16 %v3983
        %v4357 = vunpack.c.l.b16 %v3984
        %v4358 = vunpack.c.h.b16 %v3984
        %v4359 = vunpack.c.l.b16 %v3985
        %v4360 = vunpack.c.h.b16 %v3985
        %v4361 = vunpack.c.l.b16 %v3986
        %v4362 = vunpack.c.h.b16 %v3986
        %v4363 = vunpack.c.l.b16 %v3987
        %v4364 = vunpack.c.h.b16 %v3987
        %v4365 = vunpack.c.l.b16 %v3988
        %v4366 = vunpack.c.h.b16 %v3988
        %v4367 = vunpack.c.l.b16 %v3989
        %v4368 = vunpack.c.h.b16 %v3989
        %v4369 = vunpack.c.l.b16 %v3990
        %v4370 = vunpack.c.h.b16 %v3990
        %v4371 = vunpack.c.l.b16 %v3991
        %v4372 = vunpack.c.h.b16 %v3991
        %v4373 = vunpack.c.l.b16 %v3992
        %v4374 = vunpack.c.h.b16 %v3992
        %v4375 = vunpack.c.l.b16 %v3993
        %v4376 = vunpack.c.h.b16 %v3993
        %v4377 = vunpack.c.l.b16 %v3994
        %v4378 = vunpack.c.h.b16 %v3994
        %v4379 = vunpack.c.l.b16 %v3995
        %v4380 = vunpack.c.h.b16 %v3995
        %v4381 = vunpack.c.l.b16 %v3996
        %v4382 = vunpack.c.h.b16 %v3996
        %v4383 = vunpack.c.l.b16 %v3997
        %v4384 = vunpack.c.h.b16 %v3997
        %v4385 = vunpack.c.l.b16 %v3998
        %v4386 = vunpack.c.h.b16 %v3998
        %v4387 = vunpack.c.l.b16 %v3999
        %v4388 = vunpack.c.h.b16 %v3999
        %v4389 = vunpack.c.l.b16 %v4000
        %v4390 = vunpack.c.h.b16 %v4000
        %v4391 = vunpack.c.l.b16 %v4001
        %v4392 = vunpack.c.h.b16 %v4001
        %v4393 = vunpack.c.l.b16 %v4002
        %v4394 = vunpack.c.h.b16 %v4002
        %v4395 = vunpack.c.l.b16 %v4003
        %v4396 = vunpack.c.h.b16 %v4003
        %v4397 = vunpack.c.l.b16 %v4004
        %v4398 = vunpack.c.h.b16 %v4004
        %v4399 = vunpack.c.l.b16 %v4005
        %v4400 = vunpack.c.h.b16 %v4005
        %v4401 = vunpack.c.l.b16 %v4006
        %v4402 = vunpack.c.h.b16 %v4006
        %v4403 = vunpack.c.l.b16 %v4007
        %v4404 = vunpack.c.h.b16 %v4007
        %v4405 = vunpack.c.l.b16 %v4008
        %v4406 = vunpack.c.h.b16 %v4008
        %v4407 = vunpack.c.l.b16 %v4009
        %v4408 = vunpack.c.h.b16 %v4009
        %v4409 = vunpack.c.l.b16 %v4010
        %v4410 = vunpack.c.h.b16 %v4010
        %v4411 = vunpack.c.l.b16 %v4011
        %v4412 = vunpack.c.h.b16 %v4011
        %v4413 = vunpack.c.l.b16 %v4012
        %v4414 = vunpack.c.h.b16 %v4012
        %v4415 = vunpack.c.l.b16 %v4013
        %v4416 = vunpack.c.h.b16 %v4013
        %v4417 = vunpack.c.l.b16 %v4014
        %v4418 = vunpack.c.h.b16 %v4014
        %v4419 = vunpack.c.l.b16 %v4015
        %v4420 = vunpack.c.h.b16 %v4015
        %v4421 = vunpack.c.l.b16 %v4016
        %v4422 = vunpack.c.h.b16 %v4016
        %v4423 = vpack.c.b16 %v4171, %v4167
        %v4424 = vpack.c.b16 %v4172, %v4168
        %v4425 = vpack.c.b16 %v4173, %v4169
        %v4426 = vpack.c.b16 %v4174, %v4170
        %v4427 = vpack.c.b16 %v4179, %v4175
        %v4428 = vpack.c.b16 %v4180, %v4176
        %v4429 = vpack.c.b16 %v4181, %v4177
        %v4430 = vpack.c.b16 %v4182, %v4178
        %v4431 = vpack.c.b16 %v4187, %v4183
        %v4432 = vpack.c.b16 %v4188, %v4184
        %v4433 = vpack.c.b16 %v4189, %v4185
        %v4434 = vpack.c.b16 %v4190, %v4186
        %v4435 = vpack.c.b16 %v4195, %v4191
        %v4436 = vpack.c.b16 %v4196, %v4192
        %v4437 = vpack.c.b16 %v4197, %v4193
        %v4438 = vpack.c.b16 %v4198, %v4194
        %v4439 = vpack.c.b16 %v4203, %v4199
        %v4440 = vpack.c.b16 %v4204, %v4200
        %v4441 = vpack.c.b16 %v4205, %v4201
        %v4442 = vpack.c.b16 %v4206, %v4202
        %v4443 = vpack.c.b16 %v4211, %v4207
        %v4444 = vpack.c.b16 %v4212, %v4208
        %v4445 = vpack.c.b16 %v4213, %v4209
        %v4446 = vpack.c.b16 %v4214, %v4210
        %v4447 = vpack.c.b16 %v4219, %v4215
        %v4448 = vpack.c.b16 %v4220, %v4216
        %v4449 = vpack.c.b16 %v4221, %v4217
        %v4450 = vpack.c.b16 %v4222, %v4218
        %v4451 = vpack.c.b16 %v4227, %v4223
        %v4452 = vpack.c.b16 %v4228, %v4224
        %v4453 = vpack.c.b16 %v4229, %v4225
        %v4454 = vpack.c.b16 %v4230, %v4226
        %v4455 = vpack.c.b16 %v4235, %v4231
        %v4456 = vpack.c.b16 %v4236, %v4232
        %v4457 = vpack.c.b16 %v4237, %v4233
        %v4458 = vpack.c.b16 %v4238, %v4234
        %v4459 = vpack.c.b16 %v4243, %v4239
        %v4460 = vpack.c.b16 %v4244, %v4240
        %v4461 = vpack.c.b16 %v4245, %v4241
        %v4462 = vpack.c.b16 %v4246, %v4242
        %v4463 = vpack.c.b16 %v4251, %v4247
        %v4464 = vpack.c.b16 %v4252, %v4248
        %v4465 = vpack.c.b16 %v4253, %v4249
        %v4466 = vpack.c.b16 %v4254, %v4250
        %v4467 = vpack.c.b16 %v4259, %v4255
        %v4468 = vpack.c.b16 %v4260, %v4256
        %v4469 = vpack.c.b16 %v4261, %v4257
        %v4470 = vpack.c.b16 %v4262, %v4258
        %v4471 = vpack.c.b16 %v4267, %v4263
        %v4472 = vpack.c.b16 %v4268, %v4264
        %v4473 = vpack.c.b16 %v4269, %v4265
        %v4474 = vpack.c.b16 %v4270, %v4266
        %v4475 = vpack.c.b16 %v4275, %v4271
        %v4476 = vpack.c.b16 %v4276, %v4272
        %v4477 = vpack.c.b16 %v4277, %v4273
        %v4478 = vpack.c.b16 %v4278, %v4274
        %v4479 = vpack.c.b16 %v4283, %v4279
        %v4480 = vpack.c.b16 %v4284, %v4280
        %v4481 = vpack.c.b16 %v4285, %v4281
        %v4482 = vpack.c.b16 %v4286, %v4282
        %v4483 = vpack.c.b16 %v4291, %v4287
        %v4484 = vpack.c.b16 %v4292, %v4288
        %v4485 = vpack.c.b16 %v4293, %v4289
        %v4486 = vpack.c.b16 %v4294, %v4290
        %v4487 = vpack.c.b16 %v4299, %v4295
        %v4488 = vpack.c.b16 %v4300, %v4296
        %v4489 = vpack.c.b16 %v4301, %v4297
        %v4490 = vpack.c.b16 %v4302, %v4298
        %v4491 = vpack.c.b16 %v4307, %v4303
        %v4492 = vpack.c.b16 %v4308, %v4304
        %v4493 = vpack.c.b16 %v4309, %v4305
        %v4494 = vpack.c.b16 %v4310, %v4306
        %v4495 = vpack.c.b16 %v4315, %v4311
        %v4496 = vpack.c.b16 %v4316, %v4312
        %v4497 = vpack.c.b16 %v4317, %v4313
        %v4498 = vpack.c.b16 %v4318, %v4314
        %v4499 = vpack.c.b16 %v4323, %v4319
        %v4500 = vpack.c.b16 %v4324, %v4320
        %v4501 = vpack.c.b16 %v4325, %v4321
        %v4502 = vpack.c.b16 %v4326, %v4322
        %v4503 = vpack.c.b16 %v4331, %v4327
        %v4504 = vpack.c.b16 %v4332, %v4328
        %v4505 = vpack.c.b16 %v4333, %v4329
        %v4506 = vpack.c.b16 %v4334, %v4330
        %v4507 = vpack.c.b16 %v4339, %v4335
        %v4508 = vpack.c.b16 %v4340, %v4336
        %v4509 = vpack.c.b16 %v4341, %v4337
        %v4510 = vpack.c.b16 %v4342, %v4338
        %v4511 = vpack.c.b16 %v4347, %v4343
        %v4512 = vpack.c.b16 %v4348, %v4344
        %v4513 = vpack.c.b16 %v4349, %v4345
        %v4514 = vpack.c.b16 %v4350, %v4346
        %v4515 = vpack.c.b16 %v4355, %v4351
        %v4516 = vpack.c.b16 %v4356, %v4352
        %v4517 = vpack.c.b16 %v4357, %v4353
        %v4518 = vpack.c.b16 %v4358, %v4354
        %v4519 = vpack.c.b16 %v4363, %v4359
        %v4520 = vpack.c.b16 %v4364, %v4360
        %v4521 = vpack.c.b16 %v4365, %v4361
        %v4522 = vpack.c.b16 %v4366, %v4362
        %v4523 = vpack.c.b16 %v4371, %v4367
        %v4524 = vpack.c.b16 %v4372, %v4368
        %v4525 = vpack.c.b16 %v4373, %v4369
        %v4526 = vpack.c.b16 %v4374, %v4370
        %v4527 = vpack.c.b16 %v4379, %v4375
        %v4528 = vpack.c.b16 %v4380, %v4376
        %v4529 = vpack.c.b16 %v4381, %v4377
        %v4530 = vpack.c.b16 %v4382, %v4378
        %v4531 = vpack.c.b16 %v4387, %v4383
        %v4532 = vpack.c.b16 %v4388, %v4384
        %v4533 = vpack.c.b16 %v4389, %v4385
        %v4534 = vpack.c.b16 %v4390, %v4386
        %v4535 = vpack.c.b16 %v4395, %v4391
        %v4536 = vpack.c.b16 %v4396, %v4392
        %v4537 = vpack.c.b16 %v4397, %v4393
        %v4538 = vpack.c.b16 %v4398, %v4394
        %v4539 = vpack.c.b16 %v4403, %v4399
        %v4540 = vpack.c.b16 %v4404, %v4400
        %v4541 = vpack.c.b16 %v4405, %v4401
        %v4542 = vpack.c.b16 %v4406, %v4402
        %v4543 = vpack.c.b16 %v4411, %v4407
        %v4544 = vpack.c.b16 %v4412, %v4408
        %v4545 = vpack.c.b16 %v4413, %v4409
        %v4546 = vpack.c.b16 %v4414, %v4410
        %v4547 = vpack.c.b16 %v4419, %v4415
        %v4548 = vpack.c.b16 %v4420, %v4416
        %v4549 = vpack.c.b16 %v4421, %v4417
        %v4550 = vpack.c.b16 %v4422, %v4418
        %4679 = vmatprep.subr.bf16.mxu0 %v4424
        %4680 = vmatpush1.bf16.msra.mxu0 %v4423
        %4681 = vmatprep.subr.bf16.mxu0 %v4428
        %4682 = vmatpush1.bf16.msra.mxu0 %v4427
        %4683 = vmatprep.subr.bf16.mxu0 %v4432
        %4684 = vmatpush1.bf16.msra.mxu0 %v4431
        %4685 = vmatprep.subr.bf16.mxu0 %v4436
        %4686 = vmatpush1.bf16.msra.mxu0 %v4435
        %4687 = vmatprep.subr.bf16.mxu0 %v4440
        %4688 = vmatpush1.bf16.msra.mxu0 %v4439
        %4689 = vmatprep.subr.bf16.mxu0 %v4444
        %4690 = vmatpush1.bf16.msra.mxu0 %v4443
        %4691 = vmatprep.subr.bf16.mxu0 %v4448
        %4692 = vmatpush1.bf16.msra.mxu0 %v4447
        %4693 = vmatprep.subr.bf16.mxu0 %v4452
        %4694 = vmatpush1.bf16.msra.mxu0 %v4451
        %4695 = vmatprep.subr.bf16.mxu0 %v4456
        %4696 = vmatpush1.bf16.msra.mxu0 %v4455
        %4697 = vmatprep.subr.bf16.mxu0 %v4460
        %4698 = vmatpush1.bf16.msra.mxu0 %v4459
        %4699 = vmatprep.subr.bf16.mxu0 %v4464
        %4700 = vmatpush1.bf16.msra.mxu0 %v4463
        %4701 = vmatprep.subr.bf16.mxu0 %v4468
        %4702 = vmatpush1.bf16.msra.mxu0 %v4467
        %4703 = vmatprep.subr.bf16.mxu0 %v4472
        %4704 = vmatpush1.bf16.msra.mxu0 %v4471
        %4705 = vmatprep.subr.bf16.mxu0 %v4476
        %4706 = vmatpush1.bf16.msra.mxu0 %v4475
        %4707 = vmatprep.subr.bf16.mxu0 %v4480
        %4708 = vmatpush1.bf16.msra.mxu0 %v4479
        %4709 = vmatprep.subr.bf16.mxu0 %v4484
        %4710 = vmatpush1.bf16.msra.mxu0 %v4483
        %4711 = vmatprep.mubr.bf16.mxu0 %v2286
        %4712 = vmatmul.mubr.bf16.gmra.mrb[0].mxu0 %v2285
        %v4713 = vpop.f32.mrb[0].mxu0
        %v4714 = vadd.f32 %v4022, %v4713
        %v4715 = vpop.f32.mrb[0].mxu0
        %v4716 = vadd.f32 %v4026, %v4715
        %v4717 = vpop.f32.mrb[0].mxu0
        %v4718 = vadd.f32 %v4022, %v4717
        %v4719 = vpop.f32.mrb[0].mxu0
        %v4720 = vadd.f32 %v4026, %v4719
        %4721 = vmatprep.mubr.bf16.mxu0 %v2290
        %4722 = vmatmul.mubr.bf16.gmra.mrb[0].mxu0 %v2289
        %v4723 = vpop.f32.mrb[0].mxu0
        %v4724 = vadd.f32 %v4022, %v4723
        %v4725 = vpop.f32.mrb[0].mxu0
        %v4726 = vadd.f32 %v4026, %v4725
        %v4727 = vpop.f32.mrb[0].mxu0
        %v4728 = vadd.f32 %v4022, %v4727
        %v4729 = vpop.f32.mrb[0].mxu0
        %v4730 = vadd.f32 %v4026, %v4729
        %4731 = vmatprep.mubr.bf16.mxu0 %v2294
        %4732 = vmatmul.mubr.bf16.gmra.mrb[0].mxu0 %v2293
        %v4733 = vpop.f32.mrb[0].mxu0
        %v4734 = vadd.f32 %v4022, %v4733
        %v4735 = vpop.f32.mrb[0].mxu0
        %v4736 = vadd.f32 %v4026, %v4735
        %v4737 = vpop.f32.mrb[0].mxu0
        %v4738 = vadd.f32 %v4022, %v4737
        %v4739 = vpop.f32.mrb[0].mxu0
        %v4740 = vadd.f32 %v4026, %v4739
        %4741 = vmatprep.mubr.bf16.mxu0 %v2298
        %4742 = vmatmul.mubr.bf16.gmra.mrb[0].mxu0 %v2297
        %v4743 = vpop.f32.mrb[0].mxu0
        %v4744 = vadd.f32 %v4022, %v4743
        %v4745 = vpop.f32.mrb[0].mxu0
        %v4746 = vadd.f32 %v4026, %v4745
        %v4747 = vpop.f32.mrb[0].mxu0
        %v4748 = vadd.f32 %v4022, %v4747
        %v4749 = vpop.f32.mrb[0].mxu0
        %v4750 = vadd.f32 %v4026, %v4749
        %4751 = vmatprep.mubr.bf16.mxu0 %v2302
        %4752 = vmatmul.mubr.bf16.gmra.mrb[0].mxu0 %v2301
        %v4753 = vpop.f32.mrb[0].mxu0
        %v4754 = vadd.f32 %v4022, %v4753
        %v4755 = vpop.f32.mrb[0].mxu0
        %v4756 = vadd.f32 %v4026, %v4755
        %v4757 = vpop.f32.mrb[0].mxu0
        %v4758 = vadd.f32 %v4022, %v4757
        %v4759 = vpop.f32.mrb[0].mxu0
        %v4760 = vadd.f32 %v4026, %v4759
        %4761 = vmatprep.mubr.bf16.mxu0 %v2306
        %4762 = vmatmul.mubr.bf16.gmra.mrb[0].mxu0 %v2305
        %v4763 = vpop.f32.mrb[0].mxu0
        %v4764 = vadd.f32 %v4022, %v4763
        %v4765 = vpop.f32.mrb[0].mxu0
        %v4766 = vadd.f32 %v4026, %v4765
        %v4767 = vpop.f32.mrb[0].mxu0
        %v4768 = vadd.f32 %v4022, %v4767
        %v4769 = vpop.f32.mrb[0].mxu0
        %v4770 = vadd.f32 %v4026, %v4769
        %4771 = vmatprep.mubr.bf16.mxu0 %v2310
        %4772 = vmatmul.mubr.bf16.gmra.mrb[0].mxu0 %v2309
        %v4773 = vpop.f32.mrb[0].mxu0
        %v4774 = vadd.f32 %v4022, %v4773
        %v4775 = vpop.f32.mrb[0].mxu0
        %v4776 = vadd.f32 %v4026, %v4775
        %v4777 = vpop.f32.mrb[0].mxu0
        %v4778 = vadd.f32 %v4022, %v4777
        %v4779 = vpop.f32.mrb[0].mxu0
        %v4780 = vadd.f32 %v4026, %v4779
        %4781 = vmatprep.mubr.bf16.mxu0 %v2314
        %4782 = vmatmul.mubr.bf16.gmra.mrb[0].mxu0 %v2313
        %v4783 = vpop.f32.mrb[0].mxu0
        %v4784 = vadd.f32 %v4022, %v4783
        %v4785 = vpop.f32.mrb[0].mxu0
        %v4786 = vadd.f32 %v4026, %v4785
        %v4787 = vpop.f32.mrb[0].mxu0
        %v4788 = vadd.f32 %v4022, %v4787
        %v4789 = vpop.f32.mrb[0].mxu0
        %v4790 = vadd.f32 %v4026, %v4789
        %4791 = vmatprep.mubr.bf16.mxu0 %v2318
        %4792 = vmatmul.mubr.bf16.gmra.mrb[0].mxu0 %v2317
        %v4793 = vpop.f32.mrb[0].mxu0
        %v4794 = vadd.f32 %v4022, %v4793
        %v4795 = vpop.f32.mrb[0].mxu0
        %v4796 = vadd.f32 %v4026, %v4795
        %v4797 = vpop.f32.mrb[0].mxu0
        %v4798 = vadd.f32 %v4022, %v4797
        %v4799 = vpop.f32.mrb[0].mxu0
        %v4800 = vadd.f32 %v4026, %v4799
        %4801 = vmatprep.mubr.bf16.mxu0 %v2322
        %4802 = vmatmul.mubr.bf16.gmra.mrb[0].mxu0 %v2321
        %v4803 = vpop.f32.mrb[0].mxu0
        %v4804 = vadd.f32 %v4022, %v4803
        %v4805 = vpop.f32.mrb[0].mxu0
        %v4806 = vadd.f32 %v4026, %v4805
        %v4807 = vpop.f32.mrb[0].mxu0
        %v4808 = vadd.f32 %v4022, %v4807
        %v4809 = vpop.f32.mrb[0].mxu0
        %v4810 = vadd.f32 %v4026, %v4809
        %4811 = vmatprep.mubr.bf16.mxu0 %v2326
        %4812 = vmatmul.mubr.bf16.gmra.mrb[0].mxu0 %v2325
        %v4813 = vpop.f32.mrb[0].mxu0
        %v4814 = vadd.f32 %v4022, %v4813
        %v4815 = vpop.f32.mrb[0].mxu0
        %v4816 = vadd.f32 %v4026, %v4815
        %v4817 = vpop.f32.mrb[0].mxu0
        %v4818 = vadd.f32 %v4022, %v4817
        %v4819 = vpop.f32.mrb[0].mxu0
        %v4820 = vadd.f32 %v4026, %v4819
        %4821 = vmatprep.mubr.bf16.mxu0 %v2330
        %4822 = vmatmul.mubr.bf16.gmra.mrb[0].mxu0 %v2329
        %v4823 = vpop.f32.mrb[0].mxu0
        %v4824 = vadd.f32 %v4022, %v4823
        %v4825 = vpop.f32.mrb[0].mxu0
        %v4826 = vadd.f32 %v4026, %v4825
        %v4827 = vpop.f32.mrb[0].mxu0
        %v4828 = vadd.f32 %v4022, %v4827
        %v4829 = vpop.f32.mrb[0].mxu0
        %v4830 = vadd.f32 %v4026, %v4829
        %4831 = vmatprep.mubr.bf16.mxu0 %v2334
        %4832 = vmatmul.mubr.bf16.gmra.mrb[0].mxu0 %v2333
        %v4833 = vpop.f32.mrb[0].mxu0
        %v4834 = vadd.f32 %v4022, %v4833
        %v4835 = vpop.f32.mrb[0].mxu0
        %v4836 = vadd.f32 %v4026, %v4835
        %v4837 = vpop.f32.mrb[0].mxu0
        %v4838 = vadd.f32 %v4022, %v4837
        %v4839 = vpop.f32.mrb[0].mxu0
        %v4840 = vadd.f32 %v4026, %v4839
        %4841 = vmatprep.mubr.bf16.mxu0 %v2338
        %4842 = vmatmul.mubr.bf16.gmra.mrb[0].mxu0 %v2337
        %v4843 = vpop.f32.mrb[0].mxu0
        %v4844 = vadd.f32 %v4022, %v4843
        %v4845 = vpop.f32.mrb[0].mxu0
        %v4846 = vadd.f32 %v4026, %v4845
        %v4847 = vpop.f32.mrb[0].mxu0
        %v4848 = vadd.f32 %v4022, %v4847
        %v4849 = vpop.f32.mrb[0].mxu0
        %v4850 = vadd.f32 %v4026, %v4849
        %4851 = vmatprep.mubr.bf16.mxu0 %v2342
        %4852 = vmatmul.mubr.bf16.gmra.mrb[0].mxu0 %v2341
        %v4853 = vpop.f32.mrb[0].mxu0
        %v4854 = vadd.f32 %v4022, %v4853
        %v4855 = vpop.f32.mrb[0].mxu0
        %v4856 = vadd.f32 %v4026, %v4855
        %v4857 = vpop.f32.mrb[0].mxu0
        %v4858 = vadd.f32 %v4022, %v4857
        %v4859 = vpop.f32.mrb[0].mxu0
        %v4860 = vadd.f32 %v4026, %v4859
        %4861 = vmatprep.mubr.bf16.mxu0 %v2346
        %4862 = vmatmul.mubr.bf16.gmra.mrb[0].mxu0 %v2345
        %v4863 = vpop.f32.mrb[0].mxu0
        %v4864 = vadd.f32 %v4022, %v4863
        %v4865 = vpop.f32.mrb[0].mxu0
        %v4866 = vadd.f32 %v4026, %v4865
        %v4867 = vpop.f32.mrb[0].mxu0
        %v4868 = vadd.f32 %v4022, %v4867
        %v4869 = vpop.f32.mrb[0].mxu0
        %v4870 = vadd.f32 %v4026, %v4869
        %4871 = vdwg.mxu0
        %4872 = vmatprep.subr.bf16.mxu0 %v4488
        %4873 = vmatpush1.bf16.msra.mxu0 %v4487
        %4874 = vmatprep.subr.bf16.mxu0 %v4492
        %4875 = vmatpush1.bf16.msra.mxu0 %v4491
        %4876 = vmatprep.subr.bf16.mxu0 %v4496
        %4877 = vmatpush1.bf16.msra.mxu0 %v4495
        %4878 = vmatprep.subr.bf16.mxu0 %v4500
        %4879 = vmatpush1.bf16.msra.mxu0 %v4499
        %4880 = vmatprep.subr.bf16.mxu0 %v4504
        %4881 = vmatpush1.bf16.msra.mxu0 %v4503
        %4882 = vmatprep.subr.bf16.mxu0 %v4508
        %4883 = vmatpush1.bf16.msra.mxu0 %v4507
        %4884 = vmatprep.subr.bf16.mxu0 %v4512
        %4885 = vmatpush1.bf16.msra.mxu0 %v4511
        %4886 = vmatprep.subr.bf16.mxu0 %v4516
        %4887 = vmatpush1.bf16.msra.mxu0 %v4515
        %4888 = vmatprep.subr.bf16.mxu0 %v4520
        %4889 = vmatpush1.bf16.msra.mxu0 %v4519
        %4890 = vmatprep.subr.bf16.mxu0 %v4524
        %4891 = vmatpush1.bf16.msra.mxu0 %v4523
        %4892 = vmatprep.subr.bf16.mxu0 %v4528
        %4893 = vmatpush1.bf16.msra.mxu0 %v4527
        %4894 = vmatprep.subr.bf16.mxu0 %v4532
        %4895 = vmatpush1.bf16.msra.mxu0 %v4531
        %4896 = vmatprep.subr.bf16.mxu0 %v4536
        %4897 = vmatpush1.bf16.msra.mxu0 %v4535
        %4898 = vmatprep.subr.bf16.mxu0 %v4540
        %4899 = vmatpush1.bf16.msra.mxu0 %v4539
        %4900 = vmatprep.subr.bf16.mxu0 %v4544
        %4901 = vmatpush1.bf16.msra.mxu0 %v4543
        %4902 = vmatprep.subr.bf16.mxu0 %v4548
        %4903 = vmatpush1.bf16.msra.mxu0 %v4547
        %4904 = vmatprep.mubr.bf16.mxu0 %v2288
        %4905 = vmatmul.mubr.bf16.gmra.mrb[0].mxu0 %v2287
        %v4906 = vpop.f32.mrb[0].mxu0
        %v4907 = vadd.f32 %v4714, %v4906
        %v4908 = vpop.f32.mrb[0].mxu0
        %v4909 = vadd.f32 %v4716, %v4908
        %v4910 = vpop.f32.mrb[0].mxu0
        %v4911 = vadd.f32 %v4718, %v4910
        %v4912 = vpop.f32.mrb[0].mxu0
        %v4913 = vadd.f32 %v4720, %v4912
        %4914 = vmatprep.mubr.bf16.mxu0 %v2292
        %4915 = vmatmul.mubr.bf16.gmra.mrb[0].mxu0 %v2291
        %v4916 = vpop.f32.mrb[0].mxu0
        %v4917 = vadd.f32 %v4724, %v4916
        %v4918 = vpop.f32.mrb[0].mxu0
        %v4919 = vadd.f32 %v4726, %v4918
        %v4920 = vpop.f32.mrb[0].mxu0
        %v4921 = vadd.f32 %v4728, %v4920
        %v4922 = vpop.f32.mrb[0].mxu0
        %v4923 = vadd.f32 %v4730, %v4922
        %4924 = vmatprep.mubr.bf16.mxu0 %v2296
        %4925 = vmatmul.mubr.bf16.gmra.mrb[0].mxu0 %v2295
        %v4926 = vpop.f32.mrb[0].mxu0
        %v4927 = vadd.f32 %v4734, %v4926
        %v4928 = vpop.f32.mrb[0].mxu0
        %v4929 = vadd.f32 %v4736, %v4928
        %v4930 = vpop.f32.mrb[0].mxu0
        %v4931 = vadd.f32 %v4738, %v4930
        %v4932 = vpop.f32.mrb[0].mxu0
        %v4933 = vadd.f32 %v4740, %v4932
        %4934 = vmatprep.mubr.bf16.mxu0 %v2300
        %4935 = vmatmul.mubr.bf16.gmra.mrb[0].mxu0 %v2299
        %v4936 = vpop.f32.mrb[0].mxu0
        %v4937 = vadd.f32 %v4744, %v4936
        %v4938 = vpop.f32.mrb[0].mxu0
        %v4939 = vadd.f32 %v4746, %v4938
        %v4940 = vpop.f32.mrb[0].mxu0
        %v4941 = vadd.f32 %v4748, %v4940
        %v4942 = vpop.f32.mrb[0].mxu0
        %v4943 = vadd.f32 %v4750, %v4942
        %4944 = vmatprep.mubr.bf16.mxu0 %v2304
        %4945 = vmatmul.mubr.bf16.gmra.mrb[0].mxu0 %v2303
        %v4946 = vpop.f32.mrb[0].mxu0
        %v4947 = vadd.f32 %v4754, %v4946
        %v4948 = vpop.f32.mrb[0].mxu0
        %v4949 = vadd.f32 %v4756, %v4948
        %v4950 = vpop.f32.mrb[0].mxu0
        %v4951 = vadd.f32 %v4758, %v4950
        %v4952 = vpop.f32.mrb[0].mxu0
        %v4953 = vadd.f32 %v4760, %v4952
        %4954 = vmatprep.mubr.bf16.mxu0 %v2308
        %4955 = vmatmul.mubr.bf16.gmra.mrb[0].mxu0 %v2307
        %v4956 = vpop.f32.mrb[0].mxu0
        %v4957 = vadd.f32 %v4764, %v4956
        %v4958 = vpop.f32.mrb[0].mxu0
        %v4959 = vadd.f32 %v4766, %v4958
        %v4960 = vpop.f32.mrb[0].mxu0
        %v4961 = vadd.f32 %v4768, %v4960
        %v4962 = vpop.f32.mrb[0].mxu0
        %v4963 = vadd.f32 %v4770, %v4962
        %4964 = vmatprep.mubr.bf16.mxu0 %v2312
        %4965 = vmatmul.mubr.bf16.gmra.mrb[0].mxu0 %v2311
        %v4966 = vpop.f32.mrb[0].mxu0
        %v4967 = vadd.f32 %v4774, %v4966
        %v4968 = vpop.f32.mrb[0].mxu0
        %v4969 = vadd.f32 %v4776, %v4968
        %v4970 = vpop.f32.mrb[0].mxu0
        %v4971 = vadd.f32 %v4778, %v4970
        %v4972 = vpop.f32.mrb[0].mxu0
        %v4973 = vadd.f32 %v4780, %v4972
        %4974 = vmatprep.mubr.bf16.mxu0 %v2316
        %4975 = vmatmul.mubr.bf16.gmra.mrb[0].mxu0 %v2315
        %v4976 = vpop.f32.mrb[0].mxu0
        %v4977 = vadd.f32 %v4784, %v4976
        %v4978 = vpop.f32.mrb[0].mxu0
        %v4979 = vadd.f32 %v4786, %v4978
        %v4980 = vpop.f32.mrb[0].mxu0
        %v4981 = vadd.f32 %v4788, %v4980
        %v4982 = vpop.f32.mrb[0].mxu0
        %v4983 = vadd.f32 %v4790, %v4982
        %4984 = vmatprep.mubr.bf16.mxu0 %v2320
        %4985 = vmatmul.mubr.bf16.gmra.mrb[0].mxu0 %v2319
        %v4986 = vpop.f32.mrb[0].mxu0
        %v4987 = vadd.f32 %v4794, %v4986
        %v4988 = vpop.f32.mrb[0].mxu0
        %v4989 = vadd.f32 %v4796, %v4988
        %v4990 = vpop.f32.mrb[0].mxu0
        %v4991 = vadd.f32 %v4798, %v4990
        %v4992 = vpop.f32.mrb[0].mxu0
        %v4993 = vadd.f32 %v4800, %v4992
        %4994 = vmatprep.mubr.bf16.mxu0 %v2324
        %4995 = vmatmul.mubr.bf16.gmra.mrb[0].mxu0 %v2323
        %v4996 = vpop.f32.mrb[0].mxu0
        %v4997 = vadd.f32 %v4804, %v4996
        %v4998 = vpop.f32.mrb[0].mxu0
        %v4999 = vadd.f32 %v4806, %v4998
        %v5000 = vpop.f32.mrb[0].mxu0
        %v5001 = vadd.f32 %v4808, %v5000
        %v5002 = vpop.f32.mrb[0].mxu0
        %v5003 = vadd.f32 %v4810, %v5002
        %5004 = vmatprep.mubr.bf16.mxu0 %v2328
        %5005 = vmatmul.mubr.bf16.gmra.mrb[0].mxu0 %v2327
        %v5006 = vpop.f32.mrb[0].mxu0
        %v5007 = vadd.f32 %v4814, %v5006
        %v5008 = vpop.f32.mrb[0].mxu0
        %v5009 = vadd.f32 %v4816, %v5008
        %v5010 = vpop.f32.mrb[0].mxu0
        %v5011 = vadd.f32 %v4818, %v5010
        %v5012 = vpop.f32.mrb[0].mxu0
        %v5013 = vadd.f32 %v4820, %v5012
        %5014 = vmatprep.mubr.bf16.mxu0 %v2332
        %5015 = vmatmul.mubr.bf16.gmra.mrb[0].mxu0 %v2331
        %v5016 = vpop.f32.mrb[0].mxu0
        %v5017 = vadd.f32 %v4824, %v5016
        %v5018 = vpop.f32.mrb[0].mxu0
        %v5019 = vadd.f32 %v4826, %v5018
        %v5020 = vpop.f32.mrb[0].mxu0
        %v5021 = vadd.f32 %v4828, %v5020
        %v5022 = vpop.f32.mrb[0].mxu0
        %v5023 = vadd.f32 %v4830, %v5022
        %5024 = vmatprep.mubr.bf16.mxu0 %v2336
        %5025 = vmatmul.mubr.bf16.gmra.mrb[0].mxu0 %v2335
        %v5026 = vpop.f32.mrb[0].mxu0
        %v5027 = vadd.f32 %v4834, %v5026
        %v5028 = vpop.f32.mrb[0].mxu0
        %v5029 = vadd.f32 %v4836, %v5028
        %v5030 = vpop.f32.mrb[0].mxu0
        %v5031 = vadd.f32 %v4838, %v5030
        %v5032 = vpop.f32.mrb[0].mxu0
        %v5033 = vadd.f32 %v4840, %v5032
        %5034 = vmatprep.mubr.bf16.mxu0 %v2340
        %5035 = vmatmul.mubr.bf16.gmra.mrb[0].mxu0 %v2339
        %v5036 = vpop.f32.mrb[0].mxu0
        %v5037 = vadd.f32 %v4844, %v5036
        %v5038 = vpop.f32.mrb[0].mxu0
        %v5039 = vadd.f32 %v4846, %v5038
        %v5040 = vpop.f32.mrb[0].mxu0
        %v5041 = vadd.f32 %v4848, %v5040
        %v5042 = vpop.f32.mrb[0].mxu0
        %v5043 = vadd.f32 %v4850, %v5042
        %5044 = vmatprep.mubr.bf16.mxu0 %v2344
        %5045 = vmatmul.mubr.bf16.gmra.mrb[0].mxu0 %v2343
        %v5046 = vpop.f32.mrb[0].mxu0
        %v5047 = vadd.f32 %v4854, %v5046
        %v5048 = vpop.f32.mrb[0].mxu0
        %v5049 = vadd.f32 %v4856, %v5048
        %v5050 = vpop.f32.mrb[0].mxu0
        %v5051 = vadd.f32 %v4858, %v5050
        %v5052 = vpop.f32.mrb[0].mxu0
        %v5053 = vadd.f32 %v4860, %v5052
        %5054 = vmatprep.mubr.bf16.mxu0 %v2348
        %5055 = vmatmul.mubr.bf16.gmra.mrb[0].mxu0 %v2347
        %v5056 = vpop.f32.mrb[0].mxu0
        %v5057 = vadd.f32 %v4864, %v5056
        %v5058 = vpop.f32.mrb[0].mxu0
        %v5059 = vadd.f32 %v4866, %v5058
        %v5060 = vpop.f32.mrb[0].mxu0
        %v5061 = vadd.f32 %v4868, %v5060
        %v5062 = vpop.f32.mrb[0].mxu0
        %v5063 = vadd.f32 %v4870, %v5062
        %5064 = vdwg.mxu0
        %5065 = vmatprep.subr.bf16.mxu0 %v4426
        %5066 = vmatpush1.bf16.msra.mxu0 %v4425
        %5067 = vmatprep.subr.bf16.mxu0 %v4430
        %5068 = vmatpush1.bf16.msra.mxu0 %v4429
        %5069 = vmatprep.subr.bf16.mxu0 %v4434
        %5070 = vmatpush1.bf16.msra.mxu0 %v4433
        %5071 = vmatprep.subr.bf16.mxu0 %v4438
        %5072 = vmatpush1.bf16.msra.mxu0 %v4437
        %5073 = vmatprep.subr.bf16.mxu0 %v4442
        %5074 = vmatpush1.bf16.msra.mxu0 %v4441
        %5075 = vmatprep.subr.bf16.mxu0 %v4446
        %5076 = vmatpush1.bf16.msra.mxu0 %v4445
        %5077 = vmatprep.subr.bf16.mxu0 %v4450
        %5078 = vmatpush1.bf16.msra.mxu0 %v4449
        %5079 = vmatprep.subr.bf16.mxu0 %v4454
        %5080 = vmatpush1.bf16.msra.mxu0 %v4453
        %5081 = vmatprep.subr.bf16.mxu0 %v4458
        %5082 = vmatpush1.bf16.msra.mxu0 %v4457
        %5083 = vmatprep.subr.bf16.mxu0 %v4462
        %5084 = vmatpush1.bf16.msra.mxu0 %v4461
        %5085 = vmatprep.subr.bf16.mxu0 %v4466
        %5086 = vmatpush1.bf16.msra.mxu0 %v4465
        %5087 = vmatprep.subr.bf16.mxu0 %v4470
        %5088 = vmatpush1.bf16.msra.mxu0 %v4469
        %5089 = vmatprep.subr.bf16.mxu0 %v4474
        %5090 = vmatpush1.bf16.msra.mxu0 %v4473
        %5091 = vmatprep.subr.bf16.mxu0 %v4478
        %5092 = vmatpush1.bf16.msra.mxu0 %v4477
        %5093 = vmatprep.subr.bf16.mxu0 %v4482
        %5094 = vmatpush1.bf16.msra.mxu0 %v4481
        %5095 = vmatprep.subr.bf16.mxu0 %v4486
        %5096 = vmatpush1.bf16.msra.mxu0 %v4485
        %5097 = vmatprep.mubr.bf16.mxu0 %v2286
        %5098 = vmatmul.mubr.bf16.gmra.mrb[0].mxu0 %v2285
        %v5099 = vpop.f32.mrb[0].mxu0
        %v5100 = vadd.f32 %v4030, %v5099
        %v5101 = vpop.f32.mrb[0].mxu0
        %v5102 = vadd.f32 %v4034, %v5101
        %v5103 = vpop.f32.mrb[0].mxu0
        %v5104 = vadd.f32 %v4030, %v5103
        %v5105 = vpop.f32.mrb[0].mxu0
        %v5106 = vadd.f32 %v4034, %v5105
        %5107 = vmatprep.mubr.bf16.mxu0 %v2290
        %5108 = vmatmul.mubr.bf16.gmra.mrb[0].mxu0 %v2289
        %v5109 = vpop.f32.mrb[0].mxu0
        %v5110 = vadd.f32 %v4030, %v5109
        %v5111 = vpop.f32.mrb[0].mxu0
        %v5112 = vadd.f32 %v4034, %v5111
        %v5113 = vpop.f32.mrb[0].mxu0
        %v5114 = vadd.f32 %v4030, %v5113
        %v5115 = vpop.f32.mrb[0].mxu0
        %v5116 = vadd.f32 %v4034, %v5115
        %5117 = vmatprep.mubr.bf16.mxu0 %v2294
        %5118 = vmatmul.mubr.bf16.gmra.mrb[0].mxu0 %v2293
        %v5119 = vpop.f32.mrb[0].mxu0
        %v5120 = vadd.f32 %v4030, %v5119
        %v5121 = vpop.f32.mrb[0].mxu0
        %v5122 = vadd.f32 %v4034, %v5121
        %v5123 = vpop.f32.mrb[0].mxu0
        %v5124 = vadd.f32 %v4030, %v5123
        %v5125 = vpop.f32.mrb[0].mxu0
        %v5126 = vadd.f32 %v4034, %v5125
        %5127 = vmatprep.mubr.bf16.mxu0 %v2298
        %5128 = vmatmul.mubr.bf16.gmra.mrb[0].mxu0 %v2297
        %v5129 = vpop.f32.mrb[0].mxu0
        %v5130 = vadd.f32 %v4030, %v5129
        %v5131 = vpop.f32.mrb[0].mxu0
        %v5132 = vadd.f32 %v4034, %v5131
        %v5133 = vpop.f32.mrb[0].mxu0
        %v5134 = vadd.f32 %v4030, %v5133
        %v5135 = vpop.f32.mrb[0].mxu0
        %v5136 = vadd.f32 %v4034, %v5135
        %5137 = vmatprep.mubr.bf16.mxu0 %v2302
        %5138 = vmatmul.mubr.bf16.gmra.mrb[0].mxu0 %v2301
        %v5139 = vpop.f32.mrb[0].mxu0
        %v5140 = vadd.f32 %v4030, %v5139
        %v5141 = vpop.f32.mrb[0].mxu0
        %v5142 = vadd.f32 %v4034, %v5141
        %v5143 = vpop.f32.mrb[0].mxu0
        %v5144 = vadd.f32 %v4030, %v5143
        %v5145 = vpop.f32.mrb[0].mxu0
        %v5146 = vadd.f32 %v4034, %v5145
        %5147 = vmatprep.mubr.bf16.mxu0 %v2306
        %5148 = vmatmul.mubr.bf16.gmra.mrb[0].mxu0 %v2305
        %v5149 = vpop.f32.mrb[0].mxu0
        %v5150 = vadd.f32 %v4030, %v5149
        %v5151 = vpop.f32.mrb[0].mxu0
        %v5152 = vadd.f32 %v4034, %v5151
        %v5153 = vpop.f32.mrb[0].mxu0
        %v5154 = vadd.f32 %v4030, %v5153
        %v5155 = vpop.f32.mrb[0].mxu0
        %v5156 = vadd.f32 %v4034, %v5155
        %5157 = vmatprep.mubr.bf16.mxu0 %v2310
        %5158 = vmatmul.mubr.bf16.gmra.mrb[0].mxu0 %v2309
        %v5159 = vpop.f32.mrb[0].mxu0
        %v5160 = vadd.f32 %v4030, %v5159
        %v5161 = vpop.f32.mrb[0].mxu0
        %v5162 = vadd.f32 %v4034, %v5161
        %v5163 = vpop.f32.mrb[0].mxu0
        %v5164 = vadd.f32 %v4030, %v5163
        %v5165 = vpop.f32.mrb[0].mxu0
        %v5166 = vadd.f32 %v4034, %v5165
        %5167 = vmatprep.mubr.bf16.mxu0 %v2314
        %5168 = vmatmul.mubr.bf16.gmra.mrb[0].mxu0 %v2313
        %v5169 = vpop.f32.mrb[0].mxu0
        %v5170 = vadd.f32 %v4030, %v5169
        %v5171 = vpop.f32.mrb[0].mxu0
        %v5172 = vadd.f32 %v4034, %v5171
        %v5173 = vpop.f32.mrb[0].mxu0
        %v5174 = vadd.f32 %v4030, %v5173
        %v5175 = vpop.f32.mrb[0].mxu0
        %v5176 = vadd.f32 %v4034, %v5175
        %5177 = vmatprep.mubr.bf16.mxu0 %v2318
        %5178 = vmatmul.mubr.bf16.gmra.mrb[0].mxu0 %v2317
        %v5179 = vpop.f32.mrb[0].mxu0
        %v5180 = vadd.f32 %v4030, %v5179
        %v5181 = vpop.f32.mrb[0].mxu0
        %v5182 = vadd.f32 %v4034, %v5181
        %v5183 = vpop.f32.mrb[0].mxu0
        %v5184 = vadd.f32 %v4030, %v5183
        %v5185 = vpop.f32.mrb[0].mxu0
        %v5186 = vadd.f32 %v4034, %v5185
        %5187 = vmatprep.mubr.bf16.mxu0 %v2322
        %5188 = vmatmul.mubr.bf16.gmra.mrb[0].mxu0 %v2321
        %v5189 = vpop.f32.mrb[0].mxu0
        %v5190 = vadd.f32 %v4030, %v5189
        %v5191 = vpop.f32.mrb[0].mxu0
        %v5192 = vadd.f32 %v4034, %v5191
        %v5193 = vpop.f32.mrb[0].mxu0
        %v5194 = vadd.f32 %v4030, %v5193
        %v5195 = vpop.f32.mrb[0].mxu0
        %v5196 = vadd.f32 %v4034, %v5195
        %5197 = vmatprep.mubr.bf16.mxu0 %v2326
        %5198 = vmatmul.mubr.bf16.gmra.mrb[0].mxu0 %v2325
        %v5199 = vpop.f32.mrb[0].mxu0
        %v5200 = vadd.f32 %v4030, %v5199
        %v5201 = vpop.f32.mrb[0].mxu0
        %v5202 = vadd.f32 %v4034, %v5201
        %v5203 = vpop.f32.mrb[0].mxu0
        %v5204 = vadd.f32 %v4030, %v5203
        %v5205 = vpop.f32.mrb[0].mxu0
        %v5206 = vadd.f32 %v4034, %v5205
        %5207 = vmatprep.mubr.bf16.mxu0 %v2330
        %5208 = vmatmul.mubr.bf16.gmra.mrb[0].mxu0 %v2329
        %v5209 = vpop.f32.mrb[0].mxu0
        %v5210 = vadd.f32 %v4030, %v5209
        %v5211 = vpop.f32.mrb[0].mxu0
        %v5212 = vadd.f32 %v4034, %v5211
        %v5213 = vpop.f32.mrb[0].mxu0
        %v5214 = vadd.f32 %v4030, %v5213
        %v5215 = vpop.f32.mrb[0].mxu0
        %v5216 = vadd.f32 %v4034, %v5215
        %5217 = vmatprep.mubr.bf16.mxu0 %v2334
        %5218 = vmatmul.mubr.bf16.gmra.mrb[0].mxu0 %v2333
        %v5219 = vpop.f32.mrb[0].mxu0
        %v5220 = vadd.f32 %v4030, %v5219
        %v5221 = vpop.f32.mrb[0].mxu0
        %v5222 = vadd.f32 %v4034, %v5221
        %v5223 = vpop.f32.mrb[0].mxu0
        %v5224 = vadd.f32 %v4030, %v5223
        %v5225 = vpop.f32.mrb[0].mxu0
        %v5226 = vadd.f32 %v4034, %v5225
        %5227 = vmatprep.mubr.bf16.mxu0 %v2338
        %5228 = vmatmul.mubr.bf16.gmra.mrb[0].mxu0 %v2337
        %v5229 = vpop.f32.mrb[0].mxu0
        %v5230 = vadd.f32 %v4030, %v5229
        %v5231 = vpop.f32.mrb[0].mxu0
        %v5232 = vadd.f32 %v4034, %v5231
        %v5233 = vpop.f32.mrb[0].mxu0
        %v5234 = vadd.f32 %v4030, %v5233
        %v5235 = vpop.f32.mrb[0].mxu0
        %v5236 = vadd.f32 %v4034, %v5235
        %5237 = vmatprep.mubr.bf16.mxu0 %v2342
        %5238 = vmatmul.mubr.bf16.gmra.mrb[0].mxu0 %v2341
        %v5239 = vpop.f32.mrb[0].mxu0
        %v5240 = vadd.f32 %v4030, %v5239
        %v5241 = vpop.f32.mrb[0].mxu0
        %v5242 = vadd.f32 %v4034, %v5241
        %v5243 = vpop.f32.mrb[0].mxu0
        %v5244 = vadd.f32 %v4030, %v5243
        %v5245 = vpop.f32.mrb[0].mxu0
        %v5246 = vadd.f32 %v4034, %v5245
        %5247 = vmatprep.mubr.bf16.mxu0 %v2346
        %5248 = vmatmul.mubr.bf16.gmra.mrb[0].mxu0 %v2345
        %v5249 = vpop.f32.mrb[0].mxu0
        %v5250 = vadd.f32 %v4030, %v5249
        %v5251 = vpop.f32.mrb[0].mxu0
        %v5252 = vadd.f32 %v4034, %v5251
        %v5253 = vpop.f32.mrb[0].mxu0
        %v5254 = vadd.f32 %v4030, %v5253
        %v5255 = vpop.f32.mrb[0].mxu0
        %v5256 = vadd.f32 %v4034, %v5255
        %5257 = vdwg.mxu0
        %5258 = vmatprep.subr.bf16.mxu0 %v4490
        %5259 = vmatpush1.bf16.msra.mxu0 %v4489
        %5260 = vmatprep.subr.bf16.mxu0 %v4494
        %5261 = vmatpush1.bf16.msra.mxu0 %v4493
        %5262 = vmatprep.subr.bf16.mxu0 %v4498
        %5263 = vmatpush1.bf16.msra.mxu0 %v4497
        %5264 = vmatprep.subr.bf16.mxu0 %v4502
        %5265 = vmatpush1.bf16.msra.mxu0 %v4501
        %5266 = vmatprep.subr.bf16.mxu0 %v4506
        %5267 = vmatpush1.bf16.msra.mxu0 %v4505
        %5268 = vmatprep.subr.bf16.mxu0 %v4510
        %5269 = vmatpush1.bf16.msra.mxu0 %v4509
        %5270 = vmatprep.subr.bf16.mxu0 %v4514
        %5271 = vmatpush1.bf16.msra.mxu0 %v4513
        %5272 = vmatprep.subr.bf16.mxu0 %v4518
        %5273 = vmatpush1.bf16.msra.mxu0 %v4517
        %5274 = vmatprep.subr.bf16.mxu0 %v4522
        %5275 = vmatpush1.bf16.msra.mxu0 %v4521
        %5276 = vmatprep.subr.bf16.mxu0 %v4526
        %5277 = vmatpush1.bf16.msra.mxu0 %v4525
        %5278 = vmatprep.subr.bf16.mxu0 %v4530
        %5279 = vmatpush1.bf16.msra.mxu0 %v4529
        %5280 = vmatprep.subr.bf16.mxu0 %v4534
        %5281 = vmatpush1.bf16.msra.mxu0 %v4533
        %5282 = vmatprep.subr.bf16.mxu0 %v4538
        %5283 = vmatpush1.bf16.msra.mxu0 %v4537
        %5284 = vmatprep.subr.bf16.mxu0 %v4542
        %5285 = vmatpush1.bf16.msra.mxu0 %v4541
        %5286 = vmatprep.subr.bf16.mxu0 %v4546
        %5287 = vmatpush1.bf16.msra.mxu0 %v4545
        %5288 = vmatprep.subr.bf16.mxu0 %v4550
        %5289 = vmatpush1.bf16.msra.mxu0 %v4549
        %5290 = vmatprep.mubr.bf16.mxu0 %v2288
        %5291 = vmatmul.mubr.bf16.gmra.mrb[0].mxu0 %v2287
        %v5292 = vpop.f32.mrb[0].mxu0
        %v5293 = vadd.f32 %v5100, %v5292
        %v5294 = vpop.f32.mrb[0].mxu0
        %v5295 = vadd.f32 %v5102, %v5294
        %v5296 = vpop.f32.mrb[0].mxu0
        %v5297 = vadd.f32 %v5104, %v5296
        %v5298 = vpop.f32.mrb[0].mxu0
        %v5299 = vadd.f32 %v5106, %v5298
        %5300 = vmatprep.mubr.bf16.mxu0 %v2292
        %5301 = vmatmul.mubr.bf16.gmra.mrb[0].mxu0 %v2291
        %v5302 = vpop.f32.mrb[0].mxu0
        %v5303 = vadd.f32 %v5110, %v5302
        %v5304 = vpop.f32.mrb[0].mxu0
        %v5305 = vadd.f32 %v5112, %v5304
        %v5306 = vpop.f32.mrb[0].mxu0
        %v5307 = vadd.f32 %v5114, %v5306
        %v5308 = vpop.f32.mrb[0].mxu0
        %v5309 = vadd.f32 %v5116, %v5308
        %5310 = vmatprep.mubr.bf16.mxu0 %v2296
        %5311 = vmatmul.mubr.bf16.gmra.mrb[0].mxu0 %v2295
        %v5312 = vpop.f32.mrb[0].mxu0
        %v5313 = vadd.f32 %v5120, %v5312
        %v5314 = vpop.f32.mrb[0].mxu0
        %v5315 = vadd.f32 %v5122, %v5314
        %v5316 = vpop.f32.mrb[0].mxu0
        %v5317 = vadd.f32 %v5124, %v5316
        %v5318 = vpop.f32.mrb[0].mxu0
        %v5319 = vadd.f32 %v5126, %v5318
        %5320 = vmatprep.mubr.bf16.mxu0 %v2300
        %5321 = vmatmul.mubr.bf16.gmra.mrb[0].mxu0 %v2299
        %v5322 = vpop.f32.mrb[0].mxu0
        %v5323 = vadd.f32 %v5130, %v5322
        %v5324 = vpop.f32.mrb[0].mxu0
        %v5325 = vadd.f32 %v5132, %v5324
        %v5326 = vpop.f32.mrb[0].mxu0
        %v5327 = vadd.f32 %v5134, %v5326
        %v5328 = vpop.f32.mrb[0].mxu0
        %v5329 = vadd.f32 %v5136, %v5328
        %5330 = vmatprep.mubr.bf16.mxu0 %v2304
        %5331 = vmatmul.mubr.bf16.gmra.mrb[0].mxu0 %v2303
        %v5332 = vpop.f32.mrb[0].mxu0
        %v5333 = vadd.f32 %v5140, %v5332
        %v5334 = vpop.f32.mrb[0].mxu0
        %v5335 = vadd.f32 %v5142, %v5334
        %v5336 = vpop.f32.mrb[0].mxu0
        %v5337 = vadd.f32 %v5144, %v5336
        %v5338 = vpop.f32.mrb[0].mxu0
        %v5339 = vadd.f32 %v5146, %v5338
        %5340 = vmatprep.mubr.bf16.mxu0 %v2308
        %5341 = vmatmul.mubr.bf16.gmra.mrb[0].mxu0 %v2307
        %v5342 = vpop.f32.mrb[0].mxu0
        %v5343 = vadd.f32 %v5150, %v5342
        %v5344 = vpop.f32.mrb[0].mxu0
        %v5345 = vadd.f32 %v5152, %v5344
        %v5346 = vpop.f32.mrb[0].mxu0
        %v5347 = vadd.f32 %v5154, %v5346
        %v5348 = vpop.f32.mrb[0].mxu0
        %v5349 = vadd.f32 %v5156, %v5348
        %5350 = vmatprep.mubr.bf16.mxu0 %v2312
        %5351 = vmatmul.mubr.bf16.gmra.mrb[0].mxu0 %v2311
        %v5352 = vpop.f32.mrb[0].mxu0
        %v5353 = vadd.f32 %v5160, %v5352
        %v5354 = vpop.f32.mrb[0].mxu0
        %v5355 = vadd.f32 %v5162, %v5354
        %v5356 = vpop.f32.mrb[0].mxu0
        %v5357 = vadd.f32 %v5164, %v5356
        %v5358 = vpop.f32.mrb[0].mxu0
        %v5359 = vadd.f32 %v5166, %v5358
        %5360 = vmatprep.mubr.bf16.mxu0 %v2316
        %5361 = vmatmul.mubr.bf16.gmra.mrb[0].mxu0 %v2315
        %v5362 = vpop.f32.mrb[0].mxu0
        %v5363 = vadd.f32 %v5170, %v5362
        %v5364 = vpop.f32.mrb[0].mxu0
        %v5365 = vadd.f32 %v5172, %v5364
        %v5366 = vpop.f32.mrb[0].mxu0
        %v5367 = vadd.f32 %v5174, %v5366
        %v5368 = vpop.f32.mrb[0].mxu0
        %v5369 = vadd.f32 %v5176, %v5368
        %5370 = vmatprep.mubr.bf16.mxu0 %v2320
        %5371 = vmatmul.mubr.bf16.gmra.mrb[0].mxu0 %v2319
        %v5372 = vpop.f32.mrb[0].mxu0
        %v5373 = vadd.f32 %v5180, %v5372
        %v5374 = vpop.f32.mrb[0].mxu0
        %v5375 = vadd.f32 %v5182, %v5374
        %v5376 = vpop.f32.mrb[0].mxu0
        %v5377 = vadd.f32 %v5184, %v5376
        %v5378 = vpop.f32.mrb[0].mxu0
        %v5379 = vadd.f32 %v5186, %v5378
        %5380 = vmatprep.mubr.bf16.mxu0 %v2324
        %5381 = vmatmul.mubr.bf16.gmra.mrb[0].mxu0 %v2323
        %v5382 = vpop.f32.mrb[0].mxu0
        %v5383 = vadd.f32 %v5190, %v5382
        %v5384 = vpop.f32.mrb[0].mxu0
        %v5385 = vadd.f32 %v5192, %v5384
        %v5386 = vpop.f32.mrb[0].mxu0
        %v5387 = vadd.f32 %v5194, %v5386
        %v5388 = vpop.f32.mrb[0].mxu0
        %v5389 = vadd.f32 %v5196, %v5388
        %5390 = vmatprep.mubr.bf16.mxu0 %v2328
        %5391 = vmatmul.mubr.bf16.gmra.mrb[0].mxu0 %v2327
        %v5392 = vpop.f32.mrb[0].mxu0
        %v5393 = vadd.f32 %v5200, %v5392
        %v5394 = vpop.f32.mrb[0].mxu0
        %v5395 = vadd.f32 %v5202, %v5394
        %v5396 = vpop.f32.mrb[0].mxu0
        %v5397 = vadd.f32 %v5204, %v5396
        %v5398 = vpop.f32.mrb[0].mxu0
        %v5399 = vadd.f32 %v5206, %v5398
        %5400 = vmatprep.mubr.bf16.mxu0 %v2332
        %5401 = vmatmul.mubr.bf16.gmra.mrb[0].mxu0 %v2331
        %v5402 = vpop.f32.mrb[0].mxu0
        %v5403 = vadd.f32 %v5210, %v5402
        %v5404 = vpop.f32.mrb[0].mxu0
        %v5405 = vadd.f32 %v5212, %v5404
        %v5406 = vpop.f32.mrb[0].mxu0
        %v5407 = vadd.f32 %v5214, %v5406
        %v5408 = vpop.f32.mrb[0].mxu0
        %v5409 = vadd.f32 %v5216, %v5408
        %5410 = vmatprep.mubr.bf16.mxu0 %v2336
        %5411 = vmatmul.mubr.bf16.gmra.mrb[0].mxu0 %v2335
        %v5412 = vpop.f32.mrb[0].mxu0
        %v5413 = vadd.f32 %v5220, %v5412
        %v5414 = vpop.f32.mrb[0].mxu0
        %v5415 = vadd.f32 %v5222, %v5414
        %v5416 = vpop.f32.mrb[0].mxu0
        %v5417 = vadd.f32 %v5224, %v5416
        %v5418 = vpop.f32.mrb[0].mxu0
        %v5419 = vadd.f32 %v5226, %v5418
        %5420 = vmatprep.mubr.bf16.mxu0 %v2340
        %5421 = vmatmul.mubr.bf16.gmra.mrb[0].mxu0 %v2339
        %v5422 = vpop.f32.mrb[0].mxu0
        %v5423 = vadd.f32 %v5230, %v5422
        %v5424 = vpop.f32.mrb[0].mxu0
        %v5425 = vadd.f32 %v5232, %v5424
        %v5426 = vpop.f32.mrb[0].mxu0
        %v5427 = vadd.f32 %v5234, %v5426
        %v5428 = vpop.f32.mrb[0].mxu0
        %v5429 = vadd.f32 %v5236, %v5428
        %5430 = vmatprep.mubr.bf16.mxu0 %v2344
        %5431 = vmatmul.mubr.bf16.gmra.mrb[0].mxu0 %v2343
        %v5432 = vpop.f32.mrb[0].mxu0
        %v5433 = vadd.f32 %v5240, %v5432
        %v5434 = vpop.f32.mrb[0].mxu0
        %v5435 = vadd.f32 %v5242, %v5434
        %v5436 = vpop.f32.mrb[0].mxu0
        %v5437 = vadd.f32 %v5244, %v5436
        %v5438 = vpop.f32.mrb[0].mxu0
        %v5439 = vadd.f32 %v5246, %v5438
        %5440 = vmatprep.mubr.bf16.mxu0 %v2348
        %5441 = vmatmul.mubr.bf16.gmra.mrb[0].mxu0 %v2347
        %v5442 = vpop.f32.mrb[0].mxu0
        %v5443 = vadd.f32 %v5250, %v5442
        %v5444 = vpop.f32.mrb[0].mxu0
        %v5445 = vadd.f32 %v5252, %v5444
        %v5446 = vpop.f32.mrb[0].mxu0
        %v5447 = vadd.f32 %v5254, %v5446
        %v5448 = vpop.f32.mrb[0].mxu0
        %v5449 = vadd.f32 %v5256, %v5448
        %5450 = vdwg.mxu0
        %v5451 = vpack.c.bf16 %v4911, %v4907
        %v5452 = vpack.c.bf16 %v4913, %v4909
        %v5453 = vpack.c.bf16 %v5297, %v5293
        %v5454 = vpack.c.bf16 %v5299, %v5295
        %v5455 = vpack.c.bf16 %v4921, %v4917
        %v5456 = vpack.c.bf16 %v4923, %v4919
        %v5457 = vpack.c.bf16 %v5307, %v5303
        %v5458 = vpack.c.bf16 %v5309, %v5305
        %v5459 = vpack.c.bf16 %v4931, %v4927
        %v5460 = vpack.c.bf16 %v4933, %v4929
        %v5461 = vpack.c.bf16 %v5317, %v5313
        %v5462 = vpack.c.bf16 %v5319, %v5315
        %v5463 = vpack.c.bf16 %v4941, %v4937
        %v5464 = vpack.c.bf16 %v4943, %v4939
        %v5465 = vpack.c.bf16 %v5327, %v5323
        %v5466 = vpack.c.bf16 %v5329, %v5325
        %v5467 = vpack.c.bf16 %v4951, %v4947
        %v5468 = vpack.c.bf16 %v4953, %v4949
        %v5469 = vpack.c.bf16 %v5337, %v5333
        %v5470 = vpack.c.bf16 %v5339, %v5335
        %v5471 = vpack.c.bf16 %v4961, %v4957
        %v5472 = vpack.c.bf16 %v4963, %v4959
        %v5473 = vpack.c.bf16 %v5347, %v5343
        %v5474 = vpack.c.bf16 %v5349, %v5345
        %v5475 = vpack.c.bf16 %v4971, %v4967
        %v5476 = vpack.c.bf16 %v4973, %v4969
        %v5477 = vpack.c.bf16 %v5357, %v5353
        %v5478 = vpack.c.bf16 %v5359, %v5355
        %v5479 = vpack.c.bf16 %v4981, %v4977
        %v5480 = vpack.c.bf16 %v4983, %v4979
        %v5481 = vpack.c.bf16 %v5367, %v5363
        %v5482 = vpack.c.bf16 %v5369, %v5365
        %v5483 = vpack.c.bf16 %v4991, %v4987
        %v5484 = vpack.c.bf16 %v4993, %v4989
        %v5485 = vpack.c.bf16 %v5377, %v5373
        %v5486 = vpack.c.bf16 %v5379, %v5375
        %v5487 = vpack.c.bf16 %v5001, %v4997
        %v5488 = vpack.c.bf16 %v5003, %v4999
        %v5489 = vpack.c.bf16 %v5387, %v5383
        %v5490 = vpack.c.bf16 %v5389, %v5385
        %v5491 = vpack.c.bf16 %v5011, %v5007
        %v5492 = vpack.c.bf16 %v5013, %v5009
        %v5493 = vpack.c.bf16 %v5397, %v5393
        %v5494 = vpack.c.bf16 %v5399, %v5395
        %v5495 = vpack.c.bf16 %v5021, %v5017
        %v5496 = vpack.c.bf16 %v5023, %v5019
        %v5497 = vpack.c.bf16 %v5407, %v5403
        %v5498 = vpack.c.bf16 %v5409, %v5405
        %v5499 = vpack.c.bf16 %v5031, %v5027
        %v5500 = vpack.c.bf16 %v5033, %v5029
        %v5501 = vpack.c.bf16 %v5417, %v5413
        %v5502 = vpack.c.bf16 %v5419, %v5415
        %v5503 = vpack.c.bf16 %v5041, %v5037
        %v5504 = vpack.c.bf16 %v5043, %v5039
        %v5505 = vpack.c.bf16 %v5427, %v5423
        %v5506 = vpack.c.bf16 %v5429, %v5425
        %v5507 = vpack.c.bf16 %v5051, %v5047
        %v5508 = vpack.c.bf16 %v5053, %v5049
        %v5509 = vpack.c.bf16 %v5437, %v5433
        %v5510 = vpack.c.bf16 %v5439, %v5435
        %v5511 = vpack.c.bf16 %v5061, %v5057
        %v5512 = vpack.c.bf16 %v5063, %v5059
        %v5513 = vpack.c.bf16 %v5447, %v5443
        %v5514 = vpack.c.bf16 %v5449, %v5445
        %5515 = vmatprep.subr.bf16.mxu0 0
        %5516 = vmatpush1.bf16.xpose.msra.mxu0 %v3825
        %5517 = vmatprep.subr.bf16.mxu0 0
        %5518 = vmatpush1.bf16.xpose.msra.mxu0 %v3829
        %5519 = vmatprep.subr.bf16.mxu0 0
        %5520 = vmatpush1.bf16.xpose.msra.mxu0 %v3833
        %5521 = vmatprep.subr.bf16.mxu0 0
        %5522 = vmatpush1.bf16.xpose.msra.mxu0 %v3837
        %5523 = vmatprep.subr.bf16.mxu0 0
        %5524 = vmatpush1.bf16.xpose.msra.mxu0 %v3841
        %5525 = vmatprep.subr.bf16.mxu0 0
        %5526 = vmatpush1.bf16.xpose.msra.mxu0 %v3845
        %5527 = vmatprep.subr.bf16.mxu0 0
        %5528 = vmatpush1.bf16.xpose.msra.mxu0 %v3849
        %5529 = vmatprep.subr.bf16.mxu0 0
        %5530 = vmatpush1.bf16.xpose.msra.mxu0 %v3853
        %5531 = vmatprep.subr.bf16.mxu0 0
        %5532 = vmatpush1.bf16.xpose.msra.mxu0 %v3857
        %5533 = vmatprep.subr.bf16.mxu0 0
        %5534 = vmatpush1.bf16.xpose.msra.mxu0 %v3861
        %5535 = vmatprep.subr.bf16.mxu0 0
        %5536 = vmatpush1.bf16.xpose.msra.mxu0 %v3865
        %5537 = vmatprep.subr.bf16.mxu0 0
        %5538 = vmatpush1.bf16.xpose.msra.mxu0 %v3869
        %5539 = vmatprep.subr.bf16.mxu0 0
        %5540 = vmatpush1.bf16.xpose.msra.mxu0 %v3873
        %5541 = vmatprep.subr.bf16.mxu0 0
        %5542 = vmatpush1.bf16.xpose.msra.mxu0 %v3877
        %5543 = vmatprep.subr.bf16.mxu0 0
        %5544 = vmatpush1.bf16.xpose.msra.mxu0 %v3881
        %5545 = vmatprep.subr.bf16.mxu0 0
        %5546 = vmatpush1.bf16.xpose.msra.mxu0 %v3885
        %5547 = vmatprep.mubr.bf16.mxu0 0
        %5548 = vmatmul.mubr.bf16.gmra.mrb[0].mxu0 %v1911
        %v5549 = vpop.f32.mrb[0].mxu0
        %v5550 = vadd.f32 0.0, %v5549
        %v5551 = vpop.f32.mrb[0].mxu0
        %v5552 = vadd.f32 0.0, %v5551
        %v5553 = vpop.f32.mrb[0].mxu0
        %v5554 = vadd.f32 0.0, %v5553
        %v5555 = vpop.f32.mrb[0].mxu0
        %v5556 = vadd.f32 0.0, %v5555
        %5557 = vmatprep.mubr.bf16.mxu0 0
        %5558 = vmatmul.mubr.bf16.gmra.mrb[0].mxu0 %v1915
        %v5559 = vpop.f32.mrb[0].mxu0
        %v5560 = vadd.f32 0.0, %v5559
        %v5561 = vpop.f32.mrb[0].mxu0
        %v5562 = vadd.f32 0.0, %v5561
        %v5563 = vpop.f32.mrb[0].mxu0
        %v5564 = vadd.f32 0.0, %v5563
        %v5565 = vpop.f32.mrb[0].mxu0
        %v5566 = vadd.f32 0.0, %v5565
        %5567 = vmatprep.mubr.bf16.mxu0 0
        %5568 = vmatmul.mubr.bf16.gmra.mrb[0].mxu0 %v1919
        %v5569 = vpop.f32.mrb[0].mxu0
        %v5570 = vadd.f32 0.0, %v5569
        %v5571 = vpop.f32.mrb[0].mxu0
        %v5572 = vadd.f32 0.0, %v5571
        %v5573 = vpop.f32.mrb[0].mxu0
        %v5574 = vadd.f32 0.0, %v5573
        %v5575 = vpop.f32.mrb[0].mxu0
        %v5576 = vadd.f32 0.0, %v5575
        %5577 = vmatprep.mubr.bf16.mxu0 0
        %5578 = vmatmul.mubr.bf16.gmra.mrb[0].mxu0 %v1923
        %v5579 = vpop.f32.mrb[0].mxu0
        %v5580 = vadd.f32 0.0, %v5579
        %v5581 = vpop.f32.mrb[0].mxu0
        %v5582 = vadd.f32 0.0, %v5581
        %v5583 = vpop.f32.mrb[0].mxu0
        %v5584 = vadd.f32 0.0, %v5583
        %v5585 = vpop.f32.mrb[0].mxu0
        %v5586 = vadd.f32 0.0, %v5585
        %5587 = vmatprep.mubr.bf16.mxu0 0
        %5588 = vmatmul.mubr.bf16.gmra.mrb[0].mxu0 %v1927
        %v5589 = vpop.f32.mrb[0].mxu0
        %v5590 = vadd.f32 0.0, %v5589
        %v5591 = vpop.f32.mrb[0].mxu0
        %v5592 = vadd.f32 0.0, %v5591
        %v5593 = vpop.f32.mrb[0].mxu0
        %v5594 = vadd.f32 0.0, %v5593
        %v5595 = vpop.f32.mrb[0].mxu0
        %v5596 = vadd.f32 0.0, %v5595
        %5597 = vmatprep.mubr.bf16.mxu0 0
        %5598 = vmatmul.mubr.bf16.gmra.mrb[0].mxu0 %v1931
        %v5599 = vpop.f32.mrb[0].mxu0
        %v5600 = vadd.f32 0.0, %v5599
        %v5601 = vpop.f32.mrb[0].mxu0
        %v5602 = vadd.f32 0.0, %v5601
        %v5603 = vpop.f32.mrb[0].mxu0
        %v5604 = vadd.f32 0.0, %v5603
        %v5605 = vpop.f32.mrb[0].mxu0
        %v5606 = vadd.f32 0.0, %v5605
        %5607 = vmatprep.mubr.bf16.mxu0 0
        %5608 = vmatmul.mubr.bf16.gmra.mrb[0].mxu0 %v1935
        %v5609 = vpop.f32.mrb[0].mxu0
        %v5610 = vadd.f32 0.0, %v5609
        %v5611 = vpop.f32.mrb[0].mxu0
        %v5612 = vadd.f32 0.0, %v5611
        %v5613 = vpop.f32.mrb[0].mxu0
        %v5614 = vadd.f32 0.0, %v5613
        %v5615 = vpop.f32.mrb[0].mxu0
        %v5616 = vadd.f32 0.0, %v5615
        %5617 = vmatprep.mubr.bf16.mxu0 0
        %5618 = vmatmul.mubr.bf16.gmra.mrb[0].mxu0 %v1939
        %v5619 = vpop.f32.mrb[0].mxu0
        %v5620 = vadd.f32 0.0, %v5619
        %v5621 = vpop.f32.mrb[0].mxu0
        %v5622 = vadd.f32 0.0, %v5621
        %v5623 = vpop.f32.mrb[0].mxu0
        %v5624 = vadd.f32 0.0, %v5623
        %v5625 = vpop.f32.mrb[0].mxu0
        %v5626 = vadd.f32 0.0, %v5625
        %5627 = vdwg.mxu0
        %v5628 = vmax.f32 %v5550, %v5552
        %5629 = vmax.xlane.f32.xlu0 %v5628
        %v5630 = vpop.xlane.xlu0 %5629
        %v5631 = vmax.f32 %v5554, %v5556
        %5632 = vmax.xlane.f32.xlu0 %v5631
        %v5633 = vpop.xlane.xlu0 %5632
        %v5634 = vmax.f32 %v5560, %v5562
        %5635 = vmax.xlane.f32.xlu0 %v5634
        %v5636 = vpop.xlane.xlu0 %5635
        %v5637 = vmax.f32 %v5564, %v5566
        %5638 = vmax.xlane.f32.xlu0 %v5637
        %v5639 = vpop.xlane.xlu0 %5638
        %v5640 = vmax.f32 %v5570, %v5572
        %5641 = vmax.xlane.f32.xlu0 %v5640
        %v5642 = vpop.xlane.xlu0 %5641
        %v5643 = vmax.f32 %v5574, %v5576
        %5644 = vmax.xlane.f32.xlu0 %v5643
        %v5645 = vpop.xlane.xlu0 %5644
        %v5646 = vmax.f32 %v5580, %v5582
        %5647 = vmax.xlane.f32.xlu0 %v5646
        %v5648 = vpop.xlane.xlu0 %5647
        %v5649 = vmax.f32 %v5584, %v5586
        %5650 = vmax.xlane.f32.xlu0 %v5649
        %v5651 = vpop.xlane.xlu0 %5650
        %v5652 = vmax.f32 %v5590, %v5592
        %5653 = vmax.xlane.f32.xlu0 %v5652
        %v5654 = vpop.xlane.xlu0 %5653
        %v5655 = vmax.f32 %v5594, %v5596
        %5656 = vmax.xlane.f32.xlu0 %v5655
        %v5657 = vpop.xlane.xlu0 %5656
        %v5658 = vmax.f32 %v5600, %v5602
        %5659 = vmax.xlane.f32.xlu0 %v5658
        %v5660 = vpop.xlane.xlu0 %5659
        %v5661 = vmax.f32 %v5604, %v5606
        %5662 = vmax.xlane.f32.xlu0 %v5661
        %v5663 = vpop.xlane.xlu0 %5662
        %v5664 = vmax.f32 %v5610, %v5612
        %5665 = vmax.xlane.f32.xlu0 %v5664
        %v5666 = vpop.xlane.xlu0 %5665
        %v5667 = vmax.f32 %v5614, %v5616
        %5668 = vmax.xlane.f32.xlu0 %v5667
        %v5669 = vpop.xlane.xlu0 %5668
        %v5670 = vmax.f32 %v5620, %v5622
        %5671 = vmax.xlane.f32.xlu0 %v5670
        %v5672 = vpop.xlane.xlu0 %5671
        %v5673 = vmax.f32 %v5624, %v5626
        %5674 = vmax.xlane.f32.xlu0 %v5673
        %v5675 = vpop.xlane.xlu0 %5674
        %v5676 = vsub.f32 %v5550, %v5630
        %v5677 = vsub.f32 %v5552, %v5630
        %v5678 = vsub.f32 %v5554, %v5633
        %v5679 = vsub.f32 %v5556, %v5633
        %v5680 = vsub.f32 %v5560, %v5636
        %v5681 = vsub.f32 %v5562, %v5636
        %v5682 = vsub.f32 %v5564, %v5639
        %v5683 = vsub.f32 %v5566, %v5639
        %v5684 = vsub.f32 %v5570, %v5642
        %v5685 = vsub.f32 %v5572, %v5642
        %v5686 = vsub.f32 %v5574, %v5645
        %v5687 = vsub.f32 %v5576, %v5645
        %v5688 = vsub.f32 %v5580, %v5648
        %v5689 = vsub.f32 %v5582, %v5648
        %v5690 = vsub.f32 %v5584, %v5651
        %v5691 = vsub.f32 %v5586, %v5651
        %v5692 = vsub.f32 %v5590, %v5654
        %v5693 = vsub.f32 %v5592, %v5654
        %v5694 = vsub.f32 %v5594, %v5657
        %v5695 = vsub.f32 %v5596, %v5657
        %v5696 = vsub.f32 %v5600, %v5660
        %v5697 = vsub.f32 %v5602, %v5660
        %v5698 = vsub.f32 %v5604, %v5663
        %v5699 = vsub.f32 %v5606, %v5663
        %v5700 = vsub.f32 %v5610, %v5666
        %v5701 = vsub.f32 %v5612, %v5666
        %v5702 = vsub.f32 %v5614, %v5669
        %v5703 = vsub.f32 %v5616, %v5669
        %v5704 = vsub.f32 %v5620, %v5672
        %v5705 = vsub.f32 %v5622, %v5672
        %v5706 = vsub.f32 %v5624, %v5675
        %v5707 = vsub.f32 %v5626, %v5675
        %v5708 = vmul.f32 %v5676, 1.442695
        %v5709 = vpow.pop %v5708
        %v5710 = vmul.f32 %v5677, 1.442695
        %v5711 = vpow.pop %v5710
        %v5712 = vmul.f32 %v5678, 1.442695
        %v5713 = vpow.pop %v5712
        %v5714 = vmul.f32 %v5679, 1.442695
        %v5715 = vpow.pop %v5714
        %v5716 = vmul.f32 %v5680, 1.442695
        %v5717 = vpow.pop %v5716
        %v5718 = vmul.f32 %v5681, 1.442695
        %v5719 = vpow.pop %v5718
        %v5720 = vmul.f32 %v5682, 1.442695
        %v5721 = vpow.pop %v5720
        %v5722 = vmul.f32 %v5683, 1.442695
        %v5723 = vpow.pop %v5722
        %v5724 = vmul.f32 %v5684, 1.442695
        %v5725 = vpow.pop %v5724
        %v5726 = vmul.f32 %v5685, 1.442695
        %v5727 = vpow.pop %v5726
        %v5728 = vmul.f32 %v5686, 1.442695
        %v5729 = vpow.pop %v5728
        %v5730 = vmul.f32 %v5687, 1.442695
        %v5731 = vpow.pop %v5730
        %v5732 = vmul.f32 %v5688, 1.442695
        %v5733 = vpow.pop %v5732
        %v5734 = vmul.f32 %v5689, 1.442695
        %v5735 = vpow.pop %v5734
        %v5736 = vmul.f32 %v5690, 1.442695
        %v5737 = vpow.pop %v5736
        %v5738 = vmul.f32 %v5691, 1.442695
        %v5739 = vpow.pop %v5738
        %v5740 = vmul.f32 %v5692, 1.442695
        %v5741 = vpow.pop %v5740
        %v5742 = vmul.f32 %v5693, 1.442695
        %v5743 = vpow.pop %v5742
        %v5744 = vmul.f32 %v5694, 1.442695
        %v5745 = vpow.pop %v5744
        %v5746 = vmul.f32 %v5695, 1.442695
        %v5747 = vpow.pop %v5746
        %v5748 = vmul.f32 %v5696, 1.442695
        %v5749 = vpow.pop %v5748
        %v5750 = vmul.f32 %v5697, 1.442695
        %v5751 = vpow.pop %v5750
        %v5752 = vmul.f32 %v5698, 1.442695
        %v5753 = vpow.pop %v5752
        %v5754 = vmul.f32 %v5699, 1.442695
        %v5755 = vpow.pop %v5754
        %v5756 = vmul.f32 %v5700, 1.442695
        %v5757 = vpow.pop %v5756
        %v5758 = vmul.f32 %v5701, 1.442695
        %v5759 = vpow.pop %v5758
        %v5760 = vmul.f32 %v5702, 1.442695
        %v5761 = vpow.pop %v5760
        %v5762 = vmul.f32 %v5703, 1.442695
        %v5763 = vpow.pop %v5762
        %v5764 = vmul.f32 %v5704, 1.442695
        %v5765 = vpow.pop %v5764
        %v5766 = vmul.f32 %v5705, 1.442695
        %v5767 = vpow.pop %v5766
        %v5768 = vmul.f32 %v5706, 1.442695
        %v5769 = vpow.pop %v5768
        %v5770 = vmul.f32 %v5707, 1.442695
        %v5771 = vpow.pop %v5770
        %v5772 = vadd.f32 %v5709, %v5711
        %5773 = vadd.xlane.f32.xlu0 %v5772
        %v5774 = vpop.xlane.xlu0 %5773
        %v5775 = vadd.f32 %v5713, %v5715
        %5776 = vadd.xlane.f32.xlu0 %v5775
        %v5777 = vpop.xlane.xlu0 %5776
        %v5778 = vadd.f32 %v5717, %v5719
        %5779 = vadd.xlane.f32.xlu0 %v5778
        %v5780 = vpop.xlane.xlu0 %5779
        %v5781 = vadd.f32 %v5721, %v5723
        %5782 = vadd.xlane.f32.xlu0 %v5781
        %v5783 = vpop.xlane.xlu0 %5782
        %v5784 = vadd.f32 %v5725, %v5727
        %5785 = vadd.xlane.f32.xlu0 %v5784
        %v5786 = vpop.xlane.xlu0 %5785
        %v5787 = vadd.f32 %v5729, %v5731
        %5788 = vadd.xlane.f32.xlu0 %v5787
        %v5789 = vpop.xlane.xlu0 %5788
        %v5790 = vadd.f32 %v5733, %v5735
        %5791 = vadd.xlane.f32.xlu0 %v5790
        %v5792 = vpop.xlane.xlu0 %5791
        %v5793 = vadd.f32 %v5737, %v5739
        %5794 = vadd.xlane.f32.xlu0 %v5793
        %v5795 = vpop.xlane.xlu0 %5794
        %v5796 = vadd.f32 %v5741, %v5743
        %5797 = vadd.xlane.f32.xlu0 %v5796
        %v5798 = vpop.xlane.xlu0 %5797
        %v5799 = vadd.f32 %v5745, %v5747
        %5800 = vadd.xlane.f32.xlu0 %v5799
        %v5801 = vpop.xlane.xlu0 %5800
        %v5802 = vadd.f32 %v5749, %v5751
        %5803 = vadd.xlane.f32.xlu0 %v5802
        %v5804 = vpop.xlane.xlu0 %5803
        %v5805 = vadd.f32 %v5753, %v5755
        %5806 = vadd.xlane.f32.xlu0 %v5805
        %v5807 = vpop.xlane.xlu0 %5806
        %v5808 = vadd.f32 %v5757, %v5759
        %5809 = vadd.xlane.f32.xlu0 %v5808
        %v5810 = vpop.xlane.xlu0 %5809
        %v5811 = vadd.f32 %v5761, %v5763
        %5812 = vadd.xlane.f32.xlu0 %v5811
        %v5813 = vpop.xlane.xlu0 %5812
        %v5814 = vadd.f32 %v5765, %v5767
        %5815 = vadd.xlane.f32.xlu0 %v5814
        %v5816 = vpop.xlane.xlu0 %5815
        %v5817 = vadd.f32 %v5769, %v5771
        %5818 = vadd.xlane.f32.xlu0 %v5817
        %v5819 = vpop.xlane.xlu0 %5818
        %v5820 = vrcp.pop %v5774
        %v5821 = vrcp.pop %v5777
        %v5822 = vrcp.pop %v5780
        %v5823 = vrcp.pop %v5783
        %v5824 = vrcp.pop %v5786
        %v5825 = vrcp.pop %v5789
        %v5826 = vrcp.pop %v5792
        %v5827 = vrcp.pop %v5795
        %v5828 = vrcp.pop %v5798
        %v5829 = vrcp.pop %v5801
        %v5830 = vrcp.pop %v5804
        %v5831 = vrcp.pop %v5807
        %v5832 = vrcp.pop %v5810
        %v5833 = vrcp.pop %v5813
        %v5834 = vrcp.pop %v5816
        %v5835 = vrcp.pop %v5819
        %v5836 = vmul.f32 %v5709, %v5820
        %v5837 = vmul.f32 %v5711, %v5820
        %v5838 = vmul.f32 %v5713, %v5821
        %v5839 = vmul.f32 %v5715, %v5821
        %v5840 = vmul.f32 %v5717, %v5822
        %v5841 = vmul.f32 %v5719, %v5822
        %v5842 = vmul.f32 %v5721, %v5823
        %v5843 = vmul.f32 %v5723, %v5823
        %v5844 = vmul.f32 %v5725, %v5824
        %v5845 = vmul.f32 %v5727, %v5824
        %v5846 = vmul.f32 %v5729, %v5825
        %v5847 = vmul.f32 %v5731, %v5825
        %v5848 = vmul.f32 %v5733, %v5826
        %v5849 = vmul.f32 %v5735, %v5826
        %v5850 = vmul.f32 %v5737, %v5827
        %v5851 = vmul.f32 %v5739, %v5827
        %v5852 = vmul.f32 %v5741, %v5828
        %v5853 = vmul.f32 %v5743, %v5828
        %v5854 = vmul.f32 %v5745, %v5829
        %v5855 = vmul.f32 %v5747, %v5829
        %v5856 = vmul.f32 %v5749, %v5830
        %v5857 = vmul.f32 %v5751, %v5830
        %v5858 = vmul.f32 %v5753, %v5831
        %v5859 = vmul.f32 %v5755, %v5831
        %v5860 = vmul.f32 %v5757, %v5832
        %v5861 = vmul.f32 %v5759, %v5832
        %v5862 = vmul.f32 %v5761, %v5833
        %v5863 = vmul.f32 %v5763, %v5833
        %v5864 = vmul.f32 %v5765, %v5834
        %v5865 = vmul.f32 %v5767, %v5834
        %v5866 = vmul.f32 %v5769, %v5835
        %v5867 = vmul.f32 %v5771, %v5835
        %v5868 = vpack.c.bf16 %v5838, %v5836
        %v5869 = vpack.c.bf16 %v5839, %v5837
        %v5870 = vpack.c.bf16 %v5842, %v5840
        %v5871 = vpack.c.bf16 %v5843, %v5841
        %v5872 = vpack.c.bf16 %v5846, %v5844
        %v5873 = vpack.c.bf16 %v5847, %v5845
        %v5874 = vpack.c.bf16 %v5850, %v5848
        %v5875 = vpack.c.bf16 %v5851, %v5849
        %v5876 = vpack.c.bf16 %v5854, %v5852
        %v5877 = vpack.c.bf16 %v5855, %v5853
        %v5878 = vpack.c.bf16 %v5858, %v5856
        %v5879 = vpack.c.bf16 %v5859, %v5857
        %v5880 = vpack.c.bf16 %v5862, %v5860
        %v5881 = vpack.c.bf16 %v5863, %v5861
        %v5882 = vpack.c.bf16 %v5866, %v5864
        %v5883 = vpack.c.bf16 %v5867, %v5865
        %5884 = vmatprep.subr.bf16.mxu0 0
        %5885 = vmatpush1.bf16.msra.mxu0 %v5451
        %5886 = vmatprep.subr.bf16.mxu0 0
        %5887 = vmatpush1.bf16.msra.mxu0 %v5455
        %5888 = vmatprep.subr.bf16.mxu0 0
        %5889 = vmatpush1.bf16.msra.mxu0 %v5459
        %5890 = vmatprep.subr.bf16.mxu0 0
        %5891 = vmatpush1.bf16.msra.mxu0 %v5463
        %5892 = vmatprep.subr.bf16.mxu0 0
        %5893 = vmatpush1.bf16.msra.mxu0 %v5467
        %5894 = vmatprep.subr.bf16.mxu0 0
        %5895 = vmatpush1.bf16.msra.mxu0 %v5471
        %5896 = vmatprep.subr.bf16.mxu0 0
        %5897 = vmatpush1.bf16.msra.mxu0 %v5475
        %5898 = vmatprep.subr.bf16.mxu0 0
        %5899 = vmatpush1.bf16.msra.mxu0 %v5479
        %5900 = vmatprep.subr.bf16.mxu0 0
        %5901 = vmatpush1.bf16.msra.mxu0 %v5483
        %5902 = vmatprep.subr.bf16.mxu0 0
        %5903 = vmatpush1.bf16.msra.mxu0 %v5487
        %5904 = vmatprep.subr.bf16.mxu0 0
        %5905 = vmatpush1.bf16.msra.mxu0 %v5491
        %5906 = vmatprep.subr.bf16.mxu0 0
        %5907 = vmatpush1.bf16.msra.mxu0 %v5495
        %5908 = vmatprep.subr.bf16.mxu0 0
        %5909 = vmatpush1.bf16.msra.mxu0 %v5499
        %5910 = vmatprep.subr.bf16.mxu0 0
        %5911 = vmatpush1.bf16.msra.mxu0 %v5503
        %5912 = vmatprep.subr.bf16.mxu0 0
        %5913 = vmatpush1.bf16.msra.mxu0 %v5507
        %5914 = vmatprep.subr.bf16.mxu0 0
        %5915 = vmatpush1.bf16.msra.mxu0 %v5511
        %5916 = vmatprep.mubr.bf16.mxu0 %v5869
        %5917 = vmatmul.mubr.bf16.gmra.mrb[0].mxu0 %v5868
        %v5918 = vpop.f32.mrb[0].mxu0
        %v5919 = vadd.f32 0.0, %v5918
        %v5920 = vpop.f32.mrb[0].mxu0
        %v5921 = vpop.f32.mrb[0].mxu0
        %v5922 = vadd.f32 0.0, %v5921
        %v5923 = vpop.f32.mrb[0].mxu0
        %5924 = vmatprep.mubr.bf16.mxu0 %v5871
        %5925 = vmatmul.mubr.bf16.gmra.mrb[0].mxu0 %v5870
        %v5926 = vpop.f32.mrb[0].mxu0
        %v5927 = vadd.f32 0.0, %v5926
        %v5928 = vpop.f32.mrb[0].mxu0
        %v5929 = vpop.f32.mrb[0].mxu0
        %v5930 = vadd.f32 0.0, %v5929
        %v5931 = vpop.f32.mrb[0].mxu0
        %5932 = vmatprep.mubr.bf16.mxu0 %v5873
        %5933 = vmatmul.mubr.bf16.gmra.mrb[0].mxu0 %v5872
        %v5934 = vpop.f32.mrb[0].mxu0
        %v5935 = vadd.f32 0.0, %v5934
        %v5936 = vpop.f32.mrb[0].mxu0
        %v5937 = vpop.f32.mrb[0].mxu0
        %v5938 = vadd.f32 0.0, %v5937
        %v5939 = vpop.f32.mrb[0].mxu0
        %5940 = vmatprep.mubr.bf16.mxu0 %v5875
        %5941 = vmatmul.mubr.bf16.gmra.mrb[0].mxu0 %v5874
        %v5942 = vpop.f32.mrb[0].mxu0
        %v5943 = vadd.f32 0.0, %v5942
        %v5944 = vpop.f32.mrb[0].mxu0
        %v5945 = vpop.f32.mrb[0].mxu0
        %v5946 = vadd.f32 0.0, %v5945
        %v5947 = vpop.f32.mrb[0].mxu0
        %5948 = vmatprep.mubr.bf16.mxu0 %v5877
        %5949 = vmatmul.mubr.bf16.gmra.mrb[0].mxu0 %v5876
        %v5950 = vpop.f32.mrb[0].mxu0
        %v5951 = vadd.f32 0.0, %v5950
        %v5952 = vpop.f32.mrb[0].mxu0
        %v5953 = vpop.f32.mrb[0].mxu0
        %v5954 = vadd.f32 0.0, %v5953
        %v5955 = vpop.f32.mrb[0].mxu0
        %5956 = vmatprep.mubr.bf16.mxu0 %v5879
        %5957 = vmatmul.mubr.bf16.gmra.mrb[0].mxu0 %v5878
        %v5958 = vpop.f32.mrb[0].mxu0
        %v5959 = vadd.f32 0.0, %v5958
        %v5960 = vpop.f32.mrb[0].mxu0
        %v5961 = vpop.f32.mrb[0].mxu0
        %v5962 = vadd.f32 0.0, %v5961
        %v5963 = vpop.f32.mrb[0].mxu0
        %5964 = vmatprep.mubr.bf16.mxu0 %v5881
        %5965 = vmatmul.mubr.bf16.gmra.mrb[0].mxu0 %v5880
        %v5966 = vpop.f32.mrb[0].mxu0
        %v5967 = vadd.f32 0.0, %v5966
        %v5968 = vpop.f32.mrb[0].mxu0
        %v5969 = vpop.f32.mrb[0].mxu0
        %v5970 = vadd.f32 0.0, %v5969
        %v5971 = vpop.f32.mrb[0].mxu0
        %5972 = vmatprep.mubr.bf16.mxu0 %v5883
        %5973 = vmatmul.mubr.bf16.gmra.mrb[0].mxu0 %v5882
        %v5974 = vpop.f32.mrb[0].mxu0
        %v5975 = vadd.f32 0.0, %v5974
        %v5976 = vpop.f32.mrb[0].mxu0
        %v5977 = vpop.f32.mrb[0].mxu0
        %v5978 = vadd.f32 0.0, %v5977
        %v5979 = vpop.f32.mrb[0].mxu0
        %5980 = vdwg.mxu0
        %v5981 = vpack.c.bf16 %v5922, %v5919
        %v5982 = vpack.c.bf16 %v5930, %v5927
        %v5983 = vpack.c.bf16 %v5938, %v5935
        %v5984 = vpack.c.bf16 %v5946, %v5943
        %v5985 = vpack.c.bf16 %v5954, %v5951
        %v5986 = vpack.c.bf16 %v5962, %v5959
        %v5987 = vpack.c.bf16 %v5970, %v5967
        %v5988 = vpack.c.bf16 %v5978, %v5975
        %v5989 = vld [vmem:[#allocation11] sm:$0xff]
        %v5990 = vld [vmem:[#allocation11 + $0x8] sm:$0xff]
        %v5991 = vld [vmem:[#allocation11 + $0x10] sm:$0xff]
        %v5992 = vld [vmem:[#allocation11 + $0x18] sm:$0xff]
        %v5993 = vld [vmem:[#allocation11 + $0x20] sm:$0xff]
        %v5994 = vld [vmem:[#allocation11 + $0x28] sm:$0xff]
        %v5995 = vld [vmem:[#allocation11 + $0x30] sm:$0xff]
        %v5996 = vld [vmem:[#allocation11 + $0x38] sm:$0xff]
        %v5997 = vld [vmem:[#allocation11 + $0x40] sm:$0xff]
        %v5998 = vld [vmem:[#allocation11 + $0x48] sm:$0xff]
        %v5999 = vld [vmem:[#allocation11 + $0x50] sm:$0xff]
        %v6000 = vld [vmem:[#allocation11 + $0x58] sm:$0xff]
        %v6001 = vld [vmem:[#allocation11 + $0x60] sm:$0xff]
        %v6002 = vld [vmem:[#allocation11 + $0x68] sm:$0xff]
        %v6003 = vld [vmem:[#allocation11 + $0x70] sm:$0xff]
        %v6004 = vld [vmem:[#allocation11 + $0x78] sm:$0xff]
        %v6005 = vld [vmem:[#allocation11 + $0x80] sm:$0xff]
        %v6006 = vld [vmem:[#allocation11 + $0x88] sm:$0xff]
        %v6007 = vld [vmem:[#allocation11 + $0x90] sm:$0xff]
        %v6008 = vld [vmem:[#allocation11 + $0x98] sm:$0xff]
        %v6009 = vld [vmem:[#allocation11 + $0xa0] sm:$0xff]
        %v6010 = vld [vmem:[#allocation11 + $0xa8] sm:$0xff]
        %v6011 = vld [vmem:[#allocation11 + $0xb0] sm:$0xff]
        %v6012 = vld [vmem:[#allocation11 + $0xb8] sm:$0xff]
        %v6013 = vld [vmem:[#allocation11 + $0xc0] sm:$0xff]
        %v6014 = vld [vmem:[#allocation11 + $0xc8] sm:$0xff]
        %v6015 = vld [vmem:[#allocation11 + $0xd0] sm:$0xff]
        %v6016 = vld [vmem:[#allocation11 + $0xd8] sm:$0xff]
        %v6017 = vld [vmem:[#allocation11 + $0xe0] sm:$0xff]
        %v6018 = vld [vmem:[#allocation11 + $0xe8] sm:$0xff]
        %v6019 = vld [vmem:[#allocation11 + $0xf0] sm:$0xff]
        %v6020 = vld [vmem:[#allocation11 + $0xf8] sm:$0xff]
        %6021 = vmatprep.subr.bf16.mxu0 0
        %6022 = vmatpush1.bf16.xpose.msra.mxu0 %v3826
        %6023 = vmatprep.subr.bf16.mxu0 0
        %6024 = vmatpush1.bf16.xpose.msra.mxu0 %v3830
        %6025 = vmatprep.subr.bf16.mxu0 0
        %6026 = vmatpush1.bf16.xpose.msra.mxu0 %v3834
        %6027 = vmatprep.subr.bf16.mxu0 0
        %6028 = vmatpush1.bf16.xpose.msra.mxu0 %v3838
        %6029 = vmatprep.subr.bf16.mxu0 0
        %6030 = vmatpush1.bf16.xpose.msra.mxu0 %v3842
        %6031 = vmatprep.subr.bf16.mxu0 0
        %6032 = vmatpush1.bf16.xpose.msra.mxu0 %v3846
        %6033 = vmatprep.subr.bf16.mxu0 0
        %6034 = vmatpush1.bf16.xpose.msra.mxu0 %v3850
        %6035 = vmatprep.subr.bf16.mxu0 0
        %6036 = vmatpush1.bf16.xpose.msra.mxu0 %v3854
        %6037 = vmatprep.subr.bf16.mxu0 0
        %6038 = vmatpush1.bf16.xpose.msra.mxu0 %v3858
        %6039 = vmatprep.subr.bf16.mxu0 0
        %6040 = vmatpush1.bf16.xpose.msra.mxu0 %v3862
        %6041 = vmatprep.subr.bf16.mxu0 0
        %6042 = vmatpush1.bf16.xpose.msra.mxu0 %v3866
        %6043 = vmatprep.subr.bf16.mxu0 0
        %6044 = vmatpush1.bf16.xpose.msra.mxu0 %v3870
        %6045 = vmatprep.subr.bf16.mxu0 0
        %6046 = vmatpush1.bf16.xpose.msra.mxu0 %v3874
        %6047 = vmatprep.subr.bf16.mxu0 0
        %6048 = vmatpush1.bf16.xpose.msra.mxu0 %v3878
        %6049 = vmatprep.subr.bf16.mxu0 0
        %6050 = vmatpush1.bf16.xpose.msra.mxu0 %v3882
        %6051 = vmatprep.subr.bf16.mxu0 0
        %6052 = vmatpush1.bf16.xpose.msra.mxu0 %v3886
        %6053 = vmatprep.mubr.bf16.mxu0 0
        %6054 = vmatmul.mubr.bf16.gmra.mrb[0].mxu0 %v1912
        %v6055 = vpop.f32.mrb[0].mxu0
        %v6056 = vadd.f32 0.0, %v6055
        %v6057 = vpop.f32.mrb[0].mxu0
        %v6058 = vadd.f32 0.0, %v6057
        %v6059 = vpop.f32.mrb[0].mxu0
        %v6060 = vadd.f32 0.0, %v6059
        %v6061 = vpop.f32.mrb[0].mxu0
        %v6062 = vadd.f32 0.0, %v6061
        %6063 = vmatprep.mubr.bf16.mxu0 0
        %6064 = vmatmul.mubr.bf16.gmra.mrb[0].mxu0 %v1916
        %v6065 = vpop.f32.mrb[0].mxu0
        %v6066 = vadd.f32 0.0, %v6065
        %v6067 = vpop.f32.mrb[0].mxu0
        %v6068 = vadd.f32 0.0, %v6067
        %v6069 = vpop.f32.mrb[0].mxu0
        %v6070 = vadd.f32 0.0, %v6069
        %v6071 = vpop.f32.mrb[0].mxu0
        %v6072 = vadd.f32 0.0, %v6071
        %6073 = vmatprep.mubr.bf16.mxu0 0
        %6074 = vmatmul.mubr.bf16.gmra.mrb[0].mxu0 %v1920
        %v6075 = vpop.f32.mrb[0].mxu0
        %v6076 = vadd.f32 0.0, %v6075
        %v6077 = vpop.f32.mrb[0].mxu0
        %v6078 = vadd.f32 0.0, %v6077
        %v6079 = vpop.f32.mrb[0].mxu0
        %v6080 = vadd.f32 0.0, %v6079
        %v6081 = vpop.f32.mrb[0].mxu0
        %v6082 = vadd.f32 0.0, %v6081
        %6083 = vmatprep.mubr.bf16.mxu0 0
        %6084 = vmatmul.mubr.bf16.gmra.mrb[0].mxu0 %v1924
        %v6085 = vpop.f32.mrb[0].mxu0
        %v6086 = vadd.f32 0.0, %v6085
        %v6087 = vpop.f32.mrb[0].mxu0
        %v6088 = vadd.f32 0.0, %v6087
        %v6089 = vpop.f32.mrb[0].mxu0
        %v6090 = vadd.f32 0.0, %v6089
        %v6091 = vpop.f32.mrb[0].mxu0
        %v6092 = vadd.f32 0.0, %v6091
        %6093 = vmatprep.mubr.bf16.mxu0 0
        %6094 = vmatmul.mubr.bf16.gmra.mrb[0].mxu0 %v1928
        %v6095 = vpop.f32.mrb[0].mxu0
        %v6096 = vadd.f32 0.0, %v6095
        %v6097 = vpop.f32.mrb[0].mxu0
        %v6098 = vadd.f32 0.0, %v6097
        %v6099 = vpop.f32.mrb[0].mxu0
        %v6100 = vadd.f32 0.0, %v6099
        %v6101 = vpop.f32.mrb[0].mxu0
        %v6102 = vadd.f32 0.0, %v6101
        %6103 = vmatprep.mubr.bf16.mxu0 0
        %6104 = vmatmul.mubr.bf16.gmra.mrb[0].mxu0 %v1932
        %v6105 = vpop.f32.mrb[0].mxu0
        %v6106 = vadd.f32 0.0, %v6105
        %v6107 = vpop.f32.mrb[0].mxu0
        %v6108 = vadd.f32 0.0, %v6107
        %v6109 = vpop.f32.mrb[0].mxu0
        %v6110 = vadd.f32 0.0, %v6109
        %v6111 = vpop.f32.mrb[0].mxu0
        %v6112 = vadd.f32 0.0, %v6111
        %6113 = vmatprep.mubr.bf16.mxu0 0
        %6114 = vmatmul.mubr.bf16.gmra.mrb[0].mxu0 %v1936
        %v6115 = vpop.f32.mrb[0].mxu0
        %v6116 = vadd.f32 0.0, %v6115
        %v6117 = vpop.f32.mrb[0].mxu0
        %v6118 = vadd.f32 0.0, %v6117
        %v6119 = vpop.f32.mrb[0].mxu0
        %v6120 = vadd.f32 0.0, %v6119
        %v6121 = vpop.f32.mrb[0].mxu0
        %v6122 = vadd.f32 0.0, %v6121
        %6123 = vmatprep.mubr.bf16.mxu0 0
        %6124 = vmatmul.mubr.bf16.gmra.mrb[0].mxu0 %v1940
        %v6125 = vpop.f32.mrb[0].mxu0
        %v6126 = vadd.f32 0.0, %v6125
        %v6127 = vpop.f32.mrb[0].mxu0
        %v6128 = vadd.f32 0.0, %v6127
        %v6129 = vpop.f32.mrb[0].mxu0
        %v6130 = vadd.f32 0.0, %v6129
        %v6131 = vpop.f32.mrb[0].mxu0
        %v6132 = vadd.f32 0.0, %v6131
        %6133 = vdwg.mxu0
        %v6134 = vmax.f32 %v6056, %v6058
        %6135 = vmax.xlane.f32.xlu0 %v6134
        %v6136 = vpop.xlane.xlu0 %6135
        %v6137 = vmax.f32 %v6060, %v6062
        %6138 = vmax.xlane.f32.xlu0 %v6137
        %v6139 = vpop.xlane.xlu0 %6138
        %v6140 = vmax.f32 %v6066, %v6068
        %6141 = vmax.xlane.f32.xlu0 %v6140
        %v6142 = vpop.xlane.xlu0 %6141
        %v6143 = vmax.f32 %v6070, %v6072
        %6144 = vmax.xlane.f32.xlu0 %v6143
        %v6145 = vpop.xlane.xlu0 %6144
        %v6146 = vmax.f32 %v6076, %v6078
        %6147 = vmax.xlane.f32.xlu0 %v6146
        %v6148 = vpop.xlane.xlu0 %6147
        %v6149 = vmax.f32 %v6080, %v6082
        %6150 = vmax.xlane.f32.xlu0 %v6149
        %v6151 = vpop.xlane.xlu0 %6150
        %v6152 = vmax.f32 %v6086, %v6088
        %6153 = vmax.xlane.f32.xlu0 %v6152
        %v6154 = vpop.xlane.xlu0 %6153
        %v6155 = vmax.f32 %v6090, %v6092
        %6156 = vmax.xlane.f32.xlu0 %v6155
        %v6157 = vpop.xlane.xlu0 %6156
        %v6158 = vmax.f32 %v6096, %v6098
        %6159 = vmax.xlane.f32.xlu0 %v6158
        %v6160 = vpop.xlane.xlu0 %6159
        %v6161 = vmax.f32 %v6100, %v6102
        %6162 = vmax.xlane.f32.xlu0 %v6161
        %v6163 = vpop.xlane.xlu0 %6162
        %v6164 = vmax.f32 %v6106, %v6108
        %6165 = vmax.xlane.f32.xlu0 %v6164
        %v6166 = vpop.xlane.xlu0 %6165
        %v6167 = vmax.f32 %v6110, %v6112
        %6168 = vmax.xlane.f32.xlu0 %v6167
        %v6169 = vpop.xlane.xlu0 %6168
        %v6170 = vmax.f32 %v6116, %v6118
        %6171 = vmax.xlane.f32.xlu0 %v6170
        %v6172 = vpop.xlane.xlu0 %6171
        %v6173 = vmax.f32 %v6120, %v6122
        %6174 = vmax.xlane.f32.xlu0 %v6173
        %v6175 = vpop.xlane.xlu0 %6174
        %v6176 = vmax.f32 %v6126, %v6128
        %6177 = vmax.xlane.f32.xlu0 %v6176
        %v6178 = vpop.xlane.xlu0 %6177
        %v6179 = vmax.f32 %v6130, %v6132
        %6180 = vmax.xlane.f32.xlu0 %v6179
        %v6181 = vpop.xlane.xlu0 %6180
        %v6182 = vsub.f32 %v6056, %v6136
        %v6183 = vsub.f32 %v6058, %v6136
        %v6184 = vsub.f32 %v6060, %v6139
        %v6185 = vsub.f32 %v6062, %v6139
        %v6186 = vsub.f32 %v6066, %v6142
        %v6187 = vsub.f32 %v6068, %v6142
        %v6188 = vsub.f32 %v6070, %v6145
        %v6189 = vsub.f32 %v6072, %v6145
        %v6190 = vsub.f32 %v6076, %v6148
        %v6191 = vsub.f32 %v6078, %v6148
        %v6192 = vsub.f32 %v6080, %v6151
        %v6193 = vsub.f32 %v6082, %v6151
        %v6194 = vsub.f32 %v6086, %v6154
        %v6195 = vsub.f32 %v6088, %v6154
        %v6196 = vsub.f32 %v6090, %v6157
        %v6197 = vsub.f32 %v6092, %v6157
        %v6198 = vsub.f32 %v6096, %v6160
        %v6199 = vsub.f32 %v6098, %v6160
        %v6200 = vsub.f32 %v6100, %v6163
        %v6201 = vsub.f32 %v6102, %v6163
        %v6202 = vsub.f32 %v6106, %v6166
        %v6203 = vsub.f32 %v6108, %v6166
        %v6204 = vsub.f32 %v6110, %v6169
        %v6205 = vsub.f32 %v6112, %v6169
        %v6206 = vsub.f32 %v6116, %v6172
        %v6207 = vsub.f32 %v6118, %v6172
        %v6208 = vsub.f32 %v6120, %v6175
        %v6209 = vsub.f32 %v6122, %v6175
        %v6210 = vsub.f32 %v6126, %v6178
        %v6211 = vsub.f32 %v6128, %v6178
        %v6212 = vsub.f32 %v6130, %v6181
        %v6213 = vsub.f32 %v6132, %v6181
        %v6214 = vmul.f32 %v6182, 1.442695
        %v6215 = vpow.pop %v6214
        %v6216 = vmul.f32 %v6183, 1.442695
        %v6217 = vpow.pop %v6216
        %v6218 = vmul.f32 %v6184, 1.442695
        %v6219 = vpow.pop %v6218
        %v6220 = vmul.f32 %v6185, 1.442695
        %v6221 = vpow.pop %v6220
        %v6222 = vmul.f32 %v6186, 1.442695
        %v6223 = vpow.pop %v6222
        %v6224 = vmul.f32 %v6187, 1.442695
        %v6225 = vpow.pop %v6224
        %v6226 = vmul.f32 %v6188, 1.442695
        %v6227 = vpow.pop %v6226
        %v6228 = vmul.f32 %v6189, 1.442695
        %v6229 = vpow.pop %v6228
        %v6230 = vmul.f32 %v6190, 1.442695
        %v6231 = vpow.pop %v6230
        %v6232 = vmul.f32 %v6191, 1.442695
        %v6233 = vpow.pop %v6232
        %v6234 = vmul.f32 %v6192, 1.442695
        %v6235 = vpow.pop %v6234
        %v6236 = vmul.f32 %v6193, 1.442695
        %v6237 = vpow.pop %v6236
        %v6238 = vmul.f32 %v6194, 1.442695
        %v6239 = vpow.pop %v6238
        %v6240 = vmul.f32 %v6195, 1.442695
        %v6241 = vpow.pop %v6240
        %v6242 = vmul.f32 %v6196, 1.442695
        %v6243 = vpow.pop %v6242
        %v6244 = vmul.f32 %v6197, 1.442695
        %v6245 = vpow.pop %v6244
        %v6246 = vmul.f32 %v6198, 1.442695
        %v6247 = vpow.pop %v6246
        %v6248 = vmul.f32 %v6199, 1.442695
        %v6249 = vpow.pop %v6248
        %v6250 = vmul.f32 %v6200, 1.442695
        %v6251 = vpow.pop %v6250
        %v6252 = vmul.f32 %v6201, 1.442695
        %v6253 = vpow.pop %v6252
        %v6254 = vmul.f32 %v6202, 1.442695
        %v6255 = vpow.pop %v6254
        %v6256 = vmul.f32 %v6203, 1.442695
        %v6257 = vpow.pop %v6256
        %v6258 = vmul.f32 %v6204, 1.442695
        %v6259 = vpow.pop %v6258
        %v6260 = vmul.f32 %v6205, 1.442695
        %v6261 = vpow.pop %v6260
        %v6262 = vmul.f32 %v6206, 1.442695
        %v6263 = vpow.pop %v6262
        %v6264 = vmul.f32 %v6207, 1.442695
        %v6265 = vpow.pop %v6264
        %v6266 = vmul.f32 %v6208, 1.442695
        %v6267 = vpow.pop %v6266
        %v6268 = vmul.f32 %v6209, 1.442695
        %v6269 = vpow.pop %v6268
        %v6270 = vmul.f32 %v6210, 1.442695
        %v6271 = vpow.pop %v6270
        %v6272 = vmul.f32 %v6211, 1.442695
        %v6273 = vpow.pop %v6272
        %v6274 = vmul.f32 %v6212, 1.442695
        %v6275 = vpow.pop %v6274
        %v6276 = vmul.f32 %v6213, 1.442695
        %v6277 = vpow.pop %v6276
        %v6278 = vadd.f32 %v6215, %v6217
        %6279 = vadd.xlane.f32.xlu0 %v6278
        %v6280 = vpop.xlane.xlu0 %6279
        %v6281 = vadd.f32 %v6219, %v6221
        %6282 = vadd.xlane.f32.xlu0 %v6281
        %v6283 = vpop.xlane.xlu0 %6282
        %v6284 = vadd.f32 %v6223, %v6225
        %6285 = vadd.xlane.f32.xlu0 %v6284
        %v6286 = vpop.xlane.xlu0 %6285
        %v6287 = vadd.f32 %v6227, %v6229
        %6288 = vadd.xlane.f32.xlu0 %v6287
        %v6289 = vpop.xlane.xlu0 %6288
        %v6290 = vadd.f32 %v6231, %v6233
        %6291 = vadd.xlane.f32.xlu0 %v6290
        %v6292 = vpop.xlane.xlu0 %6291
        %v6293 = vadd.f32 %v6235, %v6237
        %6294 = vadd.xlane.f32.xlu0 %v6293
        %v6295 = vpop.xlane.xlu0 %6294
        %v6296 = vadd.f32 %v6239, %v6241
        %6297 = vadd.xlane.f32.xlu0 %v6296
        %v6298 = vpop.xlane.xlu0 %6297
        %v6299 = vadd.f32 %v6243, %v6245
        %6300 = vadd.xlane.f32.xlu0 %v6299
        %v6301 = vpop.xlane.xlu0 %6300
        %v6302 = vadd.f32 %v6247, %v6249
        %6303 = vadd.xlane.f32.xlu0 %v6302
        %v6304 = vpop.xlane.xlu0 %6303
        %v6305 = vadd.f32 %v6251, %v6253
        %6306 = vadd.xlane.f32.xlu0 %v6305
        %v6307 = vpop.xlane.xlu0 %6306
        %v6308 = vadd.f32 %v6255, %v6257
        %6309 = vadd.xlane.f32.xlu0 %v6308
        %v6310 = vpop.xlane.xlu0 %6309
        %v6311 = vadd.f32 %v6259, %v6261
        %6312 = vadd.xlane.f32.xlu0 %v6311
        %v6313 = vpop.xlane.xlu0 %6312
        %v6314 = vadd.f32 %v6263, %v6265
        %6315 = vadd.xlane.f32.xlu0 %v6314
        %v6316 = vpop.xlane.xlu0 %6315
        %v6317 = vadd.f32 %v6267, %v6269
        %6318 = vadd.xlane.f32.xlu0 %v6317
        %v6319 = vpop.xlane.xlu0 %6318
        %v6320 = vadd.f32 %v6271, %v6273
        %6321 = vadd.xlane.f32.xlu0 %v6320
        %v6322 = vpop.xlane.xlu0 %6321
        %v6323 = vadd.f32 %v6275, %v6277
        %6324 = vadd.xlane.f32.xlu0 %v6323
        %v6325 = vpop.xlane.xlu0 %6324
        %v6326 = vrcp.pop %v6280
        %v6327 = vrcp.pop %v6283
        %v6328 = vrcp.pop %v6286
        %v6329 = vrcp.pop %v6289
        %v6330 = vrcp.pop %v6292
        %v6331 = vrcp.pop %v6295
        %v6332 = vrcp.pop %v6298
        %v6333 = vrcp.pop %v6301
        %v6334 = vrcp.pop %v6304
        %v6335 = vrcp.pop %v6307
        %v6336 = vrcp.pop %v6310
        %v6337 = vrcp.pop %v6313
        %v6338 = vrcp.pop %v6316
        %v6339 = vrcp.pop %v6319
        %v6340 = vrcp.pop %v6322
        %v6341 = vrcp.pop %v6325
        %v6342 = vmul.f32 %v6215, %v6326
        %v6343 = vmul.f32 %v6217, %v6326
        %v6344 = vmul.f32 %v6219, %v6327
        %v6345 = vmul.f32 %v6221, %v6327
        %v6346 = vmul.f32 %v6223, %v6328
        %v6347 = vmul.f32 %v6225, %v6328
        %v6348 = vmul.f32 %v6227, %v6329
        %v6349 = vmul.f32 %v6229, %v6329
        %v6350 = vmul.f32 %v6231, %v6330
        %v6351 = vmul.f32 %v6233, %v6330
        %v6352 = vmul.f32 %v6235, %v6331
        %v6353 = vmul.f32 %v6237, %v6331
        %v6354 = vmul.f32 %v6239, %v6332
        %v6355 = vmul.f32 %v6241, %v6332
        %v6356 = vmul.f32 %v6243, %v6333
        %v6357 = vmul.f32 %v6245, %v6333
        %v6358 = vmul.f32 %v6247, %v6334
        %v6359 = vmul.f32 %v6249, %v6334
        %v6360 = vmul.f32 %v6251, %v6335
        %v6361 = vmul.f32 %v6253, %v6335
        %v6362 = vmul.f32 %v6255, %v6336
        %v6363 = vmul.f32 %v6257, %v6336
        %v6364 = vmul.f32 %v6259, %v6337
        %v6365 = vmul.f32 %v6261, %v6337
        %v6366 = vmul.f32 %v6263, %v6338
        %v6367 = vmul.f32 %v6265, %v6338
        %v6368 = vmul.f32 %v6267, %v6339
        %v6369 = vmul.f32 %v6269, %v6339
        %v6370 = vmul.f32 %v6271, %v6340
        %v6371 = vmul.f32 %v6273, %v6340
        %v6372 = vmul.f32 %v6275, %v6341
        %v6373 = vmul.f32 %v6277, %v6341
        %v6374 = vpack.c.bf16 %v6344, %v6342
        %v6375 = vpack.c.bf16 %v6345, %v6343
        %v6376 = vpack.c.bf16 %v6348, %v6346
        %v6377 = vpack.c.bf16 %v6349, %v6347
        %v6378 = vpack.c.bf16 %v6352, %v6350
        %v6379 = vpack.c.bf16 %v6353, %v6351
        %v6380 = vpack.c.bf16 %v6356, %v6354
        %v6381 = vpack.c.bf16 %v6357, %v6355
        %v6382 = vpack.c.bf16 %v6360, %v6358
        %v6383 = vpack.c.bf16 %v6361, %v6359
        %v6384 = vpack.c.bf16 %v6364, %v6362
        %v6385 = vpack.c.bf16 %v6365, %v6363
        %v6386 = vpack.c.bf16 %v6368, %v6366
        %v6387 = vpack.c.bf16 %v6369, %v6367
        %v6388 = vpack.c.bf16 %v6372, %v6370
        %v6389 = vpack.c.bf16 %v6373, %v6371
        %6390 = vmatprep.subr.bf16.mxu0 0
        %6391 = vmatpush1.bf16.msra.mxu0 %v5452
        %6392 = vmatprep.subr.bf16.mxu0 0
        %6393 = vmatpush1.bf16.msra.mxu0 %v5456
        %6394 = vmatprep.subr.bf16.mxu0 0
        %6395 = vmatpush1.bf16.msra.mxu0 %v5460
        %6396 = vmatprep.subr.bf16.mxu0 0
        %6397 = vmatpush1.bf16.msra.mxu0 %v5464
        %6398 = vmatprep.subr.bf16.mxu0 0
        %6399 = vmatpush1.bf16.msra.mxu0 %v5468
        %6400 = vmatprep.subr.bf16.mxu0 0
        %6401 = vmatpush1.bf16.msra.mxu0 %v5472
        %6402 = vmatprep.subr.bf16.mxu0 0
        %6403 = vmatpush1.bf16.msra.mxu0 %v5476
        %6404 = vmatprep.subr.bf16.mxu0 0
        %6405 = vmatpush1.bf16.msra.mxu0 %v5480
        %6406 = vmatprep.subr.bf16.mxu0 0
        %6407 = vmatpush1.bf16.msra.mxu0 %v5484
        %6408 = vmatprep.subr.bf16.mxu0 0
        %6409 = vmatpush1.bf16.msra.mxu0 %v5488
        %6410 = vmatprep.subr.bf16.mxu0 0
        %6411 = vmatpush1.bf16.msra.mxu0 %v5492
        %6412 = vmatprep.subr.bf16.mxu0 0
        %6413 = vmatpush1.bf16.msra.mxu0 %v5496
        %6414 = vmatprep.subr.bf16.mxu0 0
        %6415 = vmatpush1.bf16.msra.mxu0 %v5500
        %6416 = vmatprep.subr.bf16.mxu0 0
        %6417 = vmatpush1.bf16.msra.mxu0 %v5504
        %6418 = vmatprep.subr.bf16.mxu0 0
        %6419 = vmatpush1.bf16.msra.mxu0 %v5508
        %6420 = vmatprep.subr.bf16.mxu0 0
        %6421 = vmatpush1.bf16.msra.mxu0 %v5512
        %6422 = vmatprep.mubr.bf16.mxu0 %v6375
        %6423 = vmatmul.mubr.bf16.gmra.mrb[0].mxu0 %v6374
        %v6424 = vpop.f32.mrb[0].mxu0
        %v6425 = vadd.f32 0.0, %v6424
        %v6426 = vpop.f32.mrb[0].mxu0
        %v6427 = vpop.f32.mrb[0].mxu0
        %v6428 = vadd.f32 0.0, %v6427
        %v6429 = vpop.f32.mrb[0].mxu0
        %6430 = vmatprep.mubr.bf16.mxu0 %v6377
        %6431 = vmatmul.mubr.bf16.gmra.mrb[0].mxu0 %v6376
        %v6432 = vpop.f32.mrb[0].mxu0
        %v6433 = vadd.f32 0.0, %v6432
        %v6434 = vpop.f32.mrb[0].mxu0
        %v6435 = vpop.f32.mrb[0].mxu0
        %v6436 = vadd.f32 0.0, %v6435
        %v6437 = vpop.f32.mrb[0].mxu0
        %6438 = vmatprep.mubr.bf16.mxu0 %v6379
        %6439 = vmatmul.mubr.bf16.gmra.mrb[0].mxu0 %v6378
        %v6440 = vpop.f32.mrb[0].mxu0
        %v6441 = vadd.f32 0.0, %v6440
        %v6442 = vpop.f32.mrb[0].mxu0
        %v6443 = vpop.f32.mrb[0].mxu0
        %v6444 = vadd.f32 0.0, %v6443
        %v6445 = vpop.f32.mrb[0].mxu0
        %6446 = vmatprep.mubr.bf16.mxu0 %v6381
        %6447 = vmatmul.mubr.bf16.gmra.mrb[0].mxu0 %v6380
        %v6448 = vpop.f32.mrb[0].mxu0
        %v6449 = vadd.f32 0.0, %v6448
        %v6450 = vpop.f32.mrb[0].mxu0
        %v6451 = vpop.f32.mrb[0].mxu0
        %v6452 = vadd.f32 0.0, %v6451
        %v6453 = vpop.f32.mrb[0].mxu0
        %6454 = vmatprep.mubr.bf16.mxu0 %v6383
        %6455 = vmatmul.mubr.bf16.gmra.mrb[0].mxu0 %v6382
        %v6456 = vpop.f32.mrb[0].mxu0
        %v6457 = vadd.f32 0.0, %v6456
        %v6458 = vpop.f32.mrb[0].mxu0
        %v6459 = vpop.f32.mrb[0].mxu0
        %v6460 = vadd.f32 0.0, %v6459
        %v6461 = vpop.f32.mrb[0].mxu0
        %6462 = vmatprep.mubr.bf16.mxu0 %v6385
        %6463 = vmatmul.mubr.bf16.gmra.mrb[0].mxu0 %v6384
        %v6464 = vpop.f32.mrb[0].mxu0
        %v6465 = vadd.f32 0.0, %v6464
        %v6466 = vpop.f32.mrb[0].mxu0
        %v6467 = vpop.f32.mrb[0].mxu0
        %v6468 = vadd.f32 0.0, %v6467
        %v6469 = vpop.f32.mrb[0].mxu0
        %6470 = vmatprep.mubr.bf16.mxu0 %v6387
        %6471 = vmatmul.mubr.bf16.gmra.mrb[0].mxu0 %v6386
        %v6472 = vpop.f32.mrb[0].mxu0
        %v6473 = vadd.f32 0.0, %v6472
        %v6474 = vpop.f32.mrb[0].mxu0
        %v6475 = vpop.f32.mrb[0].mxu0
        %v6476 = vadd.f32 0.0, %v6475
        %v6477 = vpop.f32.mrb[0].mxu0
        %6478 = vmatprep.mubr.bf16.mxu0 %v6389
        %6479 = vmatmul.mubr.bf16.gmra.mrb[0].mxu0 %v6388
        %v6480 = vpop.f32.mrb[0].mxu0
        %v6481 = vadd.f32 0.0, %v6480
        %v6482 = vpop.f32.mrb[0].mxu0
        %v6483 = vpop.f32.mrb[0].mxu0
        %v6484 = vadd.f32 0.0, %v6483
        %v6485 = vpop.f32.mrb[0].mxu0
        %6486 = vdwg.mxu0
        %v6487 = vpack.c.bf16 %v6428, %v6425
        %v6488 = vpack.c.bf16 %v6436, %v6433
        %v6489 = vpack.c.bf16 %v6444, %v6441
        %v6490 = vpack.c.bf16 %v6452, %v6449
        %v6491 = vpack.c.bf16 %v6460, %v6457
        %v6492 = vpack.c.bf16 %v6468, %v6465
        %v6493 = vpack.c.bf16 %v6476, %v6473
        %v6494 = vpack.c.bf16 %v6484, %v6481
        %v6495 = vld [vmem:[#allocation11 + $0x100] sm:$0xff]
        %v6496 = vld [vmem:[#allocation11 + $0x108] sm:$0xff]
        %v6497 = vld [vmem:[#allocation11 + $0x110] sm:$0xff]
        %v6498 = vld [vmem:[#allocation11 + $0x118] sm:$0xff]
        %v6499 = vld [vmem:[#allocation11 + $0x120] sm:$0xff]
        %v6500 = vld [vmem:[#allocation11 + $0x128] sm:$0xff]
        %v6501 = vld [vmem:[#allocation11 + $0x130] sm:$0xff]
        %v6502 = vld [vmem:[#allocation11 + $0x138] sm:$0xff]
        %v6503 = vld [vmem:[#allocation11 + $0x140] sm:$0xff]
        %v6504 = vld [vmem:[#allocation11 + $0x148] sm:$0xff]
        %v6505 = vld [vmem:[#allocation11 + $0x150] sm:$0xff]
        %v6506 = vld [vmem:[#allocation11 + $0x158] sm:$0xff]
        %v6507 = vld [vmem:[#allocation11 + $0x160] sm:$0xff]
        %v6508 = vld [vmem:[#allocation11 + $0x168] sm:$0xff]
        %v6509 = vld [vmem:[#allocation11 + $0x170] sm:$0xff]
        %v6510 = vld [vmem:[#allocation11 + $0x178] sm:$0xff]
        %v6511 = vld [vmem:[#allocation11 + $0x180] sm:$0xff]
        %v6512 = vld [vmem:[#allocation11 + $0x188] sm:$0xff]
        %v6513 = vld [vmem:[#allocation11 + $0x190] sm:$0xff]
        %v6514 = vld [vmem:[#allocation11 + $0x198] sm:$0xff]
        %v6515 = vld [vmem:[#allocation11 + $0x1a0] sm:$0xff]
        %v6516 = vld [vmem:[#allocation11 + $0x1a8] sm:$0xff]
        %v6517 = vld [vmem:[#allocation11 + $0x1b0] sm:$0xff]
        %v6518 = vld [vmem:[#allocation11 + $0x1b8] sm:$0xff]
        %v6519 = vld [vmem:[#allocation11 + $0x1c0] sm:$0xff]
        %v6520 = vld [vmem:[#allocation11 + $0x1c8] sm:$0xff]
        %v6521 = vld [vmem:[#allocation11 + $0x1d0] sm:$0xff]
        %v6522 = vld [vmem:[#allocation11 + $0x1d8] sm:$0xff]
        %v6523 = vld [vmem:[#allocation11 + $0x1e0] sm:$0xff]
        %v6524 = vld [vmem:[#allocation11 + $0x1e8] sm:$0xff]
        %v6525 = vld [vmem:[#allocation11 + $0x1f0] sm:$0xff]
        %v6526 = vld [vmem:[#allocation11 + $0x1f8] sm:$0xff]
        %v6559 = vunpack.c.l.b16 %v6495
        %v6560 = vunpack.c.h.b16 %v6495
        %v6561 = vunpack.c.l.b16 %v6496
        %v6562 = vunpack.c.h.b16 %v6496
        %v6563 = vunpack.c.l.b16 %v6497
        %v6564 = vunpack.c.h.b16 %v6497
        %v6565 = vunpack.c.l.b16 %v6498
        %v6566 = vunpack.c.h.b16 %v6498
        %v6567 = vunpack.c.l.b16 %v6499
        %v6568 = vunpack.c.h.b16 %v6499
        %v6569 = vunpack.c.l.b16 %v6500
        %v6570 = vunpack.c.h.b16 %v6500
        %v6571 = vunpack.c.l.b16 %v6501
        %v6572 = vunpack.c.h.b16 %v6501
        %v6573 = vunpack.c.l.b16 %v6502
        %v6574 = vunpack.c.h.b16 %v6502
        %v6575 = vunpack.c.l.b16 %v6503
        %v6576 = vunpack.c.h.b16 %v6503
        %v6577 = vunpack.c.l.b16 %v6504
        %v6578 = vunpack.c.h.b16 %v6504
        %v6579 = vunpack.c.l.b16 %v6505
        %v6580 = vunpack.c.h.b16 %v6505
        %v6581 = vunpack.c.l.b16 %v6506
        %v6582 = vunpack.c.h.b16 %v6506
        %v6583 = vunpack.c.l.b16 %v6507
        %v6584 = vunpack.c.h.b16 %v6507
        %v6585 = vunpack.c.l.b16 %v6508
        %v6586 = vunpack.c.h.b16 %v6508
        %v6587 = vunpack.c.l.b16 %v6509
        %v6588 = vunpack.c.h.b16 %v6509
        %v6589 = vunpack.c.l.b16 %v6510
        %v6590 = vunpack.c.h.b16 %v6510
        %v6591 = vunpack.c.l.b16 %v6511
        %v6592 = vunpack.c.h.b16 %v6511
        %v6593 = vunpack.c.l.b16 %v6512
        %v6594 = vunpack.c.h.b16 %v6512
        %v6595 = vunpack.c.l.b16 %v6513
        %v6596 = vunpack.c.h.b16 %v6513
        %v6597 = vunpack.c.l.b16 %v6514
        %v6598 = vunpack.c.h.b16 %v6514
        %v6599 = vunpack.c.l.b16 %v6515
        %v6600 = vunpack.c.h.b16 %v6515
        %v6601 = vunpack.c.l.b16 %v6516
        %v6602 = vunpack.c.h.b16 %v6516
        %v6603 = vunpack.c.l.b16 %v6517
        %v6604 = vunpack.c.h.b16 %v6517
        %v6605 = vunpack.c.l.b16 %v6518
        %v6606 = vunpack.c.h.b16 %v6518
        %v6607 = vunpack.c.l.b16 %v6519
        %v6608 = vunpack.c.h.b16 %v6519
        %v6609 = vunpack.c.l.b16 %v6520
        %v6610 = vunpack.c.h.b16 %v6520
        %v6611 = vunpack.c.l.b16 %v6521
        %v6612 = vunpack.c.h.b16 %v6521
        %v6613 = vunpack.c.l.b16 %v6522
        %v6614 = vunpack.c.h.b16 %v6522
        %v6615 = vunpack.c.l.b16 %v6523
        %v6616 = vunpack.c.h.b16 %v6523
        %v6617 = vunpack.c.l.b16 %v6524
        %v6618 = vunpack.c.h.b16 %v6524
        %v6619 = vunpack.c.l.b16 %v6525
        %v6620 = vunpack.c.h.b16 %v6525
        %v6621 = vunpack.c.l.b16 %v6526
        %v6622 = vunpack.c.h.b16 %v6526
        %v6623 = vpack.c.b16 %v6563, %v6559
        %v6624 = vpack.c.b16 %v6564, %v6560
        %v6625 = vpack.c.b16 %v6565, %v6561
        %v6626 = vpack.c.b16 %v6566, %v6562
        %v6627 = vpack.c.b16 %v6571, %v6567
        %v6628 = vpack.c.b16 %v6572, %v6568
        %v6629 = vpack.c.b16 %v6573, %v6569
        %v6630 = vpack.c.b16 %v6574, %v6570
        %v6631 = vpack.c.b16 %v6579, %v6575
        %v6632 = vpack.c.b16 %v6580, %v6576
        %v6633 = vpack.c.b16 %v6581, %v6577
        %v6634 = vpack.c.b16 %v6582, %v6578
        %v6635 = vpack.c.b16 %v6587, %v6583
        %v6636 = vpack.c.b16 %v6588, %v6584
        %v6637 = vpack.c.b16 %v6589, %v6585
        %v6638 = vpack.c.b16 %v6590, %v6586
        %v6639 = vpack.c.b16 %v6595, %v6591
        %v6640 = vpack.c.b16 %v6596, %v6592
        %v6641 = vpack.c.b16 %v6597, %v6593
        %v6642 = vpack.c.b16 %v6598, %v6594
        %v6643 = vpack.c.b16 %v6603, %v6599
        %v6644 = vpack.c.b16 %v6604, %v6600
        %v6645 = vpack.c.b16 %v6605, %v6601
        %v6646 = vpack.c.b16 %v6606, %v6602
        %v6647 = vpack.c.b16 %v6611, %v6607
        %v6648 = vpack.c.b16 %v6612, %v6608
        %v6649 = vpack.c.b16 %v6613, %v6609
        %v6650 = vpack.c.b16 %v6614, %v6610
        %v6651 = vpack.c.b16 %v6619, %v6615
        %v6652 = vpack.c.b16 %v6620, %v6616
        %v6653 = vpack.c.b16 %v6621, %v6617
        %v6654 = vpack.c.b16 %v6622, %v6618
        %6687 = vmatprep.subr.bf16.mxu0 %v6624
        %6688 = vmatpush1.bf16.msra.mxu0 %v6623
        %6689 = vmatprep.subr.bf16.mxu0 %v6628
        %6690 = vmatpush1.bf16.msra.mxu0 %v6627
        %6691 = vmatprep.subr.bf16.mxu0 %v6632
        %6692 = vmatpush1.bf16.msra.mxu0 %v6631
        %6693 = vmatprep.subr.bf16.mxu0 %v6636
        %6694 = vmatpush1.bf16.msra.mxu0 %v6635
        %6695 = vmatprep.subr.bf16.mxu0 %v6640
        %6696 = vmatpush1.bf16.msra.mxu0 %v6639
        %6697 = vmatprep.subr.bf16.mxu0 %v6644
        %6698 = vmatpush1.bf16.msra.mxu0 %v6643
        %6699 = vmatprep.subr.bf16.mxu0 %v6648
        %6700 = vmatpush1.bf16.msra.mxu0 %v6647
        %6701 = vmatprep.subr.bf16.mxu0 %v6652
        %6702 = vmatpush1.bf16.msra.mxu0 %v6651
        %6703 = vmatprep.subr.bf16.mxu0 0
        %6704 = vmatpush1.bf16.msra.mxu0 0
        %6705 = vmatprep.subr.bf16.mxu0 0
        %6706 = vmatpush1.bf16.msra.mxu0 0
        %6707 = vmatprep.subr.bf16.mxu0 0
        %6708 = vmatpush1.bf16.msra.mxu0 0
        %6709 = vmatprep.subr.bf16.mxu0 0
        %6710 = vmatpush1.bf16.msra.mxu0 0
        %6711 = vmatprep.subr.bf16.mxu0 0
        %6712 = vmatpush1.bf16.msra.mxu0 0
        %6713 = vmatprep.subr.bf16.mxu0 0
        %6714 = vmatpush1.bf16.msra.mxu0 0
        %6715 = vmatprep.subr.bf16.mxu0 0
        %6716 = vmatpush1.bf16.msra.mxu0 0
        %6717 = vmatprep.subr.bf16.mxu0 0
        %6718 = vmatpush1.bf16.msra.mxu0 0
        %6719 = vmatprep.mubr.bf16.mxu0 0
        %6720 = vmatmul.mubr.bf16.gmra.mrb[0].mxu0 %v6487
        %v6721 = vpop.f32.mrb[0].mxu0
        %v6722 = vadd.f32 0.0, %v6721
        %v6723 = vpop.f32.mrb[0].mxu0
        %v6724 = vadd.f32 0.0, %v6723
        %v6725 = vpop.f32.mrb[0].mxu0
        %v6726 = vadd.f32 0.0, %v6725
        %v6727 = vpop.f32.mrb[0].mxu0
        %v6728 = vadd.f32 0.0, %v6727
        %6729 = vmatprep.mubr.bf16.mxu0 0
        %6730 = vmatmul.mubr.bf16.gmra.mrb[0].mxu0 %v6488
        %v6731 = vpop.f32.mrb[0].mxu0
        %v6732 = vadd.f32 0.0, %v6731
        %v6733 = vpop.f32.mrb[0].mxu0
        %v6734 = vadd.f32 0.0, %v6733
        %v6735 = vpop.f32.mrb[0].mxu0
        %v6736 = vadd.f32 0.0, %v6735
        %v6737 = vpop.f32.mrb[0].mxu0
        %v6738 = vadd.f32 0.0, %v6737
        %6739 = vmatprep.mubr.bf16.mxu0 0
        %6740 = vmatmul.mubr.bf16.gmra.mrb[0].mxu0 %v6489
        %v6741 = vpop.f32.mrb[0].mxu0
        %v6742 = vadd.f32 0.0, %v6741
        %v6743 = vpop.f32.mrb[0].mxu0
        %v6744 = vadd.f32 0.0, %v6743
        %v6745 = vpop.f32.mrb[0].mxu0
        %v6746 = vadd.f32 0.0, %v6745
        %v6747 = vpop.f32.mrb[0].mxu0
        %v6748 = vadd.f32 0.0, %v6747
        %6749 = vmatprep.mubr.bf16.mxu0 0
        %6750 = vmatmul.mubr.bf16.gmra.mrb[0].mxu0 %v6490
        %v6751 = vpop.f32.mrb[0].mxu0
        %v6752 = vadd.f32 0.0, %v6751
        %v6753 = vpop.f32.mrb[0].mxu0
        %v6754 = vadd.f32 0.0, %v6753
        %v6755 = vpop.f32.mrb[0].mxu0
        %v6756 = vadd.f32 0.0, %v6755
        %v6757 = vpop.f32.mrb[0].mxu0
        %v6758 = vadd.f32 0.0, %v6757
        %6759 = vmatprep.mubr.bf16.mxu0 0
        %6760 = vmatmul.mubr.bf16.gmra.mrb[0].mxu0 %v6491
        %v6761 = vpop.f32.mrb[0].mxu0
        %v6762 = vadd.f32 0.0, %v6761
        %v6763 = vpop.f32.mrb[0].mxu0
        %v6764 = vadd.f32 0.0, %v6763
        %v6765 = vpop.f32.mrb[0].mxu0
        %v6766 = vadd.f32 0.0, %v6765
        %v6767 = vpop.f32.mrb[0].mxu0
        %v6768 = vadd.f32 0.0, %v6767
        %6769 = vmatprep.mubr.bf16.mxu0 0
        %6770 = vmatmul.mubr.bf16.gmra.mrb[0].mxu0 %v6492
        %v6771 = vpop.f32.mrb[0].mxu0
        %v6772 = vadd.f32 0.0, %v6771
        %v6773 = vpop.f32.mrb[0].mxu0
        %v6774 = vadd.f32 0.0, %v6773
        %v6775 = vpop.f32.mrb[0].mxu0
        %v6776 = vadd.f32 0.0, %v6775
        %v6777 = vpop.f32.mrb[0].mxu0
        %v6778 = vadd.f32 0.0, %v6777
        %6779 = vmatprep.mubr.bf16.mxu0 0
        %6780 = vmatmul.mubr.bf16.gmra.mrb[0].mxu0 %v6493
        %v6781 = vpop.f32.mrb[0].mxu0
        %v6782 = vadd.f32 0.0, %v6781
        %v6783 = vpop.f32.mrb[0].mxu0
        %v6784 = vadd.f32 0.0, %v6783
        %v6785 = vpop.f32.mrb[0].mxu0
        %v6786 = vadd.f32 0.0, %v6785
        %v6787 = vpop.f32.mrb[0].mxu0
        %v6788 = vadd.f32 0.0, %v6787
        %6789 = vmatprep.mubr.bf16.mxu0 0
        %6790 = vmatmul.mubr.bf16.gmra.mrb[0].mxu0 %v6494
        %v6791 = vpop.f32.mrb[0].mxu0
        %v6792 = vadd.f32 0.0, %v6791
        %v6793 = vpop.f32.mrb[0].mxu0
        %v6794 = vadd.f32 0.0, %v6793
        %v6795 = vpop.f32.mrb[0].mxu0
        %v6796 = vadd.f32 0.0, %v6795
        %v6797 = vpop.f32.mrb[0].mxu0
        %v6798 = vadd.f32 0.0, %v6797
        %6799 = vdwg.mxu0
        %6800 = vmatprep.subr.bf16.mxu0 %v6626
        %6801 = vmatpush1.bf16.msra.mxu0 %v6625
        %6802 = vmatprep.subr.bf16.mxu0 %v6630
        %6803 = vmatpush1.bf16.msra.mxu0 %v6629
        %6804 = vmatprep.subr.bf16.mxu0 %v6634
        %6805 = vmatpush1.bf16.msra.mxu0 %v6633
        %6806 = vmatprep.subr.bf16.mxu0 %v6638
        %6807 = vmatpush1.bf16.msra.mxu0 %v6637
        %6808 = vmatprep.subr.bf16.mxu0 %v6642
        %6809 = vmatpush1.bf16.msra.mxu0 %v6641
        %6810 = vmatprep.subr.bf16.mxu0 %v6646
        %6811 = vmatpush1.bf16.msra.mxu0 %v6645
        %6812 = vmatprep.subr.bf16.mxu0 %v6650
        %6813 = vmatpush1.bf16.msra.mxu0 %v6649
        %6814 = vmatprep.subr.bf16.mxu0 %v6654
        %6815 = vmatpush1.bf16.msra.mxu0 %v6653
        %6816 = vmatprep.subr.bf16.mxu0 0
        %6817 = vmatpush1.bf16.msra.mxu0 0
        %6818 = vmatprep.subr.bf16.mxu0 0
        %6819 = vmatpush1.bf16.msra.mxu0 0
        %6820 = vmatprep.subr.bf16.mxu0 0
        %6821 = vmatpush1.bf16.msra.mxu0 0
        %6822 = vmatprep.subr.bf16.mxu0 0
        %6823 = vmatpush1.bf16.msra.mxu0 0
        %6824 = vmatprep.subr.bf16.mxu0 0
        %6825 = vmatpush1.bf16.msra.mxu0 0
        %6826 = vmatprep.subr.bf16.mxu0 0
        %6827 = vmatpush1.bf16.msra.mxu0 0
        %6828 = vmatprep.subr.bf16.mxu0 0
        %6829 = vmatpush1.bf16.msra.mxu0 0
        %6830 = vmatprep.subr.bf16.mxu0 0
        %6831 = vmatpush1.bf16.msra.mxu0 0
        %6832 = vmatprep.mubr.bf16.mxu0 0
        %6833 = vmatmul.mubr.bf16.gmra.mrb[0].mxu0 %v6487
        %v6834 = vpop.f32.mrb[0].mxu0
        %v6835 = vadd.f32 0.0, %v6834
        %v6836 = vpop.f32.mrb[0].mxu0
        %v6837 = vadd.f32 0.0, %v6836
        %v6838 = vpop.f32.mrb[0].mxu0
        %v6839 = vadd.f32 0.0, %v6838
        %v6840 = vpop.f32.mrb[0].mxu0
        %v6841 = vadd.f32 0.0, %v6840
        %6842 = vmatprep.mubr.bf16.mxu0 0
        %6843 = vmatmul.mubr.bf16.gmra.mrb[0].mxu0 %v6488
        %v6844 = vpop.f32.mrb[0].mxu0
        %v6845 = vadd.f32 0.0, %v6844
        %v6846 = vpop.f32.mrb[0].mxu0
        %v6847 = vadd.f32 0.0, %v6846
        %v6848 = vpop.f32.mrb[0].mxu0
        %v6849 = vadd.f32 0.0, %v6848
        %v6850 = vpop.f32.mrb[0].mxu0
        %v6851 = vadd.f32 0.0, %v6850
        %6852 = vmatprep.mubr.bf16.mxu0 0
        %6853 = vmatmul.mubr.bf16.gmra.mrb[0].mxu0 %v6489
        %v6854 = vpop.f32.mrb[0].mxu0
        %v6855 = vadd.f32 0.0, %v6854
        %v6856 = vpop.f32.mrb[0].mxu0
        %v6857 = vadd.f32 0.0, %v6856
        %v6858 = vpop.f32.mrb[0].mxu0
        %v6859 = vadd.f32 0.0, %v6858
        %v6860 = vpop.f32.mrb[0].mxu0
        %v6861 = vadd.f32 0.0, %v6860
        %6862 = vmatprep.mubr.bf16.mxu0 0
        %6863 = vmatmul.mubr.bf16.gmra.mrb[0].mxu0 %v6490
        %v6864 = vpop.f32.mrb[0].mxu0
        %v6865 = vadd.f32 0.0, %v6864
        %v6866 = vpop.f32.mrb[0].mxu0
        %v6867 = vadd.f32 0.0, %v6866
        %v6868 = vpop.f32.mrb[0].mxu0
        %v6869 = vadd.f32 0.0, %v6868
        %v6870 = vpop.f32.mrb[0].mxu0
        %v6871 = vadd.f32 0.0, %v6870
        %6872 = vmatprep.mubr.bf16.mxu0 0
        %6873 = vmatmul.mubr.bf16.gmra.mrb[0].mxu0 %v6491
        %v6874 = vpop.f32.mrb[0].mxu0
        %v6875 = vadd.f32 0.0, %v6874
        %v6876 = vpop.f32.mrb[0].mxu0
        %v6877 = vadd.f32 0.0, %v6876
        %v6878 = vpop.f32.mrb[0].mxu0
        %v6879 = vadd.f32 0.0, %v6878
        %v6880 = vpop.f32.mrb[0].mxu0
        %v6881 = vadd.f32 0.0, %v6880
        %6882 = vmatprep.mubr.bf16.mxu0 0
        %6883 = vmatmul.mubr.bf16.gmra.mrb[0].mxu0 %v6492
        %v6884 = vpop.f32.mrb[0].mxu0
        %v6885 = vadd.f32 0.0, %v6884
        %v6886 = vpop.f32.mrb[0].mxu0
        %v6887 = vadd.f32 0.0, %v6886
        %v6888 = vpop.f32.mrb[0].mxu0
        %v6889 = vadd.f32 0.0, %v6888
        %v6890 = vpop.f32.mrb[0].mxu0
        %v6891 = vadd.f32 0.0, %v6890
        %6892 = vmatprep.mubr.bf16.mxu0 0
        %6893 = vmatmul.mubr.bf16.gmra.mrb[0].mxu0 %v6493
        %v6894 = vpop.f32.mrb[0].mxu0
        %v6895 = vadd.f32 0.0, %v6894
        %v6896 = vpop.f32.mrb[0].mxu0
        %v6897 = vadd.f32 0.0, %v6896
        %v6898 = vpop.f32.mrb[0].mxu0
        %v6899 = vadd.f32 0.0, %v6898
        %v6900 = vpop.f32.mrb[0].mxu0
        %v6901 = vadd.f32 0.0, %v6900
        %6902 = vmatprep.mubr.bf16.mxu0 0
        %6903 = vmatmul.mubr.bf16.gmra.mrb[0].mxu0 %v6494
        %v6904 = vpop.f32.mrb[0].mxu0
        %v6905 = vadd.f32 0.0, %v6904
        %v6906 = vpop.f32.mrb[0].mxu0
        %v6907 = vadd.f32 0.0, %v6906
        %v6908 = vpop.f32.mrb[0].mxu0
        %v6909 = vadd.f32 0.0, %v6908
        %v6910 = vpop.f32.mrb[0].mxu0
        %v6911 = vadd.f32 0.0, %v6910
        %6912 = vdwg.mxu0
        %v6945 = vunpack.c.l.b16 %v5989
        %v6946 = vunpack.c.h.b16 %v5989
        %v6947 = vunpack.c.l.b16 %v5990
        %v6948 = vunpack.c.h.b16 %v5990
        %v6949 = vunpack.c.l.b16 %v5991
        %v6950 = vunpack.c.h.b16 %v5991
        %v6951 = vunpack.c.l.b16 %v5992
        %v6952 = vunpack.c.h.b16 %v5992
        %v6953 = vunpack.c.l.b16 %v5993
        %v6954 = vunpack.c.h.b16 %v5993
        %v6955 = vunpack.c.l.b16 %v5994
        %v6956 = vunpack.c.h.b16 %v5994
        %v6957 = vunpack.c.l.b16 %v5995
        %v6958 = vunpack.c.h.b16 %v5995
        %v6959 = vunpack.c.l.b16 %v5996
        %v6960 = vunpack.c.h.b16 %v5996
        %v6961 = vunpack.c.l.b16 %v5997
        %v6962 = vunpack.c.h.b16 %v5997
        %v6963 = vunpack.c.l.b16 %v5998
        %v6964 = vunpack.c.h.b16 %v5998
        %v6965 = vunpack.c.l.b16 %v5999
        %v6966 = vunpack.c.h.b16 %v5999
        %v6967 = vunpack.c.l.b16 %v6000
        %v6968 = vunpack.c.h.b16 %v6000
        %v6969 = vunpack.c.l.b16 %v6001
        %v6970 = vunpack.c.h.b16 %v6001
        %v6971 = vunpack.c.l.b16 %v6002
        %v6972 = vunpack.c.h.b16 %v6002
        %v6973 = vunpack.c.l.b16 %v6003
        %v6974 = vunpack.c.h.b16 %v6003
        %v6975 = vunpack.c.l.b16 %v6004
        %v6976 = vunpack.c.h.b16 %v6004
        %v6977 = vunpack.c.l.b16 %v6005
        %v6978 = vunpack.c.h.b16 %v6005
        %v6979 = vunpack.c.l.b16 %v6006
        %v6980 = vunpack.c.h.b16 %v6006
        %v6981 = vunpack.c.l.b16 %v6007
        %v6982 = vunpack.c.h.b16 %v6007
        %v6983 = vunpack.c.l.b16 %v6008
        %v6984 = vunpack.c.h.b16 %v6008
        %v6985 = vunpack.c.l.b16 %v6009
        %v6986 = vunpack.c.h.b16 %v6009
        %v6987 = vunpack.c.l.b16 %v6010
        %v6988 = vunpack.c.h.b16 %v6010
        %v6989 = vunpack.c.l.b16 %v6011
        %v6990 = vunpack.c.h.b16 %v6011
        %v6991 = vunpack.c.l.b16 %v6012
        %v6992 = vunpack.c.h.b16 %v6012
        %v6993 = vunpack.c.l.b16 %v6013
        %v6994 = vunpack.c.h.b16 %v6013
        %v6995 = vunpack.c.l.b16 %v6014
        %v6996 = vunpack.c.h.b16 %v6014
        %v6997 = vunpack.c.l.b16 %v6015
        %v6998 = vunpack.c.h.b16 %v6015
        %v6999 = vunpack.c.l.b16 %v6016
        %v7000 = vunpack.c.h.b16 %v6016
        %v7001 = vunpack.c.l.b16 %v6017
        %v7002 = vunpack.c.h.b16 %v6017
        %v7003 = vunpack.c.l.b16 %v6018
        %v7004 = vunpack.c.h.b16 %v6018
        %v7005 = vunpack.c.l.b16 %v6019
        %v7006 = vunpack.c.h.b16 %v6019
        %v7007 = vunpack.c.l.b16 %v6020
        %v7008 = vunpack.c.h.b16 %v6020
        %v7009 = vpack.c.b16 %v6949, %v6945
        %v7010 = vpack.c.b16 %v6950, %v6946
        %v7011 = vpack.c.b16 %v6951, %v6947
        %v7012 = vpack.c.b16 %v6952, %v6948
        %v7013 = vpack.c.b16 %v6957, %v6953
        %v7014 = vpack.c.b16 %v6958, %v6954
        %v7015 = vpack.c.b16 %v6959, %v6955
        %v7016 = vpack.c.b16 %v6960, %v6956
        %v7017 = vpack.c.b16 %v6965, %v6961
        %v7018 = vpack.c.b16 %v6966, %v6962
        %v7019 = vpack.c.b16 %v6967, %v6963
        %v7020 = vpack.c.b16 %v6968, %v6964
        %v7021 = vpack.c.b16 %v6973, %v6969
        %v7022 = vpack.c.b16 %v6974, %v6970
        %v7023 = vpack.c.b16 %v6975, %v6971
        %v7024 = vpack.c.b16 %v6976, %v6972
        %v7025 = vpack.c.b16 %v6981, %v6977
        %v7026 = vpack.c.b16 %v6982, %v6978
        %v7027 = vpack.c.b16 %v6983, %v6979
        %v7028 = vpack.c.b16 %v6984, %v6980
        %v7029 = vpack.c.b16 %v6989, %v6985
        %v7030 = vpack.c.b16 %v6990, %v6986
        %v7031 = vpack.c.b16 %v6991, %v6987
        %v7032 = vpack.c.b16 %v6992, %v6988
        %v7033 = vpack.c.b16 %v6997, %v6993
        %v7034 = vpack.c.b16 %v6998, %v6994
        %v7035 = vpack.c.b16 %v6999, %v6995
        %v7036 = vpack.c.b16 %v7000, %v6996
        %v7037 = vpack.c.b16 %v7005, %v7001
        %v7038 = vpack.c.b16 %v7006, %v7002
        %v7039 = vpack.c.b16 %v7007, %v7003
        %v7040 = vpack.c.b16 %v7008, %v7004
        %7073 = vmatprep.subr.bf16.mxu0 %v7010
        %7074 = vmatpush1.bf16.msra.mxu0 %v7009
        %7075 = vmatprep.subr.bf16.mxu0 %v7014
        %7076 = vmatpush1.bf16.msra.mxu0 %v7013
        %7077 = vmatprep.subr.bf16.mxu0 %v7018
        %7078 = vmatpush1.bf16.msra.mxu0 %v7017
        %7079 = vmatprep.subr.bf16.mxu0 %v7022
        %7080 = vmatpush1.bf16.msra.mxu0 %v7021
        %7081 = vmatprep.subr.bf16.mxu0 %v7026
        %7082 = vmatpush1.bf16.msra.mxu0 %v7025
        %7083 = vmatprep.subr.bf16.mxu0 %v7030
        %7084 = vmatpush1.bf16.msra.mxu0 %v7029
        %7085 = vmatprep.subr.bf16.mxu0 %v7034
        %7086 = vmatpush1.bf16.msra.mxu0 %v7033
        %7087 = vmatprep.subr.bf16.mxu0 %v7038
        %7088 = vmatpush1.bf16.msra.mxu0 %v7037
        %7089 = vmatprep.subr.bf16.mxu0 0
        %7090 = vmatpush1.bf16.msra.mxu0 0
        %7091 = vmatprep.subr.bf16.mxu0 0
        %7092 = vmatpush1.bf16.msra.mxu0 0
        %7093 = vmatprep.subr.bf16.mxu0 0
        %7094 = vmatpush1.bf16.msra.mxu0 0
        %7095 = vmatprep.subr.bf16.mxu0 0
        %7096 = vmatpush1.bf16.msra.mxu0 0
        %7097 = vmatprep.subr.bf16.mxu0 0
        %7098 = vmatpush1.bf16.msra.mxu0 0
        %7099 = vmatprep.subr.bf16.mxu0 0
        %7100 = vmatpush1.bf16.msra.mxu0 0
        %7101 = vmatprep.subr.bf16.mxu0 0
        %7102 = vmatpush1.bf16.msra.mxu0 0
        %7103 = vmatprep.subr.bf16.mxu0 0
        %7104 = vmatpush1.bf16.msra.mxu0 0
        %7105 = vmatprep.mubr.bf16.mxu0 0
        %7106 = vmatmul.mubr.bf16.gmra.mrb[0].mxu0 %v5981
        %v7107 = vpop.f32.mrb[0].mxu0
        %v7108 = vadd.f32 %v6722, %v7107
        %v7109 = vpop.f32.mrb[0].mxu0
        %v7110 = vadd.f32 %v6724, %v7109
        %v7111 = vpop.f32.mrb[0].mxu0
        %v7112 = vadd.f32 %v6726, %v7111
        %v7113 = vpop.f32.mrb[0].mxu0
        %v7114 = vadd.f32 %v6728, %v7113
        %7115 = vmatprep.mubr.bf16.mxu0 0
        %7116 = vmatmul.mubr.bf16.gmra.mrb[0].mxu0 %v5982
        %v7117 = vpop.f32.mrb[0].mxu0
        %v7118 = vadd.f32 %v6732, %v7117
        %v7119 = vpop.f32.mrb[0].mxu0
        %v7120 = vadd.f32 %v6734, %v7119
        %v7121 = vpop.f32.mrb[0].mxu0
        %v7122 = vadd.f32 %v6736, %v7121
        %v7123 = vpop.f32.mrb[0].mxu0
        %v7124 = vadd.f32 %v6738, %v7123
        %7125 = vmatprep.mubr.bf16.mxu0 0
        %7126 = vmatmul.mubr.bf16.gmra.mrb[0].mxu0 %v5983
        %v7127 = vpop.f32.mrb[0].mxu0
        %v7128 = vadd.f32 %v6742, %v7127
        %v7129 = vpop.f32.mrb[0].mxu0
        %v7130 = vadd.f32 %v6744, %v7129
        %v7131 = vpop.f32.mrb[0].mxu0
        %v7132 = vadd.f32 %v6746, %v7131
        %v7133 = vpop.f32.mrb[0].mxu0
        %v7134 = vadd.f32 %v6748, %v7133
        %7135 = vmatprep.mubr.bf16.mxu0 0
        %7136 = vmatmul.mubr.bf16.gmra.mrb[0].mxu0 %v5984
        %v7137 = vpop.f32.mrb[0].mxu0
        %v7138 = vadd.f32 %v6752, %v7137
        %v7139 = vpop.f32.mrb[0].mxu0
        %v7140 = vadd.f32 %v6754, %v7139
        %v7141 = vpop.f32.mrb[0].mxu0
        %v7142 = vadd.f32 %v6756, %v7141
        %v7143 = vpop.f32.mrb[0].mxu0
        %v7144 = vadd.f32 %v6758, %v7143
        %7145 = vmatprep.mubr.bf16.mxu0 0
        %7146 = vmatmul.mubr.bf16.gmra.mrb[0].mxu0 %v5985
        %v7147 = vpop.f32.mrb[0].mxu0
        %v7148 = vadd.f32 %v6762, %v7147
        %v7149 = vpop.f32.mrb[0].mxu0
        %v7150 = vadd.f32 %v6764, %v7149
        %v7151 = vpop.f32.mrb[0].mxu0
        %v7152 = vadd.f32 %v6766, %v7151
        %v7153 = vpop.f32.mrb[0].mxu0
        %v7154 = vadd.f32 %v6768, %v7153
        %7155 = vmatprep.mubr.bf16.mxu0 0
        %7156 = vmatmul.mubr.bf16.gmra.mrb[0].mxu0 %v5986
        %v7157 = vpop.f32.mrb[0].mxu0
        %v7158 = vadd.f32 %v6772, %v7157
        %v7159 = vpop.f32.mrb[0].mxu0
        %v7160 = vadd.f32 %v6774, %v7159
        %v7161 = vpop.f32.mrb[0].mxu0
        %v7162 = vadd.f32 %v6776, %v7161
        %v7163 = vpop.f32.mrb[0].mxu0
        %v7164 = vadd.f32 %v6778, %v7163
        %7165 = vmatprep.mubr.bf16.mxu0 0
        %7166 = vmatmul.mubr.bf16.gmra.mrb[0].mxu0 %v5987
        %v7167 = vpop.f32.mrb[0].mxu0
        %v7168 = vadd.f32 %v6782, %v7167
        %v7169 = vpop.f32.mrb[0].mxu0
        %v7170 = vadd.f32 %v6784, %v7169
        %v7171 = vpop.f32.mrb[0].mxu0
        %v7172 = vadd.f32 %v6786, %v7171
        %v7173 = vpop.f32.mrb[0].mxu0
        %v7174 = vadd.f32 %v6788, %v7173
        %7175 = vmatprep.mubr.bf16.mxu0 0
        %7176 = vmatmul.mubr.bf16.gmra.mrb[0].mxu0 %v5988
        %v7177 = vpop.f32.mrb[0].mxu0
        %v7178 = vadd.f32 %v6792, %v7177
        %v7179 = vpop.f32.mrb[0].mxu0
        %v7180 = vadd.f32 %v6794, %v7179
        %v7181 = vpop.f32.mrb[0].mxu0
        %v7182 = vadd.f32 %v6796, %v7181
        %v7183 = vpop.f32.mrb[0].mxu0
        %v7184 = vadd.f32 %v6798, %v7183
        %7185 = vdwg.mxu0
        %7186 = vmatprep.subr.bf16.mxu0 %v7012
        %7187 = vmatpush1.bf16.msra.mxu0 %v7011
        %7188 = vmatprep.subr.bf16.mxu0 %v7016
        %7189 = vmatpush1.bf16.msra.mxu0 %v7015
        %7190 = vmatprep.subr.bf16.mxu0 %v7020
        %7191 = vmatpush1.bf16.msra.mxu0 %v7019
        %7192 = vmatprep.subr.bf16.mxu0 %v7024
        %7193 = vmatpush1.bf16.msra.mxu0 %v7023
        %7194 = vmatprep.subr.bf16.mxu0 %v7028
        %7195 = vmatpush1.bf16.msra.mxu0 %v7027
        %7196 = vmatprep.subr.bf16.mxu0 %v7032
        %7197 = vmatpush1.bf16.msra.mxu0 %v7031
        %7198 = vmatprep.subr.bf16.mxu0 %v7036
        %7199 = vmatpush1.bf16.msra.mxu0 %v7035
        %7200 = vmatprep.subr.bf16.mxu0 %v7040
        %7201 = vmatpush1.bf16.msra.mxu0 %v7039
        %7202 = vmatprep.subr.bf16.mxu0 0
        %7203 = vmatpush1.bf16.msra.mxu0 0
        %7204 = vmatprep.subr.bf16.mxu0 0
        %7205 = vmatpush1.bf16.msra.mxu0 0
        %7206 = vmatprep.subr.bf16.mxu0 0
        %7207 = vmatpush1.bf16.msra.mxu0 0
        %7208 = vmatprep.subr.bf16.mxu0 0
        %7209 = vmatpush1.bf16.msra.mxu0 0
        %7210 = vmatprep.subr.bf16.mxu0 0
        %7211 = vmatpush1.bf16.msra.mxu0 0
        %7212 = vmatprep.subr.bf16.mxu0 0
        %7213 = vmatpush1.bf16.msra.mxu0 0
        %7214 = vmatprep.subr.bf16.mxu0 0
        %7215 = vmatpush1.bf16.msra.mxu0 0
        %7216 = vmatprep.subr.bf16.mxu0 0
        %7217 = vmatpush1.bf16.msra.mxu0 0
        %7218 = vmatprep.mubr.bf16.mxu0 0
        %7219 = vmatmul.mubr.bf16.gmra.mrb[0].mxu0 %v5981
        %v7220 = vpop.f32.mrb[0].mxu0
        %v7221 = vadd.f32 %v6835, %v7220
        %v7222 = vpop.f32.mrb[0].mxu0
        %v7223 = vadd.f32 %v6837, %v7222
        %v7224 = vpop.f32.mrb[0].mxu0
        %v7225 = vadd.f32 %v6839, %v7224
        %v7226 = vpop.f32.mrb[0].mxu0
        %v7227 = vadd.f32 %v6841, %v7226
        %7228 = vmatprep.mubr.bf16.mxu0 0
        %7229 = vmatmul.mubr.bf16.gmra.mrb[0].mxu0 %v5982
        %v7230 = vpop.f32.mrb[0].mxu0
        %v7231 = vadd.f32 %v6845, %v7230
        %v7232 = vpop.f32.mrb[0].mxu0
        %v7233 = vadd.f32 %v6847, %v7232
        %v7234 = vpop.f32.mrb[0].mxu0
        %v7235 = vadd.f32 %v6849, %v7234
        %v7236 = vpop.f32.mrb[0].mxu0
        %v7237 = vadd.f32 %v6851, %v7236
        %7238 = vmatprep.mubr.bf16.mxu0 0
        %7239 = vmatmul.mubr.bf16.gmra.mrb[0].mxu0 %v5983
        %v7240 = vpop.f32.mrb[0].mxu0
        %v7241 = vadd.f32 %v6855, %v7240
        %v7242 = vpop.f32.mrb[0].mxu0
        %v7243 = vadd.f32 %v6857, %v7242
        %v7244 = vpop.f32.mrb[0].mxu0
        %v7245 = vadd.f32 %v6859, %v7244
        %v7246 = vpop.f32.mrb[0].mxu0
        %v7247 = vadd.f32 %v6861, %v7246
        %7248 = vmatprep.mubr.bf16.mxu0 0
        %7249 = vmatmul.mubr.bf16.gmra.mrb[0].mxu0 %v5984
        %v7250 = vpop.f32.mrb[0].mxu0
        %v7251 = vadd.f32 %v6865, %v7250
        %v7252 = vpop.f32.mrb[0].mxu0
        %v7253 = vadd.f32 %v6867, %v7252
        %v7254 = vpop.f32.mrb[0].mxu0
        %v7255 = vadd.f32 %v6869, %v7254
        %v7256 = vpop.f32.mrb[0].mxu0
        %v7257 = vadd.f32 %v6871, %v7256
        %7258 = vmatprep.mubr.bf16.mxu0 0
        %7259 = vmatmul.mubr.bf16.gmra.mrb[0].mxu0 %v5985
        %v7260 = vpop.f32.mrb[0].mxu0
        %v7261 = vadd.f32 %v6875, %v7260
        %v7262 = vpop.f32.mrb[0].mxu0
        %v7263 = vadd.f32 %v6877, %v7262
        %v7264 = vpop.f32.mrb[0].mxu0
        %v7265 = vadd.f32 %v6879, %v7264
        %v7266 = vpop.f32.mrb[0].mxu0
        %v7267 = vadd.f32 %v6881, %v7266
        %7268 = vmatprep.mubr.bf16.mxu0 0
        %7269 = vmatmul.mubr.bf16.gmra.mrb[0].mxu0 %v5986
        %v7270 = vpop.f32.mrb[0].mxu0
        %v7271 = vadd.f32 %v6885, %v7270
        %v7272 = vpop.f32.mrb[0].mxu0
        %v7273 = vadd.f32 %v6887, %v7272
        %v7274 = vpop.f32.mrb[0].mxu0
        %v7275 = vadd.f32 %v6889, %v7274
        %v7276 = vpop.f32.mrb[0].mxu0
        %v7277 = vadd.f32 %v6891, %v7276
        %7278 = vmatprep.mubr.bf16.mxu0 0
        %7279 = vmatmul.mubr.bf16.gmra.mrb[0].mxu0 %v5987
        %v7280 = vpop.f32.mrb[0].mxu0
        %v7281 = vadd.f32 %v6895, %v7280
        %v7282 = vpop.f32.mrb[0].mxu0
        %v7283 = vadd.f32 %v6897, %v7282
        %v7284 = vpop.f32.mrb[0].mxu0
        %v7285 = vadd.f32 %v6899, %v7284
        %v7286 = vpop.f32.mrb[0].mxu0
        %v7287 = vadd.f32 %v6901, %v7286
        %7288 = vmatprep.mubr.bf16.mxu0 0
        %7289 = vmatmul.mubr.bf16.gmra.mrb[0].mxu0 %v5988
        %v7290 = vpop.f32.mrb[0].mxu0
        %v7291 = vadd.f32 %v6905, %v7290
        %v7292 = vpop.f32.mrb[0].mxu0
        %v7293 = vadd.f32 %v6907, %v7292
        %v7294 = vpop.f32.mrb[0].mxu0
        %v7295 = vadd.f32 %v6909, %v7294
        %v7296 = vpop.f32.mrb[0].mxu0
        %v7297 = vadd.f32 %v6911, %v7296
        %7298 = vdwg.mxu0
        %7299 = vmatprep.subr.bf16.mxu0 0
        %7300 = vmatpush1.bf16.xpose.msra.mxu0 %v3827
        %7301 = vmatprep.subr.bf16.mxu0 0
        %7302 = vmatpush1.bf16.xpose.msra.mxu0 %v3831
        %7303 = vmatprep.subr.bf16.mxu0 0
        %7304 = vmatpush1.bf16.xpose.msra.mxu0 %v3835
        %7305 = vmatprep.subr.bf16.mxu0 0
        %7306 = vmatpush1.bf16.xpose.msra.mxu0 %v3839
        %7307 = vmatprep.subr.bf16.mxu0 0
        %7308 = vmatpush1.bf16.xpose.msra.mxu0 %v3843
        %7309 = vmatprep.subr.bf16.mxu0 0
        %7310 = vmatpush1.bf16.xpose.msra.mxu0 %v3847
        %7311 = vmatprep.subr.bf16.mxu0 0
        %7312 = vmatpush1.bf16.xpose.msra.mxu0 %v3851
        %7313 = vmatprep.subr.bf16.mxu0 0
        %7314 = vmatpush1.bf16.xpose.msra.mxu0 %v3855
        %7315 = vmatprep.subr.bf16.mxu0 0
        %7316 = vmatpush1.bf16.xpose.msra.mxu0 %v3859
        %7317 = vmatprep.subr.bf16.mxu0 0
        %7318 = vmatpush1.bf16.xpose.msra.mxu0 %v3863
        %7319 = vmatprep.subr.bf16.mxu0 0
        %7320 = vmatpush1.bf16.xpose.msra.mxu0 %v3867
        %7321 = vmatprep.subr.bf16.mxu0 0
        %7322 = vmatpush1.bf16.xpose.msra.mxu0 %v3871
        %7323 = vmatprep.subr.bf16.mxu0 0
        %7324 = vmatpush1.bf16.xpose.msra.mxu0 %v3875
        %7325 = vmatprep.subr.bf16.mxu0 0
        %7326 = vmatpush1.bf16.xpose.msra.mxu0 %v3879
        %7327 = vmatprep.subr.bf16.mxu0 0
        %7328 = vmatpush1.bf16.xpose.msra.mxu0 %v3883
        %7329 = vmatprep.subr.bf16.mxu0 0
        %7330 = vmatpush1.bf16.xpose.msra.mxu0 %v3887
        %7331 = vmatprep.mubr.bf16.mxu0 0
        %7332 = vmatmul.mubr.bf16.gmra.mrb[0].mxu0 %v1913
        %v7333 = vpop.f32.mrb[0].mxu0
        %v7334 = vadd.f32 0.0, %v7333
        %v7335 = vpop.f32.mrb[0].mxu0
        %v7336 = vadd.f32 0.0, %v7335
        %v7337 = vpop.f32.mrb[0].mxu0
        %v7338 = vadd.f32 0.0, %v7337
        %v7339 = vpop.f32.mrb[0].mxu0
        %v7340 = vadd.f32 0.0, %v7339
        %7341 = vmatprep.mubr.bf16.mxu0 0
        %7342 = vmatmul.mubr.bf16.gmra.mrb[0].mxu0 %v1917
        %v7343 = vpop.f32.mrb[0].mxu0
        %v7344 = vadd.f32 0.0, %v7343
        %v7345 = vpop.f32.mrb[0].mxu0
        %v7346 = vadd.f32 0.0, %v7345
        %v7347 = vpop.f32.mrb[0].mxu0
        %v7348 = vadd.f32 0.0, %v7347
        %v7349 = vpop.f32.mrb[0].mxu0
        %v7350 = vadd.f32 0.0, %v7349
        %7351 = vmatprep.mubr.bf16.mxu0 0
        %7352 = vmatmul.mubr.bf16.gmra.mrb[0].mxu0 %v1921
        %v7353 = vpop.f32.mrb[0].mxu0
        %v7354 = vadd.f32 0.0, %v7353
        %v7355 = vpop.f32.mrb[0].mxu0
        %v7356 = vadd.f32 0.0, %v7355
        %v7357 = vpop.f32.mrb[0].mxu0
        %v7358 = vadd.f32 0.0, %v7357
        %v7359 = vpop.f32.mrb[0].mxu0
        %v7360 = vadd.f32 0.0, %v7359
        %7361 = vmatprep.mubr.bf16.mxu0 0
        %7362 = vmatmul.mubr.bf16.gmra.mrb[0].mxu0 %v1925
        %v7363 = vpop.f32.mrb[0].mxu0
        %v7364 = vadd.f32 0.0, %v7363
        %v7365 = vpop.f32.mrb[0].mxu0
        %v7366 = vadd.f32 0.0, %v7365
        %v7367 = vpop.f32.mrb[0].mxu0
        %v7368 = vadd.f32 0.0, %v7367
        %v7369 = vpop.f32.mrb[0].mxu0
        %v7370 = vadd.f32 0.0, %v7369
        %7371 = vmatprep.mubr.bf16.mxu0 0
        %7372 = vmatmul.mubr.bf16.gmra.mrb[0].mxu0 %v1929
        %v7373 = vpop.f32.mrb[0].mxu0
        %v7374 = vadd.f32 0.0, %v7373
        %v7375 = vpop.f32.mrb[0].mxu0
        %v7376 = vadd.f32 0.0, %v7375
        %v7377 = vpop.f32.mrb[0].mxu0
        %v7378 = vadd.f32 0.0, %v7377
        %v7379 = vpop.f32.mrb[0].mxu0
        %v7380 = vadd.f32 0.0, %v7379
        %7381 = vmatprep.mubr.bf16.mxu0 0
        %7382 = vmatmul.mubr.bf16.gmra.mrb[0].mxu0 %v1933
        %v7383 = vpop.f32.mrb[0].mxu0
        %v7384 = vadd.f32 0.0, %v7383
        %v7385 = vpop.f32.mrb[0].mxu0
        %v7386 = vadd.f32 0.0, %v7385
        %v7387 = vpop.f32.mrb[0].mxu0
        %v7388 = vadd.f32 0.0, %v7387
        %v7389 = vpop.f32.mrb[0].mxu0
        %v7390 = vadd.f32 0.0, %v7389
        %7391 = vmatprep.mubr.bf16.mxu0 0
        %7392 = vmatmul.mubr.bf16.gmra.mrb[0].mxu0 %v1937
        %v7393 = vpop.f32.mrb[0].mxu0
        %v7394 = vadd.f32 0.0, %v7393
        %v7395 = vpop.f32.mrb[0].mxu0
        %v7396 = vadd.f32 0.0, %v7395
        %v7397 = vpop.f32.mrb[0].mxu0
        %v7398 = vadd.f32 0.0, %v7397
        %v7399 = vpop.f32.mrb[0].mxu0
        %v7400 = vadd.f32 0.0, %v7399
        %7401 = vmatprep.mubr.bf16.mxu0 0
        %7402 = vmatmul.mubr.bf16.gmra.mrb[0].mxu0 %v1941
        %v7403 = vpop.f32.mrb[0].mxu0
        %v7404 = vadd.f32 0.0, %v7403
        %v7405 = vpop.f32.mrb[0].mxu0
        %v7406 = vadd.f32 0.0, %v7405
        %v7407 = vpop.f32.mrb[0].mxu0
        %v7408 = vadd.f32 0.0, %v7407
        %v7409 = vpop.f32.mrb[0].mxu0
        %v7410 = vadd.f32 0.0, %v7409
        %7411 = vdwg.mxu0
        %v7412 = vmax.f32 %v7334, %v7336
        %7413 = vmax.xlane.f32.xlu0 %v7412
        %v7414 = vpop.xlane.xlu0 %7413
        %v7415 = vmax.f32 %v7338, %v7340
        %7416 = vmax.xlane.f32.xlu0 %v7415
        %v7417 = vpop.xlane.xlu0 %7416
        %v7418 = vmax.f32 %v7344, %v7346
        %7419 = vmax.xlane.f32.xlu0 %v7418
        %v7420 = vpop.xlane.xlu0 %7419
        %v7421 = vmax.f32 %v7348, %v7350
        %7422 = vmax.xlane.f32.xlu0 %v7421
        %v7423 = vpop.xlane.xlu0 %7422
        %v7424 = vmax.f32 %v7354, %v7356
        %7425 = vmax.xlane.f32.xlu0 %v7424
        %v7426 = vpop.xlane.xlu0 %7425
        %v7427 = vmax.f32 %v7358, %v7360
        %7428 = vmax.xlane.f32.xlu0 %v7427
        %v7429 = vpop.xlane.xlu0 %7428
        %v7430 = vmax.f32 %v7364, %v7366
        %7431 = vmax.xlane.f32.xlu0 %v7430
        %v7432 = vpop.xlane.xlu0 %7431
        %v7433 = vmax.f32 %v7368, %v7370
        %7434 = vmax.xlane.f32.xlu0 %v7433
        %v7435 = vpop.xlane.xlu0 %7434
        %v7436 = vmax.f32 %v7374, %v7376
        %7437 = vmax.xlane.f32.xlu0 %v7436
        %v7438 = vpop.xlane.xlu0 %7437
        %v7439 = vmax.f32 %v7378, %v7380
        %7440 = vmax.xlane.f32.xlu0 %v7439
        %v7441 = vpop.xlane.xlu0 %7440
        %v7442 = vmax.f32 %v7384, %v7386
        %7443 = vmax.xlane.f32.xlu0 %v7442
        %v7444 = vpop.xlane.xlu0 %7443
        %v7445 = vmax.f32 %v7388, %v7390
        %7446 = vmax.xlane.f32.xlu0 %v7445
        %v7447 = vpop.xlane.xlu0 %7446
        %v7448 = vmax.f32 %v7394, %v7396
        %7449 = vmax.xlane.f32.xlu0 %v7448
        %v7450 = vpop.xlane.xlu0 %7449
        %v7451 = vmax.f32 %v7398, %v7400
        %7452 = vmax.xlane.f32.xlu0 %v7451
        %v7453 = vpop.xlane.xlu0 %7452
        %v7454 = vmax.f32 %v7404, %v7406
        %7455 = vmax.xlane.f32.xlu0 %v7454
        %v7456 = vpop.xlane.xlu0 %7455
        %v7457 = vmax.f32 %v7408, %v7410
        %7458 = vmax.xlane.f32.xlu0 %v7457
        %v7459 = vpop.xlane.xlu0 %7458
        %v7460 = vsub.f32 %v7334, %v7414
        %v7461 = vsub.f32 %v7336, %v7414
        %v7462 = vsub.f32 %v7338, %v7417
        %v7463 = vsub.f32 %v7340, %v7417
        %v7464 = vsub.f32 %v7344, %v7420
        %v7465 = vsub.f32 %v7346, %v7420
        %v7466 = vsub.f32 %v7348, %v7423
        %v7467 = vsub.f32 %v7350, %v7423
        %v7468 = vsub.f32 %v7354, %v7426
        %v7469 = vsub.f32 %v7356, %v7426
        %v7470 = vsub.f32 %v7358, %v7429
        %v7471 = vsub.f32 %v7360, %v7429
        %v7472 = vsub.f32 %v7364, %v7432
        %v7473 = vsub.f32 %v7366, %v7432
        %v7474 = vsub.f32 %v7368, %v7435
        %v7475 = vsub.f32 %v7370, %v7435
        %v7476 = vsub.f32 %v7374, %v7438
        %v7477 = vsub.f32 %v7376, %v7438
        %v7478 = vsub.f32 %v7378, %v7441
        %v7479 = vsub.f32 %v7380, %v7441
        %v7480 = vsub.f32 %v7384, %v7444
        %v7481 = vsub.f32 %v7386, %v7444
        %v7482 = vsub.f32 %v7388, %v7447
        %v7483 = vsub.f32 %v7390, %v7447
        %v7484 = vsub.f32 %v7394, %v7450
        %v7485 = vsub.f32 %v7396, %v7450
        %v7486 = vsub.f32 %v7398, %v7453
        %v7487 = vsub.f32 %v7400, %v7453
        %v7488 = vsub.f32 %v7404, %v7456
        %v7489 = vsub.f32 %v7406, %v7456
        %v7490 = vsub.f32 %v7408, %v7459
        %v7491 = vsub.f32 %v7410, %v7459
        %v7492 = vmul.f32 %v7460, 1.442695
        %v7493 = vpow.pop %v7492
        %v7494 = vmul.f32 %v7461, 1.442695
        %v7495 = vpow.pop %v7494
        %v7496 = vmul.f32 %v7462, 1.442695
        %v7497 = vpow.pop %v7496
        %v7498 = vmul.f32 %v7463, 1.442695
        %v7499 = vpow.pop %v7498
        %v7500 = vmul.f32 %v7464, 1.442695
        %v7501 = vpow.pop %v7500
        %v7502 = vmul.f32 %v7465, 1.442695
        %v7503 = vpow.pop %v7502
        %v7504 = vmul.f32 %v7466, 1.442695
        %v7505 = vpow.pop %v7504
        %v7506 = vmul.f32 %v7467, 1.442695
        %v7507 = vpow.pop %v7506
        %v7508 = vmul.f32 %v7468, 1.442695
        %v7509 = vpow.pop %v7508
        %v7510 = vmul.f32 %v7469, 1.442695
        %v7511 = vpow.pop %v7510
        %v7512 = vmul.f32 %v7470, 1.442695
        %v7513 = vpow.pop %v7512
        %v7514 = vmul.f32 %v7471, 1.442695
        %v7515 = vpow.pop %v7514
        %v7516 = vmul.f32 %v7472, 1.442695
        %v7517 = vpow.pop %v7516
        %v7518 = vmul.f32 %v7473, 1.442695
        %v7519 = vpow.pop %v7518
        %v7520 = vmul.f32 %v7474, 1.442695
        %v7521 = vpow.pop %v7520
        %v7522 = vmul.f32 %v7475, 1.442695
        %v7523 = vpow.pop %v7522
        %v7524 = vmul.f32 %v7476, 1.442695
        %v7525 = vpow.pop %v7524
        %v7526 = vmul.f32 %v7477, 1.442695
        %v7527 = vpow.pop %v7526
        %v7528 = vmul.f32 %v7478, 1.442695
        %v7529 = vpow.pop %v7528
        %v7530 = vmul.f32 %v7479, 1.442695
        %v7531 = vpow.pop %v7530
        %v7532 = vmul.f32 %v7480, 1.442695
        %v7533 = vpow.pop %v7532
        %v7534 = vmul.f32 %v7481, 1.442695
        %v7535 = vpow.pop %v7534
        %v7536 = vmul.f32 %v7482, 1.442695
        %v7537 = vpow.pop %v7536
        %v7538 = vmul.f32 %v7483, 1.442695
        %v7539 = vpow.pop %v7538
        %v7540 = vmul.f32 %v7484, 1.442695
        %v7541 = vpow.pop %v7540
        %v7542 = vmul.f32 %v7485, 1.442695
        %v7543 = vpow.pop %v7542
        %v7544 = vmul.f32 %v7486, 1.442695
        %v7545 = vpow.pop %v7544
        %v7546 = vmul.f32 %v7487, 1.442695
        %v7547 = vpow.pop %v7546
        %v7548 = vmul.f32 %v7488, 1.442695
        %v7549 = vpow.pop %v7548
        %v7550 = vmul.f32 %v7489, 1.442695
        %v7551 = vpow.pop %v7550
        %v7552 = vmul.f32 %v7490, 1.442695
        %v7553 = vpow.pop %v7552
        %v7554 = vmul.f32 %v7491, 1.442695
        %v7555 = vpow.pop %v7554
        %v7556 = vadd.f32 %v7493, %v7495
        %7557 = vadd.xlane.f32.xlu0 %v7556
        %v7558 = vpop.xlane.xlu0 %7557
        %v7559 = vadd.f32 %v7497, %v7499
        %7560 = vadd.xlane.f32.xlu0 %v7559
        %v7561 = vpop.xlane.xlu0 %7560
        %v7562 = vadd.f32 %v7501, %v7503
        %7563 = vadd.xlane.f32.xlu0 %v7562
        %v7564 = vpop.xlane.xlu0 %7563
        %v7565 = vadd.f32 %v7505, %v7507
        %7566 = vadd.xlane.f32.xlu0 %v7565
        %v7567 = vpop.xlane.xlu0 %7566
        %v7568 = vadd.f32 %v7509, %v7511
        %7569 = vadd.xlane.f32.xlu0 %v7568
        %v7570 = vpop.xlane.xlu0 %7569
        %v7571 = vadd.f32 %v7513, %v7515
        %7572 = vadd.xlane.f32.xlu0 %v7571
        %v7573 = vpop.xlane.xlu0 %7572
        %v7574 = vadd.f32 %v7517, %v7519
        %7575 = vadd.xlane.f32.xlu0 %v7574
        %v7576 = vpop.xlane.xlu0 %7575
        %v7577 = vadd.f32 %v7521, %v7523
        %7578 = vadd.xlane.f32.xlu0 %v7577
        %v7579 = vpop.xlane.xlu0 %7578
        %v7580 = vadd.f32 %v7525, %v7527
        %7581 = vadd.xlane.f32.xlu0 %v7580
        %v7582 = vpop.xlane.xlu0 %7581
        %v7583 = vadd.f32 %v7529, %v7531
        %7584 = vadd.xlane.f32.xlu0 %v7583
        %v7585 = vpop.xlane.xlu0 %7584
        %v7586 = vadd.f32 %v7533, %v7535
        %7587 = vadd.xlane.f32.xlu0 %v7586
        %v7588 = vpop.xlane.xlu0 %7587
        %v7589 = vadd.f32 %v7537, %v7539
        %7590 = vadd.xlane.f32.xlu0 %v7589
        %v7591 = vpop.xlane.xlu0 %7590
        %v7592 = vadd.f32 %v7541, %v7543
        %7593 = vadd.xlane.f32.xlu0 %v7592
        %v7594 = vpop.xlane.xlu0 %7593
        %v7595 = vadd.f32 %v7545, %v7547
        %7596 = vadd.xlane.f32.xlu0 %v7595
        %v7597 = vpop.xlane.xlu0 %7596
        %v7598 = vadd.f32 %v7549, %v7551
        %7599 = vadd.xlane.f32.xlu0 %v7598
        %v7600 = vpop.xlane.xlu0 %7599
        %v7601 = vadd.f32 %v7553, %v7555
        %7602 = vadd.xlane.f32.xlu0 %v7601
        %v7603 = vpop.xlane.xlu0 %7602
        %v7604 = vrcp.pop %v7558
        %v7605 = vrcp.pop %v7561
        %v7606 = vrcp.pop %v7564
        %v7607 = vrcp.pop %v7567
        %v7608 = vrcp.pop %v7570
        %v7609 = vrcp.pop %v7573
        %v7610 = vrcp.pop %v7576
        %v7611 = vrcp.pop %v7579
        %v7612 = vrcp.pop %v7582
        %v7613 = vrcp.pop %v7585
        %v7614 = vrcp.pop %v7588
        %v7615 = vrcp.pop %v7591
        %v7616 = vrcp.pop %v7594
        %v7617 = vrcp.pop %v7597
        %v7618 = vrcp.pop %v7600
        %v7619 = vrcp.pop %v7603
        %v7620 = vmul.f32 %v7493, %v7604
        %v7621 = vmul.f32 %v7495, %v7604
        %v7622 = vmul.f32 %v7497, %v7605
        %v7623 = vmul.f32 %v7499, %v7605
        %v7624 = vmul.f32 %v7501, %v7606
        %v7625 = vmul.f32 %v7503, %v7606
        %v7626 = vmul.f32 %v7505, %v7607
        %v7627 = vmul.f32 %v7507, %v7607
        %v7628 = vmul.f32 %v7509, %v7608
        %v7629 = vmul.f32 %v7511, %v7608
        %v7630 = vmul.f32 %v7513, %v7609
        %v7631 = vmul.f32 %v7515, %v7609
        %v7632 = vmul.f32 %v7517, %v7610
        %v7633 = vmul.f32 %v7519, %v7610
        %v7634 = vmul.f32 %v7521, %v7611
        %v7635 = vmul.f32 %v7523, %v7611
        %v7636 = vmul.f32 %v7525, %v7612
        %v7637 = vmul.f32 %v7527, %v7612
        %v7638 = vmul.f32 %v7529, %v7613
        %v7639 = vmul.f32 %v7531, %v7613
        %v7640 = vmul.f32 %v7533, %v7614
        %v7641 = vmul.f32 %v7535, %v7614
        %v7642 = vmul.f32 %v7537, %v7615
        %v7643 = vmul.f32 %v7539, %v7615
        %v7644 = vmul.f32 %v7541, %v7616
        %v7645 = vmul.f32 %v7543, %v7616
        %v7646 = vmul.f32 %v7545, %v7617
        %v7647 = vmul.f32 %v7547, %v7617
        %v7648 = vmul.f32 %v7549, %v7618
        %v7649 = vmul.f32 %v7551, %v7618
        %v7650 = vmul.f32 %v7553, %v7619
        %v7651 = vmul.f32 %v7555, %v7619
        %v7652 = vpack.c.bf16 %v7622, %v7620
        %v7653 = vpack.c.bf16 %v7623, %v7621
        %v7654 = vpack.c.bf16 %v7626, %v7624
        %v7655 = vpack.c.bf16 %v7627, %v7625
        %v7656 = vpack.c.bf16 %v7630, %v7628
        %v7657 = vpack.c.bf16 %v7631, %v7629
        %v7658 = vpack.c.bf16 %v7634, %v7632
        %v7659 = vpack.c.bf16 %v7635, %v7633
        %v7660 = vpack.c.bf16 %v7638, %v7636
        %v7661 = vpack.c.bf16 %v7639, %v7637
        %v7662 = vpack.c.bf16 %v7642, %v7640
        %v7663 = vpack.c.bf16 %v7643, %v7641
        %v7664 = vpack.c.bf16 %v7646, %v7644
        %v7665 = vpack.c.bf16 %v7647, %v7645
        %v7666 = vpack.c.bf16 %v7650, %v7648
        %v7667 = vpack.c.bf16 %v7651, %v7649
        %7668 = vmatprep.subr.bf16.mxu0 0
        %7669 = vmatpush1.bf16.msra.mxu0 %v5453
        %7670 = vmatprep.subr.bf16.mxu0 0
        %7671 = vmatpush1.bf16.msra.mxu0 %v5457
        %7672 = vmatprep.subr.bf16.mxu0 0
        %7673 = vmatpush1.bf16.msra.mxu0 %v5461
        %7674 = vmatprep.subr.bf16.mxu0 0
        %7675 = vmatpush1.bf16.msra.mxu0 %v5465
        %7676 = vmatprep.subr.bf16.mxu0 0
        %7677 = vmatpush1.bf16.msra.mxu0 %v5469
        %7678 = vmatprep.subr.bf16.mxu0 0
        %7679 = vmatpush1.bf16.msra.mxu0 %v5473
        %7680 = vmatprep.subr.bf16.mxu0 0
        %7681 = vmatpush1.bf16.msra.mxu0 %v5477
        %7682 = vmatprep.subr.bf16.mxu0 0
        %7683 = vmatpush1.bf16.msra.mxu0 %v5481
        %7684 = vmatprep.subr.bf16.mxu0 0
        %7685 = vmatpush1.bf16.msra.mxu0 %v5485
        %7686 = vmatprep.subr.bf16.mxu0 0
        %7687 = vmatpush1.bf16.msra.mxu0 %v5489
        %7688 = vmatprep.subr.bf16.mxu0 0
        %7689 = vmatpush1.bf16.msra.mxu0 %v5493
        %7690 = vmatprep.subr.bf16.mxu0 0
        %7691 = vmatpush1.bf16.msra.mxu0 %v5497
        %7692 = vmatprep.subr.bf16.mxu0 0
        %7693 = vmatpush1.bf16.msra.mxu0 %v5501
        %7694 = vmatprep.subr.bf16.mxu0 0
        %7695 = vmatpush1.bf16.msra.mxu0 %v5505
        %7696 = vmatprep.subr.bf16.mxu0 0
        %7697 = vmatpush1.bf16.msra.mxu0 %v5509
        %7698 = vmatprep.subr.bf16.mxu0 0
        %7699 = vmatpush1.bf16.msra.mxu0 %v5513
        %7700 = vmatprep.mubr.bf16.mxu0 %v7653
        %7701 = vmatmul.mubr.bf16.gmra.mrb[0].mxu0 %v7652
        %v7702 = vpop.f32.mrb[0].mxu0
        %v7703 = vadd.f32 0.0, %v7702
        %v7704 = vpop.f32.mrb[0].mxu0
        %v7705 = vpop.f32.mrb[0].mxu0
        %v7706 = vadd.f32 0.0, %v7705
        %v7707 = vpop.f32.mrb[0].mxu0
        %7708 = vmatprep.mubr.bf16.mxu0 %v7655
        %7709 = vmatmul.mubr.bf16.gmra.mrb[0].mxu0 %v7654
        %v7710 = vpop.f32.mrb[0].mxu0
        %v7711 = vadd.f32 0.0, %v7710
        %v7712 = vpop.f32.mrb[0].mxu0
        %v7713 = vpop.f32.mrb[0].mxu0
        %v7714 = vadd.f32 0.0, %v7713
        %v7715 = vpop.f32.mrb[0].mxu0
        %7716 = vmatprep.mubr.bf16.mxu0 %v7657
        %7717 = vmatmul.mubr.bf16.gmra.mrb[0].mxu0 %v7656
        %v7718 = vpop.f32.mrb[0].mxu0
        %v7719 = vadd.f32 0.0, %v7718
        %v7720 = vpop.f32.mrb[0].mxu0
        %v7721 = vpop.f32.mrb[0].mxu0
        %v7722 = vadd.f32 0.0, %v7721
        %v7723 = vpop.f32.mrb[0].mxu0
        %7724 = vmatprep.mubr.bf16.mxu0 %v7659
        %7725 = vmatmul.mubr.bf16.gmra.mrb[0].mxu0 %v7658
        %v7726 = vpop.f32.mrb[0].mxu0
        %v7727 = vadd.f32 0.0, %v7726
        %v7728 = vpop.f32.mrb[0].mxu0
        %v7729 = vpop.f32.mrb[0].mxu0
        %v7730 = vadd.f32 0.0, %v7729
        %v7731 = vpop.f32.mrb[0].mxu0
        %7732 = vmatprep.mubr.bf16.mxu0 %v7661
        %7733 = vmatmul.mubr.bf16.gmra.mrb[0].mxu0 %v7660
        %v7734 = vpop.f32.mrb[0].mxu0
        %v7735 = vadd.f32 0.0, %v7734
        %v7736 = vpop.f32.mrb[0].mxu0
        %v7737 = vpop.f32.mrb[0].mxu0
        %v7738 = vadd.f32 0.0, %v7737
        %v7739 = vpop.f32.mrb[0].mxu0
        %7740 = vmatprep.mubr.bf16.mxu0 %v7663
        %7741 = vmatmul.mubr.bf16.gmra.mrb[0].mxu0 %v7662
        %v7742 = vpop.f32.mrb[0].mxu0
        %v7743 = vadd.f32 0.0, %v7742
        %v7744 = vpop.f32.mrb[0].mxu0
        %v7745 = vpop.f32.mrb[0].mxu0
        %v7746 = vadd.f32 0.0, %v7745
        %v7747 = vpop.f32.mrb[0].mxu0
        %7748 = vmatprep.mubr.bf16.mxu0 %v7665
        %7749 = vmatmul.mubr.bf16.gmra.mrb[0].mxu0 %v7664
        %v7750 = vpop.f32.mrb[0].mxu0
        %v7751 = vadd.f32 0.0, %v7750
        %v7752 = vpop.f32.mrb[0].mxu0
        %v7753 = vpop.f32.mrb[0].mxu0
        %v7754 = vadd.f32 0.0, %v7753
        %v7755 = vpop.f32.mrb[0].mxu0
        %7756 = vmatprep.mubr.bf16.mxu0 %v7667
        %7757 = vmatmul.mubr.bf16.gmra.mrb[0].mxu0 %v7666
        %v7758 = vpop.f32.mrb[0].mxu0
        %v7759 = vadd.f32 0.0, %v7758
        %v7760 = vpop.f32.mrb[0].mxu0
        %v7761 = vpop.f32.mrb[0].mxu0
        %v7762 = vadd.f32 0.0, %v7761
        %v7763 = vpop.f32.mrb[0].mxu0
        %7764 = vdwg.mxu0
        %v7765 = vpack.c.bf16 %v7706, %v7703
        %v7766 = vpack.c.bf16 %v7714, %v7711
        %v7767 = vpack.c.bf16 %v7722, %v7719
        %v7768 = vpack.c.bf16 %v7730, %v7727
        %v7769 = vpack.c.bf16 %v7738, %v7735
        %v7770 = vpack.c.bf16 %v7746, %v7743
        %v7771 = vpack.c.bf16 %v7754, %v7751
        %v7772 = vpack.c.bf16 %v7762, %v7759
        %v7773 = vld [vmem:[#allocation11 + $0x200] sm:$0xff]
        %v7774 = vld [vmem:[#allocation11 + $0x208] sm:$0xff]
        %v7775 = vld [vmem:[#allocation11 + $0x210] sm:$0xff]
        %v7776 = vld [vmem:[#allocation11 + $0x218] sm:$0xff]
        %v7777 = vld [vmem:[#allocation11 + $0x220] sm:$0xff]
        %v7778 = vld [vmem:[#allocation11 + $0x228] sm:$0xff]
        %v7779 = vld [vmem:[#allocation11 + $0x230] sm:$0xff]
        %v7780 = vld [vmem:[#allocation11 + $0x238] sm:$0xff]
        %v7781 = vld [vmem:[#allocation11 + $0x240] sm:$0xff]
        %v7782 = vld [vmem:[#allocation11 + $0x248] sm:$0xff]
        %v7783 = vld [vmem:[#allocation11 + $0x250] sm:$0xff]
        %v7784 = vld [vmem:[#allocation11 + $0x258] sm:$0xff]
        %v7785 = vld [vmem:[#allocation11 + $0x260] sm:$0xff]
        %v7786 = vld [vmem:[#allocation11 + $0x268] sm:$0xff]
        %v7787 = vld [vmem:[#allocation11 + $0x270] sm:$0xff]
        %v7788 = vld [vmem:[#allocation11 + $0x278] sm:$0xff]
        %v7789 = vld [vmem:[#allocation11 + $0x280] sm:$0xff]
        %v7790 = vld [vmem:[#allocation11 + $0x288] sm:$0xff]
        %v7791 = vld [vmem:[#allocation11 + $0x290] sm:$0xff]
        %v7792 = vld [vmem:[#allocation11 + $0x298] sm:$0xff]
        %v7793 = vld [vmem:[#allocation11 + $0x2a0] sm:$0xff]
        %v7794 = vld [vmem:[#allocation11 + $0x2a8] sm:$0xff]
        %v7795 = vld [vmem:[#allocation11 + $0x2b0] sm:$0xff]
        %v7796 = vld [vmem:[#allocation11 + $0x2b8] sm:$0xff]
        %v7797 = vld [vmem:[#allocation11 + $0x2c0] sm:$0xff]
        %v7798 = vld [vmem:[#allocation11 + $0x2c8] sm:$0xff]
        %v7799 = vld [vmem:[#allocation11 + $0x2d0] sm:$0xff]
        %v7800 = vld [vmem:[#allocation11 + $0x2d8] sm:$0xff]
        %v7801 = vld [vmem:[#allocation11 + $0x2e0] sm:$0xff]
        %v7802 = vld [vmem:[#allocation11 + $0x2e8] sm:$0xff]
        %v7803 = vld [vmem:[#allocation11 + $0x2f0] sm:$0xff]
        %v7804 = vld [vmem:[#allocation11 + $0x2f8] sm:$0xff]
        %v7837 = vunpack.c.l.b16 %v7773
        %v7838 = vunpack.c.h.b16 %v7773
        %v7839 = vunpack.c.l.b16 %v7774
        %v7840 = vunpack.c.h.b16 %v7774
        %v7841 = vunpack.c.l.b16 %v7775
        %v7842 = vunpack.c.h.b16 %v7775
        %v7843 = vunpack.c.l.b16 %v7776
        %v7844 = vunpack.c.h.b16 %v7776
        %v7845 = vunpack.c.l.b16 %v7777
        %v7846 = vunpack.c.h.b16 %v7777
        %v7847 = vunpack.c.l.b16 %v7778
        %v7848 = vunpack.c.h.b16 %v7778
        %v7849 = vunpack.c.l.b16 %v7779
        %v7850 = vunpack.c.h.b16 %v7779
        %v7851 = vunpack.c.l.b16 %v7780
        %v7852 = vunpack.c.h.b16 %v7780
        %v7853 = vunpack.c.l.b16 %v7781
        %v7854 = vunpack.c.h.b16 %v7781
        %v7855 = vunpack.c.l.b16 %v7782
        %v7856 = vunpack.c.h.b16 %v7782
        %v7857 = vunpack.c.l.b16 %v7783
        %v7858 = vunpack.c.h.b16 %v7783
        %v7859 = vunpack.c.l.b16 %v7784
        %v7860 = vunpack.c.h.b16 %v7784
        %v7861 = vunpack.c.l.b16 %v7785
        %v7862 = vunpack.c.h.b16 %v7785
        %v7863 = vunpack.c.l.b16 %v7786
        %v7864 = vunpack.c.h.b16 %v7786
        %v7865 = vunpack.c.l.b16 %v7787
        %v7866 = vunpack.c.h.b16 %v7787
        %v7867 = vunpack.c.l.b16 %v7788
        %v7868 = vunpack.c.h.b16 %v7788
        %v7869 = vunpack.c.l.b16 %v7789
        %v7870 = vunpack.c.h.b16 %v7789
        %v7871 = vunpack.c.l.b16 %v7790
        %v7872 = vunpack.c.h.b16 %v7790
        %v7873 = vunpack.c.l.b16 %v7791
        %v7874 = vunpack.c.h.b16 %v7791
        %v7875 = vunpack.c.l.b16 %v7792
        %v7876 = vunpack.c.h.b16 %v7792
        %v7877 = vunpack.c.l.b16 %v7793
        %v7878 = vunpack.c.h.b16 %v7793
        %v7879 = vunpack.c.l.b16 %v7794
        %v7880 = vunpack.c.h.b16 %v7794
        %v7881 = vunpack.c.l.b16 %v7795
        %v7882 = vunpack.c.h.b16 %v7795
        %v7883 = vunpack.c.l.b16 %v7796
        %v7884 = vunpack.c.h.b16 %v7796
        %v7885 = vunpack.c.l.b16 %v7797
        %v7886 = vunpack.c.h.b16 %v7797
        %v7887 = vunpack.c.l.b16 %v7798
        %v7888 = vunpack.c.h.b16 %v7798
        %v7889 = vunpack.c.l.b16 %v7799
        %v7890 = vunpack.c.h.b16 %v7799
        %v7891 = vunpack.c.l.b16 %v7800
        %v7892 = vunpack.c.h.b16 %v7800
        %v7893 = vunpack.c.l.b16 %v7801
        %v7894 = vunpack.c.h.b16 %v7801
        %v7895 = vunpack.c.l.b16 %v7802
        %v7896 = vunpack.c.h.b16 %v7802
        %v7897 = vunpack.c.l.b16 %v7803
        %v7898 = vunpack.c.h.b16 %v7803
        %v7899 = vunpack.c.l.b16 %v7804
        %v7900 = vunpack.c.h.b16 %v7804
        %v7901 = vpack.c.b16 %v7841, %v7837
        %v7902 = vpack.c.b16 %v7842, %v7838
        %v7903 = vpack.c.b16 %v7843, %v7839
        %v7904 = vpack.c.b16 %v7844, %v7840
        %v7905 = vpack.c.b16 %v7849, %v7845
        %v7906 = vpack.c.b16 %v7850, %v7846
        %v7907 = vpack.c.b16 %v7851, %v7847
        %v7908 = vpack.c.b16 %v7852, %v7848
        %v7909 = vpack.c.b16 %v7857, %v7853
        %v7910 = vpack.c.b16 %v7858, %v7854
        %v7911 = vpack.c.b16 %v7859, %v7855
        %v7912 = vpack.c.b16 %v7860, %v7856
        %v7913 = vpack.c.b16 %v7865, %v7861
        %v7914 = vpack.c.b16 %v7866, %v7862
        %v7915 = vpack.c.b16 %v7867, %v7863
        %v7916 = vpack.c.b16 %v7868, %v7864
        %v7917 = vpack.c.b16 %v7873, %v7869
        %v7918 = vpack.c.b16 %v7874, %v7870
        %v7919 = vpack.c.b16 %v7875, %v7871
        %v7920 = vpack.c.b16 %v7876, %v7872
        %v7921 = vpack.c.b16 %v7881, %v7877
        %v7922 = vpack.c.b16 %v7882, %v7878
        %v7923 = vpack.c.b16 %v7883, %v7879
        %v7924 = vpack.c.b16 %v7884, %v7880
        %v7925 = vpack.c.b16 %v7889, %v7885
        %v7926 = vpack.c.b16 %v7890, %v7886
        %v7927 = vpack.c.b16 %v7891, %v7887
        %v7928 = vpack.c.b16 %v7892, %v7888
        %v7929 = vpack.c.b16 %v7897, %v7893
        %v7930 = vpack.c.b16 %v7898, %v7894
        %v7931 = vpack.c.b16 %v7899, %v7895
        %v7932 = vpack.c.b16 %v7900, %v7896
        %7965 = vmatprep.subr.bf16.mxu0 %v7902
        %7966 = vmatpush1.bf16.msra.mxu0 %v7901
        %7967 = vmatprep.subr.bf16.mxu0 %v7906
        %7968 = vmatpush1.bf16.msra.mxu0 %v7905
        %7969 = vmatprep.subr.bf16.mxu0 %v7910
        %7970 = vmatpush1.bf16.msra.mxu0 %v7909
        %7971 = vmatprep.subr.bf16.mxu0 %v7914
        %7972 = vmatpush1.bf16.msra.mxu0 %v7913
        %7973 = vmatprep.subr.bf16.mxu0 %v7918
        %7974 = vmatpush1.bf16.msra.mxu0 %v7917
        %7975 = vmatprep.subr.bf16.mxu0 %v7922
        %7976 = vmatpush1.bf16.msra.mxu0 %v7921
        %7977 = vmatprep.subr.bf16.mxu0 %v7926
        %7978 = vmatpush1.bf16.msra.mxu0 %v7925
        %7979 = vmatprep.subr.bf16.mxu0 %v7930
        %7980 = vmatpush1.bf16.msra.mxu0 %v7929
        %7981 = vmatprep.subr.bf16.mxu0 0
        %7982 = vmatpush1.bf16.msra.mxu0 0
        %7983 = vmatprep.subr.bf16.mxu0 0
        %7984 = vmatpush1.bf16.msra.mxu0 0
        %7985 = vmatprep.subr.bf16.mxu0 0
        %7986 = vmatpush1.bf16.msra.mxu0 0
        %7987 = vmatprep.subr.bf16.mxu0 0
        %7988 = vmatpush1.bf16.msra.mxu0 0
        %7989 = vmatprep.subr.bf16.mxu0 0
        %7990 = vmatpush1.bf16.msra.mxu0 0
        %7991 = vmatprep.subr.bf16.mxu0 0
        %7992 = vmatpush1.bf16.msra.mxu0 0
        %7993 = vmatprep.subr.bf16.mxu0 0
        %7994 = vmatpush1.bf16.msra.mxu0 0
        %7995 = vmatprep.subr.bf16.mxu0 0
        %7996 = vmatpush1.bf16.msra.mxu0 0
        %7997 = vmatprep.mubr.bf16.mxu0 0
        %7998 = vmatmul.mubr.bf16.gmra.mrb[0].mxu0 %v7765
        %v7999 = vpop.f32.mrb[0].mxu0
        %v8000 = vadd.f32 0.0, %v7999
        %v8001 = vpop.f32.mrb[0].mxu0
        %v8002 = vadd.f32 0.0, %v8001
        %v8003 = vpop.f32.mrb[0].mxu0
        %v8004 = vadd.f32 0.0, %v8003
        %v8005 = vpop.f32.mrb[0].mxu0
        %v8006 = vadd.f32 0.0, %v8005
        %8007 = vmatprep.mubr.bf16.mxu0 0
        %8008 = vmatmul.mubr.bf16.gmra.mrb[0].mxu0 %v7766
        %v8009 = vpop.f32.mrb[0].mxu0
        %v8010 = vadd.f32 0.0, %v8009
        %v8011 = vpop.f32.mrb[0].mxu0
        %v8012 = vadd.f32 0.0, %v8011
        %v8013 = vpop.f32.mrb[0].mxu0
        %v8014 = vadd.f32 0.0, %v8013
        %v8015 = vpop.f32.mrb[0].mxu0
        %v8016 = vadd.f32 0.0, %v8015
        %8017 = vmatprep.mubr.bf16.mxu0 0
        %8018 = vmatmul.mubr.bf16.gmra.mrb[0].mxu0 %v7767
        %v8019 = vpop.f32.mrb[0].mxu0
        %v8020 = vadd.f32 0.0, %v8019
        %v8021 = vpop.f32.mrb[0].mxu0
        %v8022 = vadd.f32 0.0, %v8021
        %v8023 = vpop.f32.mrb[0].mxu0
        %v8024 = vadd.f32 0.0, %v8023
        %v8025 = vpop.f32.mrb[0].mxu0
        %v8026 = vadd.f32 0.0, %v8025
        %8027 = vmatprep.mubr.bf16.mxu0 0
        %8028 = vmatmul.mubr.bf16.gmra.mrb[0].mxu0 %v7768
        %v8029 = vpop.f32.mrb[0].mxu0
        %v8030 = vadd.f32 0.0, %v8029
        %v8031 = vpop.f32.mrb[0].mxu0
        %v8032 = vadd.f32 0.0, %v8031
        %v8033 = vpop.f32.mrb[0].mxu0
        %v8034 = vadd.f32 0.0, %v8033
        %v8035 = vpop.f32.mrb[0].mxu0
        %v8036 = vadd.f32 0.0, %v8035
        %8037 = vmatprep.mubr.bf16.mxu0 0
        %8038 = vmatmul.mubr.bf16.gmra.mrb[0].mxu0 %v7769
        %v8039 = vpop.f32.mrb[0].mxu0
        %v8040 = vadd.f32 0.0, %v8039
        %v8041 = vpop.f32.mrb[0].mxu0
        %v8042 = vadd.f32 0.0, %v8041
        %v8043 = vpop.f32.mrb[0].mxu0
        %v8044 = vadd.f32 0.0, %v8043
        %v8045 = vpop.f32.mrb[0].mxu0
        %v8046 = vadd.f32 0.0, %v8045
        %8047 = vmatprep.mubr.bf16.mxu0 0
        %8048 = vmatmul.mubr.bf16.gmra.mrb[0].mxu0 %v7770
        %v8049 = vpop.f32.mrb[0].mxu0
        %v8050 = vadd.f32 0.0, %v8049
        %v8051 = vpop.f32.mrb[0].mxu0
        %v8052 = vadd.f32 0.0, %v8051
        %v8053 = vpop.f32.mrb[0].mxu0
        %v8054 = vadd.f32 0.0, %v8053
        %v8055 = vpop.f32.mrb[0].mxu0
        %v8056 = vadd.f32 0.0, %v8055
        %8057 = vmatprep.mubr.bf16.mxu0 0
        %8058 = vmatmul.mubr.bf16.gmra.mrb[0].mxu0 %v7771
        %v8059 = vpop.f32.mrb[0].mxu0
        %v8060 = vadd.f32 0.0, %v8059
        %v8061 = vpop.f32.mrb[0].mxu0
        %v8062 = vadd.f32 0.0, %v8061
        %v8063 = vpop.f32.mrb[0].mxu0
        %v8064 = vadd.f32 0.0, %v8063
        %v8065 = vpop.f32.mrb[0].mxu0
        %v8066 = vadd.f32 0.0, %v8065
        %8067 = vmatprep.mubr.bf16.mxu0 0
        %8068 = vmatmul.mubr.bf16.gmra.mrb[0].mxu0 %v7772
        %v8069 = vpop.f32.mrb[0].mxu0
        %v8070 = vadd.f32 0.0, %v8069
        %v8071 = vpop.f32.mrb[0].mxu0
        %v8072 = vadd.f32 0.0, %v8071
        %v8073 = vpop.f32.mrb[0].mxu0
        %v8074 = vadd.f32 0.0, %v8073
        %v8075 = vpop.f32.mrb[0].mxu0
        %v8076 = vadd.f32 0.0, %v8075
        %8077 = vdwg.mxu0
        %8078 = vmatprep.subr.bf16.mxu0 %v7904
        %8079 = vmatpush1.bf16.msra.mxu0 %v7903
        %8080 = vmatprep.subr.bf16.mxu0 %v7908
        %8081 = vmatpush1.bf16.msra.mxu0 %v7907
        %8082 = vmatprep.subr.bf16.mxu0 %v7912
        %8083 = vmatpush1.bf16.msra.mxu0 %v7911
        %8084 = vmatprep.subr.bf16.mxu0 %v7916
        %8085 = vmatpush1.bf16.msra.mxu0 %v7915
        %8086 = vmatprep.subr.bf16.mxu0 %v7920
        %8087 = vmatpush1.bf16.msra.mxu0 %v7919
        %8088 = vmatprep.subr.bf16.mxu0 %v7924
        %8089 = vmatpush1.bf16.msra.mxu0 %v7923
        %8090 = vmatprep.subr.bf16.mxu0 %v7928
        %8091 = vmatpush1.bf16.msra.mxu0 %v7927
        %8092 = vmatprep.subr.bf16.mxu0 %v7932
        %8093 = vmatpush1.bf16.msra.mxu0 %v7931
        %8094 = vmatprep.subr.bf16.mxu0 0
        %8095 = vmatpush1.bf16.msra.mxu0 0
        %8096 = vmatprep.subr.bf16.mxu0 0
        %8097 = vmatpush1.bf16.msra.mxu0 0
        %8098 = vmatprep.subr.bf16.mxu0 0
        %8099 = vmatpush1.bf16.msra.mxu0 0
        %8100 = vmatprep.subr.bf16.mxu0 0
        %8101 = vmatpush1.bf16.msra.mxu0 0
        %8102 = vmatprep.subr.bf16.mxu0 0
        %8103 = vmatpush1.bf16.msra.mxu0 0
        %8104 = vmatprep.subr.bf16.mxu0 0
        %8105 = vmatpush1.bf16.msra.mxu0 0
        %8106 = vmatprep.subr.bf16.mxu0 0
        %8107 = vmatpush1.bf16.msra.mxu0 0
        %8108 = vmatprep.subr.bf16.mxu0 0
        %8109 = vmatpush1.bf16.msra.mxu0 0
        %8110 = vmatprep.mubr.bf16.mxu0 0
        %8111 = vmatmul.mubr.bf16.gmra.mrb[0].mxu0 %v7765
        %v8112 = vpop.f32.mrb[0].mxu0
        %v8113 = vadd.f32 0.0, %v8112
        %v8114 = vpop.f32.mrb[0].mxu0
        %v8115 = vadd.f32 0.0, %v8114
        %v8116 = vpop.f32.mrb[0].mxu0
        %v8117 = vadd.f32 0.0, %v8116
        %v8118 = vpop.f32.mrb[0].mxu0
        %v8119 = vadd.f32 0.0, %v8118
        %8120 = vmatprep.mubr.bf16.mxu0 0
        %8121 = vmatmul.mubr.bf16.gmra.mrb[0].mxu0 %v7766
        %v8122 = vpop.f32.mrb[0].mxu0
        %v8123 = vadd.f32 0.0, %v8122
        %v8124 = vpop.f32.mrb[0].mxu0
        %v8125 = vadd.f32 0.0, %v8124
        %v8126 = vpop.f32.mrb[0].mxu0
        %v8127 = vadd.f32 0.0, %v8126
        %v8128 = vpop.f32.mrb[0].mxu0
        %v8129 = vadd.f32 0.0, %v8128
        %8130 = vmatprep.mubr.bf16.mxu0 0
        %8131 = vmatmul.mubr.bf16.gmra.mrb[0].mxu0 %v7767
        %v8132 = vpop.f32.mrb[0].mxu0
        %v8133 = vadd.f32 0.0, %v8132
        %v8134 = vpop.f32.mrb[0].mxu0
        %v8135 = vadd.f32 0.0, %v8134
        %v8136 = vpop.f32.mrb[0].mxu0
        %v8137 = vadd.f32 0.0, %v8136
        %v8138 = vpop.f32.mrb[0].mxu0
        %v8139 = vadd.f32 0.0, %v8138
        %8140 = vmatprep.mubr.bf16.mxu0 0
        %8141 = vmatmul.mubr.bf16.gmra.mrb[0].mxu0 %v7768
        %v8142 = vpop.f32.mrb[0].mxu0
        %v8143 = vadd.f32 0.0, %v8142
        %v8144 = vpop.f32.mrb[0].mxu0
        %v8145 = vadd.f32 0.0, %v8144
        %v8146 = vpop.f32.mrb[0].mxu0
        %v8147 = vadd.f32 0.0, %v8146
        %v8148 = vpop.f32.mrb[0].mxu0
        %v8149 = vadd.f32 0.0, %v8148
        %8150 = vmatprep.mubr.bf16.mxu0 0
        %8151 = vmatmul.mubr.bf16.gmra.mrb[0].mxu0 %v7769
        %v8152 = vpop.f32.mrb[0].mxu0
        %v8153 = vadd.f32 0.0, %v8152
        %v8154 = vpop.f32.mrb[0].mxu0
        %v8155 = vadd.f32 0.0, %v8154
        %v8156 = vpop.f32.mrb[0].mxu0
        %v8157 = vadd.f32 0.0, %v8156
        %v8158 = vpop.f32.mrb[0].mxu0
        %v8159 = vadd.f32 0.0, %v8158
        %8160 = vmatprep.mubr.bf16.mxu0 0
        %8161 = vmatmul.mubr.bf16.gmra.mrb[0].mxu0 %v7770
        %v8162 = vpop.f32.mrb[0].mxu0
        %v8163 = vadd.f32 0.0, %v8162
        %v8164 = vpop.f32.mrb[0].mxu0
        %v8165 = vadd.f32 0.0, %v8164
        %v8166 = vpop.f32.mrb[0].mxu0
        %v8167 = vadd.f32 0.0, %v8166
        %v8168 = vpop.f32.mrb[0].mxu0
        %v8169 = vadd.f32 0.0, %v8168
        %8170 = vmatprep.mubr.bf16.mxu0 0
        %8171 = vmatmul.mubr.bf16.gmra.mrb[0].mxu0 %v7771
        %v8172 = vpop.f32.mrb[0].mxu0
        %v8173 = vadd.f32 0.0, %v8172
        %v8174 = vpop.f32.mrb[0].mxu0
        %v8175 = vadd.f32 0.0, %v8174
        %v8176 = vpop.f32.mrb[0].mxu0
        %v8177 = vadd.f32 0.0, %v8176
        %v8178 = vpop.f32.mrb[0].mxu0
        %v8179 = vadd.f32 0.0, %v8178
        %8180 = vmatprep.mubr.bf16.mxu0 0
        %8181 = vmatmul.mubr.bf16.gmra.mrb[0].mxu0 %v7772
        %v8182 = vpop.f32.mrb[0].mxu0
        %v8183 = vadd.f32 0.0, %v8182
        %v8184 = vpop.f32.mrb[0].mxu0
        %v8185 = vadd.f32 0.0, %v8184
        %v8186 = vpop.f32.mrb[0].mxu0
        %v8187 = vadd.f32 0.0, %v8186
        %v8188 = vpop.f32.mrb[0].mxu0
        %v8189 = vadd.f32 0.0, %v8188
        %8190 = vdwg.mxu0
        %v8191 = vadd.f32 %v7108, %v8000
        %v8192 = vadd.f32 %v7110, %v8002
        %v8193 = vadd.f32 %v7221, %v8113
        %v8194 = vadd.f32 %v7223, %v8115
        %v8195 = vadd.f32 %v7112, %v8004
        %v8196 = vadd.f32 %v7114, %v8006
        %v8197 = vadd.f32 %v7225, %v8117
        %v8198 = vadd.f32 %v7227, %v8119
        %v8199 = vadd.f32 %v7118, %v8010
        %v8200 = vadd.f32 %v7120, %v8012
        %v8201 = vadd.f32 %v7231, %v8123
        %v8202 = vadd.f32 %v7233, %v8125
        %v8203 = vadd.f32 %v7122, %v8014
        %v8204 = vadd.f32 %v7124, %v8016
        %v8205 = vadd.f32 %v7235, %v8127
        %v8206 = vadd.f32 %v7237, %v8129
        %v8207 = vadd.f32 %v7128, %v8020
        %v8208 = vadd.f32 %v7130, %v8022
        %v8209 = vadd.f32 %v7241, %v8133
        %v8210 = vadd.f32 %v7243, %v8135
        %v8211 = vadd.f32 %v7132, %v8024
        %v8212 = vadd.f32 %v7134, %v8026
        %v8213 = vadd.f32 %v7245, %v8137
        %v8214 = vadd.f32 %v7247, %v8139
        %v8215 = vadd.f32 %v7138, %v8030
        %v8216 = vadd.f32 %v7140, %v8032
        %v8217 = vadd.f32 %v7251, %v8143
        %v8218 = vadd.f32 %v7253, %v8145
        %v8219 = vadd.f32 %v7142, %v8034
        %v8220 = vadd.f32 %v7144, %v8036
        %v8221 = vadd.f32 %v7255, %v8147
        %v8222 = vadd.f32 %v7257, %v8149
        %v8223 = vadd.f32 %v7148, %v8040
        %v8224 = vadd.f32 %v7150, %v8042
        %v8225 = vadd.f32 %v7261, %v8153
        %v8226 = vadd.f32 %v7263, %v8155
        %v8227 = vadd.f32 %v7152, %v8044
        %v8228 = vadd.f32 %v7154, %v8046
        %v8229 = vadd.f32 %v7265, %v8157
        %v8230 = vadd.f32 %v7267, %v8159
        %v8231 = vadd.f32 %v7158, %v8050
        %v8232 = vadd.f32 %v7160, %v8052
        %v8233 = vadd.f32 %v7271, %v8163
        %v8234 = vadd.f32 %v7273, %v8165
        %v8235 = vadd.f32 %v7162, %v8054
        %v8236 = vadd.f32 %v7164, %v8056
        %v8237 = vadd.f32 %v7275, %v8167
        %v8238 = vadd.f32 %v7277, %v8169
        %v8239 = vadd.f32 %v7168, %v8060
        %v8240 = vadd.f32 %v7170, %v8062
        %v8241 = vadd.f32 %v7281, %v8173
        %v8242 = vadd.f32 %v7283, %v8175
        %v8243 = vadd.f32 %v7172, %v8064
        %v8244 = vadd.f32 %v7174, %v8066
        %v8245 = vadd.f32 %v7285, %v8177
        %v8246 = vadd.f32 %v7287, %v8179
        %v8247 = vadd.f32 %v7178, %v8070
        %v8248 = vadd.f32 %v7180, %v8072
        %v8249 = vadd.f32 %v7291, %v8183
        %v8250 = vadd.f32 %v7293, %v8185
        %v8251 = vadd.f32 %v7182, %v8074
        %v8252 = vadd.f32 %v7184, %v8076
        %v8253 = vadd.f32 %v7295, %v8187
        %v8254 = vadd.f32 %v7297, %v8189
        %8255 = vmatprep.subr.bf16.mxu0 0
        %8256 = vmatpush1.bf16.xpose.msra.mxu0 %v3828
        %8257 = vmatprep.subr.bf16.mxu0 0
        %8258 = vmatpush1.bf16.xpose.msra.mxu0 %v3832
        %8259 = vmatprep.subr.bf16.mxu0 0
        %8260 = vmatpush1.bf16.xpose.msra.mxu0 %v3836
        %8261 = vmatprep.subr.bf16.mxu0 0
        %8262 = vmatpush1.bf16.xpose.msra.mxu0 %v3840
        %8263 = vmatprep.subr.bf16.mxu0 0
        %8264 = vmatpush1.bf16.xpose.msra.mxu0 %v3844
        %8265 = vmatprep.subr.bf16.mxu0 0
        %8266 = vmatpush1.bf16.xpose.msra.mxu0 %v3848
        %8267 = vmatprep.subr.bf16.mxu0 0
        %8268 = vmatpush1.bf16.xpose.msra.mxu0 %v3852
        %8269 = vmatprep.subr.bf16.mxu0 0
        %8270 = vmatpush1.bf16.xpose.msra.mxu0 %v3856
        %8271 = vmatprep.subr.bf16.mxu0 0
        %8272 = vmatpush1.bf16.xpose.msra.mxu0 %v3860
        %8273 = vmatprep.subr.bf16.mxu0 0
        %8274 = vmatpush1.bf16.xpose.msra.mxu0 %v3864
        %8275 = vmatprep.subr.bf16.mxu0 0
        %8276 = vmatpush1.bf16.xpose.msra.mxu0 %v3868
        %8277 = vmatprep.subr.bf16.mxu0 0
        %8278 = vmatpush1.bf16.xpose.msra.mxu0 %v3872
        %8279 = vmatprep.subr.bf16.mxu0 0
        %8280 = vmatpush1.bf16.xpose.msra.mxu0 %v3876
        %8281 = vmatprep.subr.bf16.mxu0 0
        %8282 = vmatpush1.bf16.xpose.msra.mxu0 %v3880
        %8283 = vmatprep.subr.bf16.mxu0 0
        %8284 = vmatpush1.bf16.xpose.msra.mxu0 %v3884
        %8285 = vmatprep.subr.bf16.mxu0 0
        %8286 = vmatpush1.bf16.xpose.msra.mxu0 %v3888
        %8287 = vmatprep.mubr.bf16.mxu0 0
        %8288 = vmatmul.mubr.bf16.gmra.mrb[0].mxu0 %v1914
        %v8289 = vpop.f32.mrb[0].mxu0
        %v8290 = vadd.f32 0.0, %v8289
        %v8291 = vpop.f32.mrb[0].mxu0
        %v8292 = vadd.f32 0.0, %v8291
        %v8293 = vpop.f32.mrb[0].mxu0
        %v8294 = vadd.f32 0.0, %v8293
        %v8295 = vpop.f32.mrb[0].mxu0
        %v8296 = vadd.f32 0.0, %v8295
        %8297 = vmatprep.mubr.bf16.mxu0 0
        %8298 = vmatmul.mubr.bf16.gmra.mrb[0].mxu0 %v1918
        %v8299 = vpop.f32.mrb[0].mxu0
        %v8300 = vadd.f32 0.0, %v8299
        %v8301 = vpop.f32.mrb[0].mxu0
        %v8302 = vadd.f32 0.0, %v8301
        %v8303 = vpop.f32.mrb[0].mxu0
        %v8304 = vadd.f32 0.0, %v8303
        %v8305 = vpop.f32.mrb[0].mxu0
        %v8306 = vadd.f32 0.0, %v8305
        %8307 = vmatprep.mubr.bf16.mxu0 0
        %8308 = vmatmul.mubr.bf16.gmra.mrb[0].mxu0 %v1922
        %v8309 = vpop.f32.mrb[0].mxu0
        %v8310 = vadd.f32 0.0, %v8309
        %v8311 = vpop.f32.mrb[0].mxu0
        %v8312 = vadd.f32 0.0, %v8311
        %v8313 = vpop.f32.mrb[0].mxu0
        %v8314 = vadd.f32 0.0, %v8313
        %v8315 = vpop.f32.mrb[0].mxu0
        %v8316 = vadd.f32 0.0, %v8315
        %8317 = vmatprep.mubr.bf16.mxu0 0
        %8318 = vmatmul.mubr.bf16.gmra.mrb[0].mxu0 %v1926
        %v8319 = vpop.f32.mrb[0].mxu0
        %v8320 = vadd.f32 0.0, %v8319
        %v8321 = vpop.f32.mrb[0].mxu0
        %v8322 = vadd.f32 0.0, %v8321
        %v8323 = vpop.f32.mrb[0].mxu0
        %v8324 = vadd.f32 0.0, %v8323
        %v8325 = vpop.f32.mrb[0].mxu0
        %v8326 = vadd.f32 0.0, %v8325
        %8327 = vmatprep.mubr.bf16.mxu0 0
        %8328 = vmatmul.mubr.bf16.gmra.mrb[0].mxu0 %v1930
        %v8329 = vpop.f32.mrb[0].mxu0
        %v8330 = vadd.f32 0.0, %v8329
        %v8331 = vpop.f32.mrb[0].mxu0
        %v8332 = vadd.f32 0.0, %v8331
        %v8333 = vpop.f32.mrb[0].mxu0
        %v8334 = vadd.f32 0.0, %v8333
        %v8335 = vpop.f32.mrb[0].mxu0
        %v8336 = vadd.f32 0.0, %v8335
        %8337 = vmatprep.mubr.bf16.mxu0 0
        %8338 = vmatmul.mubr.bf16.gmra.mrb[0].mxu0 %v1934
        %v8339 = vpop.f32.mrb[0].mxu0
        %v8340 = vadd.f32 0.0, %v8339
        %v8341 = vpop.f32.mrb[0].mxu0
        %v8342 = vadd.f32 0.0, %v8341
        %v8343 = vpop.f32.mrb[0].mxu0
        %v8344 = vadd.f32 0.0, %v8343
        %v8345 = vpop.f32.mrb[0].mxu0
        %v8346 = vadd.f32 0.0, %v8345
        %8347 = vmatprep.mubr.bf16.mxu0 0
        %8348 = vmatmul.mubr.bf16.gmra.mrb[0].mxu0 %v1938
        %v8349 = vpop.f32.mrb[0].mxu0
        %v8350 = vadd.f32 0.0, %v8349
        %v8351 = vpop.f32.mrb[0].mxu0
        %v8352 = vadd.f32 0.0, %v8351
        %v8353 = vpop.f32.mrb[0].mxu0
        %v8354 = vadd.f32 0.0, %v8353
        %v8355 = vpop.f32.mrb[0].mxu0
        %v8356 = vadd.f32 0.0, %v8355
        %8357 = vmatprep.mubr.bf16.mxu0 0
        %8358 = vmatmul.mubr.bf16.gmra.mrb[0].mxu0 %v1942
        %v8359 = vpop.f32.mrb[0].mxu0
        %v8360 = vadd.f32 0.0, %v8359
        %v8361 = vpop.f32.mrb[0].mxu0
        %v8362 = vadd.f32 0.0, %v8361
        %v8363 = vpop.f32.mrb[0].mxu0
        %v8364 = vadd.f32 0.0, %v8363
        %v8365 = vpop.f32.mrb[0].mxu0
        %v8366 = vadd.f32 0.0, %v8365
        %8367 = vdwg.mxu0
        %v8368 = vmax.f32 %v8290, %v8292
        %8369 = vmax.xlane.f32.xlu0 %v8368
        %v8370 = vpop.xlane.xlu0 %8369
        %v8371 = vmax.f32 %v8294, %v8296
        %8372 = vmax.xlane.f32.xlu0 %v8371
        %v8373 = vpop.xlane.xlu0 %8372
        %v8374 = vmax.f32 %v8300, %v8302
        %8375 = vmax.xlane.f32.xlu0 %v8374
        %v8376 = vpop.xlane.xlu0 %8375
        %v8377 = vmax.f32 %v8304, %v8306
        %8378 = vmax.xlane.f32.xlu0 %v8377
        %v8379 = vpop.xlane.xlu0 %8378
        %v8380 = vmax.f32 %v8310, %v8312
        %8381 = vmax.xlane.f32.xlu0 %v8380
        %v8382 = vpop.xlane.xlu0 %8381
        %v8383 = vmax.f32 %v8314, %v8316
        %8384 = vmax.xlane.f32.xlu0 %v8383
        %v8385 = vpop.xlane.xlu0 %8384
        %v8386 = vmax.f32 %v8320, %v8322
        %8387 = vmax.xlane.f32.xlu0 %v8386
        %v8388 = vpop.xlane.xlu0 %8387
        %v8389 = vmax.f32 %v8324, %v8326
        %8390 = vmax.xlane.f32.xlu0 %v8389
        %v8391 = vpop.xlane.xlu0 %8390
        %v8392 = vmax.f32 %v8330, %v8332
        %8393 = vmax.xlane.f32.xlu0 %v8392
        %v8394 = vpop.xlane.xlu0 %8393
        %v8395 = vmax.f32 %v8334, %v8336
        %8396 = vmax.xlane.f32.xlu0 %v8395
        %v8397 = vpop.xlane.xlu0 %8396
        %v8398 = vmax.f32 %v8340, %v8342
        %8399 = vmax.xlane.f32.xlu0 %v8398
        %v8400 = vpop.xlane.xlu0 %8399
        %v8401 = vmax.f32 %v8344, %v8346
        %8402 = vmax.xlane.f32.xlu0 %v8401
        %v8403 = vpop.xlane.xlu0 %8402
        %v8404 = vmax.f32 %v8350, %v8352
        %8405 = vmax.xlane.f32.xlu0 %v8404
        %v8406 = vpop.xlane.xlu0 %8405
        %v8407 = vmax.f32 %v8354, %v8356
        %8408 = vmax.xlane.f32.xlu0 %v8407
        %v8409 = vpop.xlane.xlu0 %8408
        %v8410 = vmax.f32 %v8360, %v8362
        %8411 = vmax.xlane.f32.xlu0 %v8410
        %v8412 = vpop.xlane.xlu0 %8411
        %v8413 = vmax.f32 %v8364, %v8366
        %8414 = vmax.xlane.f32.xlu0 %v8413
        %v8415 = vpop.xlane.xlu0 %8414
        %v8416 = vsub.f32 %v8290, %v8370
        %v8417 = vsub.f32 %v8292, %v8370
        %v8418 = vsub.f32 %v8294, %v8373
        %v8419 = vsub.f32 %v8296, %v8373
        %v8420 = vsub.f32 %v8300, %v8376
        %v8421 = vsub.f32 %v8302, %v8376
        %v8422 = vsub.f32 %v8304, %v8379
        %v8423 = vsub.f32 %v8306, %v8379
        %v8424 = vsub.f32 %v8310, %v8382
        %v8425 = vsub.f32 %v8312, %v8382
        %v8426 = vsub.f32 %v8314, %v8385
        %v8427 = vsub.f32 %v8316, %v8385
        %v8428 = vsub.f32 %v8320, %v8388
        %v8429 = vsub.f32 %v8322, %v8388
        %v8430 = vsub.f32 %v8324, %v8391
        %v8431 = vsub.f32 %v8326, %v8391
        %v8432 = vsub.f32 %v8330, %v8394
        %v8433 = vsub.f32 %v8332, %v8394
        %v8434 = vsub.f32 %v8334, %v8397
        %v8435 = vsub.f32 %v8336, %v8397
        %v8436 = vsub.f32 %v8340, %v8400
        %v8437 = vsub.f32 %v8342, %v8400
        %v8438 = vsub.f32 %v8344, %v8403
        %v8439 = vsub.f32 %v8346, %v8403
        %v8440 = vsub.f32 %v8350, %v8406
        %v8441 = vsub.f32 %v8352, %v8406
        %v8442 = vsub.f32 %v8354, %v8409
        %v8443 = vsub.f32 %v8356, %v8409
        %v8444 = vsub.f32 %v8360, %v8412
        %v8445 = vsub.f32 %v8362, %v8412
        %v8446 = vsub.f32 %v8364, %v8415
        %v8447 = vsub.f32 %v8366, %v8415
        %v8448 = vmul.f32 %v8416, 1.442695
        %v8449 = vpow.pop %v8448
        %v8450 = vmul.f32 %v8417, 1.442695
        %v8451 = vpow.pop %v8450
        %v8452 = vmul.f32 %v8418, 1.442695
        %v8453 = vpow.pop %v8452
        %v8454 = vmul.f32 %v8419, 1.442695
        %v8455 = vpow.pop %v8454
        %v8456 = vmul.f32 %v8420, 1.442695
        %v8457 = vpow.pop %v8456
        %v8458 = vmul.f32 %v8421, 1.442695
        %v8459 = vpow.pop %v8458
        %v8460 = vmul.f32 %v8422, 1.442695
        %v8461 = vpow.pop %v8460
        %v8462 = vmul.f32 %v8423, 1.442695
        %v8463 = vpow.pop %v8462
        %v8464 = vmul.f32 %v8424, 1.442695
        %v8465 = vpow.pop %v8464
        %v8466 = vmul.f32 %v8425, 1.442695
        %v8467 = vpow.pop %v8466
        %v8468 = vmul.f32 %v8426, 1.442695
        %v8469 = vpow.pop %v8468
        %v8470 = vmul.f32 %v8427, 1.442695
        %v8471 = vpow.pop %v8470
        %v8472 = vmul.f32 %v8428, 1.442695
        %v8473 = vpow.pop %v8472
        %v8474 = vmul.f32 %v8429, 1.442695
        %v8475 = vpow.pop %v8474
        %v8476 = vmul.f32 %v8430, 1.442695
        %v8477 = vpow.pop %v8476
        %v8478 = vmul.f32 %v8431, 1.442695
        %v8479 = vpow.pop %v8478
        %v8480 = vmul.f32 %v8432, 1.442695
        %v8481 = vpow.pop %v8480
        %v8482 = vmul.f32 %v8433, 1.442695
        %v8483 = vpow.pop %v8482
        %v8484 = vmul.f32 %v8434, 1.442695
        %v8485 = vpow.pop %v8484
        %v8486 = vmul.f32 %v8435, 1.442695
        %v8487 = vpow.pop %v8486
        %v8488 = vmul.f32 %v8436, 1.442695
        %v8489 = vpow.pop %v8488
        %v8490 = vmul.f32 %v8437, 1.442695
        %v8491 = vpow.pop %v8490
        %v8492 = vmul.f32 %v8438, 1.442695
        %v8493 = vpow.pop %v8492
        %v8494 = vmul.f32 %v8439, 1.442695
        %v8495 = vpow.pop %v8494
        %v8496 = vmul.f32 %v8440, 1.442695
        %v8497 = vpow.pop %v8496
        %v8498 = vmul.f32 %v8441, 1.442695
        %v8499 = vpow.pop %v8498
        %v8500 = vmul.f32 %v8442, 1.442695
        %v8501 = vpow.pop %v8500
        %v8502 = vmul.f32 %v8443, 1.442695
        %v8503 = vpow.pop %v8502
        %v8504 = vmul.f32 %v8444, 1.442695
        %v8505 = vpow.pop %v8504
        %v8506 = vmul.f32 %v8445, 1.442695
        %v8507 = vpow.pop %v8506
        %v8508 = vmul.f32 %v8446, 1.442695
        %v8509 = vpow.pop %v8508
        %v8510 = vmul.f32 %v8447, 1.442695
        %v8511 = vpow.pop %v8510
        %v8512 = vadd.f32 %v8449, %v8451
        %8513 = vadd.xlane.f32.xlu0 %v8512
        %v8514 = vpop.xlane.xlu0 %8513
        %v8515 = vadd.f32 %v8453, %v8455
        %8516 = vadd.xlane.f32.xlu0 %v8515
        %v8517 = vpop.xlane.xlu0 %8516
        %v8518 = vadd.f32 %v8457, %v8459
        %8519 = vadd.xlane.f32.xlu0 %v8518
        %v8520 = vpop.xlane.xlu0 %8519
        %v8521 = vadd.f32 %v8461, %v8463
        %8522 = vadd.xlane.f32.xlu0 %v8521
        %v8523 = vpop.xlane.xlu0 %8522
        %v8524 = vadd.f32 %v8465, %v8467
        %8525 = vadd.xlane.f32.xlu0 %v8524
        %v8526 = vpop.xlane.xlu0 %8525
        %v8527 = vadd.f32 %v8469, %v8471
        %8528 = vadd.xlane.f32.xlu0 %v8527
        %v8529 = vpop.xlane.xlu0 %8528
        %v8530 = vadd.f32 %v8473, %v8475
        %8531 = vadd.xlane.f32.xlu0 %v8530
        %v8532 = vpop.xlane.xlu0 %8531
        %v8533 = vadd.f32 %v8477, %v8479
        %8534 = vadd.xlane.f32.xlu0 %v8533
        %v8535 = vpop.xlane.xlu0 %8534
        %v8536 = vadd.f32 %v8481, %v8483
        %8537 = vadd.xlane.f32.xlu0 %v8536
        %v8538 = vpop.xlane.xlu0 %8537
        %v8539 = vadd.f32 %v8485, %v8487
        %8540 = vadd.xlane.f32.xlu0 %v8539
        %v8541 = vpop.xlane.xlu0 %8540
        %v8542 = vadd.f32 %v8489, %v8491
        %8543 = vadd.xlane.f32.xlu0 %v8542
        %v8544 = vpop.xlane.xlu0 %8543
        %v8545 = vadd.f32 %v8493, %v8495
        %8546 = vadd.xlane.f32.xlu0 %v8545
        %v8547 = vpop.xlane.xlu0 %8546
        %v8548 = vadd.f32 %v8497, %v8499
        %8549 = vadd.xlane.f32.xlu0 %v8548
        %v8550 = vpop.xlane.xlu0 %8549
        %v8551 = vadd.f32 %v8501, %v8503
        %8552 = vadd.xlane.f32.xlu0 %v8551
        %v8553 = vpop.xlane.xlu0 %8552
        %v8554 = vadd.f32 %v8505, %v8507
        %8555 = vadd.xlane.f32.xlu0 %v8554
        %v8556 = vpop.xlane.xlu0 %8555
        %v8557 = vadd.f32 %v8509, %v8511
        %8558 = vadd.xlane.f32.xlu0 %v8557
        %v8559 = vpop.xlane.xlu0 %8558
        %v8560 = vrcp.pop %v8514
        %v8561 = vrcp.pop %v8517
        %v8562 = vrcp.pop %v8520
        %v8563 = vrcp.pop %v8523
        %v8564 = vrcp.pop %v8526
        %v8565 = vrcp.pop %v8529
        %v8566 = vrcp.pop %v8532
        %v8567 = vrcp.pop %v8535
        %v8568 = vrcp.pop %v8538
        %v8569 = vrcp.pop %v8541
        %v8570 = vrcp.pop %v8544
        %v8571 = vrcp.pop %v8547
        %v8572 = vrcp.pop %v8550
        %v8573 = vrcp.pop %v8553
        %v8574 = vrcp.pop %v8556
        %v8575 = vrcp.pop %v8559
        %v8576 = vmul.f32 %v8449, %v8560
        %v8577 = vmul.f32 %v8451, %v8560
        %v8578 = vmul.f32 %v8453, %v8561
        %v8579 = vmul.f32 %v8455, %v8561
        %v8580 = vmul.f32 %v8457, %v8562
        %v8581 = vmul.f32 %v8459, %v8562
        %v8582 = vmul.f32 %v8461, %v8563
        %v8583 = vmul.f32 %v8463, %v8563
        %v8584 = vmul.f32 %v8465, %v8564
        %v8585 = vmul.f32 %v8467, %v8564
        %v8586 = vmul.f32 %v8469, %v8565
        %v8587 = vmul.f32 %v8471, %v8565
        %v8588 = vmul.f32 %v8473, %v8566
        %v8589 = vmul.f32 %v8475, %v8566
        %v8590 = vmul.f32 %v8477, %v8567
        %v8591 = vmul.f32 %v8479, %v8567
        %v8592 = vmul.f32 %v8481, %v8568
        %v8593 = vmul.f32 %v8483, %v8568
        %v8594 = vmul.f32 %v8485, %v8569
        %v8595 = vmul.f32 %v8487, %v8569
        %v8596 = vmul.f32 %v8489, %v8570
        %v8597 = vmul.f32 %v8491, %v8570
        %v8598 = vmul.f32 %v8493, %v8571
        %v8599 = vmul.f32 %v8495, %v8571
        %v8600 = vmul.f32 %v8497, %v8572
        %v8601 = vmul.f32 %v8499, %v8572
        %v8602 = vmul.f32 %v8501, %v8573
        %v8603 = vmul.f32 %v8503, %v8573
        %v8604 = vmul.f32 %v8505, %v8574
        %v8605 = vmul.f32 %v8507, %v8574
        %v8606 = vmul.f32 %v8509, %v8575
        %v8607 = vmul.f32 %v8511, %v8575
        %v8608 = vpack.c.bf16 %v8578, %v8576
        %v8609 = vpack.c.bf16 %v8579, %v8577
        %v8610 = vpack.c.bf16 %v8582, %v8580
        %v8611 = vpack.c.bf16 %v8583, %v8581
        %v8612 = vpack.c.bf16 %v8586, %v8584
        %v8613 = vpack.c.bf16 %v8587, %v8585
        %v8614 = vpack.c.bf16 %v8590, %v8588
        %v8615 = vpack.c.bf16 %v8591, %v8589
        %v8616 = vpack.c.bf16 %v8594, %v8592
        %v8617 = vpack.c.bf16 %v8595, %v8593
        %v8618 = vpack.c.bf16 %v8598, %v8596
        %v8619 = vpack.c.bf16 %v8599, %v8597
        %v8620 = vpack.c.bf16 %v8602, %v8600
        %v8621 = vpack.c.bf16 %v8603, %v8601
        %v8622 = vpack.c.bf16 %v8606, %v8604
        %v8623 = vpack.c.bf16 %v8607, %v8605
        %8624 = vmatprep.subr.bf16.mxu0 0
        %8625 = vmatpush1.bf16.msra.mxu0 %v5454
        %8626 = vmatprep.subr.bf16.mxu0 0
        %8627 = vmatpush1.bf16.msra.mxu0 %v5458
        %8628 = vmatprep.subr.bf16.mxu0 0
        %8629 = vmatpush1.bf16.msra.mxu0 %v5462
        %8630 = vmatprep.subr.bf16.mxu0 0
        %8631 = vmatpush1.bf16.msra.mxu0 %v5466
        %8632 = vmatprep.subr.bf16.mxu0 0
        %8633 = vmatpush1.bf16.msra.mxu0 %v5470
        %8634 = vmatprep.subr.bf16.mxu0 0
        %8635 = vmatpush1.bf16.msra.mxu0 %v5474
        %8636 = vmatprep.subr.bf16.mxu0 0
        %8637 = vmatpush1.bf16.msra.mxu0 %v5478
        %8638 = vmatprep.subr.bf16.mxu0 0
        %8639 = vmatpush1.bf16.msra.mxu0 %v5482
        %8640 = vmatprep.subr.bf16.mxu0 0
        %8641 = vmatpush1.bf16.msra.mxu0 %v5486
        %8642 = vmatprep.subr.bf16.mxu0 0
        %8643 = vmatpush1.bf16.msra.mxu0 %v5490
        %8644 = vmatprep.subr.bf16.mxu0 0
        %8645 = vmatpush1.bf16.msra.mxu0 %v5494
        %8646 = vmatprep.subr.bf16.mxu0 0
        %8647 = vmatpush1.bf16.msra.mxu0 %v5498
        %8648 = vmatprep.subr.bf16.mxu0 0
        %8649 = vmatpush1.bf16.msra.mxu0 %v5502
        %8650 = vmatprep.subr.bf16.mxu0 0
        %8651 = vmatpush1.bf16.msra.mxu0 %v5506
        %8652 = vmatprep.subr.bf16.mxu0 0
        %8653 = vmatpush1.bf16.msra.mxu0 %v5510
        %8654 = vmatprep.subr.bf16.mxu0 0
        %8655 = vmatpush1.bf16.msra.mxu0 %v5514
        %8656 = vmatprep.mubr.bf16.mxu0 %v8609
        %8657 = vmatmul.mubr.bf16.gmra.mrb[0].mxu0 %v8608
        %v8658 = vpop.f32.mrb[0].mxu0
        %v8659 = vadd.f32 0.0, %v8658
        %v8660 = vpop.f32.mrb[0].mxu0
        %v8661 = vpop.f32.mrb[0].mxu0
        %v8662 = vadd.f32 0.0, %v8661
        %v8663 = vpop.f32.mrb[0].mxu0
        %8664 = vmatprep.mubr.bf16.mxu0 %v8611
        %8665 = vmatmul.mubr.bf16.gmra.mrb[0].mxu0 %v8610
        %v8666 = vpop.f32.mrb[0].mxu0
        %v8667 = vadd.f32 0.0, %v8666
        %v8668 = vpop.f32.mrb[0].mxu0
        %v8669 = vpop.f32.mrb[0].mxu0
        %v8670 = vadd.f32 0.0, %v8669
        %v8671 = vpop.f32.mrb[0].mxu0
        %8672 = vmatprep.mubr.bf16.mxu0 %v8613
        %8673 = vmatmul.mubr.bf16.gmra.mrb[0].mxu0 %v8612
        %v8674 = vpop.f32.mrb[0].mxu0
        %v8675 = vadd.f32 0.0, %v8674
        %v8676 = vpop.f32.mrb[0].mxu0
        %v8677 = vpop.f32.mrb[0].mxu0
        %v8678 = vadd.f32 0.0, %v8677
        %v8679 = vpop.f32.mrb[0].mxu0
        %8680 = vmatprep.mubr.bf16.mxu0 %v8615
        %8681 = vmatmul.mubr.bf16.gmra.mrb[0].mxu0 %v8614
        %v8682 = vpop.f32.mrb[0].mxu0
        %v8683 = vadd.f32 0.0, %v8682
        %v8684 = vpop.f32.mrb[0].mxu0
        %v8685 = vpop.f32.mrb[0].mxu0
        %v8686 = vadd.f32 0.0, %v8685
        %v8687 = vpop.f32.mrb[0].mxu0
        %8688 = vmatprep.mubr.bf16.mxu0 %v8617
        %8689 = vmatmul.mubr.bf16.gmra.mrb[0].mxu0 %v8616
        %v8690 = vpop.f32.mrb[0].mxu0
        %v8691 = vadd.f32 0.0, %v8690
        %v8692 = vpop.f32.mrb[0].mxu0
        %v8693 = vpop.f32.mrb[0].mxu0
        %v8694 = vadd.f32 0.0, %v8693
        %v8695 = vpop.f32.mrb[0].mxu0
        %8696 = vmatprep.mubr.bf16.mxu0 %v8619
        %8697 = vmatmul.mubr.bf16.gmra.mrb[0].mxu0 %v8618
        %v8698 = vpop.f32.mrb[0].mxu0
        %v8699 = vadd.f32 0.0, %v8698
        %v8700 = vpop.f32.mrb[0].mxu0
        %v8701 = vpop.f32.mrb[0].mxu0
        %v8702 = vadd.f32 0.0, %v8701
        %v8703 = vpop.f32.mrb[0].mxu0
        %8704 = vmatprep.mubr.bf16.mxu0 %v8621
        %8705 = vmatmul.mubr.bf16.gmra.mrb[0].mxu0 %v8620
        %v8706 = vpop.f32.mrb[0].mxu0
        %v8707 = vadd.f32 0.0, %v8706
        %v8708 = vpop.f32.mrb[0].mxu0
        %v8709 = vpop.f32.mrb[0].mxu0
        %v8710 = vadd.f32 0.0, %v8709
        %v8711 = vpop.f32.mrb[0].mxu0
        %8712 = vmatprep.mubr.bf16.mxu0 %v8623
        %8713 = vmatmul.mubr.bf16.gmra.mrb[0].mxu0 %v8622
        %v8714 = vpop.f32.mrb[0].mxu0
        %v8715 = vadd.f32 0.0, %v8714
        %v8716 = vpop.f32.mrb[0].mxu0
        %v8717 = vpop.f32.mrb[0].mxu0
        %v8718 = vadd.f32 0.0, %v8717
        %v8719 = vpop.f32.mrb[0].mxu0
        %8720 = vdwg.mxu0
        %v8721 = vpack.c.bf16 %v8662, %v8659
        %v8722 = vpack.c.bf16 %v8670, %v8667
        %v8723 = vpack.c.bf16 %v8678, %v8675
        %v8724 = vpack.c.bf16 %v8686, %v8683
        %v8725 = vpack.c.bf16 %v8694, %v8691
        %v8726 = vpack.c.bf16 %v8702, %v8699
        %v8727 = vpack.c.bf16 %v8710, %v8707
        %v8728 = vpack.c.bf16 %v8718, %v8715
        %v8729 = vld [vmem:[#allocation11 + $0x300] sm:$0xff]
        %v8730 = vld [vmem:[#allocation11 + $0x308] sm:$0xff]
        %v8731 = vld [vmem:[#allocation11 + $0x310] sm:$0xff]
        %v8732 = vld [vmem:[#allocation11 + $0x318] sm:$0xff]
        %v8733 = vld [vmem:[#allocation11 + $0x320] sm:$0xff]
        %v8734 = vld [vmem:[#allocation11 + $0x328] sm:$0xff]
        %v8735 = vld [vmem:[#allocation11 + $0x330] sm:$0xff]
        %v8736 = vld [vmem:[#allocation11 + $0x338] sm:$0xff]
        %v8737 = vld [vmem:[#allocation11 + $0x340] sm:$0xff]
        %v8738 = vld [vmem:[#allocation11 + $0x348] sm:$0xff]
        %v8739 = vld [vmem:[#allocation11 + $0x350] sm:$0xff]
        %v8740 = vld [vmem:[#allocation11 + $0x358] sm:$0xff]
        %v8741 = vld [vmem:[#allocation11 + $0x360] sm:$0xff]
        %v8742 = vld [vmem:[#allocation11 + $0x368] sm:$0xff]
        %v8743 = vld [vmem:[#allocation11 + $0x370] sm:$0xff]
        %v8744 = vld [vmem:[#allocation11 + $0x378] sm:$0xff]
        %v8745 = vld [vmem:[#allocation11 + $0x380] sm:$0xff]
        %v8746 = vld [vmem:[#allocation11 + $0x388] sm:$0xff]
        %v8747 = vld [vmem:[#allocation11 + $0x390] sm:$0xff]
        %v8748 = vld [vmem:[#allocation11 + $0x398] sm:$0xff]
        %v8749 = vld [vmem:[#allocation11 + $0x3a0] sm:$0xff]
        %v8750 = vld [vmem:[#allocation11 + $0x3a8] sm:$0xff]
        %v8751 = vld [vmem:[#allocation11 + $0x3b0] sm:$0xff]
        %v8752 = vld [vmem:[#allocation11 + $0x3b8] sm:$0xff]
        %v8753 = vld [vmem:[#allocation11 + $0x3c0] sm:$0xff]
        %v8754 = vld [vmem:[#allocation11 + $0x3c8] sm:$0xff]
        %v8755 = vld [vmem:[#allocation11 + $0x3d0] sm:$0xff]
        %v8756 = vld [vmem:[#allocation11 + $0x3d8] sm:$0xff]
        %v8757 = vld [vmem:[#allocation11 + $0x3e0] sm:$0xff]
        %v8758 = vld [vmem:[#allocation11 + $0x3e8] sm:$0xff]
        %v8759 = vld [vmem:[#allocation11 + $0x3f0] sm:$0xff]
        %v8760 = vld [vmem:[#allocation11 + $0x3f8] sm:$0xff]
        %v8793 = vunpack.c.l.b16 %v8729
        %v8794 = vunpack.c.h.b16 %v8729
        %v8795 = vunpack.c.l.b16 %v8730
        %v8796 = vunpack.c.h.b16 %v8730
        %v8797 = vunpack.c.l.b16 %v8731
        %v8798 = vunpack.c.h.b16 %v8731
        %v8799 = vunpack.c.l.b16 %v8732
        %v8800 = vunpack.c.h.b16 %v8732
        %v8801 = vunpack.c.l.b16 %v8733
        %v8802 = vunpack.c.h.b16 %v8733
        %v8803 = vunpack.c.l.b16 %v8734
        %v8804 = vunpack.c.h.b16 %v8734
        %v8805 = vunpack.c.l.b16 %v8735
        %v8806 = vunpack.c.h.b16 %v8735
        %v8807 = vunpack.c.l.b16 %v8736
        %v8808 = vunpack.c.h.b16 %v8736
        %v8809 = vunpack.c.l.b16 %v8737
        %v8810 = vunpack.c.h.b16 %v8737
        %v8811 = vunpack.c.l.b16 %v8738
        %v8812 = vunpack.c.h.b16 %v8738
        %v8813 = vunpack.c.l.b16 %v8739
        %v8814 = vunpack.c.h.b16 %v8739
        %v8815 = vunpack.c.l.b16 %v8740
        %v8816 = vunpack.c.h.b16 %v8740
        %v8817 = vunpack.c.l.b16 %v8741
        %v8818 = vunpack.c.h.b16 %v8741
        %v8819 = vunpack.c.l.b16 %v8742
        %v8820 = vunpack.c.h.b16 %v8742
        %v8821 = vunpack.c.l.b16 %v8743
        %v8822 = vunpack.c.h.b16 %v8743
        %v8823 = vunpack.c.l.b16 %v8744
        %v8824 = vunpack.c.h.b16 %v8744
        %v8825 = vunpack.c.l.b16 %v8745
        %v8826 = vunpack.c.h.b16 %v8745
        %v8827 = vunpack.c.l.b16 %v8746
        %v8828 = vunpack.c.h.b16 %v8746
        %v8829 = vunpack.c.l.b16 %v8747
        %v8830 = vunpack.c.h.b16 %v8747
        %v8831 = vunpack.c.l.b16 %v8748
        %v8832 = vunpack.c.h.b16 %v8748
        %v8833 = vunpack.c.l.b16 %v8749
        %v8834 = vunpack.c.h.b16 %v8749
        %v8835 = vunpack.c.l.b16 %v8750
        %v8836 = vunpack.c.h.b16 %v8750
        %v8837 = vunpack.c.l.b16 %v8751
        %v8838 = vunpack.c.h.b16 %v8751
        %v8839 = vunpack.c.l.b16 %v8752
        %v8840 = vunpack.c.h.b16 %v8752
        %v8841 = vunpack.c.l.b16 %v8753
        %v8842 = vunpack.c.h.b16 %v8753
        %v8843 = vunpack.c.l.b16 %v8754
        %v8844 = vunpack.c.h.b16 %v8754
        %v8845 = vunpack.c.l.b16 %v8755
        %v8846 = vunpack.c.h.b16 %v8755
        %v8847 = vunpack.c.l.b16 %v8756
        %v8848 = vunpack.c.h.b16 %v8756
        %v8849 = vunpack.c.l.b16 %v8757
        %v8850 = vunpack.c.h.b16 %v8757
        %v8851 = vunpack.c.l.b16 %v8758
        %v8852 = vunpack.c.h.b16 %v8758
        %v8853 = vunpack.c.l.b16 %v8759
        %v8854 = vunpack.c.h.b16 %v8759
        %v8855 = vunpack.c.l.b16 %v8760
        %v8856 = vunpack.c.h.b16 %v8760
        %v8857 = vpack.c.b16 %v8797, %v8793
        %v8858 = vpack.c.b16 %v8798, %v8794
        %v8859 = vpack.c.b16 %v8799, %v8795
        %v8860 = vpack.c.b16 %v8800, %v8796
        %v8861 = vpack.c.b16 %v8805, %v8801
        %v8862 = vpack.c.b16 %v8806, %v8802
        %v8863 = vpack.c.b16 %v8807, %v8803
        %v8864 = vpack.c.b16 %v8808, %v8804
        %v8865 = vpack.c.b16 %v8813, %v8809
        %v8866 = vpack.c.b16 %v8814, %v8810
        %v8867 = vpack.c.b16 %v8815, %v8811
        %v8868 = vpack.c.b16 %v8816, %v8812
        %v8869 = vpack.c.b16 %v8821, %v8817
        %v8870 = vpack.c.b16 %v8822, %v8818
        %v8871 = vpack.c.b16 %v8823, %v8819
        %v8872 = vpack.c.b16 %v8824, %v8820
        %v8873 = vpack.c.b16 %v8829, %v8825
        %v8874 = vpack.c.b16 %v8830, %v8826
        %v8875 = vpack.c.b16 %v8831, %v8827
        %v8876 = vpack.c.b16 %v8832, %v8828
        %v8877 = vpack.c.b16 %v8837, %v8833
        %v8878 = vpack.c.b16 %v8838, %v8834
        %v8879 = vpack.c.b16 %v8839, %v8835
        %v8880 = vpack.c.b16 %v8840, %v8836
        %v8881 = vpack.c.b16 %v8845, %v8841
        %v8882 = vpack.c.b16 %v8846, %v8842
        %v8883 = vpack.c.b16 %v8847, %v8843
        %v8884 = vpack.c.b16 %v8848, %v8844
        %v8885 = vpack.c.b16 %v8853, %v8849
        %v8886 = vpack.c.b16 %v8854, %v8850
        %v8887 = vpack.c.b16 %v8855, %v8851
        %v8888 = vpack.c.b16 %v8856, %v8852
        %8921 = vmatprep.subr.bf16.mxu0 %v8858
        %8922 = vmatpush1.bf16.msra.mxu0 %v8857
        %8923 = vmatprep.subr.bf16.mxu0 %v8862
        %8924 = vmatpush1.bf16.msra.mxu0 %v8861
        %8925 = vmatprep.subr.bf16.mxu0 %v8866
        %8926 = vmatpush1.bf16.msra.mxu0 %v8865
        %8927 = vmatprep.subr.bf16.mxu0 %v8870
        %8928 = vmatpush1.bf16.msra.mxu0 %v8869
        %8929 = vmatprep.subr.bf16.mxu0 %v8874
        %8930 = vmatpush1.bf16.msra.mxu0 %v8873
        %8931 = vmatprep.subr.bf16.mxu0 %v8878
        %8932 = vmatpush1.bf16.msra.mxu0 %v8877
        %8933 = vmatprep.subr.bf16.mxu0 %v8882
        %8934 = vmatpush1.bf16.msra.mxu0 %v8881
        %8935 = vmatprep.subr.bf16.mxu0 %v8886
        %8936 = vmatpush1.bf16.msra.mxu0 %v8885
        %8937 = vmatprep.subr.bf16.mxu0 0
        %8938 = vmatpush1.bf16.msra.mxu0 0
        %8939 = vmatprep.subr.bf16.mxu0 0
        %8940 = vmatpush1.bf16.msra.mxu0 0
        %8941 = vmatprep.subr.bf16.mxu0 0
        %8942 = vmatpush1.bf16.msra.mxu0 0
        %8943 = vmatprep.subr.bf16.mxu0 0
        %8944 = vmatpush1.bf16.msra.mxu0 0
        %8945 = vmatprep.subr.bf16.mxu0 0
        %8946 = vmatpush1.bf16.msra.mxu0 0
        %8947 = vmatprep.subr.bf16.mxu0 0
        %8948 = vmatpush1.bf16.msra.mxu0 0
        %8949 = vmatprep.subr.bf16.mxu0 0
        %8950 = vmatpush1.bf16.msra.mxu0 0
        %8951 = vmatprep.subr.bf16.mxu0 0
        %8952 = vmatpush1.bf16.msra.mxu0 0
        %8953 = vmatprep.mubr.bf16.mxu0 0
        %8954 = vmatmul.mubr.bf16.gmra.mrb[0].mxu0 %v8721
        %v8955 = vpop.f32.mrb[0].mxu0
        %v8956 = vadd.f32 0.0, %v8955
        %v8957 = vpop.f32.mrb[0].mxu0
        %v8958 = vadd.f32 0.0, %v8957
        %v8959 = vpop.f32.mrb[0].mxu0
        %v8960 = vadd.f32 0.0, %v8959
        %v8961 = vpop.f32.mrb[0].mxu0
        %v8962 = vadd.f32 0.0, %v8961
        %8963 = vmatprep.mubr.bf16.mxu0 0
        %8964 = vmatmul.mubr.bf16.gmra.mrb[0].mxu0 %v8722
        %v8965 = vpop.f32.mrb[0].mxu0
        %v8966 = vadd.f32 0.0, %v8965
        %v8967 = vpop.f32.mrb[0].mxu0
        %v8968 = vadd.f32 0.0, %v8967
        %v8969 = vpop.f32.mrb[0].mxu0
        %v8970 = vadd.f32 0.0, %v8969
        %v8971 = vpop.f32.mrb[0].mxu0
        %v8972 = vadd.f32 0.0, %v8971
        %8973 = vmatprep.mubr.bf16.mxu0 0
        %8974 = vmatmul.mubr.bf16.gmra.mrb[0].mxu0 %v8723
        %v8975 = vpop.f32.mrb[0].mxu0
        %v8976 = vadd.f32 0.0, %v8975
        %v8977 = vpop.f32.mrb[0].mxu0
        %v8978 = vadd.f32 0.0, %v8977
        %v8979 = vpop.f32.mrb[0].mxu0
        %v8980 = vadd.f32 0.0, %v8979
        %v8981 = vpop.f32.mrb[0].mxu0
        %v8982 = vadd.f32 0.0, %v8981
        %8983 = vmatprep.mubr.bf16.mxu0 0
        %8984 = vmatmul.mubr.bf16.gmra.mrb[0].mxu0 %v8724
        %v8985 = vpop.f32.mrb[0].mxu0
        %v8986 = vadd.f32 0.0, %v8985
        %v8987 = vpop.f32.mrb[0].mxu0
        %v8988 = vadd.f32 0.0, %v8987
        %v8989 = vpop.f32.mrb[0].mxu0
        %v8990 = vadd.f32 0.0, %v8989
        %v8991 = vpop.f32.mrb[0].mxu0
        %v8992 = vadd.f32 0.0, %v8991
        %8993 = vmatprep.mubr.bf16.mxu0 0
        %8994 = vmatmul.mubr.bf16.gmra.mrb[0].mxu0 %v8725
        %v8995 = vpop.f32.mrb[0].mxu0
        %v8996 = vadd.f32 0.0, %v8995
        %v8997 = vpop.f32.mrb[0].mxu0
        %v8998 = vadd.f32 0.0, %v8997
        %v8999 = vpop.f32.mrb[0].mxu0
        %v9000 = vadd.f32 0.0, %v8999
        %v9001 = vpop.f32.mrb[0].mxu0
        %v9002 = vadd.f32 0.0, %v9001
        %9003 = vmatprep.mubr.bf16.mxu0 0
        %9004 = vmatmul.mubr.bf16.gmra.mrb[0].mxu0 %v8726
        %v9005 = vpop.f32.mrb[0].mxu0
        %v9006 = vadd.f32 0.0, %v9005
        %v9007 = vpop.f32.mrb[0].mxu0
        %v9008 = vadd.f32 0.0, %v9007
        %v9009 = vpop.f32.mrb[0].mxu0
        %v9010 = vadd.f32 0.0, %v9009
        %v9011 = vpop.f32.mrb[0].mxu0
        %v9012 = vadd.f32 0.0, %v9011
        %9013 = vmatprep.mubr.bf16.mxu0 0
        %9014 = vmatmul.mubr.bf16.gmra.mrb[0].mxu0 %v8727
        %v9015 = vpop.f32.mrb[0].mxu0
        %v9016 = vadd.f32 0.0, %v9015
        %v9017 = vpop.f32.mrb[0].mxu0
        %v9018 = vadd.f32 0.0, %v9017
        %v9019 = vpop.f32.mrb[0].mxu0
        %v9020 = vadd.f32 0.0, %v9019
        %v9021 = vpop.f32.mrb[0].mxu0
        %v9022 = vadd.f32 0.0, %v9021
        %9023 = vmatprep.mubr.bf16.mxu0 0
        %9024 = vmatmul.mubr.bf16.gmra.mrb[0].mxu0 %v8728
        %v9025 = vpop.f32.mrb[0].mxu0
        %v9026 = vadd.f32 0.0, %v9025
        %v9027 = vpop.f32.mrb[0].mxu0
        %v9028 = vadd.f32 0.0, %v9027
        %v9029 = vpop.f32.mrb[0].mxu0
        %v9030 = vadd.f32 0.0, %v9029
        %v9031 = vpop.f32.mrb[0].mxu0
        %v9032 = vadd.f32 0.0, %v9031
        %9033 = vdwg.mxu0
        %9034 = vmatprep.subr.bf16.mxu0 %v8860
        %9035 = vmatpush1.bf16.msra.mxu0 %v8859
        %9036 = vmatprep.subr.bf16.mxu0 %v8864
        %9037 = vmatpush1.bf16.msra.mxu0 %v8863
        %9038 = vmatprep.subr.bf16.mxu0 %v8868
        %9039 = vmatpush1.bf16.msra.mxu0 %v8867
        %9040 = vmatprep.subr.bf16.mxu0 %v8872
        %9041 = vmatpush1.bf16.msra.mxu0 %v8871
        %9042 = vmatprep.subr.bf16.mxu0 %v8876
        %9043 = vmatpush1.bf16.msra.mxu0 %v8875
        %9044 = vmatprep.subr.bf16.mxu0 %v8880
        %9045 = vmatpush1.bf16.msra.mxu0 %v8879
        %9046 = vmatprep.subr.bf16.mxu0 %v8884
        %9047 = vmatpush1.bf16.msra.mxu0 %v8883
        %9048 = vmatprep.subr.bf16.mxu0 %v8888
        %9049 = vmatpush1.bf16.msra.mxu0 %v8887
        %9050 = vmatprep.subr.bf16.mxu0 0
        %9051 = vmatpush1.bf16.msra.mxu0 0
        %9052 = vmatprep.subr.bf16.mxu0 0
        %9053 = vmatpush1.bf16.msra.mxu0 0
        %9054 = vmatprep.subr.bf16.mxu0 0
        %9055 = vmatpush1.bf16.msra.mxu0 0
        %9056 = vmatprep.subr.bf16.mxu0 0
        %9057 = vmatpush1.bf16.msra.mxu0 0
        %9058 = vmatprep.subr.bf16.mxu0 0
        %9059 = vmatpush1.bf16.msra.mxu0 0
        %9060 = vmatprep.subr.bf16.mxu0 0
        %9061 = vmatpush1.bf16.msra.mxu0 0
        %9062 = vmatprep.subr.bf16.mxu0 0
        %9063 = vmatpush1.bf16.msra.mxu0 0
        %9064 = vmatprep.subr.bf16.mxu0 0
        %9065 = vmatpush1.bf16.msra.mxu0 0
        %9066 = vmatprep.mubr.bf16.mxu0 0
        %9067 = vmatmul.mubr.bf16.gmra.mrb[0].mxu0 %v8721
        %v9068 = vpop.f32.mrb[0].mxu0
        %v9069 = vadd.f32 0.0, %v9068
        %v9070 = vpop.f32.mrb[0].mxu0
        %v9071 = vadd.f32 0.0, %v9070
        %v9072 = vpop.f32.mrb[0].mxu0
        %v9073 = vadd.f32 0.0, %v9072
        %v9074 = vpop.f32.mrb[0].mxu0
        %v9075 = vadd.f32 0.0, %v9074
        %9076 = vmatprep.mubr.bf16.mxu0 0
        %9077 = vmatmul.mubr.bf16.gmra.mrb[0].mxu0 %v8722
        %v9078 = vpop.f32.mrb[0].mxu0
        %v9079 = vadd.f32 0.0, %v9078
        %v9080 = vpop.f32.mrb[0].mxu0
        %v9081 = vadd.f32 0.0, %v9080
        %v9082 = vpop.f32.mrb[0].mxu0
        %v9083 = vadd.f32 0.0, %v9082
        %v9084 = vpop.f32.mrb[0].mxu0
        %v9085 = vadd.f32 0.0, %v9084
        %9086 = vmatprep.mubr.bf16.mxu0 0
        %9087 = vmatmul.mubr.bf16.gmra.mrb[0].mxu0 %v8723
        %v9088 = vpop.f32.mrb[0].mxu0
        %v9089 = vadd.f32 0.0, %v9088
        %v9090 = vpop.f32.mrb[0].mxu0
        %v9091 = vadd.f32 0.0, %v9090
        %v9092 = vpop.f32.mrb[0].mxu0
        %v9093 = vadd.f32 0.0, %v9092
        %v9094 = vpop.f32.mrb[0].mxu0
        %v9095 = vadd.f32 0.0, %v9094
        %9096 = vmatprep.mubr.bf16.mxu0 0
        %9097 = vmatmul.mubr.bf16.gmra.mrb[0].mxu0 %v8724
        %v9098 = vpop.f32.mrb[0].mxu0
        %v9099 = vadd.f32 0.0, %v9098
        %v9100 = vpop.f32.mrb[0].mxu0
        %v9101 = vadd.f32 0.0, %v9100
        %v9102 = vpop.f32.mrb[0].mxu0
        %v9103 = vadd.f32 0.0, %v9102
        %v9104 = vpop.f32.mrb[0].mxu0
        %v9105 = vadd.f32 0.0, %v9104
        %9106 = vmatprep.mubr.bf16.mxu0 0
        %9107 = vmatmul.mubr.bf16.gmra.mrb[0].mxu0 %v8725
        %v9108 = vpop.f32.mrb[0].mxu0
        %v9109 = vadd.f32 0.0, %v9108
        %v9110 = vpop.f32.mrb[0].mxu0
        %v9111 = vadd.f32 0.0, %v9110
        %v9112 = vpop.f32.mrb[0].mxu0
        %v9113 = vadd.f32 0.0, %v9112
        %v9114 = vpop.f32.mrb[0].mxu0
        %v9115 = vadd.f32 0.0, %v9114
        %9116 = vmatprep.mubr.bf16.mxu0 0
        %9117 = vmatmul.mubr.bf16.gmra.mrb[0].mxu0 %v8726
        %v9118 = vpop.f32.mrb[0].mxu0
        %v9119 = vadd.f32 0.0, %v9118
        %v9120 = vpop.f32.mrb[0].mxu0
        %v9121 = vadd.f32 0.0, %v9120
        %v9122 = vpop.f32.mrb[0].mxu0
        %v9123 = vadd.f32 0.0, %v9122
        %v9124 = vpop.f32.mrb[0].mxu0
        %v9125 = vadd.f32 0.0, %v9124
        %9126 = vmatprep.mubr.bf16.mxu0 0
        %9127 = vmatmul.mubr.bf16.gmra.mrb[0].mxu0 %v8727
        %v9128 = vpop.f32.mrb[0].mxu0
        %v9129 = vadd.f32 0.0, %v9128
        %v9130 = vpop.f32.mrb[0].mxu0
        %v9131 = vadd.f32 0.0, %v9130
        %v9132 = vpop.f32.mrb[0].mxu0
        %v9133 = vadd.f32 0.0, %v9132
        %v9134 = vpop.f32.mrb[0].mxu0
        %v9135 = vadd.f32 0.0, %v9134
        %9136 = vmatprep.mubr.bf16.mxu0 0
        %9137 = vmatmul.mubr.bf16.gmra.mrb[0].mxu0 %v8728
        %v9138 = vpop.f32.mrb[0].mxu0
        %v9139 = vadd.f32 0.0, %v9138
        %v9140 = vpop.f32.mrb[0].mxu0
        %v9141 = vadd.f32 0.0, %v9140
        %v9142 = vpop.f32.mrb[0].mxu0
        %v9143 = vadd.f32 0.0, %v9142
        %v9144 = vpop.f32.mrb[0].mxu0
        %v9145 = vadd.f32 0.0, %v9144
        %9146 = vdwg.mxu0
        %v9147 = vadd.f32 %v8191, %v8956
        %v9148 = vadd.f32 %v8192, %v8958
        %v9149 = vadd.f32 %v8193, %v9069
        %v9150 = vadd.f32 %v8194, %v9071
        %v9151 = vadd.f32 %v8195, %v8960
        %v9152 = vadd.f32 %v8196, %v8962
        %v9153 = vadd.f32 %v8197, %v9073
        %v9154 = vadd.f32 %v8198, %v9075
        %v9155 = vadd.f32 %v8199, %v8966
        %v9156 = vadd.f32 %v8200, %v8968
        %v9157 = vadd.f32 %v8201, %v9079
        %v9158 = vadd.f32 %v8202, %v9081
        %v9159 = vadd.f32 %v8203, %v8970
        %v9160 = vadd.f32 %v8204, %v8972
        %v9161 = vadd.f32 %v8205, %v9083
        %v9162 = vadd.f32 %v8206, %v9085
        %v9163 = vadd.f32 %v8207, %v8976
        %v9164 = vadd.f32 %v8208, %v8978
        %v9165 = vadd.f32 %v8209, %v9089
        %v9166 = vadd.f32 %v8210, %v9091
        %v9167 = vadd.f32 %v8211, %v8980
        %v9168 = vadd.f32 %v8212, %v8982
        %v9169 = vadd.f32 %v8213, %v9093
        %v9170 = vadd.f32 %v8214, %v9095
        %v9171 = vadd.f32 %v8215, %v8986
        %v9172 = vadd.f32 %v8216, %v8988
        %v9173 = vadd.f32 %v8217, %v9099
        %v9174 = vadd.f32 %v8218, %v9101
        %v9175 = vadd.f32 %v8219, %v8990
        %v9176 = vadd.f32 %v8220, %v8992
        %v9177 = vadd.f32 %v8221, %v9103
        %v9178 = vadd.f32 %v8222, %v9105
        %v9179 = vadd.f32 %v8223, %v8996
        %v9180 = vadd.f32 %v8224, %v8998
        %v9181 = vadd.f32 %v8225, %v9109
        %v9182 = vadd.f32 %v8226, %v9111
        %v9183 = vadd.f32 %v8227, %v9000
        %v9184 = vadd.f32 %v8228, %v9002
        %v9185 = vadd.f32 %v8229, %v9113
        %v9186 = vadd.f32 %v8230, %v9115
        %v9187 = vadd.f32 %v8231, %v9006
        %v9188 = vadd.f32 %v8232, %v9008
        %v9189 = vadd.f32 %v8233, %v9119
        %v9190 = vadd.f32 %v8234, %v9121
        %v9191 = vadd.f32 %v8235, %v9010
        %v9192 = vadd.f32 %v8236, %v9012
        %v9193 = vadd.f32 %v8237, %v9123
        %v9194 = vadd.f32 %v8238, %v9125
        %v9195 = vadd.f32 %v8239, %v9016
        %v9196 = vadd.f32 %v8240, %v9018
        %v9197 = vadd.f32 %v8241, %v9129
        %v9198 = vadd.f32 %v8242, %v9131
        %v9199 = vadd.f32 %v8243, %v9020
        %v9200 = vadd.f32 %v8244, %v9022
        %v9201 = vadd.f32 %v8245, %v9133
        %v9202 = vadd.f32 %v8246, %v9135
        %v9203 = vadd.f32 %v8247, %v9026
        %v9204 = vadd.f32 %v8248, %v9028
        %v9205 = vadd.f32 %v8249, %v9139
        %v9206 = vadd.f32 %v8250, %v9141
        %v9207 = vadd.f32 %v8251, %v9030
        %v9208 = vadd.f32 %v8252, %v9032
        %v9209 = vadd.f32 %v8253, %v9143
        %v9210 = vadd.f32 %v8254, %v9145
        %v9211 = vadd.f32 %v509, %v9147
        %v9212 = vadd.f32 %v510, %v9148
        %v9213 = vadd.f32 %v511, %v9149
        %v9214 = vadd.f32 %v512, %v9150
        %v9215 = vadd.f32 %v513, %v9151
        %v9216 = vadd.f32 %v514, %v9152
        %v9217 = vadd.f32 %v515, %v9153
        %v9218 = vadd.f32 %v516, %v9154
        %v9219 = vadd.f32 %v517, %v9155
        %v9220 = vadd.f32 %v518, %v9156
        %v9221 = vadd.f32 %v519, %v9157
        %v9222 = vadd.f32 %v520, %v9158
        %v9223 = vadd.f32 %v521, %v9159
        %v9224 = vadd.f32 %v522, %v9160
        %v9225 = vadd.f32 %v523, %v9161
        %v9226 = vadd.f32 %v524, %v9162
        %v9227 = vadd.f32 %v525, %v9163
        %v9228 = vadd.f32 %v526, %v9164
        %v9229 = vadd.f32 %v527, %v9165
        %v9230 = vadd.f32 %v528, %v9166
        %v9231 = vadd.f32 %v529, %v9167
        %v9232 = vadd.f32 %v530, %v9168
        %v9233 = vadd.f32 %v531, %v9169
        %v9234 = vadd.f32 %v532, %v9170
        %v9235 = vadd.f32 %v533, %v9171
        %v9236 = vadd.f32 %v534, %v9172
        %v9237 = vadd.f32 %v535, %v9173
        %v9238 = vadd.f32 %v536, %v9174
        %v9239 = vadd.f32 %v537, %v9175
        %v9240 = vadd.f32 %v538, %v9176
        %v9241 = vadd.f32 %v539, %v9177
        %v9242 = vadd.f32 %v540, %v9178
        %v9243 = vadd.f32 %v541, %v9179
        %v9244 = vadd.f32 %v542, %v9180
        %v9245 = vadd.f32 %v543, %v9181
        %v9246 = vadd.f32 %v544, %v9182
        %v9247 = vadd.f32 %v545, %v9183
        %v9248 = vadd.f32 %v546, %v9184
        %v9249 = vadd.f32 %v547, %v9185
        %v9250 = vadd.f32 %v548, %v9186
        %v9251 = vadd.f32 %v549, %v9187
        %v9252 = vadd.f32 %v550, %v9188
        %v9253 = vadd.f32 %v551, %v9189
        %v9254 = vadd.f32 %v552, %v9190
        %v9255 = vadd.f32 %v553, %v9191
        %v9256 = vadd.f32 %v554, %v9192
        %v9257 = vadd.f32 %v555, %v9193
        %v9258 = vadd.f32 %v556, %v9194
        %v9259 = vadd.f32 %v557, %v9195
        %v9260 = vadd.f32 %v558, %v9196
        %v9261 = vadd.f32 %v559, %v9197
        %v9262 = vadd.f32 %v560, %v9198
        %v9263 = vadd.f32 %v561, %v9199
        %v9264 = vadd.f32 %v562, %v9200
        %v9265 = vadd.f32 %v563, %v9201
        %v9266 = vadd.f32 %v564, %v9202
        %v9267 = vadd.f32 %v565, %v9203
        %v9268 = vadd.f32 %v566, %v9204
        %v9269 = vadd.f32 %v567, %v9205
        %v9270 = vadd.f32 %v568, %v9206
        %v9271 = vadd.f32 %v569, %v9207
        %v9272 = vadd.f32 %v570, %v9208
        %v9273 = vadd.f32 %v571, %v9209
        %v9274 = vadd.f32 %v572, %v9210
        %v9275 = vld [vmem:[%s9] sm:$0xf]
        %v9277 = vlaneseq
        %v9278 = vshrl.u32 %v9277, 7
        %v9279 = vsub.s32 0, %v9278
        %v9280 = vrot.slane %v9275, %v9279
        %v9281 = vlaneseq
        %v9282 = vshrl.u32 %v9281, 7
        %v9283 = vsub.s32 1, %v9282
        %v9284 = vrot.slane %v9275, %v9283
        %v9285 = vlaneseq
        %v9286 = vshrl.u32 %v9285, 7
        %v9287 = vsub.s32 2, %v9286
        %v9288 = vrot.slane %v9275, %v9287
        %v9289 = vlaneseq
        %v9290 = vshrl.u32 %v9289, 7
        %v9291 = vsub.s32 3, %v9290
        %v9292 = vrot.slane %v9275, %v9291
        %v9297 = vadd.f32 %v9211, %v9280
        %v9298 = vadd.f32 %v9212, %v9284
        %v9299 = vadd.f32 %v9213, %v9288
        %v9300 = vadd.f32 %v9214, %v9292
        %v9301 = vadd.f32 %v9215, %v9280
        %v9302 = vadd.f32 %v9216, %v9284
        %v9303 = vadd.f32 %v9217, %v9288
        %v9304 = vadd.f32 %v9218, %v9292
        %v9305 = vadd.f32 %v9219, %v9280
        %v9306 = vadd.f32 %v9220, %v9284
        %v9307 = vadd.f32 %v9221, %v9288
        %v9308 = vadd.f32 %v9222, %v9292
        %v9309 = vadd.f32 %v9223, %v9280
        %v9310 = vadd.f32 %v9224, %v9284
        %v9311 = vadd.f32 %v9225, %v9288
        %v9312 = vadd.f32 %v9226, %v9292
        %v9313 = vadd.f32 %v9227, %v9280
        %v9314 = vadd.f32 %v9228, %v9284
        %v9315 = vadd.f32 %v9229, %v9288
        %v9316 = vadd.f32 %v9230, %v9292
        %v9317 = vadd.f32 %v9231, %v9280
        %v9318 = vadd.f32 %v9232, %v9284
        %v9319 = vadd.f32 %v9233, %v9288
        %v9320 = vadd.f32 %v9234, %v9292
        %v9321 = vadd.f32 %v9235, %v9280
        %v9322 = vadd.f32 %v9236, %v9284
        %v9323 = vadd.f32 %v9237, %v9288
        %v9324 = vadd.f32 %v9238, %v9292
        %v9325 = vadd.f32 %v9239, %v9280
        %v9326 = vadd.f32 %v9240, %v9284
        %v9327 = vadd.f32 %v9241, %v9288
        %v9328 = vadd.f32 %v9242, %v9292
        %v9329 = vadd.f32 %v9243, %v9280
        %v9330 = vadd.f32 %v9244, %v9284
        %v9331 = vadd.f32 %v9245, %v9288
        %v9332 = vadd.f32 %v9246, %v9292
        %v9333 = vadd.f32 %v9247, %v9280
        %v9334 = vadd.f32 %v9248, %v9284
        %v9335 = vadd.f32 %v9249, %v9288
        %v9336 = vadd.f32 %v9250, %v9292
        %v9337 = vadd.f32 %v9251, %v9280
        %v9338 = vadd.f32 %v9252, %v9284
        %v9339 = vadd.f32 %v9253, %v9288
        %v9340 = vadd.f32 %v9254, %v9292
        %v9341 = vadd.f32 %v9255, %v9280
        %v9342 = vadd.f32 %v9256, %v9284
        %v9343 = vadd.f32 %v9257, %v9288
        %v9344 = vadd.f32 %v9258, %v9292
        %v9345 = vadd.f32 %v9259, %v9280
        %v9346 = vadd.f32 %v9260, %v9284
        %v9347 = vadd.f32 %v9261, %v9288
        %v9348 = vadd.f32 %v9262, %v9292
        %v9349 = vadd.f32 %v9263, %v9280
        %v9350 = vadd.f32 %v9264, %v9284
        %v9351 = vadd.f32 %v9265, %v9288
        %v9352 = vadd.f32 %v9266, %v9292
        %v9353 = vadd.f32 %v9267, %v9280
        %v9354 = vadd.f32 %v9268, %v9284
        %v9355 = vadd.f32 %v9269, %v9288
        %v9356 = vadd.f32 %v9270, %v9292
        %v9357 = vadd.f32 %v9271, %v9280
        %v9358 = vadd.f32 %v9272, %v9284
        %v9359 = vadd.f32 %v9273, %v9288
        %v9360 = vadd.f32 %v9274, %v9292
        %v9361 = vadd.f32 %v9297, %v9298
        %v9362 = vadd.f32 %v9361, %v9299
        %v9363 = vadd.f32 %v9362, %v9300
        %9364 = vadd.xlane.f32.xlu0 %v9363
        %v9365 = vpop.xlane.xlu0 %9364
        %v9366 = vadd.f32 %v9301, %v9302
        %v9367 = vadd.f32 %v9366, %v9303
        %v9368 = vadd.f32 %v9367, %v9304
        %9369 = vadd.xlane.f32.xlu0 %v9368
        %v9370 = vpop.xlane.xlu0 %9369
        %v9371 = vadd.f32 %v9305, %v9306
        %v9372 = vadd.f32 %v9371, %v9307
        %v9373 = vadd.f32 %v9372, %v9308
        %9374 = vadd.xlane.f32.xlu0 %v9373
        %v9375 = vpop.xlane.xlu0 %9374
        %v9376 = vadd.f32 %v9309, %v9310
        %v9377 = vadd.f32 %v9376, %v9311
        %v9378 = vadd.f32 %v9377, %v9312
        %9379 = vadd.xlane.f32.xlu0 %v9378
        %v9380 = vpop.xlane.xlu0 %9379
        %v9381 = vadd.f32 %v9313, %v9314
        %v9382 = vadd.f32 %v9381, %v9315
        %v9383 = vadd.f32 %v9382, %v9316
        %9384 = vadd.xlane.f32.xlu0 %v9383
        %v9385 = vpop.xlane.xlu0 %9384
        %v9386 = vadd.f32 %v9317, %v9318
        %v9387 = vadd.f32 %v9386, %v9319
        %v9388 = vadd.f32 %v9387, %v9320
        %9389 = vadd.xlane.f32.xlu0 %v9388
        %v9390 = vpop.xlane.xlu0 %9389
        %v9391 = vadd.f32 %v9321, %v9322
        %v9392 = vadd.f32 %v9391, %v9323
        %v9393 = vadd.f32 %v9392, %v9324
        %9394 = vadd.xlane.f32.xlu0 %v9393
        %v9395 = vpop.xlane.xlu0 %9394
        %v9396 = vadd.f32 %v9325, %v9326
        %v9397 = vadd.f32 %v9396, %v9327
        %v9398 = vadd.f32 %v9397, %v9328
        %9399 = vadd.xlane.f32.xlu0 %v9398
        %v9400 = vpop.xlane.xlu0 %9399
        %v9401 = vadd.f32 %v9329, %v9330
        %v9402 = vadd.f32 %v9401, %v9331
        %v9403 = vadd.f32 %v9402, %v9332
        %9404 = vadd.xlane.f32.xlu0 %v9403
        %v9405 = vpop.xlane.xlu0 %9404
        %v9406 = vadd.f32 %v9333, %v9334
        %v9407 = vadd.f32 %v9406, %v9335
        %v9408 = vadd.f32 %v9407, %v9336
        %9409 = vadd.xlane.f32.xlu0 %v9408
        %v9410 = vpop.xlane.xlu0 %9409
        %v9411 = vadd.f32 %v9337, %v9338
        %v9412 = vadd.f32 %v9411, %v9339
        %v9413 = vadd.f32 %v9412, %v9340
        %9414 = vadd.xlane.f32.xlu0 %v9413
        %v9415 = vpop.xlane.xlu0 %9414
        %v9416 = vadd.f32 %v9341, %v9342
        %v9417 = vadd.f32 %v9416, %v9343
        %v9418 = vadd.f32 %v9417, %v9344
        %9419 = vadd.xlane.f32.xlu0 %v9418
        %v9420 = vpop.xlane.xlu0 %9419
        %v9421 = vadd.f32 %v9345, %v9346
        %v9422 = vadd.f32 %v9421, %v9347
        %v9423 = vadd.f32 %v9422, %v9348
        %9424 = vadd.xlane.f32.xlu0 %v9423
        %v9425 = vpop.xlane.xlu0 %9424
        %v9426 = vadd.f32 %v9349, %v9350
        %v9427 = vadd.f32 %v9426, %v9351
        %v9428 = vadd.f32 %v9427, %v9352
        %9429 = vadd.xlane.f32.xlu0 %v9428
        %v9430 = vpop.xlane.xlu0 %9429
        %v9431 = vadd.f32 %v9353, %v9354
        %v9432 = vadd.f32 %v9431, %v9355
        %v9433 = vadd.f32 %v9432, %v9356
        %9434 = vadd.xlane.f32.xlu0 %v9433
        %v9435 = vpop.xlane.xlu0 %9434
        %v9436 = vadd.f32 %v9357, %v9358
        %v9437 = vadd.f32 %v9436, %v9359
        %v9438 = vadd.f32 %v9437, %v9360
        %9439 = vadd.xlane.f32.xlu0 %v9438
        %v9440 = vpop.xlane.xlu0 %9439
        %v9441 = vrcp.pop 512.0
        %v9442 = vmul.f32 %v9365, %v9441
        %v9443 = vmul.f32 %v9370, %v9441
        %v9444 = vmul.f32 %v9375, %v9441
        %v9445 = vmul.f32 %v9380, %v9441
        %v9446 = vmul.f32 %v9385, %v9441
        %v9447 = vmul.f32 %v9390, %v9441
        %v9448 = vmul.f32 %v9395, %v9441
        %v9449 = vmul.f32 %v9400, %v9441
        %v9450 = vmul.f32 %v9405, %v9441
        %v9451 = vmul.f32 %v9410, %v9441
        %v9452 = vmul.f32 %v9415, %v9441
        %v9453 = vmul.f32 %v9420, %v9441
        %v9454 = vmul.f32 %v9425, %v9441
        %v9455 = vmul.f32 %v9430, %v9441
        %v9456 = vmul.f32 %v9435, %v9441
        %v9457 = vmul.f32 %v9440, %v9441
        %v9458 = vsub.f32 %v9297, %v9442
        %v9459 = vsub.f32 %v9298, %v9442
        %v9460 = vsub.f32 %v9299, %v9442
        %v9461 = vsub.f32 %v9300, %v9442
        %v9462 = vsub.f32 %v9301, %v9443
        %v9463 = vsub.f32 %v9302, %v9443
        %v9464 = vsub.f32 %v9303, %v9443
        %v9465 = vsub.f32 %v9304, %v9443
        %v9466 = vsub.f32 %v9305, %v9444
        %v9467 = vsub.f32 %v9306, %v9444
        %v9468 = vsub.f32 %v9307, %v9444
        %v9469 = vsub.f32 %v9308, %v9444
        %v9470 = vsub.f32 %v9309, %v9445
        %v9471 = vsub.f32 %v9310, %v9445
        %v9472 = vsub.f32 %v9311, %v9445
        %v9473 = vsub.f32 %v9312, %v9445
        %v9474 = vsub.f32 %v9313, %v9446
        %v9475 = vsub.f32 %v9314, %v9446
        %v9476 = vsub.f32 %v9315, %v9446
        %v9477 = vsub.f32 %v9316, %v9446
        %v9478 = vsub.f32 %v9317, %v9447
        %v9479 = vsub.f32 %v9318, %v9447
        %v9480 = vsub.f32 %v9319, %v9447
        %v9481 = vsub.f32 %v9320, %v9447
        %v9482 = vsub.f32 %v9321, %v9448
        %v9483 = vsub.f32 %v9322, %v9448
        %v9484 = vsub.f32 %v9323, %v9448
        %v9485 = vsub.f32 %v9324, %v9448
        %v9486 = vsub.f32 %v9325, %v9449
        %v9487 = vsub.f32 %v9326, %v9449
        %v9488 = vsub.f32 %v9327, %v9449
        %v9489 = vsub.f32 %v9328, %v9449
        %v9490 = vsub.f32 %v9329, %v9450
        %v9491 = vsub.f32 %v9330, %v9450
        %v9492 = vsub.f32 %v9331, %v9450
        %v9493 = vsub.f32 %v9332, %v9450
        %v9494 = vsub.f32 %v9333, %v9451
        %v9495 = vsub.f32 %v9334, %v9451
        %v9496 = vsub.f32 %v9335, %v9451
        %v9497 = vsub.f32 %v9336, %v9451
        %v9498 = vsub.f32 %v9337, %v9452
        %v9499 = vsub.f32 %v9338, %v9452
        %v9500 = vsub.f32 %v9339, %v9452
        %v9501 = vsub.f32 %v9340, %v9452
        %v9502 = vsub.f32 %v9341, %v9453
        %v9503 = vsub.f32 %v9342, %v9453
        %v9504 = vsub.f32 %v9343, %v9453
        %v9505 = vsub.f32 %v9344, %v9453
        %v9506 = vsub.f32 %v9345, %v9454
        %v9507 = vsub.f32 %v9346, %v9454
        %v9508 = vsub.f32 %v9347, %v9454
        %v9509 = vsub.f32 %v9348, %v9454
        %v9510 = vsub.f32 %v9349, %v9455
        %v9511 = vsub.f32 %v9350, %v9455
        %v9512 = vsub.f32 %v9351, %v9455
        %v9513 = vsub.f32 %v9352, %v9455
        %v9514 = vsub.f32 %v9353, %v9456
        %v9515 = vsub.f32 %v9354, %v9456
        %v9516 = vsub.f32 %v9355, %v9456
        %v9517 = vsub.f32 %v9356, %v9456
        %v9518 = vsub.f32 %v9357, %v9457
        %v9519 = vsub.f32 %v9358, %v9457
        %v9520 = vsub.f32 %v9359, %v9457
        %v9521 = vsub.f32 %v9360, %v9457
        %v9522 = vmul.f32 %v9458, %v9458
        %v9523 = vmul.f32 %v9459, %v9459
        %v9524 = vmul.f32 %v9460, %v9460
        %v9525 = vmul.f32 %v9461, %v9461
        %v9526 = vmul.f32 %v9462, %v9462
        %v9527 = vmul.f32 %v9463, %v9463
        %v9528 = vmul.f32 %v9464, %v9464
        %v9529 = vmul.f32 %v9465, %v9465
        %v9530 = vmul.f32 %v9466, %v9466
        %v9531 = vmul.f32 %v9467, %v9467
        %v9532 = vmul.f32 %v9468, %v9468
        %v9533 = vmul.f32 %v9469, %v9469
        %v9534 = vmul.f32 %v9470, %v9470
        %v9535 = vmul.f32 %v9471, %v9471
        %v9536 = vmul.f32 %v9472, %v9472
        %v9537 = vmul.f32 %v9473, %v9473
        %v9538 = vmul.f32 %v9474, %v9474
        %v9539 = vmul.f32 %v9475, %v9475
        %v9540 = vmul.f32 %v9476, %v9476
        %v9541 = vmul.f32 %v9477, %v9477
        %v9542 = vmul.f32 %v9478, %v9478
        %v9543 = vmul.f32 %v9479, %v9479
        %v9544 = vmul.f32 %v9480, %v9480
        %v9545 = vmul.f32 %v9481, %v9481
        %v9546 = vmul.f32 %v9482, %v9482
        %v9547 = vmul.f32 %v9483, %v9483
        %v9548 = vmul.f32 %v9484, %v9484
        %v9549 = vmul.f32 %v9485, %v9485
        %v9550 = vmul.f32 %v9486, %v9486
        %v9551 = vmul.f32 %v9487, %v9487
        %v9552 = vmul.f32 %v9488, %v9488
        %v9553 = vmul.f32 %v9489, %v9489
        %v9554 = vmul.f32 %v9490, %v9490
        %v9555 = vmul.f32 %v9491, %v9491
        %v9556 = vmul.f32 %v9492, %v9492
        %v9557 = vmul.f32 %v9493, %v9493
        %v9558 = vmul.f32 %v9494, %v9494
        %v9559 = vmul.f32 %v9495, %v9495
        %v9560 = vmul.f32 %v9496, %v9496
        %v9561 = vmul.f32 %v9497, %v9497
        %v9562 = vmul.f32 %v9498, %v9498
        %v9563 = vmul.f32 %v9499, %v9499
        %v9564 = vmul.f32 %v9500, %v9500
        %v9565 = vmul.f32 %v9501, %v9501
        %v9566 = vmul.f32 %v9502, %v9502
        %v9567 = vmul.f32 %v9503, %v9503
        %v9568 = vmul.f32 %v9504, %v9504
        %v9569 = vmul.f32 %v9505, %v9505
        %v9570 = vmul.f32 %v9506, %v9506
        %v9571 = vmul.f32 %v9507, %v9507
        %v9572 = vmul.f32 %v9508, %v9508
        %v9573 = vmul.f32 %v9509, %v9509
        %v9574 = vmul.f32 %v9510, %v9510
        %v9575 = vmul.f32 %v9511, %v9511
        %v9576 = vmul.f32 %v9512, %v9512
        %v9577 = vmul.f32 %v9513, %v9513
        %v9578 = vmul.f32 %v9514, %v9514
        %v9579 = vmul.f32 %v9515, %v9515
        %v9580 = vmul.f32 %v9516, %v9516
        %v9581 = vmul.f32 %v9517, %v9517
        %v9582 = vmul.f32 %v9518, %v9518
        %v9583 = vmul.f32 %v9519, %v9519
        %v9584 = vmul.f32 %v9520, %v9520
        %v9585 = vmul.f32 %v9521, %v9521
        %v9586 = vadd.f32 %v9522, %v9523
        %v9587 = vadd.f32 %v9586, %v9524
        %v9588 = vadd.f32 %v9587, %v9525
        %9589 = vadd.xlane.f32.xlu0 %v9588
        %v9590 = vpop.xlane.xlu0 %9589
        %v9591 = vadd.f32 %v9526, %v9527
        %v9592 = vadd.f32 %v9591, %v9528
        %v9593 = vadd.f32 %v9592, %v9529
        %9594 = vadd.xlane.f32.xlu0 %v9593
        %v9595 = vpop.xlane.xlu0 %9594
        %v9596 = vadd.f32 %v9530, %v9531
        %v9597 = vadd.f32 %v9596, %v9532
        %v9598 = vadd.f32 %v9597, %v9533
        %9599 = vadd.xlane.f32.xlu0 %v9598
        %v9600 = vpop.xlane.xlu0 %9599
        %v9601 = vadd.f32 %v9534, %v9535
        %v9602 = vadd.f32 %v9601, %v9536
        %v9603 = vadd.f32 %v9602, %v9537
        %9604 = vadd.xlane.f32.xlu0 %v9603
        %v9605 = vpop.xlane.xlu0 %9604
        %v9606 = vadd.f32 %v9538, %v9539
        %v9607 = vadd.f32 %v9606, %v9540
        %v9608 = vadd.f32 %v9607, %v9541
        %9609 = vadd.xlane.f32.xlu0 %v9608
        %v9610 = vpop.xlane.xlu0 %9609
        %v9611 = vadd.f32 %v9542, %v9543
        %v9612 = vadd.f32 %v9611, %v9544
        %v9613 = vadd.f32 %v9612, %v9545
        %9614 = vadd.xlane.f32.xlu0 %v9613
        %v9615 = vpop.xlane.xlu0 %9614
        %v9616 = vadd.f32 %v9546, %v9547
        %v9617 = vadd.f32 %v9616, %v9548
        %v9618 = vadd.f32 %v9617, %v9549
        %9619 = vadd.xlane.f32.xlu0 %v9618
        %v9620 = vpop.xlane.xlu0 %9619
        %v9621 = vadd.f32 %v9550, %v9551
        %v9622 = vadd.f32 %v9621, %v9552
        %v9623 = vadd.f32 %v9622, %v9553
        %9624 = vadd.xlane.f32.xlu0 %v9623
        %v9625 = vpop.xlane.xlu0 %9624
        %v9626 = vadd.f32 %v9554, %v9555
        %v9627 = vadd.f32 %v9626, %v9556
        %v9628 = vadd.f32 %v9627, %v9557
        %9629 = vadd.xlane.f32.xlu0 %v9628
        %v9630 = vpop.xlane.xlu0 %9629
        %v9631 = vadd.f32 %v9558, %v9559
        %v9632 = vadd.f32 %v9631, %v9560
        %v9633 = vadd.f32 %v9632, %v9561
        %9634 = vadd.xlane.f32.xlu0 %v9633
        %v9635 = vpop.xlane.xlu0 %9634
        %v9636 = vadd.f32 %v9562, %v9563
        %v9637 = vadd.f32 %v9636, %v9564
        %v9638 = vadd.f32 %v9637, %v9565
        %9639 = vadd.xlane.f32.xlu0 %v9638
        %v9640 = vpop.xlane.xlu0 %9639
        %v9641 = vadd.f32 %v9566, %v9567
        %v9642 = vadd.f32 %v9641, %v9568
        %v9643 = vadd.f32 %v9642, %v9569
        %9644 = vadd.xlane.f32.xlu0 %v9643
        %v9645 = vpop.xlane.xlu0 %9644
        %v9646 = vadd.f32 %v9570, %v9571
        %v9647 = vadd.f32 %v9646, %v9572
        %v9648 = vadd.f32 %v9647, %v9573
        %9649 = vadd.xlane.f32.xlu0 %v9648
        %v9650 = vpop.xlane.xlu0 %9649
        %v9651 = vadd.f32 %v9574, %v9575
        %v9652 = vadd.f32 %v9651, %v9576
        %v9653 = vadd.f32 %v9652, %v9577
        %9654 = vadd.xlane.f32.xlu0 %v9653
        %v9655 = vpop.xlane.xlu0 %9654
        %v9656 = vadd.f32 %v9578, %v9579
        %v9657 = vadd.f32 %v9656, %v9580
        %v9658 = vadd.f32 %v9657, %v9581
        %9659 = vadd.xlane.f32.xlu0 %v9658
        %v9660 = vpop.xlane.xlu0 %9659
        %v9661 = vadd.f32 %v9582, %v9583
        %v9662 = vadd.f32 %v9661, %v9584
        %v9663 = vadd.f32 %v9662, %v9585
        %9664 = vadd.xlane.f32.xlu0 %v9663
        %v9665 = vpop.xlane.xlu0 %9664
        %v9666 = vmul.f32 %v9590, %v9441
        %v9667 = vmul.f32 %v9595, %v9441
        %v9668 = vmul.f32 %v9600, %v9441
        %v9669 = vmul.f32 %v9605, %v9441
        %v9670 = vmul.f32 %v9610, %v9441
        %v9671 = vmul.f32 %v9615, %v9441
        %v9672 = vmul.f32 %v9620, %v9441
        %v9673 = vmul.f32 %v9625, %v9441
        %v9674 = vmul.f32 %v9630, %v9441
        %v9675 = vmul.f32 %v9635, %v9441
        %v9676 = vmul.f32 %v9640, %v9441
        %v9677 = vmul.f32 %v9645, %v9441
        %v9678 = vmul.f32 %v9650, %v9441
        %v9679 = vmul.f32 %v9655, %v9441
        %v9680 = vmul.f32 %v9660, %v9441
        %v9681 = vmul.f32 %v9665, %v9441
        %v9682 = vadd.f32 %v9666, 1e-05
        %v9683 = vadd.f32 %v9667, 1e-05
        %v9684 = vadd.f32 %v9668, 1e-05
        %v9685 = vadd.f32 %v9669, 1e-05
        %v9686 = vadd.f32 %v9670, 1e-05
        %v9687 = vadd.f32 %v9671, 1e-05
        %v9688 = vadd.f32 %v9672, 1e-05
        %v9689 = vadd.f32 %v9673, 1e-05
        %v9690 = vadd.f32 %v9674, 1e-05
        %v9691 = vadd.f32 %v9675, 1e-05
        %v9692 = vadd.f32 %v9676, 1e-05
        %v9693 = vadd.f32 %v9677, 1e-05
        %v9694 = vadd.f32 %v9678, 1e-05
        %v9695 = vadd.f32 %v9679, 1e-05
        %v9696 = vadd.f32 %v9680, 1e-05
        %v9697 = vadd.f32 %v9681, 1e-05
        %v9698 = vrsqrt.pop %v9682
        %v9699 = vrsqrt.pop %v9683
        %v9700 = vrsqrt.pop %v9684
        %v9701 = vrsqrt.pop %v9685
        %v9702 = vrsqrt.pop %v9686
        %v9703 = vrsqrt.pop %v9687
        %v9704 = vrsqrt.pop %v9688
        %v9705 = vrsqrt.pop %v9689
        %v9706 = vrsqrt.pop %v9690
        %v9707 = vrsqrt.pop %v9691
        %v9708 = vrsqrt.pop %v9692
        %v9709 = vrsqrt.pop %v9693
        %v9710 = vrsqrt.pop %v9694
        %v9711 = vrsqrt.pop %v9695
        %v9712 = vrsqrt.pop %v9696
        %v9713 = vrsqrt.pop %v9697
        %v9714 = vmul.f32 %v9458, %v9698
        %v9715 = vmul.f32 %v9459, %v9698
        %v9716 = vmul.f32 %v9460, %v9698
        %v9717 = vmul.f32 %v9461, %v9698
        %v9718 = vmul.f32 %v9462, %v9699
        %v9719 = vmul.f32 %v9463, %v9699
        %v9720 = vmul.f32 %v9464, %v9699
        %v9721 = vmul.f32 %v9465, %v9699
        %v9722 = vmul.f32 %v9466, %v9700
        %v9723 = vmul.f32 %v9467, %v9700
        %v9724 = vmul.f32 %v9468, %v9700
        %v9725 = vmul.f32 %v9469, %v9700
        %v9726 = vmul.f32 %v9470, %v9701
        %v9727 = vmul.f32 %v9471, %v9701
        %v9728 = vmul.f32 %v9472, %v9701
        %v9729 = vmul.f32 %v9473, %v9701
        %v9730 = vmul.f32 %v9474, %v9702
        %v9731 = vmul.f32 %v9475, %v9702
        %v9732 = vmul.f32 %v9476, %v9702
        %v9733 = vmul.f32 %v9477, %v9702
        %v9734 = vmul.f32 %v9478, %v9703
        %v9735 = vmul.f32 %v9479, %v9703
        %v9736 = vmul.f32 %v9480, %v9703
        %v9737 = vmul.f32 %v9481, %v9703
        %v9738 = vmul.f32 %v9482, %v9704
        %v9739 = vmul.f32 %v9483, %v9704
        %v9740 = vmul.f32 %v9484, %v9704
        %v9741 = vmul.f32 %v9485, %v9704
        %v9742 = vmul.f32 %v9486, %v9705
        %v9743 = vmul.f32 %v9487, %v9705
        %v9744 = vmul.f32 %v9488, %v9705
        %v9745 = vmul.f32 %v9489, %v9705
        %v9746 = vmul.f32 %v9490, %v9706
        %v9747 = vmul.f32 %v9491, %v9706
        %v9748 = vmul.f32 %v9492, %v9706
        %v9749 = vmul.f32 %v9493, %v9706
        %v9750 = vmul.f32 %v9494, %v9707
        %v9751 = vmul.f32 %v9495, %v9707
        %v9752 = vmul.f32 %v9496, %v9707
        %v9753 = vmul.f32 %v9497, %v9707
        %v9754 = vmul.f32 %v9498, %v9708
        %v9755 = vmul.f32 %v9499, %v9708
        %v9756 = vmul.f32 %v9500, %v9708
        %v9757 = vmul.f32 %v9501, %v9708
        %v9758 = vmul.f32 %v9502, %v9709
        %v9759 = vmul.f32 %v9503, %v9709
        %v9760 = vmul.f32 %v9504, %v9709
        %v9761 = vmul.f32 %v9505, %v9709
        %v9762 = vmul.f32 %v9506, %v9710
        %v9763 = vmul.f32 %v9507, %v9710
        %v9764 = vmul.f32 %v9508, %v9710
        %v9765 = vmul.f32 %v9509, %v9710
        %v9766 = vmul.f32 %v9510, %v9711
        %v9767 = vmul.f32 %v9511, %v9711
        %v9768 = vmul.f32 %v9512, %v9711
        %v9769 = vmul.f32 %v9513, %v9711
        %v9770 = vmul.f32 %v9514, %v9712
        %v9771 = vmul.f32 %v9515, %v9712
        %v9772 = vmul.f32 %v9516, %v9712
        %v9773 = vmul.f32 %v9517, %v9712
        %v9774 = vmul.f32 %v9518, %v9713
        %v9775 = vmul.f32 %v9519, %v9713
        %v9776 = vmul.f32 %v9520, %v9713
        %v9777 = vmul.f32 %v9521, %v9713
        %v9778 = vld [vmem:[%s10] sm:$0xf]
        %v9780 = vlaneseq
        %v9781 = vshrl.u32 %v9780, 7
        %v9782 = vsub.s32 0, %v9781
        %v9783 = vrot.slane %v9778, %v9782
        %v9784 = vlaneseq
        %v9785 = vshrl.u32 %v9784, 7
        %v9786 = vsub.s32 1, %v9785
        %v9787 = vrot.slane %v9778, %v9786
        %v9788 = vlaneseq
        %v9789 = vshrl.u32 %v9788, 7
        %v9790 = vsub.s32 2, %v9789
        %v9791 = vrot.slane %v9778, %v9790
        %v9792 = vlaneseq
        %v9793 = vshrl.u32 %v9792, 7
        %v9794 = vsub.s32 3, %v9793
        %v9795 = vrot.slane %v9778, %v9794
        %v9800 = vmul.f32 %v9714, %v9783
        %v9801 = vmul.f32 %v9715, %v9787
        %v9802 = vmul.f32 %v9716, %v9791
        %v9803 = vmul.f32 %v9717, %v9795
        %v9804 = vmul.f32 %v9718, %v9783
        %v9805 = vmul.f32 %v9719, %v9787
        %v9806 = vmul.f32 %v9720, %v9791
        %v9807 = vmul.f32 %v9721, %v9795
        %v9808 = vmul.f32 %v9722, %v9783
        %v9809 = vmul.f32 %v9723, %v9787
        %v9810 = vmul.f32 %v9724, %v9791
        %v9811 = vmul.f32 %v9725, %v9795
        %v9812 = vmul.f32 %v9726, %v9783
        %v9813 = vmul.f32 %v9727, %v9787
        %v9814 = vmul.f32 %v9728, %v9791
        %v9815 = vmul.f32 %v9729, %v9795
        %v9816 = vmul.f32 %v9730, %v9783
        %v9817 = vmul.f32 %v9731, %v9787
        %v9818 = vmul.f32 %v9732, %v9791
        %v9819 = vmul.f32 %v9733, %v9795
        %v9820 = vmul.f32 %v9734, %v9783
        %v9821 = vmul.f32 %v9735, %v9787
        %v9822 = vmul.f32 %v9736, %v9791
        %v9823 = vmul.f32 %v9737, %v9795
        %v9824 = vmul.f32 %v9738, %v9783
        %v9825 = vmul.f32 %v9739, %v9787
        %v9826 = vmul.f32 %v9740, %v9791
        %v9827 = vmul.f32 %v9741, %v9795
        %v9828 = vmul.f32 %v9742, %v9783
        %v9829 = vmul.f32 %v9743, %v9787
        %v9830 = vmul.f32 %v9744, %v9791
        %v9831 = vmul.f32 %v9745, %v9795
        %v9832 = vmul.f32 %v9746, %v9783
        %v9833 = vmul.f32 %v9747, %v9787
        %v9834 = vmul.f32 %v9748, %v9791
        %v9835 = vmul.f32 %v9749, %v9795
        %v9836 = vmul.f32 %v9750, %v9783
        %v9837 = vmul.f32 %v9751, %v9787
        %v9838 = vmul.f32 %v9752, %v9791
        %v9839 = vmul.f32 %v9753, %v9795
        %v9840 = vmul.f32 %v9754, %v9783
        %v9841 = vmul.f32 %v9755, %v9787
        %v9842 = vmul.f32 %v9756, %v9791
        %v9843 = vmul.f32 %v9757, %v9795
        %v9844 = vmul.f32 %v9758, %v9783
        %v9845 = vmul.f32 %v9759, %v9787
        %v9846 = vmul.f32 %v9760, %v9791
        %v9847 = vmul.f32 %v9761, %v9795
        %v9848 = vmul.f32 %v9762, %v9783
        %v9849 = vmul.f32 %v9763, %v9787
        %v9850 = vmul.f32 %v9764, %v9791
        %v9851 = vmul.f32 %v9765, %v9795
        %v9852 = vmul.f32 %v9766, %v9783
        %v9853 = vmul.f32 %v9767, %v9787
        %v9854 = vmul.f32 %v9768, %v9791
        %v9855 = vmul.f32 %v9769, %v9795
        %v9856 = vmul.f32 %v9770, %v9783
        %v9857 = vmul.f32 %v9771, %v9787
        %v9858 = vmul.f32 %v9772, %v9791
        %v9859 = vmul.f32 %v9773, %v9795
        %v9860 = vmul.f32 %v9774, %v9783
        %v9861 = vmul.f32 %v9775, %v9787
        %v9862 = vmul.f32 %v9776, %v9791
        %v9863 = vmul.f32 %v9777, %v9795
        %v9864 = vld [vmem:[%s11] sm:$0xf]
        %v9866 = vlaneseq
        %v9867 = vshrl.u32 %v9866, 7
        %v9868 = vsub.s32 0, %v9867
        %v9869 = vrot.slane %v9864, %v9868
        %v9870 = vlaneseq
        %v9871 = vshrl.u32 %v9870, 7
        %v9872 = vsub.s32 1, %v9871
        %v9873 = vrot.slane %v9864, %v9872
        %v9874 = vlaneseq
        %v9875 = vshrl.u32 %v9874, 7
        %v9876 = vsub.s32 2, %v9875
        %v9877 = vrot.slane %v9864, %v9876
        %v9878 = vlaneseq
        %v9879 = vshrl.u32 %v9878, 7
        %v9880 = vsub.s32 3, %v9879
        %v9881 = vrot.slane %v9864, %v9880
        %v9886 = vadd.f32 %v9800, %v9869
        %v9887 = vadd.f32 %v9801, %v9873
        %v9888 = vadd.f32 %v9802, %v9877
        %v9889 = vadd.f32 %v9803, %v9881
        %v9890 = vadd.f32 %v9804, %v9869
        %v9891 = vadd.f32 %v9805, %v9873
        %v9892 = vadd.f32 %v9806, %v9877
        %v9893 = vadd.f32 %v9807, %v9881
        %v9894 = vadd.f32 %v9808, %v9869
        %v9895 = vadd.f32 %v9809, %v9873
        %v9896 = vadd.f32 %v9810, %v9877
        %v9897 = vadd.f32 %v9811, %v9881
        %v9898 = vadd.f32 %v9812, %v9869
        %v9899 = vadd.f32 %v9813, %v9873
        %v9900 = vadd.f32 %v9814, %v9877
        %v9901 = vadd.f32 %v9815, %v9881
        %v9902 = vadd.f32 %v9816, %v9869
        %v9903 = vadd.f32 %v9817, %v9873
        %v9904 = vadd.f32 %v9818, %v9877
        %v9905 = vadd.f32 %v9819, %v9881
        %v9906 = vadd.f32 %v9820, %v9869
        %v9907 = vadd.f32 %v9821, %v9873
        %v9908 = vadd.f32 %v9822, %v9877
        %v9909 = vadd.f32 %v9823, %v9881
        %v9910 = vadd.f32 %v9824, %v9869
        %v9911 = vadd.f32 %v9825, %v9873
        %v9912 = vadd.f32 %v9826, %v9877
        %v9913 = vadd.f32 %v9827, %v9881
        %v9914 = vadd.f32 %v9828, %v9869
        %v9915 = vadd.f32 %v9829, %v9873
        %v9916 = vadd.f32 %v9830, %v9877
        %v9917 = vadd.f32 %v9831, %v9881
        %v9918 = vadd.f32 %v9832, %v9869
        %v9919 = vadd.f32 %v9833, %v9873
        %v9920 = vadd.f32 %v9834, %v9877
        %v9921 = vadd.f32 %v9835, %v9881
        %v9922 = vadd.f32 %v9836, %v9869
        %v9923 = vadd.f32 %v9837, %v9873
        %v9924 = vadd.f32 %v9838, %v9877
        %v9925 = vadd.f32 %v9839, %v9881
        %v9926 = vadd.f32 %v9840, %v9869
        %v9927 = vadd.f32 %v9841, %v9873
        %v9928 = vadd.f32 %v9842, %v9877
        %v9929 = vadd.f32 %v9843, %v9881
        %v9930 = vadd.f32 %v9844, %v9869
        %v9931 = vadd.f32 %v9845, %v9873
        %v9932 = vadd.f32 %v9846, %v9877
        %v9933 = vadd.f32 %v9847, %v9881
        %v9934 = vadd.f32 %v9848, %v9869
        %v9935 = vadd.f32 %v9849, %v9873
        %v9936 = vadd.f32 %v9850, %v9877
        %v9937 = vadd.f32 %v9851, %v9881
        %v9938 = vadd.f32 %v9852, %v9869
        %v9939 = vadd.f32 %v9853, %v9873
        %v9940 = vadd.f32 %v9854, %v9877
        %v9941 = vadd.f32 %v9855, %v9881
        %v9942 = vadd.f32 %v9856, %v9869
        %v9943 = vadd.f32 %v9857, %v9873
        %v9944 = vadd.f32 %v9858, %v9877
        %v9945 = vadd.f32 %v9859, %v9881
        %v9946 = vadd.f32 %v9860, %v9869
        %v9947 = vadd.f32 %v9861, %v9873
        %v9948 = vadd.f32 %v9862, %v9877
        %v9949 = vadd.f32 %v9863, %v9881
        %9950 = vst [vmem:[%s505] sm:$0xff] %v9886
        %9951 = vst [vmem:[%s505 + $0x8] sm:$0xff] %v9887
        %9952 = vst [vmem:[%s505 + $0x10] sm:$0xff] %v9888
        %9953 = vst [vmem:[%s505 + $0x18] sm:$0xff] %v9889
        %9954 = vst [vmem:[%s505 + $0x20] sm:$0xff] %v9890
        %9955 = vst [vmem:[%s505 + $0x28] sm:$0xff] %v9891
        %9956 = vst [vmem:[%s505 + $0x30] sm:$0xff] %v9892
        %9957 = vst [vmem:[%s505 + $0x38] sm:$0xff] %v9893
        %9958 = vst [vmem:[%s505 + $0x40] sm:$0xff] %v9894
        %9959 = vst [vmem:[%s505 + $0x48] sm:$0xff] %v9895
        %9960 = vst [vmem:[%s505 + $0x50] sm:$0xff] %v9896
        %9961 = vst [vmem:[%s505 + $0x58] sm:$0xff] %v9897
        %9962 = vst [vmem:[%s505 + $0x60] sm:$0xff] %v9898
        %9963 = vst [vmem:[%s505 + $0x68] sm:$0xff] %v9899
        %9964 = vst [vmem:[%s505 + $0x70] sm:$0xff] %v9900
        %9965 = vst [vmem:[%s505 + $0x78] sm:$0xff] %v9901
        %9966 = vst [vmem:[%s505 + $0x80] sm:$0xff] %v9902
        %9967 = vst [vmem:[%s505 + $0x88] sm:$0xff] %v9903
        %9968 = vst [vmem:[%s505 + $0x90] sm:$0xff] %v9904
        %9969 = vst [vmem:[%s505 + $0x98] sm:$0xff] %v9905
        %9970 = vst [vmem:[%s505 + $0xa0] sm:$0xff] %v9906
        %9971 = vst [vmem:[%s505 + $0xa8] sm:$0xff] %v9907
        %9972 = vst [vmem:[%s505 + $0xb0] sm:$0xff] %v9908
        %9973 = vst [vmem:[%s505 + $0xb8] sm:$0xff] %v9909
        %9974 = vst [vmem:[%s505 + $0xc0] sm:$0xff] %v9910
        %9975 = vst [vmem:[%s505 + $0xc8] sm:$0xff] %v9911
        %9976 = vst [vmem:[%s505 + $0xd0] sm:$0xff] %v9912
        %9977 = vst [vmem:[%s505 + $0xd8] sm:$0xff] %v9913
        %9978 = vst [vmem:[%s505 + $0xe0] sm:$0xff] %v9914
        %9979 = vst [vmem:[%s505 + $0xe8] sm:$0xff] %v9915
        %9980 = vst [vmem:[%s505 + $0xf0] sm:$0xff] %v9916
        %9981 = vst [vmem:[%s505 + $0xf8] sm:$0xff] %v9917
        %9982 = vst [vmem:[%s505 + $0x100] sm:$0xff] %v9918
        %9983 = vst [vmem:[%s505 + $0x108] sm:$0xff] %v9919
        %9984 = vst [vmem:[%s505 + $0x110] sm:$0xff] %v9920
        %9985 = vst [vmem:[%s505 + $0x118] sm:$0xff] %v9921
        %9986 = vst [vmem:[%s505 + $0x120] sm:$0xff] %v9922
        %9987 = vst [vmem:[%s505 + $0x128] sm:$0xff] %v9923
        %9988 = vst [vmem:[%s505 + $0x130] sm:$0xff] %v9924
        %9989 = vst [vmem:[%s505 + $0x138] sm:$0xff] %v9925
        %9990 = vst [vmem:[%s505 + $0x140] sm:$0xff] %v9926
        %9991 = vst [vmem:[%s505 + $0x148] sm:$0xff] %v9927
        %9992 = vst [vmem:[%s505 + $0x150] sm:$0xff] %v9928
        %9993 = vst [vmem:[%s505 + $0x158] sm:$0xff] %v9929
        %9994 = vst [vmem:[%s505 + $0x160] sm:$0xff] %v9930
        %9995 = vst [vmem:[%s505 + $0x168] sm:$0xff] %v9931
        %9996 = vst [vmem:[%s505 + $0x170] sm:$0xff] %v9932
        %9997 = vst [vmem:[%s505 + $0x178] sm:$0xff] %v9933
        %9998 = vst [vmem:[%s505 + $0x180] sm:$0xff] %v9934
        %9999 = vst [vmem:[%s505 + $0x188] sm:$0xff] %v9935
        %10000 = vst [vmem:[%s505 + $0x190] sm:$0xff] %v9936
        %10001 = vst [vmem:[%s505 + $0x198] sm:$0xff] %v9937
        %10002 = vst [vmem:[%s505 + $0x1a0] sm:$0xff] %v9938
        %10003 = vst [vmem:[%s505 + $0x1a8] sm:$0xff] %v9939
        %10004 = vst [vmem:[%s505 + $0x1b0] sm:$0xff] %v9940
        %10005 = vst [vmem:[%s505 + $0x1b8] sm:$0xff] %v9941
        %10006 = vst [vmem:[%s505 + $0x1c0] sm:$0xff] %v9942
        %10007 = vst [vmem:[%s505 + $0x1c8] sm:$0xff] %v9943
        %10008 = vst [vmem:[%s505 + $0x1d0] sm:$0xff] %v9944
        %10009 = vst [vmem:[%s505 + $0x1d8] sm:$0xff] %v9945
        %10010 = vst [vmem:[%s505 + $0x1e0] sm:$0xff] %v9946
        %10011 = vst [vmem:[%s505 + $0x1e8] sm:$0xff] %v9947
        %10012 = vst [vmem:[%s505 + $0x1f0] sm:$0xff] %v9948
        %10013 = vst [vmem:[%s505 + $0x1f8] sm:$0xff] %v9949
        %s10014 = sand.u32 %s297, 1
        %s10015 = scalar_lea.sflag [#allocation4], %s10014
        %s10016 = sand.u32 %s297, 1
        %s10017 = smul.addr %s10016, 512
        %s10018 = scalar_lea.vmem [#allocation13], %s10017
        // Predicated region
        $region93: #{tpu_custom_call.1} parent=67 // pred_check
          %p10019 = pneg %p307
        $region94: #{tpu_custom_call.1} parent=67 // pred_check_branch
          %10021 = sbr.rel (%p10019) target = $region96
        $region95: #{tpu_custom_call.1} parent=67 // pred_region
          %s10022 = smul.u32 16, %s32
          %s10024 = ssub.s32 8192, 8192
          %10025 = vsyncadd %s10015, %s10024
          %s10026 = smul.addr %s10022, 4
          %s10027 = smul.addr %s10026, 128
          %s10028 = scalar_lea.hbm %s12, %s10027
          %s10029 = sshll.u32 %s10018, 4
          %s10030 = int_to_ptr.vmem [resolvable:$true] %s10029
          %10035 = dma.vmem_to_hbm [thread:$0]  %s10030, 8192, %s10028, %s10015, 512, 512, 32
        $region96: #{tpu_custom_call.1} parent=67 // pred_fallthru
          _
      $region68: #{tpu_custom_call.1} parent=5 // pred_fallthru
        _
      %p10036 = scmp.le.s32.totalorder 2, %s27
      // Predicated region
      $region97: #{tpu_custom_call.1} parent=5 // pred_check
        %p10037 = pneg %p10036
      $region98: #{tpu_custom_call.1} parent=5 // pred_check_branch
        %10039 = sbr.rel (%p10037) target = $region100
      $region99: #{tpu_custom_call.1} parent=5 // pred_region
        %s10040 = ssub.s32 %s27, 2
        // Predicated region
        $region101: #{tpu_custom_call.1} parent=99 // pred_check
          %p10041 = pneg %p313
        $region102: #{tpu_custom_call.1} parent=99 // pred_check_branch
          %10043 = sbr.rel (%p10041) target = $region104
        $region103: #{tpu_custom_call.1} parent=99 // pred_region
          %s10044 = sand.u32 %s298, 1
          %s10045 = scalar_lea.sflag [#allocation4], %s10044
          %s10046 = sand.u32 %s298, 1
          %s10047 = smul.addr %s10046, 512
          %s10048 = scalar_lea.vmem [#allocation13], %s10047
          %10049 = dma.done %s10045, 8192
        $region104: #{tpu_custom_call.1} parent=99 // pred_fallthru
          _
      $region100: #{tpu_custom_call.1} parent=5 // pred_fallthru
        _
    $region6: #{tpu_custom_call.1} parent=1 // loop_footer
      %s31 = sadd.s32 1, %s27
    $region7: #{tpu_custom_call.1} parent=1 // loop_footer_branch
      %26 = sbr.rel target = $region3
    $region8: #{tpu_custom_call.1} parent=1 // loop_exit
      _
    %10050 = vsyncpa [#allocation3], 1
    %s10051 = scalar_lea.sflag [#allocation3], 1
    %10052 = vsyncpa %s10051, 1
    %10053 = vsyncpa [#allocation6], 1
    %s10054 = scalar_lea.sflag [#allocation6], 1
    %10055 = vsyncpa %s10054, 1
    %10056 = vsyncpa [#allocation9], 1
    %10057 = vsyncpa [#allocation12], 1
    %10058 = vsyncpa [#allocation4], 1
    %s10059 = scalar_lea.sflag [#allocation4], 1
    %10060 = vsyncpa %s10059, 1

</llo_original>
